<compile_context>
chip_gen: v6e
topology: v6e:2x2x1
jax: 0.10.0
libtpu: 0.0.40
codegen_flags: <defaults>
</compile_context>

<pallas_src>
import math
import numpy as np

import jax
import jax.numpy as jnp
from jax.experimental import pallas as pl
from jax.experimental.pallas import tpu as pltpu

SQRT2 = math.sqrt(2.0)
LRELU_SLOPE = 0.2
ROW_TILE_BUDGET = 2 << 20   # ~2 MiB of operands per row tile -> safe under default VMEM limits


# ----------------------------------------------------------------------------
# helpers (plain JAX / python glue)
# ----------------------------------------------------------------------------
def _choose_rows(rows, row_bytes, budget=ROW_TILE_BUDGET):
    """Pick a row-tile size and the padded row count (a multiple of the tile)."""
    cap = max(1, budget // max(1, row_bytes))
    if cap >= rows:
        return rows, rows                       # single tile covering everything
    th = max(8, (cap // 8) * 8)
    nt = -(-rows // th)
    return th, nt * th


def _affine(style, aw, ab):
    # Equalized linear: runtime scale 1/sqrt(fan_in), bias init 1.
    return style @ aw.T * (1.0 / math.sqrt(aw.shape[1])) + ab


def _demod_coeff(w_scaled, s):
    # w_scaled: (Cout, Cin, K, K), s: (N, Cin) -> (N, Cout)
    wmod = w_scaled[None, :, :, :, :] * s[:, None, :, None, None]
    return jax.lax.rsqrt(jnp.sum(wmod * wmod, axis=(2, 3, 4)) + 1e-8)


# ----------------------------------------------------------------------------
# Pallas kernel 1: generic tap-conv (modulated conv as sum of shifted matmuls)
# ----------------------------------------------------------------------------
def make_tapconv_kernel(taps, n_groups, th, wp,
                        use_demod, use_noise, use_bias, use_act):
    """x_ref : (1, 1, (th+gh)*wp, Cin) bf16  flattened, padded input row tile
       w_ref : (ntaps, Cin, Cout)      bf16  one (Cin, Cout) matrix per tap
       out   : (1, n_groups, 1, th*wp, Cout) f32
       Optional fused epilogue: *demod, +noise, +bias, *sqrt(2) + leaky-relu."""
    m2 = th * wp

    def kernel(*refs):
        i = 0
        x_ref = refs[i]; i += 1
        w_ref = refs[i]; i += 1
        d_ref = nz_ref = b_ref = None
        if use_demod:
            d_ref = refs[i]; i += 1
        if use_noise:
            nz_ref = refs[i]; i += 1
        if use_bias:
            b_ref = refs[i]; i += 1
        out_ref = refs[i]

        accs = [None] * n_groups
        for dy, dx, wi, g in taps:                      # static python loop
            s = dy * wp + dx
            slab = x_ref[0, 0, s:s + m2, :]             # (m2, Cin) bf16, in-VMEM patch
            part = jnp.dot(slab, w_ref[wi],
                           preferred_element_type=jnp.float32)   # MXU, f32 accum
            accs[g] = part if accs[g] is None else accs[g] + part

        for g in range(n_groups):
            y = accs[g]                                 # (m2, Cout) f32
            if use_demod:
                y = y * d_ref[0]                        # (1, Cout)
            if use_noise:
                y = y + nz_ref[0]                       # (m2, 1)
            if use_bias:
                y = y + b_ref[...]                      # (1, Cout)
            if use_act:
                y = y * SQRT2
                y = jnp.where(y >= 0.0, y, LRELU_SLOPE * y)
            out_ref[0, g, 0] = y

    return kernel


def run_tapconv(xp, taps, w_stack, out_rows, out_w, n_groups,
                demod=None, noise=None, bias=None, act=False):
    """xp: (N, Hp, Wp, Cin) f32, spatially padded, already modulated by the style.
    Returns (N, n_groups, out_rows, out_w, Cout) f32."""
    N, Hp, Wp, Cin = xp.shape
    ntaps, _, Cout = w_stack.shape
    halo_h = max(t[0] for t in taps)
    halo_w = max(t[1] for t in taps)
    gh = halo_h + (1 if halo_w > 0 else 0)     # extra rows gathered (flat-slice overrun guard)

    use_demod = demod is not None
    use_noise = noise is not None
    use_bias = bias is not None

    row_bytes = Wp * Cin * 2 + Wp * n_groups * Cout * 4
    if use_noise:
        row_bytes += Wp * 128 * 4
    th, rowsp = _choose_rows(out_rows, row_bytes)
    nt = rowsp // th

    need_rows = rowsp + gh
    if need_rows > Hp:
        xp = jnp.pad(xp, ((0, 0), (0, need_rows - Hp), (0, 0), (0, 0)))
    xp = xp.astype(jnp.bfloat16)
    if nt == 1:
        xt = xp[:, None]
    else:  # overlapping row tiles with halo (tiny duplication, avoids HBM im2col)
        xt = jnp.stack([xp[:, i * th:i * th + th + gh] for i in range(nt)], axis=1)
    x_flat = xt.reshape(N, nt, (th + gh) * Wp, Cin)

    inputs = [x_flat, w_stack.astype(jnp.bfloat16)]
    in_specs = [
        pl.BlockSpec((1, 1, (th + gh) * Wp, Cin), lambda n, i: (n, i, 0, 0)),
        pl.BlockSpec((ntaps, Cin, Cout), lambda n, i: (0, 0, 0)),
    ]
    if use_demod:
        inputs.append(demod.reshape(N, 1, Cout).astype(jnp.float32))
        in_specs.append(pl.BlockSpec((1, 1, Cout), lambda n, i: (n, 0, 0)))
    if use_noise:
        nz = jnp.pad(noise.astype(jnp.float32),
                     ((0, rowsp - out_rows), (0, Wp - out_w)))
        inputs.append(nz.reshape(nt, th * Wp, 1))
        in_specs.append(pl.BlockSpec((1, th * Wp, 1), lambda n, i: (i, 0, 0)))
    if use_bias:
        inputs.append(bias.reshape(1, Cout).astype(jnp.float32))
        in_specs.append(pl.BlockSpec((1, Cout), lambda n, i: (0, 0)))

    kernel = make_tapconv_kernel(tuple(taps), n_groups, th, Wp,
                                 use_demod, use_noise, use_bias, act)
    out = pl.pallas_call(
        kernel,
        out_shape=jax.ShapeDtypeStruct((N, n_groups, nt, th * Wp, Cout), jnp.float32),
        grid=(N, nt),
        in_specs=in_specs,
        out_specs=pl.BlockSpec((1, n_groups, 1, th * Wp, Cout),
                               lambda n, i: (n, 0, i, 0, 0)),
        compiler_params=pltpu.CompilerParams(
            dimension_semantics=("parallel", "parallel")),
    )(*inputs)

    out = out.reshape(N, n_groups, rowsp, Wp, Cout)
    return out[:, :, :out_rows, :out_w, :]


# ----------------------------------------------------------------------------
# Pallas kernel 2: separable depthwise FIR blur with optional fused epilogue
# ----------------------------------------------------------------------------
def make_blur_kernel(k1d, th, out_w, use_demod, use_noise, use_bias, use_act):
    kt = [float(v) for v in k1d]
    K = len(kt)

    def kernel(*refs):
        i = 0
        x_ref = refs[i]; i += 1
        d_ref = nz_ref = b_ref = None
        if use_demod:
            d_ref = refs[i]; i += 1
        if use_noise:
            nz_ref = refs[i]; i += 1
        if use_bias:
            b_ref = refs[i]; i += 1
        out_ref = refs[i]; i += 1
        v_ref = refs[i]                           # VMEM scratch: (th, out_w+K-1, C)

        # vertical pass (outer-axis shifts: cheap)
        v = kt[0] * x_ref[0, 0, 0:th]
        for t in range(1, K):
            v = v + kt[t] * x_ref[0, 0, t:t + th]
        v_ref[...] = v
        # horizontal pass (only K sublane-offset slices instead of K*K taps)
        y = kt[0] * v_ref[:, 0:out_w, :]
        for t in range(1, K):
            y = y + kt[t] * v_ref[:, t:t + out_w, :]

        if use_demod:
            y = y * d_ref[0]                      # (1, C)
        if use_noise:
            y = y + nz_ref[...]                   # (th, out_w, 1)
        if use_bias:
            y = y + b_ref[...]                    # (1, C)
        if use_act:
            y = y * SQRT2
            y = jnp.where(y >= 0.0, y, LRELU_SLOPE * y)
        out_ref[0] = y

    return kernel


def run_blur(ypad, out_rows, out_w, k1d,
             demod=None, noise=None, bias=None, act=False):
    """ypad: (N, out_rows+K-1, out_w+K-1, C) f32 (already FIR-padded)."""
    N, Hp, Wp, C = ypad.shape
    K = len(k1d)
    halo = K - 1

    use_demod = demod is not None
    use_noise = noise is not None
    use_bias = bias is not None

    row_bytes = (2 * Wp + out_w) * C * 4
    if use_noise:
        row_bytes += out_w * 128 * 4
    th, rowsp = _choose_rows(out_rows, row_bytes)
    nt = rowsp // th

    need_rows = rowsp + halo
    if need_rows > Hp:
        ypad = jnp.pad(ypad, ((0, 0), (0, need_rows - Hp), (0, 0), (0, 0)))
    if nt == 1:
        xt = ypad[:, None]
    else:
        xt = jnp.stack([ypad[:, i * th:i * th + th + halo] for i in range(nt)], axis=1)

    inputs = [xt]
    in_specs = [pl.BlockSpec((1, 1, th + halo, Wp, C), lambda n, i: (n, i, 0, 0, 0))]
    if use_demod:
        inputs.append(demod.reshape(N, 1, C).astype(jnp.float32))
        in_specs.append(pl.BlockSpec((1, 1, C), lambda n, i: (n, 0, 0)))
    if use_noise:
        nz = jnp.pad(noise.astype(jnp.float32), ((0, rowsp - out_rows), (0, 0)))
        inputs.append(nz.reshape(rowsp, out_w, 1))
        in_specs.append(pl.BlockSpec((th, out_w, 1), lambda n, i: (i, 0, 0)))
    if use_bias:
        inputs.append(bias.reshape(1, C).astype(jnp.float32))
        in_specs.append(pl.BlockSpec((1, C), lambda n, i: (0, 0)))

    kernel = make_blur_kernel(k1d, th, out_w, use_demod, use_noise, use_bias, act)
    out = pl.pallas_call(
        kernel,
        out_shape=jax.ShapeDtypeStruct((N, rowsp, out_w, C), jnp.float32),
        grid=(N, nt),
        in_specs=in_specs,
        out_specs=pl.BlockSpec((1, th, out_w, C), lambda n, i: (n, i, 0, 0)),
        scratch_shapes=[pltpu.VMEM((th, Wp, C), jnp.float32)],
        compiler_params=pltpu.CompilerParams(
            dimension_semantics=("parallel", "parallel")),
    )(*inputs)
    return out[:, :out_rows]


# ----------------------------------------------------------------------------
# tap-set builders (static python; weights are tiny jnp arrays)
# ----------------------------------------------------------------------------
def build_conv_taps(w_s):
    """Standard KxK cross-correlation: tap (ky, kx) -> (Cin, Cout) matrix."""
    K = w_s.shape[-1]
    taps, mats = [], []
    for ky in range(K):
        for kx in range(K):
            taps.append((ky, kx, len(mats), 0))
            mats.append(jnp.transpose(w_s[:, :, ky, kx]))
    return taps, jnp.stack(mats, axis=0)


def build_upconv_taps(w_s):
    """Sub-pixel decomposition of the stride-2 3x3 transposed conv.

    For xp = pad(x*s, 1), output parity (py, px):
      plane[m, n] = sum_{(r,c)} xp[m+r, n+c] . flip(w)[ky(py,r), kx(px,c)]
    which equals zero-stuff(2) -> pad(2) -> conv(flip(w)) restricted to that parity
    (9 taps total instead of 9 taps on a 4x larger, 75%-zero image)."""
    wflip = jnp.flip(w_s, axis=(2, 3))
    taps, mats = [], []
    for py in (0, 1):
        for px in (0, 1):
            g = 2 * py + px
            for r in (0, 1):
                if py == 0:
                    ky = 2 * r
                elif r == 1:
                    ky = 1
                else:
                    continue
                for c in (0, 1):
                    if px == 0:
                        kx = 2 * c
                    elif c == 1:
                        kx = 1
                    else:
                        continue
                    taps.append((r, c, len(mats), g))
                    mats.append(jnp.transpose(wflip[:, :, ky, kx]))
    return taps, jnp.stack(mats, axis=0)          # 9 taps across 4 parity groups


# ----------------------------------------------------------------------------
# layers
# ----------------------------------------------------------------------------
def mod_conv0_up(x, style, p, k1d):
    """conv0_up: modulated stride-2 transposed conv + FIR blur + noise/bias/amp/lrelu."""
    N, H, W, Cin = x.shape
    Cout = p["w"].shape[0]
    s = _affine(style, p["aff_w"], p["aff_b"])               # (N, Cin)
    w_s = p["w"] * (1.0 / math.sqrt(Cin * 9))
    d = _demod_coeff(w_s, s)                                 # (N, Cout)

    xs = x * s[:, None, None, :]
    xp = jnp.pad(xs, ((0, 0), (1, 1), (1, 1), (0, 0)))       # (N, H+2, W+2, Cin)

    taps, w_stack = build_upconv_taps(w_s)
    planes = run_tapconv(xp, taps, w_stack,
                         out_rows=H + 1, out_w=W + 1, n_groups=4)
    # depth-to-space: planes[:, 2*py+px, m, n] -> y[:, 2m+py, 2n+px]   (XLA glue)
    ee, eo, oe, oo = planes[:, 0], planes[:, 1], planes[:, 2], planes[:, 3]
    row_e = jnp.stack([ee, eo], axis=3).reshape(N, H + 1, 2 * (W + 1), Cout)
    row_o = jnp.stack([oe, oo], axis=3).reshape(N, H + 1, 2 * (W + 1), Cout)
    y = jnp.stack([row_e, row_o], axis=2).reshape(N, 2 * (H + 1), 2 * (W + 1), Cout)
    y = y[:, :2 * H + 1, :2 * W + 1, :]                      # (N, 2H+1, 2W+1, Cout)

    ypad = jnp.pad(y, ((0, 0), (1, 1), (1, 1), (0, 0)))      # FIR pad (1, 1)
    noise = p["noise_const"] * p["noise_scaler"]             # (2H, 2W), shared over N & C
    return run_blur(ypad, 2 * H, 2 * W, k1d,
                    demod=d, noise=noise, bias=p["bias"], act=True)


def mod_conv1(x, style, p):
    """conv1: modulated 3x3 conv (pad 1) with fully fused epilogue."""
    N, H2, W2, Cin = x.shape
    s = _affine(style, p["aff_w"], p["aff_b"])
    w_s = p["w"] * (1.0 / math.sqrt(Cin * 9))
    d = _demod_coeff(w_s, s)
    xs = x * s[:, None, None, :]
    xp = jnp.pad(xs, ((0, 0), (1, 1), (1, 1), (0, 0)))
    taps, w_stack = build_conv_taps(w_s)
    noise = p["noise_const"] * p["noise_scaler"]
    out = run_tapconv(xp, taps, w_stack, out_rows=H2, out_w=W2, n_groups=1,
                      demod=d, noise=noise, bias=p["bias"], act=True)
    return out[:, 0]


def to_rgb(x, style, skip, p, k1d):
    """ToRGB: 1x1 modulated conv (no demod) + bias, plus FIR-upsampled RGB skip."""
    N, H2, W2, Cin = x.shape
    Cnum = p["w"].shape[0]
    Cpad = ((Cnum + 127) // 128) * 128           # lane-dense MXU output / stores
    s = _affine(style, p["aff_w"], p["aff_b"])
    w_s = p["w"] * (1.0 / math.sqrt(Cin))
    xs = x * s[:, None, None, :]
    taps, w_stack = build_conv_taps(w_s)         # single tap: (1, Cin, Cnum)
    w_stack = jnp.pad(w_stack, ((0, 0), (0, 0), (0, Cpad - Cnum)))
    bias_p = jnp.pad(p["bias"], (0, Cpad - Cnum))
    out = run_tapconv(xs, taps, w_stack, out_rows=H2, out_w=W2, n_groups=1,
                      bias=bias_p)
    rgb = out[:, 0, :, :, :Cnum]                 # (N, H2, W2, Cnum)

    # Upsample incoming RGB skip: zero-stuff x2 + FIR [1,3,3,1] (gain 4), pad (2,1).
    Ns, Hs, Ws, Cs = skip.shape
    up = jnp.zeros((N, 2 * Hs, 2 * Ws, Cs), jnp.float32).at[:, ::2, ::2, :].set(skip)
    uppad = jnp.pad(up, ((0, 0), (2, 1), (2, 1), (0, 0)))
    skip_up = run_blur(uppad, 2 * Hs, 2 * Ws, k1d)
    # TODO(synk): the 3-channel skip add stays in XLA (tiny); could be fused into the
    # ToRGB kernel if the skip were kept in the 128-lane-padded layout.
    return rgb + skip_up


def generator_synthesis_block(x_nchw, dlatents_in, skip_nchw, params, res):
    """Mirrors GeneratorSynthesisBlock.forward. NCHW in / NCHW out."""
    k = np.array([1.0, 3.0, 3.0, 1.0], np.float32)
    k1d = k / k.sum() * 2.0                      # separable FIR, per-axis gain sqrt(4)

    x = jnp.transpose(x_nchw, (0, 2, 3, 1)).astype(jnp.float32)
    skip = jnp.transpose(skip_nchw, (0, 2, 3, 1)).astype(jnp.float32)

    x = mod_conv0_up(x, dlatents_in[:, res * 2 - 5], params["conv0"], k1d)
    x = mod_conv1(x, dlatents_in[:, res * 2 - 4], params["conv1"])
    rgb = to_rgb(x, dlatents_in[:, res * 2 - 3], skip, params["to_rgb"], k1d)

    return jnp.transpose(x, (0, 3, 1, 2)), jnp.transpose(rgb, (0, 3, 1, 2))


# ----------------------------------------------------------------------------
# Deterministic parameter init (shapes from the module __init__)
# ----------------------------------------------------------------------------
def init_params(key, D, num_channels, in_fmaps, out_fmaps, res):
    resolution = 2 ** res
    ks = jax.random.split(key, 11)
    n = lambda k, shp: jax.random.normal(k, shp, jnp.float32)
    return {
        "conv0": dict(
            w=n(ks[0], (out_fmaps, in_fmaps, 3, 3)),
            aff_w=n(ks[1], (in_fmaps, D)),
            aff_b=jnp.ones((in_fmaps,), jnp.float32),
            noise_const=n(ks[2], (resolution, resolution)),
            noise_scaler=jnp.float32(0.1),
            bias=0.1 * n(ks[3], (out_fmaps,)),
        ),
        "conv1": dict(
            w=n(ks[4], (out_fmaps, out_fmaps, 3, 3)),
            aff_w=n(ks[5], (out_fmaps, D)),
            aff_b=jnp.ones((out_fmaps,), jnp.float32),
            noise_const=n(ks[6], (resolution, resolution)),
            noise_scaler=jnp.float32(0.1),
            bias=0.1 * n(ks[7], (out_fmaps,)),
        ),
        "to_rgb": dict(
            w=n(ks[8], (num_channels, out_fmaps, 1, 1)),
            aff_w=n(ks[9], (out_fmaps, D)),
            aff_b=jnp.ones((out_fmaps,), jnp.float32),
            bias=0.1 * n(ks[10], (num_channels,)),
        ),
    }


if __name__ == "__main__":
    key = jax.random.PRNGKey(0)
    N, D, num_channels, res = 2, 32, 3, 4
    in_fmaps, out_fmaps = 16, 32
    H = 2 ** (res - 1)  # input spatial = 8, output spatial = 16

    k1, k2, k3, k4 = jax.random.split(key, 4)
    params = init_params(k1, D, num_channels, in_fmaps, out_fmaps, res)
    x = jax.random.normal(k2, (N, in_fmaps, H, H), jnp.float32)          # NCHW
    dlatents_in = jax.random.normal(k3, (N, 8, D), jnp.float32)
    skip = jax.random.normal(k4, (N, num_channels, H, H), jnp.float32)   # NCHW

    fwd = jax.jit(generator_synthesis_block, static_argnums=(4,))
    x_out, skip_out = fwd(x, dlatents_in, skip, params, res)
    jax.block_until_ready((x_out, skip_out))

    assert x_out.shape == (N, out_fmaps, 2 * H, 2 * H)
    assert skip_out.shape == (N, num_channels, 2 * H, 2 * H)
    assert bool(jnp.isfinite(x_out).all()) and bool(jnp.isfinite(skip_out).all())
    print("KERNEL_OK")
</pallas_src>

<mosaic_0001>
module attributes {stable_mosaic.version = 11 : i64} {
  func.func @kernel(%arg0: i32, %arg1: i32, %arg2: memref<1x1x110x16xbf16, #tpu.memory_space<vmem>>, %arg3: memref<9x16x32xbf16, #tpu.memory_space<vmem>>, %arg4: memref<1x4x1x90x32xf32, #tpu.memory_space<vmem>>) attributes {dimension_semantics = [#tpu.dimension_semantics<parallel>, #tpu.dimension_semantics<parallel>], iteration_bounds = array<i64: 2, 1>, scalar_prefetch = 0 : i64, scratch_operands = 0 : i64, tpu.core_type = #tpu.core_type<tc>, window_params = [{transform_indices = @transform_0, window_bounds = array<i64: 1, 1, 110, 16>}, {pipeline_mode = #tpu.pipeline_mode<synchronous>, transform_indices = @transform_1, window_bounds = array<i64: 9, 16, 32>}, {transform_indices = @transform_2, window_bounds = array<i64: 1, 4, 1, 90, 32>}]} {
    %c0 = arith.constant 0 : index
    %c0_0 = arith.constant 0 : index
    %c0_1 = arith.constant 0 : index
    %c0_2 = arith.constant 0 : index
    %0 = vector.load %arg2[%c0, %c0_0, %c0_1, %c0_2] : memref<1x1x110x16xbf16, #tpu.memory_space<vmem>>, vector<1x1x90x16xbf16>
    %1 = vector.shape_cast %0 : vector<1x1x90x16xbf16> to vector<90x16xbf16>
    %c0_3 = arith.constant 0 : index
    %c0_4 = arith.constant 0 : index
    %c0_5 = arith.constant 0 : index
    %2 = vector.load %arg3[%c0_3, %c0_4, %c0_5] : memref<9x16x32xbf16, #tpu.memory_space<vmem>>, vector<1x16x32xbf16>
    %3 = vector.shape_cast %2 : vector<1x16x32xbf16> to vector<16x32xbf16>
    %cst = arith.constant dense<0.000000e+00> : vector<90x32xf32>
    %4 = tpu.matmul %1, %3, %cst {dimension_numbers = #tpu.dot_dimension_numbers<[1], [0], [0], [1], [0, 0, 1, 1], [], []>} : vector<90x16xbf16>, vector<16x32xbf16>, vector<90x32xf32> -> vector<90x32xf32>
    %c0_6 = arith.constant 0 : index
    %c0_7 = arith.constant 0 : index
    %c1 = arith.constant 1 : index
    %c0_8 = arith.constant 0 : index
    %5 = vector.load %arg2[%c0_6, %c0_7, %c1, %c0_8] : memref<1x1x110x16xbf16, #tpu.memory_space<vmem>>, vector<1x1x90x16xbf16>
    %6 = vector.shape_cast %5 : vector<1x1x90x16xbf16> to vector<90x16xbf16>
    %c1_9 = arith.constant 1 : index
    %c0_10 = arith.constant 0 : index
    %c0_11 = arith.constant 0 : index
    %7 = vector.load %arg3[%c1_9, %c0_10, %c0_11] : memref<9x16x32xbf16, #tpu.memory_space<vmem>>, vector<1x16x32xbf16>
    %8 = vector.shape_cast %7 : vector<1x16x32xbf16> to vector<16x32xbf16>
    %cst_12 = arith.constant dense<0.000000e+00> : vector<90x32xf32>
    %9 = tpu.matmul %6, %8, %cst_12 {dimension_numbers = #tpu.dot_dimension_numbers<[1], [0], [0], [1], [0, 0, 1, 1], [], []>} : vector<90x16xbf16>, vector<16x32xbf16>, vector<90x32xf32> -> vector<90x32xf32>
    %10 = arith.addf %4, %9 : vector<90x32xf32>
    %c0_13 = arith.constant 0 : index
    %c0_14 = arith.constant 0 : index
    %c10 = arith.constant 10 : index
    %c0_15 = arith.constant 0 : index
    %11 = vector.load %arg2[%c0_13, %c0_14, %c10, %c0_15] : memref<1x1x110x16xbf16, #tpu.memory_space<vmem>>, vector<1x1x90x16xbf16>
    %12 = vector.shape_cast %11 : vector<1x1x90x16xbf16> to vector<90x16xbf16>
    %c2 = arith.constant 2 : index
    %c0_16 = arith.constant 0 : index
    %c0_17 = arith.constant 0 : index
    %13 = vector.load %arg3[%c2, %c0_16, %c0_17] : memref<9x16x32xbf16, #tpu.memory_space<vmem>>, vector<1x16x32xbf16>
    %14 = vector.shape_cast %13 : vector<1x16x32xbf16> to vector<16x32xbf16>
    %cst_18 = arith.constant dense<0.000000e+00> : vector<90x32xf32>
    %15 = tpu.matmul %12, %14, %cst_18 {dimension_numbers = #tpu.dot_dimension_numbers<[1], [0], [0], [1], [0, 0, 1, 1], [], []>} : vector<90x16xbf16>, vector<16x32xbf16>, vector<90x32xf32> -> vector<90x32xf32>
    %16 = arith.addf %10, %15 : vector<90x32xf32>
    %c0_19 = arith.constant 0 : index
    %c0_20 = arith.constant 0 : index
    %c11 = arith.constant 11 : index
    %c0_21 = arith.constant 0 : index
    %17 = vector.load %arg2[%c0_19, %c0_20, %c11, %c0_21] : memref<1x1x110x16xbf16, #tpu.memory_space<vmem>>, vector<1x1x90x16xbf16>
    %18 = vector.shape_cast %17 : vector<1x1x90x16xbf16> to vector<90x16xbf16>
    %c3 = arith.constant 3 : index
    %c0_22 = arith.constant 0 : index
    %c0_23 = arith.constant 0 : index
    %19 = vector.load %arg3[%c3, %c0_22, %c0_23] : memref<9x16x32xbf16, #tpu.memory_space<vmem>>, vector<1x16x32xbf16>
    %20 = vector.shape_cast %19 : vector<1x16x32xbf16> to vector<16x32xbf16>
    %cst_24 = arith.constant dense<0.000000e+00> : vector<90x32xf32>
    %21 = tpu.matmul %18, %20, %cst_24 {dimension_numbers = #tpu.dot_dimension_numbers<[1], [0], [0], [1], [0, 0, 1, 1], [], []>} : vector<90x16xbf16>, vector<16x32xbf16>, vector<90x32xf32> -> vector<90x32xf32>
    %22 = arith.addf %16, %21 : vector<90x32xf32>
    %c0_25 = arith.constant 0 : index
    %c0_26 = arith.constant 0 : index
    %c1_27 = arith.constant 1 : index
    %c0_28 = arith.constant 0 : index
    %23 = vector.load %arg2[%c0_25, %c0_26, %c1_27, %c0_28] : memref<1x1x110x16xbf16, #tpu.memory_space<vmem>>, vector<1x1x90x16xbf16>
    %24 = vector.shape_cast %23 : vector<1x1x90x16xbf16> to vector<90x16xbf16>
    %c4 = arith.constant 4 : index
    %c0_29 = arith.constant 0 : index
    %c0_30 = arith.constant 0 : index
    %25 = vector.load %arg3[%c4, %c0_29, %c0_30] : memref<9x16x32xbf16, #tpu.memory_space<vmem>>, vector<1x16x32xbf16>
    %26 = vector.shape_cast %25 : vector<1x16x32xbf16> to vector<16x32xbf16>
    %cst_31 = arith.constant dense<0.000000e+00> : vector<90x32xf32>
    %27 = tpu.matmul %24, %26, %cst_31 {dimension_numbers = #tpu.dot_dimension_numbers<[1], [0], [0], [1], [0, 0, 1, 1], [], []>} : vector<90x16xbf16>, vector<16x32xbf16>, vector<90x32xf32> -> vector<90x32xf32>
    %c0_32 = arith.constant 0 : index
    %c0_33 = arith.constant 0 : index
    %c11_34 = arith.constant 11 : index
    %c0_35 = arith.constant 0 : index
    %28 = vector.load %arg2[%c0_32, %c0_33, %c11_34, %c0_35] : memref<1x1x110x16xbf16, #tpu.memory_space<vmem>>, vector<1x1x90x16xbf16>
    %29 = vector.shape_cast %28 : vector<1x1x90x16xbf16> to vector<90x16xbf16>
    %c5 = arith.constant 5 : index
    %c0_36 = arith.constant 0 : index
    %c0_37 = arith.constant 0 : index
    %30 = vector.load %arg3[%c5, %c0_36, %c0_37] : memref<9x16x32xbf16, #tpu.memory_space<vmem>>, vector<1x16x32xbf16>
    %31 = vector.shape_cast %30 : vector<1x16x32xbf16> to vector<16x32xbf16>
    %cst_38 = arith.constant dense<0.000000e+00> : vector<90x32xf32>
    %32 = tpu.matmul %29, %31, %cst_38 {dimension_numbers = #tpu.dot_dimension_numbers<[1], [0], [0], [1], [0, 0, 1, 1], [], []>} : vector<90x16xbf16>, vector<16x32xbf16>, vector<90x32xf32> -> vector<90x32xf32>
    %33 = arith.addf %27, %32 : vector<90x32xf32>
    %c0_39 = arith.constant 0 : index
    %c0_40 = arith.constant 0 : index
    %c10_41 = arith.constant 10 : index
    %c0_42 = arith.constant 0 : index
    %34 = vector.load %arg2[%c0_39, %c0_40, %c10_41, %c0_42] : memref<1x1x110x16xbf16, #tpu.memory_space<vmem>>, vector<1x1x90x16xbf16>
    %35 = vector.shape_cast %34 : vector<1x1x90x16xbf16> to vector<90x16xbf16>
    %c6 = arith.constant 6 : index
    %c0_43 = arith.constant 0 : index
    %c0_44 = arith.constant 0 : index
    %36 = vector.load %arg3[%c6, %c0_43, %c0_44] : memref<9x16x32xbf16, #tpu.memory_space<vmem>>, vector<1x16x32xbf16>
    %37 = vector.shape_cast %36 : vector<1x16x32xbf16> to vector<16x32xbf16>
    %cst_45 = arith.constant dense<0.000000e+00> : vector<90x32xf32>
    %38 = tpu.matmul %35, %37, %cst_45 {dimension_numbers = #tpu.dot_dimension_numbers<[1], [0], [0], [1], [0, 0, 1, 1], [], []>} : vector<90x16xbf16>, vector<16x32xbf16>, vector<90x32xf32> -> vector<90x32xf32>
    %c0_46 = arith.constant 0 : index
    %c0_47 = arith.constant 0 : index
    %c11_48 = arith.constant 11 : index
    %c0_49 = arith.constant 0 : index
    %39 = vector.load %arg2[%c0_46, %c0_47, %c11_48, %c0_49] : memref<1x1x110x16xbf16, #tpu.memory_space<vmem>>, vector<1x1x90x16xbf16>
    %40 = vector.shape_cast %39 : vector<1x1x90x16xbf16> to vector<90x16xbf16>
    %c7 = arith.constant 7 : index
    %c0_50 = arith.constant 0 : index
    %c0_51 = arith.constant 0 : index
    %41 = vector.load %arg3[%c7, %c0_50, %c0_51] : memref<9x16x32xbf16, #tpu.memory_space<vmem>>, vector<1x16x32xbf16>
    %42 = vector.shape_cast %41 : vector<1x16x32xbf16> to vector<16x32xbf16>
    %cst_52 = arith.constant dense<0.000000e+00> : vector<90x32xf32>
    %43 = tpu.matmul %40, %42, %cst_52 {dimension_numbers = #tpu.dot_dimension_numbers<[1], [0], [0], [1], [0, 0, 1, 1], [], []>} : vector<90x16xbf16>, vector<16x32xbf16>, vector<90x32xf32> -> vector<90x32xf32>
    %44 = arith.addf %38, %43 : vector<90x32xf32>
    %c0_53 = arith.constant 0 : index
    %c0_54 = arith.constant 0 : index
    %c11_55 = arith.constant 11 : index
    %c0_56 = arith.constant 0 : index
    %45 = vector.load %arg2[%c0_53, %c0_54, %c11_55, %c0_56] : memref<1x1x110x16xbf16, #tpu.memory_space<vmem>>, vector<1x1x90x16xbf16>
    %46 = vector.shape_cast %45 : vector<1x1x90x16xbf16> to vector<90x16xbf16>
    %c8 = arith.constant 8 : index
    %c0_57 = arith.constant 0 : index
    %c0_58 = arith.constant 0 : index
    %47 = vector.load %arg3[%c8, %c0_57, %c0_58] : memref<9x16x32xbf16, #tpu.memory_space<vmem>>, vector<1x16x32xbf16>
    %48 = vector.shape_cast %47 : vector<1x16x32xbf16> to vector<16x32xbf16>
    %cst_59 = arith.constant dense<0.000000e+00> : vector<90x32xf32>
    %49 = tpu.matmul %46, %48, %cst_59 {dimension_numbers = #tpu.dot_dimension_numbers<[1], [0], [0], [1], [0, 0, 1, 1], [], []>} : vector<90x16xbf16>, vector<16x32xbf16>, vector<90x32xf32> -> vector<90x32xf32>
    %c0_60 = arith.constant 0 : index
    %c0_61 = arith.constant 0 : index
    %c0_62 = arith.constant 0 : index
    %c0_63 = arith.constant 0 : index
    %c0_64 = arith.constant 0 : index
    %50 = vector.load %arg4[%c0_60, %c0_61, %c0_62, %c0_63, %c0_64] : memref<1x4x1x90x32xf32, #tpu.memory_space<vmem>>, vector<1x1x1x90x32xf32>
    %51 = vector.shape_cast %50 : vector<1x1x1x90x32xf32> to vector<90x32xf32>
    %52 = vector.shape_cast %22 : vector<90x32xf32> to vector<1x1x1x90x32xf32>
    tpu.vector_store %arg4[%c0_60, %c0_61, %c0_62, %c0_63, %c0_64], %52 {strides = array<i32>} : memref<1x4x1x90x32xf32, #tpu.memory_space<vmem>>, vector<1x1x1x90x32xf32>,
    %c0_65 = arith.constant 0 : index
    %c1_66 = arith.constant 1 : index
    %c0_67 = arith.constant 0 : index
    %c0_68 = arith.constant 0 : index
    %c0_69 = arith.constant 0 : index
    %53 = vector.load %arg4[%c0_65, %c1_66, %c0_67, %c0_68, %c0_69] : memref<1x4x1x90x32xf32, #tpu.memory_space<vmem>>, vector<1x1x1x90x32xf32>
    %54 = vector.shape_cast %53 : vector<1x1x1x90x32xf32> to vector<90x32xf32>
    %55 = vector.shape_cast %33 : vector<90x32xf32> to vector<1x1x1x90x32xf32>
    tpu.vector_store %arg4[%c0_65, %c1_66, %c0_67, %c0_68, %c0_69], %55 {strides = array<i32>} : memref<1x4x1x90x32xf32, #tpu.memory_space<vmem>>, vector<1x1x1x90x32xf32>,
    %c0_70 = arith.constant 0 : index
    %c2_71 = arith.constant 2 : index
    %c0_72 = arith.constant 0 : index
    %c0_73 = arith.constant 0 : index
    %c0_74 = arith.constant 0 : index
    %56 = vector.load %arg4[%c0_70, %c2_71, %c0_72, %c0_73, %c0_74] : memref<1x4x1x90x32xf32, #tpu.memory_space<vmem>>, vector<1x1x1x90x32xf32>
    %57 = vector.shape_cast %56 : vector<1x1x1x90x32xf32> to vector<90x32xf32>
    %58 = vector.shape_cast %44 : vector<90x32xf32> to vector<1x1x1x90x32xf32>
    tpu.vector_store %arg4[%c0_70, %c2_71, %c0_72, %c0_73, %c0_74], %58 {strides = array<i32>} : memref<1x4x1x90x32xf32, #tpu.memory_space<vmem>>, vector<1x1x1x90x32xf32>,
    %c0_75 = arith.constant 0 : index
    %c3_76 = arith.constant 3 : index
    %c0_77 = arith.constant 0 : index
    %c0_78 = arith.constant 0 : index
    %c0_79 = arith.constant 0 : index
    %59 = vector.load %arg4[%c0_75, %c3_76, %c0_77, %c0_78, %c0_79] : memref<1x4x1x90x32xf32, #tpu.memory_space<vmem>>, vector<1x1x1x90x32xf32>
    %60 = vector.shape_cast %59 : vector<1x1x1x90x32xf32> to vector<90x32xf32>
    %61 = vector.shape_cast %49 : vector<90x32xf32> to vector<1x1x1x90x32xf32>
    tpu.vector_store %arg4[%c0_75, %c3_76, %c0_77, %c0_78, %c0_79], %61 {strides = array<i32>} : memref<1x4x1x90x32xf32, #tpu.memory_space<vmem>>, vector<1x1x1x90x32xf32>,
    return
  }
  func.func @transform_0(%arg0: i32, %arg1: i32) -> (i32, i32, i32, i32) {
    %c0_i32 = arith.constant 0 : i32
    %c0_i32_0 = arith.constant 0 : i32
    %c0_i32_1 = arith.constant 0 : i32
    return %arg0, %arg1, %c0_i32, %c0_i32_0 : i32, i32, i32, i32
  }
  func.func @transform_1(%arg0: i32, %arg1: i32) -> (i32, i32, i32) {
    %c0_i32 = arith.constant 0 : i32
    %c0_i32_0 = arith.constant 0 : i32
    %c0_i32_1 = arith.constant 0 : i32
    %c0_i32_2 = arith.constant 0 : i32
    return %c0_i32, %c0_i32_0, %c0_i32_1 : i32, i32, i32
  }
  func.func @transform_2(%arg0: i32, %arg1: i32) -> (i32, i32, i32, i32, i32) {
    %c0_i32 = arith.constant 0 : i32
    %c0_i32_0 = arith.constant 0 : i32
    %c0_i32_1 = arith.constant 0 : i32
    %c0_i32_2 = arith.constant 0 : i32
    return %arg0, %c0_i32, %arg1, %c0_i32_0, %c0_i32_1 : i32, i32, i32, i32, i32
  }
}

module attributes {stable_mosaic.version = 11 : i64} {
  func.func @kernel(%arg0: i32, %arg1: i32, %arg2: memref<1x1x19x19x32xf32, #tpu.memory_space<vmem>>, %arg3: memref<1x1x32xf32, #tpu.memory_space<vmem>>, %arg4: memref<16x16x1xf32, #tpu.memory_space<vmem>>, %arg5: memref<1x32xf32, #tpu.memory_space<vmem>>, %arg6: memref<1x16x16x32xf32, #tpu.memory_space<vmem>>, %arg7: memref<16x19x32xf32, #tpu.memory_space<vmem>>) attributes {dimension_semantics = [#tpu.dimension_semantics<parallel>, #tpu.dimension_semantics<parallel>], iteration_bounds = array<i64: 2, 1>, scalar_prefetch = 0 : i64, scratch_operands = 1 : i64, tpu.core_type = #tpu.core_type<tc>, window_params = [{transform_indices = @transform_0, window_bounds = array<i64: 1, 1, 19, 19, 32>}, {transform_indices = @transform_1, window_bounds = array<i64: 1, 1, 32>}, {transform_indices = @transform_2, window_bounds = array<i64: 16, 16, 1>}, {pipeline_mode = #tpu.pipeline_mode<synchronous>, transform_indices = @transform_3, window_bounds = array<i64: 1, 32>}, {transform_indices = @transform_4, window_bounds = array<i64: 1, 16, 16, 32>}]} {
    %c0 = arith.constant 0 : index
    %c0_0 = arith.constant 0 : index
    %c0_1 = arith.constant 0 : index
    %c0_2 = arith.constant 0 : index
    %c0_3 = arith.constant 0 : index
    %0 = vector.load %arg2[%c0, %c0_0, %c0_1, %c0_2, %c0_3] : memref<1x1x19x19x32xf32, #tpu.memory_space<vmem>>, vector<1x1x16x19x32xf32>
    %1 = vector.shape_cast %0 : vector<1x1x16x19x32xf32> to vector<16x19x32xf32>
    %cst = arith.constant 2.500000e-01 : f32
    %2 = vector.broadcast %cst : f32 to vector<16x19x32xf32>
    %3 = arith.mulf %2, %1 : vector<16x19x32xf32>
    %c0_4 = arith.constant 0 : index
    %c0_5 = arith.constant 0 : index
    %c1 = arith.constant 1 : index
    %c0_6 = arith.constant 0 : index
    %c0_7 = arith.constant 0 : index
    %4 = vector.load %arg2[%c0_4, %c0_5, %c1, %c0_6, %c0_7] : memref<1x1x19x19x32xf32, #tpu.memory_space<vmem>>, vector<1x1x16x19x32xf32>
    %5 = vector.shape_cast %4 : vector<1x1x16x19x32xf32> to vector<16x19x32xf32>
    %cst_8 = arith.constant 7.500000e-01 : f32
    %6 = vector.broadcast %cst_8 : f32 to vector<16x19x32xf32>
    %7 = arith.mulf %6, %5 : vector<16x19x32xf32>
    %8 = arith.addf %3, %7 : vector<16x19x32xf32>
    %c0_9 = arith.constant 0 : index
    %c0_10 = arith.constant 0 : index
    %c2 = arith.constant 2 : index
    %c0_11 = arith.constant 0 : index
    %c0_12 = arith.constant 0 : index
    %9 = vector.load %arg2[%c0_9, %c0_10, %c2, %c0_11, %c0_12] : memref<1x1x19x19x32xf32, #tpu.memory_space<vmem>>, vector<1x1x16x19x32xf32>
    %10 = vector.shape_cast %9 : vector<1x1x16x19x32xf32> to vector<16x19x32xf32>
    %cst_13 = arith.constant 7.500000e-01 : f32
    %11 = vector.broadcast %cst_13 : f32 to vector<16x19x32xf32>
    %12 = arith.mulf %11, %10 : vector<16x19x32xf32>
    %13 = arith.addf %8, %12 : vector<16x19x32xf32>
    %c0_14 = arith.constant 0 : index
    %c0_15 = arith.constant 0 : index
    %c3 = arith.constant 3 : index
    %c0_16 = arith.constant 0 : index
    %c0_17 = arith.constant 0 : index
    %14 = vector.load %arg2[%c0_14, %c0_15, %c3, %c0_16, %c0_17] : memref<1x1x19x19x32xf32, #tpu.memory_space<vmem>>, vector<1x1x16x19x32xf32>
    %15 = vector.shape_cast %14 : vector<1x1x16x19x32xf32> to vector<16x19x32xf32>
    %cst_18 = arith.constant 2.500000e-01 : f32
    %16 = vector.broadcast %cst_18 : f32 to vector<16x19x32xf32>
    %17 = arith.mulf %16, %15 : vector<16x19x32xf32>
    %18 = arith.addf %13, %17 : vector<16x19x32xf32>
    %c0_19 = arith.constant 0 : index
    %c0_20 = arith.constant 0 : index
    %c0_21 = arith.constant 0 : index
    %19 = vector.load %arg7[%c0_19, %c0_20, %c0_21] : memref<16x19x32xf32, #tpu.memory_space<vmem>>, vector<16x19x32xf32>
    tpu.vector_store %arg7[%c0_19, %c0_20, %c0_21], %18 {strides = array<i32>} : memref<16x19x32xf32, #tpu.memory_space<vmem>>, vector<16x19x32xf32>,
    %c0_22 = arith.constant 0 : index
    %c0_23 = arith.constant 0 : index
    %c0_24 = arith.constant 0 : index
    %20 = vector.load %arg7[%c0_22, %c0_23, %c0_24] : memref<16x19x32xf32, #tpu.memory_space<vmem>>, vector<16x16x32xf32>
    %cst_25 = arith.constant 2.500000e-01 : f32
    %21 = vector.broadcast %cst_25 : f32 to vector<16x16x32xf32>
    %22 = arith.mulf %21, %20 : vector<16x16x32xf32>
    %c0_26 = arith.constant 0 : index
    %c1_27 = arith.constant 1 : index
    %c0_28 = arith.constant 0 : index
    %23 = vector.load %arg7[%c0_26, %c1_27, %c0_28] : memref<16x19x32xf32, #tpu.memory_space<vmem>>, vector<16x16x32xf32>
    %cst_29 = arith.constant 7.500000e-01 : f32
    %24 = vector.broadcast %cst_29 : f32 to vector<16x16x32xf32>
    %25 = arith.mulf %24, %23 : vector<16x16x32xf32>
    %26 = arith.addf %22, %25 : vector<16x16x32xf32>
    %c0_30 = arith.constant 0 : index
    %c2_31 = arith.constant 2 : index
    %c0_32 = arith.constant 0 : index
    %27 = vector.load %arg7[%c0_30, %c2_31, %c0_32] : memref<16x19x32xf32, #tpu.memory_space<vmem>>, vector<16x16x32xf32>
    %cst_33 = arith.constant 7.500000e-01 : f32
    %28 = vector.broadcast %cst_33 : f32 to vector<16x16x32xf32>
    %29 = arith.mulf %28, %27 : vector<16x16x32xf32>
    %30 = arith.addf %26, %29 : vector<16x16x32xf32>
    %c0_34 = arith.constant 0 : index
    %c3_35 = arith.constant 3 : index
    %c0_36 = arith.constant 0 : index
    %31 = vector.load %arg7[%c0_34, %c3_35, %c0_36] : memref<16x19x32xf32, #tpu.memory_space<vmem>>, vector<16x16x32xf32>
    %cst_37 = arith.constant 2.500000e-01 : f32
    %32 = vector.broadcast %cst_37 : f32 to vector<16x16x32xf32>
    %33 = arith.mulf %32, %31 : vector<16x16x32xf32>
    %34 = arith.addf %30, %33 : vector<16x16x32xf32>
    %c0_38 = arith.constant 0 : index
    %c0_39 = arith.constant 0 : index
    %c0_40 = arith.constant 0 : index
    %35 = vector.load %arg3[%c0_38, %c0_39, %c0_40] : memref<1x1x32xf32, #tpu.memory_space<vmem>>, vector<1x1x32xf32>
    %36 = vector.shape_cast %35 : vector<1x1x32xf32> to vector<1x32xf32>
    %37 = vector.shape_cast %36 : vector<1x32xf32> to vector<1x1x32xf32>
    %38 = vector.broadcast %37 : vector<1x1x32xf32> to vector<16x16x32xf32>
    %39 = arith.mulf %34, %38 : vector<16x16x32xf32>
    %c0_41 = arith.constant 0 : index
    %c0_42 = arith.constant 0 : index
    %c0_43 = arith.constant 0 : index
    %40 = vector.load %arg4[%c0_41, %c0_42, %c0_43] : memref<16x16x1xf32, #tpu.memory_space<vmem>>, vector<16x16x1xf32>
    %41 = vector.broadcast %40 : vector<16x16x1xf32> to vector<16x16x32xf32>
    %42 = arith.addf %39, %41 : vector<16x16x32xf32>
    %c0_44 = arith.constant 0 : index
    %c0_45 = arith.constant 0 : index
    %43 = vector.load %arg5[%c0_44, %c0_45] : memref<1x32xf32, #tpu.memory_space<vmem>>, vector<1x32xf32>
    %44 = vector.shape_cast %43 : vector<1x32xf32> to vector<1x1x32xf32>
    %45 = vector.broadcast %44 : vector<1x1x32xf32> to vector<16x16x32xf32>
    %46 = arith.addf %42, %45 : vector<16x16x32xf32>
    %cst_46 = arith.constant 1.41421354 : f32
    %47 = vector.broadcast %cst_46 : f32 to vector<16x16x32xf32>
    %48 = arith.mulf %46, %47 : vector<16x16x32xf32>
    %cst_47 = arith.constant 0.000000e+00 : f32
    %49 = vector.broadcast %cst_47 : f32 to vector<16x16x32xf32>
    %50 = arith.cmpf oge, %48, %49 : vector<16x16x32xf32>
    %cst_48 = arith.constant 2.000000e-01 : f32
    %51 = vector.broadcast %cst_48 : f32 to vector<16x16x32xf32>
    %52 = arith.mulf %51, %48 : vector<16x16x32xf32>
    %53 = arith.select %50, %48, %52 : vector<16x16x32xi1>, vector<16x16x32xf32>
    %c0_49 = arith.constant 0 : index
    %c0_50 = arith.constant 0 : index
    %c0_51 = arith.constant 0 : index
    %c0_52 = arith.constant 0 : index
    %54 = vector.load %arg6[%c0_49, %c0_50, %c0_51, %c0_52] : memref<1x16x16x32xf32, #tpu.memory_space<vmem>>, vector<1x16x16x32xf32>
    %55 = vector.shape_cast %54 : vector<1x16x16x32xf32> to vector<16x16x32xf32>
    %56 = vector.shape_cast %53 : vector<16x16x32xf32> to vector<1x16x16x32xf32>
    tpu.vector_store %arg6[%c0_49, %c0_50, %c0_51, %c0_52], %56 {strides = array<i32>} : memref<1x16x16x32xf32, #tpu.memory_space<vmem>>, vector<1x16x16x32xf32>,
    return
  }
  func.func @transform_0(%arg0: i32, %arg1: i32) -> (i32, i32, i32, i32, i32) {
    %c0_i32 = arith.constant 0 : i32
    %c0_i32_0 = arith.constant 0 : i32
    %c0_i32_1 = arith.constant 0 : i32
    %c0_i32_2 = arith.constant 0 : i32
    return %arg0, %arg1, %c0_i32, %c0_i32_0, %c0_i32_1 : i32, i32, i32, i32, i32
  }
  func.func @transform_1(%arg0: i32, %arg1: i32) -> (i32, i32, i32) {
    %c0_i32 = arith.constant 0 : i32
    %c0_i32_0 = arith.constant 0 : i32
    %c0_i32_1 = arith.constant 0 : i32
    return %arg0, %c0_i32, %c0_i32_0 : i32, i32, i32
  }
  func.func @transform_2(%arg0: i32, %arg1: i32) -> (i32, i32, i32) {
    %c0_i32 = arith.constant 0 : i32
    %c0_i32_0 = arith.constant 0 : i32
    %c0_i32_1 = arith.constant 0 : i32
    return %arg1, %c0_i32, %c0_i32_0 : i32, i32, i32
  }
  func.func @transform_3(%arg0: i32, %arg1: i32) -> (i32, i32) {
    %c0_i32 = arith.constant 0 : i32
    %c0_i32_0 = arith.constant 0 : i32
    %c0_i32_1 = arith.constant 0 : i32
    return %c0_i32, %c0_i32_0 : i32, i32
  }
  func.func @transform_4(%arg0: i32, %arg1: i32) -> (i32, i32, i32, i32) {
    %c0_i32 = arith.constant 0 : i32
    %c0_i32_0 = arith.constant 0 : i32
    %c0_i32_1 = arith.constant 0 : i32
    return %arg0, %arg1, %c0_i32, %c0_i32_0 : i32, i32, i32, i32
  }
}

module attributes {stable_mosaic.version = 11 : i64} {
  func.func @kernel(%arg0: i32, %arg1: i32, %arg2: memref<1x1x342x32xbf16, #tpu.memory_space<vmem>>, %arg3: memref<9x32x32xbf16, #tpu.memory_space<vmem>>, %arg4: memref<1x1x32xf32, #tpu.memory_space<vmem>>, %arg5: memref<1x288x1xf32, #tpu.memory_space<vmem>>, %arg6: memref<1x32xf32, #tpu.memory_space<vmem>>, %arg7: memref<1x1x1x288x32xf32, #tpu.memory_space<vmem>>) attributes {dimension_semantics = [#tpu.dimension_semantics<parallel>, #tpu.dimension_semantics<parallel>], iteration_bounds = array<i64: 2, 1>, scalar_prefetch = 0 : i64, scratch_operands = 0 : i64, tpu.core_type = #tpu.core_type<tc>, window_params = [{transform_indices = @transform_0, window_bounds = array<i64: 1, 1, 342, 32>}, {pipeline_mode = #tpu.pipeline_mode<synchronous>, transform_indices = @transform_1, window_bounds = array<i64: 9, 32, 32>}, {transform_indices = @transform_2, window_bounds = array<i64: 1, 1, 32>}, {transform_indices = @transform_3, window_bounds = array<i64: 1, 288, 1>}, {pipeline_mode = #tpu.pipeline_mode<synchronous>, transform_indices = @transform_4, window_bounds = array<i64: 1, 32>}, {transform_indices = @transform_5, window_bounds = array<i64: 1, 1, 1, 288, 32>}]} {
    %c0 = arith.constant 0 : index
    %c0_0 = arith.constant 0 : index
    %c0_1 = arith.constant 0 : index
    %c0_2 = arith.constant 0 : index
    %0 = vector.load %arg2[%c0, %c0_0, %c0_1, %c0_2] : memref<1x1x342x32xbf16, #tpu.memory_space<vmem>>, vector<1x1x288x32xbf16>
    %1 = vector.shape_cast %0 : vector<1x1x288x32xbf16> to vector<288x32xbf16>
    %c0_3 = arith.constant 0 : index
    %c0_4 = arith.constant 0 : index
    %c0_5 = arith.constant 0 : index
    %2 = vector.load %arg3[%c0_3, %c0_4, %c0_5] : memref<9x32x32xbf16, #tpu.memory_space<vmem>>, vector<1x32x32xbf16>
    %3 = vector.shape_cast %2 : vector<1x32x32xbf16> to vector<32x32xbf16>
    %cst = arith.constant dense<0.000000e+00> : vector<288x32xf32>
    %4 = tpu.matmul %1, %3, %cst {dimension_numbers = #tpu.dot_dimension_numbers<[1], [0], [0], [1], [0, 0, 1, 1], [], []>} : vector<288x32xbf16>, vector<32x32xbf16>, vector<288x32xf32> -> vector<288x32xf32>
    %c0_6 = arith.constant 0 : index
    %c0_7 = arith.constant 0 : index
    %c1 = arith.constant 1 : index
    %c0_8 = arith.constant 0 : index
    %5 = vector.load %arg2[%c0_6, %c0_7, %c1, %c0_8] : memref<1x1x342x32xbf16, #tpu.memory_space<vmem>>, vector<1x1x288x32xbf16>
    %6 = vector.shape_cast %5 : vector<1x1x288x32xbf16> to vector<288x32xbf16>
    %c1_9 = arith.constant 1 : index
    %c0_10 = arith.constant 0 : index
    %c0_11 = arith.constant 0 : index
    %7 = vector.load %arg3[%c1_9, %c0_10, %c0_11] : memref<9x32x32xbf16, #tpu.memory_space<vmem>>, vector<1x32x32xbf16>
    %8 = vector.shape_cast %7 : vector<1x32x32xbf16> to vector<32x32xbf16>
    %cst_12 = arith.constant dense<0.000000e+00> : vector<288x32xf32>
    %9 = tpu.matmul %6, %8, %cst_12 {dimension_numbers = #tpu.dot_dimension_numbers<[1], [0], [0], [1], [0, 0, 1, 1], [], []>} : vector<288x32xbf16>, vector<32x32xbf16>, vector<288x32xf32> -> vector<288x32xf32>
    %10 = arith.addf %4, %9 : vector<288x32xf32>
    %c0_13 = arith.constant 0 : index
    %c0_14 = arith.constant 0 : index
    %c2 = arith.constant 2 : index
    %c0_15 = arith.constant 0 : index
    %11 = vector.load %arg2[%c0_13, %c0_14, %c2, %c0_15] : memref<1x1x342x32xbf16, #tpu.memory_space<vmem>>, vector<1x1x288x32xbf16>
    %12 = vector.shape_cast %11 : vector<1x1x288x32xbf16> to vector<288x32xbf16>
    %c2_16 = arith.constant 2 : index
    %c0_17 = arith.constant 0 : index
    %c0_18 = arith.constant 0 : index
    %13 = vector.load %arg3[%c2_16, %c0_17, %c0_18] : memref<9x32x32xbf16, #tpu.memory_space<vmem>>, vector<1x32x32xbf16>
    %14 = vector.shape_cast %13 : vector<1x32x32xbf16> to vector<32x32xbf16>
    %cst_19 = arith.constant dense<0.000000e+00> : vector<288x32xf32>
    %15 = tpu.matmul %12, %14, %cst_19 {dimension_numbers = #tpu.dot_dimension_numbers<[1], [0], [0], [1], [0, 0, 1, 1], [], []>} : vector<288x32xbf16>, vector<32x32xbf16>, vector<288x32xf32> -> vector<288x32xf32>
    %16 = arith.addf %10, %15 : vector<288x32xf32>
    %c0_20 = arith.constant 0 : index
    %c0_21 = arith.constant 0 : index
    %c18 = arith.constant 18 : index
    %c0_22 = arith.constant 0 : index
    %17 = vector.load %arg2[%c0_20, %c0_21, %c18, %c0_22] : memref<1x1x342x32xbf16, #tpu.memory_space<vmem>>, vector<1x1x288x32xbf16>
    %18 = vector.shape_cast %17 : vector<1x1x288x32xbf16> to vector<288x32xbf16>
    %c3 = arith.constant 3 : index
    %c0_23 = arith.constant 0 : index
    %c0_24 = arith.constant 0 : index
    %19 = vector.load %arg3[%c3, %c0_23, %c0_24] : memref<9x32x32xbf16, #tpu.memory_space<vmem>>, vector<1x32x32xbf16>
    %20 = vector.shape_cast %19 : vector<1x32x32xbf16> to vector<32x32xbf16>
    %cst_25 = arith.constant dense<0.000000e+00> : vector<288x32xf32>
    %21 = tpu.matmul %18, %20, %cst_25 {dimension_numbers = #tpu.dot_dimension_numbers<[1], [0], [0], [1], [0, 0, 1, 1], [], []>} : vector<288x32xbf16>, vector<32x32xbf16>, vector<288x32xf32> -> vector<288x32xf32>
    %22 = arith.addf %16, %21 : vector<288x32xf32>
    %c0_26 = arith.constant 0 : index
    %c0_27 = arith.constant 0 : index
    %c19 = arith.constant 19 : index
    %c0_28 = arith.constant 0 : index
    %23 = vector.load %arg2[%c0_26, %c0_27, %c19, %c0_28] : memref<1x1x342x32xbf16, #tpu.memory_space<vmem>>, vector<1x1x288x32xbf16>
    %24 = vector.shape_cast %23 : vector<1x1x288x32xbf16> to vector<288x32xbf16>
    %c4 = arith.constant 4 : index
    %c0_29 = arith.constant 0 : index
    %c0_30 = arith.constant 0 : index
    %25 = vector.load %arg3[%c4, %c0_29, %c0_30] : memref<9x32x32xbf16, #tpu.memory_space<vmem>>, vector<1x32x32xbf16>
    %26 = vector.shape_cast %25 : vector<1x32x32xbf16> to vector<32x32xbf16>
    %cst_31 = arith.constant dense<0.000000e+00> : vector<288x32xf32>
    %27 = tpu.matmul %24, %26, %cst_31 {dimension_numbers = #tpu.dot_dimension_numbers<[1], [0], [0], [1], [0, 0, 1, 1], [], []>} : vector<288x32xbf16>, vector<32x32xbf16>, vector<288x32xf32> -> vector<288x32xf32>
    %28 = arith.addf %22, %27 : vector<288x32xf32>
    %c0_32 = arith.constant 0 : index
    %c0_33 = arith.constant 0 : index
    %c20 = arith.constant 20 : index
    %c0_34 = arith.constant 0 : index
    %29 = vector.load %arg2[%c0_32, %c0_33, %c20, %c0_34] : memref<1x1x342x32xbf16, #tpu.memory_space<vmem>>, vector<1x1x288x32xbf16>
    %30 = vector.shape_cast %29 : vector<1x1x288x32xbf16> to vector<288x32xbf16>
    %c5 = arith.constant 5 : index
    %c0_35 = arith.constant 0 : index
    %c0_36 = arith.constant 0 : index
    %31 = vector.load %arg3[%c5, %c0_35, %c0_36] : memref<9x32x32xbf16, #tpu.memory_space<vmem>>, vector<1x32x32xbf16>
    %32 = vector.shape_cast %31 : vector<1x32x32xbf16> to vector<32x32xbf16>
    %cst_37 = arith.constant dense<0.000000e+00> : vector<288x32xf32>
    %33 = tpu.matmul %30, %32, %cst_37 {dimension_numbers = #tpu.dot_dimension_numbers<[1], [0], [0], [1], [0, 0, 1, 1], [], []>} : vector<288x32xbf16>, vector<32x32xbf16>, vector<288x32xf32> -> vector<288x32xf32>
    %34 = arith.addf %28, %33 : vector<288x32xf32>
    %c0_38 = arith.constant 0 : index
    %c0_39 = arith.constant 0 : index
    %c36 = arith.constant 36 : index
    %c0_40 = arith.constant 0 : index
    %35 = vector.load %arg2[%c0_38, %c0_39, %c36, %c0_40] : memref<1x1x342x32xbf16, #tpu.memory_space<vmem>>, vector<1x1x288x32xbf16>
    %36 = vector.shape_cast %35 : vector<1x1x288x32xbf16> to vector<288x32xbf16>
    %c6 = arith.constant 6 : index
    %c0_41 = arith.constant 0 : index
    %c0_42 = arith.constant 0 : index
    %37 = vector.load %arg3[%c6, %c0_41, %c0_42] : memref<9x32x32xbf16, #tpu.memory_space<vmem>>, vector<1x32x32xbf16>
    %38 = vector.shape_cast %37 : vector<1x32x32xbf16> to vector<32x32xbf16>
    %cst_43 = arith.constant dense<0.000000e+00> : vector<288x32xf32>
    %39 = tpu.matmul %36, %38, %cst_43 {dimension_numbers = #tpu.dot_dimension_numbers<[1], [0], [0], [1], [0, 0, 1, 1], [], []>} : vector<288x32xbf16>, vector<32x32xbf16>, vector<288x32xf32> -> vector<288x32xf32>
    %40 = arith.addf %34, %39 : vector<288x32xf32>
    %c0_44 = arith.constant 0 : index
    %c0_45 = arith.constant 0 : index
    %c37 = arith.constant 37 : index
    %c0_46 = arith.constant 0 : index
    %41 = vector.load %arg2[%c0_44, %c0_45, %c37, %c0_46] : memref<1x1x342x32xbf16, #tpu.memory_space<vmem>>, vector<1x1x288x32xbf16>
    %42 = vector.shape_cast %41 : vector<1x1x288x32xbf16> to vector<288x32xbf16>
    %c7 = arith.constant 7 : index
    %c0_47 = arith.constant 0 : index
    %c0_48 = arith.constant 0 : index
    %43 = vector.load %arg3[%c7, %c0_47, %c0_48] : memref<9x32x32xbf16, #tpu.memory_space<vmem>>, vector<1x32x32xbf16>
    %44 = vector.shape_cast %43 : vector<1x32x32xbf16> to vector<32x32xbf16>
    %cst_49 = arith.constant dense<0.000000e+00> : vector<288x32xf32>
    %45 = tpu.matmul %42, %44, %cst_49 {dimension_numbers = #tpu.dot_dimension_numbers<[1], [0], [0], [1], [0, 0, 1, 1], [], []>} : vector<288x32xbf16>, vector<32x32xbf16>, vector<288x32xf32> -> vector<288x32xf32>
    %46 = arith.addf %40, %45 : vector<288x32xf32>
    %c0_50 = arith.constant 0 : index
    %c0_51 = arith.constant 0 : index
    %c38 = arith.constant 38 : index
    %c0_52 = arith.constant 0 : index
    %47 = vector.load %arg2[%c0_50, %c0_51, %c38, %c0_52] : memref<1x1x342x32xbf16, #tpu.memory_space<vmem>>, vector<1x1x288x32xbf16>
    %48 = vector.shape_cast %47 : vector<1x1x288x32xbf16> to vector<288x32xbf16>
    %c8 = arith.constant 8 : index
    %c0_53 = arith.constant 0 : index
    %c0_54 = arith.constant 0 : index
    %49 = vector.load %arg3[%c8, %c0_53, %c0_54] : memref<9x32x32xbf16, #tpu.memory_space<vmem>>, vector<1x32x32xbf16>
    %50 = vector.shape_cast %49 : vector<1x32x32xbf16> to vector<32x32xbf16>
    %cst_55 = arith.constant dense<0.000000e+00> : vector<288x32xf32>
    %51 = tpu.matmul %48, %50, %cst_55 {dimension_numbers = #tpu.dot_dimension_numbers<[1], [0], [0], [1], [0, 0, 1, 1], [], []>} : vector<288x32xbf16>, vector<32x32xbf16>, vector<288x32xf32> -> vector<288x32xf32>
    %52 = arith.addf %46, %51 : vector<288x32xf32>
    %c0_56 = arith.constant 0 : index
    %c0_57 = arith.constant 0 : index
    %c0_58 = arith.constant 0 : index
    %53 = vector.load %arg4[%c0_56, %c0_57, %c0_58] : memref<1x1x32xf32, #tpu.memory_space<vmem>>, vector<1x1x32xf32>
    %54 = vector.shape_cast %53 : vector<1x1x32xf32> to vector<1x32xf32>
    %55 = vector.broadcast %54 : vector<1x32xf32> to vector<288x32xf32>
    %56 = arith.mulf %52, %55 : vector<288x32xf32>
    %c0_59 = arith.constant 0 : index
    %c0_60 = arith.constant 0 : index
    %c0_61 = arith.constant 0 : index
    %57 = vector.load %arg5[%c0_59, %c0_60, %c0_61] : memref<1x288x1xf32, #tpu.memory_space<vmem>>, vector<1x288x1xf32>
    %58 = vector.shape_cast %57 : vector<1x288x1xf32> to vector<288x1xf32>
    %59 = vector.broadcast %58 : vector<288x1xf32> to vector<288x32xf32>
    %60 = arith.addf %56, %59 : vector<288x32xf32>
    %c0_62 = arith.constant 0 : index
    %c0_63 = arith.constant 0 : index
    %61 = vector.load %arg6[%c0_62, %c0_63] : memref<1x32xf32, #tpu.memory_space<vmem>>, vector<1x32xf32>
    %62 = vector.broadcast %61 : vector<1x32xf32> to vector<288x32xf32>
    %63 = arith.addf %60, %62 : vector<288x32xf32>
    %cst_64 = arith.constant 1.41421354 : f32
    %64 = vector.broadcast %cst_64 : f32 to vector<288x32xf32>
    %65 = arith.mulf %63, %64 : vector<288x32xf32>
    %cst_65 = arith.constant 0.000000e+00 : f32
    %66 = vector.broadcast %cst_65 : f32 to vector<288x32xf32>
    %67 = arith.cmpf oge, %65, %66 : vector<288x32xf32>
    %cst_66 = arith.constant 2.000000e-01 : f32
    %68 = vector.broadcast %cst_66 : f32 to vector<288x32xf32>
    %69 = arith.mulf %68, %65 : vector<288x32xf32>
    %70 = arith.select %67, %65, %69 : vector<288x32xi1>, vector<288x32xf32>
    %c0_67 = arith.constant 0 : index
    %c0_68 = arith.constant 0 : index
    %c0_69 = arith.constant 0 : index
    %c0_70 = arith.constant 0 : index
    %c0_71 = arith.constant 0 : index
    %71 = vector.load %arg7[%c0_67, %c0_68, %c0_69, %c0_70, %c0_71] : memref<1x1x1x288x32xf32, #tpu.memory_space<vmem>>, vector<1x1x1x288x32xf32>
    %72 = vector.shape_cast %71 : vector<1x1x1x288x32xf32> to vector<288x32xf32>
    %73 = vector.shape_cast %70 : vector<288x32xf32> to vector<1x1x1x288x32xf32>
    tpu.vector_store %arg7[%c0_67, %c0_68, %c0_69, %c0_70, %c0_71], %73 {strides = array<i32>} : memref<1x1x1x288x32xf32, #tpu.memory_space<vmem>>, vector<1x1x1x288x32xf32>,
    return
  }
  func.func @transform_0(%arg0: i32, %arg1: i32) -> (i32, i32, i32, i32) {
    %c0_i32 = arith.constant 0 : i32
    %c0_i32_0 = arith.constant 0 : i32
    %c0_i32_1 = arith.constant 0 : i32
    return %arg0, %arg1, %c0_i32, %c0_i32_0 : i32, i32, i32, i32
  }
  func.func @transform_1(%arg0: i32, %arg1: i32) -> (i32, i32, i32) {
    %c0_i32 = arith.constant 0 : i32
    %c0_i32_0 = arith.constant 0 : i32
    %c0_i32_1 = arith.constant 0 : i32
    %c0_i32_2 = arith.constant 0 : i32
    return %c0_i32, %c0_i32_0, %c0_i32_1 : i32, i32, i32
  }
  func.func @transform_2(%arg0: i32, %arg1: i32) -> (i32, i32, i32) {
    %c0_i32 = arith.constant 0 : i32
    %c0_i32_0 = arith.constant 0 : i32
    %c0_i32_1 = arith.constant 0 : i32
    return %arg0, %c0_i32, %c0_i32_0 : i32, i32, i32
  }
  func.func @transform_3(%arg0: i32, %arg1: i32) -> (i32, i32, i32) {
    %c0_i32 = arith.constant 0 : i32
    %c0_i32_0 = arith.constant 0 : i32
    %c0_i32_1 = arith.constant 0 : i32
    return %arg1, %c0_i32, %c0_i32_0 : i32, i32, i32
  }
  func.func @transform_4(%arg0: i32, %arg1: i32) -> (i32, i32) {
    %c0_i32 = arith.constant 0 : i32
    %c0_i32_0 = arith.constant 0 : i32
    %c0_i32_1 = arith.constant 0 : i32
    return %c0_i32, %c0_i32_0 : i32, i32
  }
  func.func @transform_5(%arg0: i32, %arg1: i32) -> (i32, i32, i32, i32, i32) {
    %c0_i32 = arith.constant 0 : i32
    %c0_i32_0 = arith.constant 0 : i32
    %c0_i32_1 = arith.constant 0 : i32
    %c0_i32_2 = arith.constant 0 : i32
    return %arg0, %c0_i32, %arg1, %c0_i32_0, %c0_i32_1 : i32, i32, i32, i32, i32
  }
}

module attributes {stable_mosaic.version = 11 : i64} {
  func.func @kernel(%arg0: i32, %arg1: i32, %arg2: memref<1x1x256x32xbf16, #tpu.memory_space<vmem>>, %arg3: memref<1x32x128xbf16, #tpu.memory_space<vmem>>, %arg4: memref<1x128xf32, #tpu.memory_space<vmem>>, %arg5: memref<1x1x1x256x128xf32, #tpu.memory_space<vmem>>) attributes {dimension_semantics = [#tpu.dimension_semantics<parallel>, #tpu.dimension_semantics<parallel>], iteration_bounds = array<i64: 2, 1>, scalar_prefetch = 0 : i64, scratch_operands = 0 : i64, tpu.core_type = #tpu.core_type<tc>, window_params = [{transform_indices = @transform_0, window_bounds = array<i64: 1, 1, 256, 32>}, {pipeline_mode = #tpu.pipeline_mode<synchronous>, transform_indices = @transform_1, window_bounds = array<i64: 1, 32, 128>}, {pipeline_mode = #tpu.pipeline_mode<synchronous>, transform_indices = @transform_2, window_bounds = array<i64: 1, 128>}, {transform_indices = @transform_3, window_bounds = array<i64: 1, 1, 1, 256, 128>}]} {
    %c0 = arith.constant 0 : index
    %c0_0 = arith.constant 0 : index
    %c0_1 = arith.constant 0 : index
    %c0_2 = arith.constant 0 : index
    %0 = vector.load %arg2[%c0, %c0_0, %c0_1, %c0_2] : memref<1x1x256x32xbf16, #tpu.memory_space<vmem>>, vector<1x1x256x32xbf16>
    %1 = vector.shape_cast %0 : vector<1x1x256x32xbf16> to vector<256x32xbf16>
    %c0_3 = arith.constant 0 : index
    %c0_4 = arith.constant 0 : index
    %c0_5 = arith.constant 0 : index
    %2 = vector.load %arg3[%c0_3, %c0_4, %c0_5] : memref<1x32x128xbf16, #tpu.memory_space<vmem>>, vector<1x32x128xbf16>
    %3 = vector.shape_cast %2 : vector<1x32x128xbf16> to vector<32x128xbf16>
    %cst = arith.constant dense<0.000000e+00> : vector<256x128xf32>
    %4 = tpu.matmul %1, %3, %cst {dimension_numbers = #tpu.dot_dimension_numbers<[1], [0], [0], [1], [0, 0, 1, 1], [], []>} : vector<256x32xbf16>, vector<32x128xbf16>, vector<256x128xf32> -> vector<256x128xf32>
    %c0_6 = arith.constant 0 : index
    %c0_7 = arith.constant 0 : index
    %5 = vector.load %arg4[%c0_6, %c0_7] : memref<1x128xf32, #tpu.memory_space<vmem>>, vector<1x128xf32>
    %6 = vector.broadcast %5 : vector<1x128xf32> to vector<256x128xf32>
    %7 = arith.addf %4, %6 : vector<256x128xf32>
    %c0_8 = arith.constant 0 : index
    %c0_9 = arith.constant 0 : index
    %c0_10 = arith.constant 0 : index
    %c0_11 = arith.constant 0 : index
    %c0_12 = arith.constant 0 : index
    %8 = vector.load %arg5[%c0_8, %c0_9, %c0_10, %c0_11, %c0_12] : memref<1x1x1x256x128xf32, #tpu.memory_space<vmem>>, vector<1x1x1x256x128xf32>
    %9 = vector.shape_cast %8 : vector<1x1x1x256x128xf32> to vector<256x128xf32>
    %10 = vector.shape_cast %7 : vector<256x128xf32> to vector<1x1x1x256x128xf32>
    tpu.vector_store %arg5[%c0_8, %c0_9, %c0_10, %c0_11, %c0_12], %10 {strides = array<i32>} : memref<1x1x1x256x128xf32, #tpu.memory_space<vmem>>, vector<1x1x1x256x128xf32>,
    return
  }
  func.func @transform_0(%arg0: i32, %arg1: i32) -> (i32, i32, i32, i32) {
    %c0_i32 = arith.constant 0 : i32
    %c0_i32_0 = arith.constant 0 : i32
    %c0_i32_1 = arith.constant 0 : i32
    return %arg0, %arg1, %c0_i32, %c0_i32_0 : i32, i32, i32, i32
  }
  func.func @transform_1(%arg0: i32, %arg1: i32) -> (i32, i32, i32) {
    %c0_i32 = arith.constant 0 : i32
    %c0_i32_0 = arith.constant 0 : i32
    %c0_i32_1 = arith.constant 0 : i32
    %c0_i32_2 = arith.constant 0 : i32
    return %c0_i32, %c0_i32_0, %c0_i32_1 : i32, i32, i32
  }
  func.func @transform_2(%arg0: i32, %arg1: i32) -> (i32, i32) {
    %c0_i32 = arith.constant 0 : i32
    %c0_i32_0 = arith.constant 0 : i32
    %c0_i32_1 = arith.constant 0 : i32
    return %c0_i32, %c0_i32_0 : i32, i32
  }
  func.func @transform_3(%arg0: i32, %arg1: i32) -> (i32, i32, i32, i32, i32) {
    %c0_i32 = arith.constant 0 : i32
    %c0_i32_0 = arith.constant 0 : i32
    %c0_i32_1 = arith.constant 0 : i32
    %c0_i32_2 = arith.constant 0 : i32
    return %arg0, %c0_i32, %arg1, %c0_i32_0, %c0_i32_1 : i32, i32, i32, i32, i32
  }
}

module attributes {stable_mosaic.version = 11 : i64} {
  func.func @kernel(%arg0: i32, %arg1: i32, %arg2: memref<1x1x19x19x3xf32, #tpu.memory_space<vmem>>, %arg3: memref<1x16x16x3xf32, #tpu.memory_space<vmem>>, %arg4: memref<16x19x3xf32, #tpu.memory_space<vmem>>) attributes {dimension_semantics = [#tpu.dimension_semantics<parallel>, #tpu.dimension_semantics<parallel>], iteration_bounds = array<i64: 2, 1>, scalar_prefetch = 0 : i64, scratch_operands = 1 : i64, tpu.core_type = #tpu.core_type<tc>, window_params = [{transform_indices = @transform_0, window_bounds = array<i64: 1, 1, 19, 19, 3>}, {transform_indices = @transform_1, window_bounds = array<i64: 1, 16, 16, 3>}]} {
    %c0 = arith.constant 0 : index
    %c0_0 = arith.constant 0 : index
    %c0_1 = arith.constant 0 : index
    %c0_2 = arith.constant 0 : index
    %c0_3 = arith.constant 0 : index
    %0 = vector.load %arg2[%c0, %c0_0, %c0_1, %c0_2, %c0_3] : memref<1x1x19x19x3xf32, #tpu.memory_space<vmem>>, vector<1x1x16x19x3xf32>
    %1 = vector.shape_cast %0 : vector<1x1x16x19x3xf32> to vector<16x19x3xf32>
    %cst = arith.constant 2.500000e-01 : f32
    %2 = vector.broadcast %cst : f32 to vector<16x19x3xf32>
    %3 = arith.mulf %2, %1 : vector<16x19x3xf32>
    %c0_4 = arith.constant 0 : index
    %c0_5 = arith.constant 0 : index
    %c1 = arith.constant 1 : index
    %c0_6 = arith.constant 0 : index
    %c0_7 = arith.constant 0 : index
    %4 = vector.load %arg2[%c0_4, %c0_5, %c1, %c0_6, %c0_7] : memref<1x1x19x19x3xf32, #tpu.memory_space<vmem>>, vector<1x1x16x19x3xf32>
    %5 = vector.shape_cast %4 : vector<1x1x16x19x3xf32> to vector<16x19x3xf32>
    %cst_8 = arith.constant 7.500000e-01 : f32
    %6 = vector.broadcast %cst_8 : f32 to vector<16x19x3xf32>
    %7 = arith.mulf %6, %5 : vector<16x19x3xf32>
    %8 = arith.addf %3, %7 : vector<16x19x3xf32>
    %c0_9 = arith.constant 0 : index
    %c0_10 = arith.constant 0 : index
    %c2 = arith.constant 2 : index
    %c0_11 = arith.constant 0 : index
    %c0_12 = arith.constant 0 : index
    %9 = vector.load %arg2[%c0_9, %c0_10, %c2, %c0_11, %c0_12] : memref<1x1x19x19x3xf32, #tpu.memory_space<vmem>>, vector<1x1x16x19x3xf32>
    %10 = vector.shape_cast %9 : vector<1x1x16x19x3xf32> to vector<16x19x3xf32>
    %cst_13 = arith.constant 7.500000e-01 : f32
    %11 = vector.broadcast %cst_13 : f32 to vector<16x19x3xf32>
    %12 = arith.mulf %11, %10 : vector<16x19x3xf32>
    %13 = arith.addf %8, %12 : vector<16x19x3xf32>
    %c0_14 = arith.constant 0 : index
    %c0_15 = arith.constant 0 : index
    %c3 = arith.constant 3 : index
    %c0_16 = arith.constant 0 : index
    %c0_17 = arith.constant 0 : index
    %14 = vector.load %arg2[%c0_14, %c0_15, %c3, %c0_16, %c0_17] : memref<1x1x19x19x3xf32, #tpu.memory_space<vmem>>, vector<1x1x16x19x3xf32>
    %15 = vector.shape_cast %14 : vector<1x1x16x19x3xf32> to vector<16x19x3xf32>
    %cst_18 = arith.constant 2.500000e-01 : f32
    %16 = vector.broadcast %cst_18 : f32 to vector<16x19x3xf32>
    %17 = arith.mulf %16, %15 : vector<16x19x3xf32>
    %18 = arith.addf %13, %17 : vector<16x19x3xf32>
    %c0_19 = arith.constant 0 : index
    %c0_20 = arith.constant 0 : index
    %c0_21 = arith.constant 0 : index
    %19 = vector.load %arg4[%c0_19, %c0_20, %c0_21] : memref<16x19x3xf32, #tpu.memory_space<vmem>>, vector<16x19x3xf32>
    tpu.vector_store %arg4[%c0_19, %c0_20, %c0_21], %18 {strides = array<i32>} : memref<16x19x3xf32, #tpu.memory_space<vmem>>, vector<16x19x3xf32>,
    %c0_22 = arith.constant 0 : index
    %c0_23 = arith.constant 0 : index
    %c0_24 = arith.constant 0 : index
    %20 = vector.load %arg4[%c0_22, %c0_23, %c0_24] : memref<16x19x3xf32, #tpu.memory_space<vmem>>, vector<16x16x3xf32>
    %cst_25 = arith.constant 2.500000e-01 : f32
    %21 = vector.broadcast %cst_25 : f32 to vector<16x16x3xf32>
    %22 = arith.mulf %21, %20 : vector<16x16x3xf32>
    %c0_26 = arith.constant 0 : index
    %c1_27 = arith.constant 1 : index
    %c0_28 = arith.constant 0 : index
    %23 = vector.load %arg4[%c0_26, %c1_27, %c0_28] : memref<16x19x3xf32, #tpu.memory_space<vmem>>, vector<16x16x3xf32>
    %cst_29 = arith.constant 7.500000e-01 : f32
    %24 = vector.broadcast %cst_29 : f32 to vector<16x16x3xf32>
    %25 = arith.mulf %24, %23 : vector<16x16x3xf32>
    %26 = arith.addf %22, %25 : vector<16x16x3xf32>
    %c0_30 = arith.constant 0 : index
    %c2_31 = arith.constant 2 : index
    %c0_32 = arith.constant 0 : index
    %27 = vector.load %arg4[%c0_30, %c2_31, %c0_32] : memref<16x19x3xf32, #tpu.memory_space<vmem>>, vector<16x16x3xf32>
    %cst_33 = arith.constant 7.500000e-01 : f32
    %28 = vector.broadcast %cst_33 : f32 to vector<16x16x3xf32>
    %29 = arith.mulf %28, %27 : vector<16x16x3xf32>
    %30 = arith.addf %26, %29 : vector<16x16x3xf32>
    %c0_34 = arith.constant 0 : index
    %c3_35 = arith.constant 3 : index
    %c0_36 = arith.constant 0 : index
    %31 = vector.load %arg4[%c0_34, %c3_35, %c0_36] : memref<16x19x3xf32, #tpu.memory_space<vmem>>, vector<16x16x3xf32>
    %cst_37 = arith.constant 2.500000e-01 : f32
    %32 = vector.broadcast %cst_37 : f32 to vector<16x16x3xf32>
    %33 = arith.mulf %32, %31 : vector<16x16x3xf32>
    %34 = arith.addf %30, %33 : vector<16x16x3xf32>
    %c0_38 = arith.constant 0 : index
    %c0_39 = arith.constant 0 : index
    %c0_40 = arith.constant 0 : index
    %c0_41 = arith.constant 0 : index
    %35 = vector.load %arg3[%c0_38, %c0_39, %c0_40, %c0_41] : memref<1x16x16x3xf32, #tpu.memory_space<vmem>>, vector<1x16x16x3xf32>
    %36 = vector.shape_cast %35 : vector<1x16x16x3xf32> to vector<16x16x3xf32>
    %37 = vector.shape_cast %34 : vector<16x16x3xf32> to vector<1x16x16x3xf32>
    tpu.vector_store %arg3[%c0_38, %c0_39, %c0_40, %c0_41], %37 {strides = array<i32>} : memref<1x16x16x3xf32, #tpu.memory_space<vmem>>, vector<1x16x16x3xf32>,
    return
  }
  func.func @transform_0(%arg0: i32, %arg1: i32) -> (i32, i32, i32, i32, i32) {
    %c0_i32 = arith.constant 0 : i32
    %c0_i32_0 = arith.constant 0 : i32
    %c0_i32_1 = arith.constant 0 : i32
    %c0_i32_2 = arith.constant 0 : i32
    return %arg0, %arg1, %c0_i32, %c0_i32_0, %c0_i32_1 : i32, i32, i32, i32, i32
  }
  func.func @transform_1(%arg0: i32, %arg1: i32) -> (i32, i32, i32, i32) {
    %c0_i32 = arith.constant 0 : i32
    %c0_i32_0 = arith.constant 0 : i32
    %c0_i32_1 = arith.constant 0 : i32
    return %arg0, %arg1, %c0_i32, %c0_i32_0 : i32, i32, i32, i32
  }
}

</mosaic_0001>

<llo_original>
// kernel: generator_synthesis_block.5
$region0: #{generator_synthesis_block.5}
  #allocation0 [shape = 'u32[]', space=smem, size = 0x4, offset = 0x4, fixed_abs, tag = 'smem constant byte address 0x4 - core index']
  #allocation1 [shape = 'u32[144,128]{1,0:T(1,128)}', space=vmem, size = 0x12000, scoped, tag = 'internal scratch']
  %s0 = inlined_call_operand.vmem [shape: bf16[2,1,110,16], index: 0, kind: input, shape index: {}]
  %s1 = inlined_call_operand.vmem [shape: bf16[9,16,32], index: 1, kind: input, shape index: {}]
  %s2 = inlined_call_operand.vmem [shape: f32[2,4,1,90,32], index: 2, kind: output, shape index: {}]
  %s3 = sld [smem:[#allocation0]]
  $region41: #{generator_synthesis_block.5} parent=0
    _
  %s5 = ssub.s32 1, %s3
  %s6 = scalar_select 0, %s5, %s3
  loop: start=0, step=1, limit=4
  $region2: #{generator_synthesis_block.5} parent=0 // loop_pre_header
    _
  $region3: #{generator_synthesis_block.5} parent=0 // loop_header
    %s8 = sphi 0, %s12
    %p9 = scmp.ge.s32.totalorder %s8, 4
    %s15 = sphi 0, %s27
    %s16 = sphi 0, %s23
    %s17 = sphi 0, %s15
    %s18 = sphi 0, %s16
    %s19 = sphi 0, %s17
    %s20 = sphi 0, %s18
    %s32 = sphi 0, %s34
    %s35 = sphi 0, %s32
    %s36 = sphi 0, %s35
    %s52 = sphi 0, %s36
    %s56 = sphi 0, %s56
    %s58 = sphi 0, %s56
    %s59 = sphi 0, %s58
    %s73 = sphi 0, %s59
    %s81 = sphi 0, %s83
    %s84 = sphi 0, %s81
    %s85 = sphi 0, %s84
    %s101 = sphi 0, %s85
  $region4: #{generator_synthesis_block.5} parent=0 // loop_header_branch
    %11 = sbr.rel (%p9) target = $region8
  $region5: #{generator_synthesis_block.5} parent=0 // loop_body
    %s13 = ssub.s32 %s8, 1
    %s14 = ssub.s32 %s8, 2
    %s21 = sadd.s32 1, %s16
    %p22 = scmp.ge.s32.totalorder %s21, 1
    %s23 = scalar_select %p22, 0, %s21
    %s24 = sadd.s32 1, %s15
    %s25 = scalar_select %p22, %s24, %s15
    %p26 = scmp.ge.s32.totalorder %s25, 2
    %s27 = scalar_select %p26, 0, %s25
    %s28 = ssub.s32 %s15, %s27
    %s29 = ssub.s32 %s16, %s23
    %s30 = sor.u32 %s28, %s29
    %p31 = scmp.eq.s32.totalorder %s30, 0
    %s33 = sadd.s32 %s32, 1
    %s34 = scalar_select %p31, %s32, %s33
    %p37 = pneg %p31
    %p38 = scmp.eq.s32.totalorder %s8, 1
    %p39 = por %p37, %p38
    %p40 = scmp.ne.s32.totalorder %s32, %s35
    %p41 = scmp.eq.s32.totalorder %s8, 0
    %p42 = por %p40, %p41
    %p43 = scmp.ne.s32.totalorder %s32, %s35
    %p44 = scmp.eq.s32.totalorder %s13, 1
    %p45 = por %p43, %p44
    %p46 = scmp.ne.s32.totalorder %s35, %s36
    %p47 = scmp.eq.s32.totalorder %s13, 0
    %p48 = por %p46, %p47
    %p49 = scmp.ne.s32.totalorder %s35, %s36
    %p50 = scmp.eq.s32.totalorder %s14, 1
    %p51 = por %p49, %p50
    %p53 = scmp.ne.s32.totalorder %s36, %s52
    %p54 = scmp.eq.s32.totalorder %s14, 0
    %p55 = por %p53, %p54
    %s57 = sadd.s32 %s56, 1
    %p60 = scmp.eq.s32.totalorder %s8, 1
    %p61 = scmp.ne.s32.totalorder %s56, %s58
    %p62 = scmp.eq.s32.totalorder %s8, 0
    %p63 = por %p61, %p62
    %p64 = scmp.ne.s32.totalorder %s56, %s58
    %p65 = scmp.eq.s32.totalorder %s13, 1
    %p66 = por %p64, %p65
    %p67 = scmp.ne.s32.totalorder %s58, %s59
    %p68 = scmp.eq.s32.totalorder %s13, 0
    %p69 = por %p67, %p68
    %p70 = scmp.ne.s32.totalorder %s58, %s59
    %p71 = scmp.eq.s32.totalorder %s14, 1
    %p72 = por %p70, %p71
    %p74 = scmp.ne.s32.totalorder %s59, %s73
    %p75 = scmp.eq.s32.totalorder %s14, 0
    %p76 = por %p74, %p75
    %s77 = ssub.s32 %s15, %s27
    %s78 = ssub.s32 %s16, %s23
    %s79 = sor.u32 %s77, %s78
    %p80 = scmp.eq.s32.totalorder %s79, 0
    %s82 = sadd.s32 %s81, 1
    %s83 = scalar_select %p80, %s81, %s82
    %p86 = pneg %p80
    %p87 = scmp.eq.s32.totalorder %s8, 1
    %p88 = por %p86, %p87
    %p89 = scmp.ne.s32.totalorder %s81, %s84
    %p90 = scmp.eq.s32.totalorder %s8, 0
    %p91 = por %p89, %p90
    %p92 = scmp.ne.s32.totalorder %s81, %s84
    %p93 = scmp.eq.s32.totalorder %s13, 1
    %p94 = por %p92, %p93
    %p95 = scmp.ne.s32.totalorder %s84, %s85
    %p96 = scmp.eq.s32.totalorder %s13, 0
    %p97 = por %p95, %p96
    %p98 = scmp.ne.s32.totalorder %s84, %s85
    %p99 = scmp.eq.s32.totalorder %s14, 1
    %p100 = por %p98, %p99
    %p102 = scmp.ne.s32.totalorder %s85, %s101
    %p103 = scmp.eq.s32.totalorder %s14, 0
    %p104 = por %p102, %p103
    %p105 = scmp.le.s32.totalorder 1, %s8
    %p106 = scmp.lt.s32.totalorder %s8, 3
    %p107 = pnand %p105, %p106
    %p108 = pneg %p107
    // Predicated region
    $region9: #{generator_synthesis_block.5} parent=5 // pred_check
      _
    $region10: #{generator_synthesis_block.5} parent=5 // pred_check_branch
      %110 = sbr.rel (%p107) target = $region12
    $region11: #{generator_synthesis_block.5} parent=5 // pred_region
      %s111 = ssub.s32 %s8, 1
      // Predicated region
      $region13: #{generator_synthesis_block.5} parent=11 // pred_check
        %p112 = pneg %p69
      $region14: #{generator_synthesis_block.5} parent=11 // pred_check_branch
        %114 = sbr.rel (%p112) target = $region16
      $region15: #{generator_synthesis_block.5} parent=11 // pred_region
        _
      $region16: #{generator_synthesis_block.5} parent=11 // pred_fallthru
        _
    $region12: #{generator_synthesis_block.5} parent=5 // pred_fallthru
      _
    %p115 = scmp.lt.s32.totalorder %s8, 2
    // Predicated region
    $region17: #{generator_synthesis_block.5} parent=5 // pred_check
      %p116 = pneg %p115
    $region18: #{generator_synthesis_block.5} parent=5 // pred_check_branch
      %118 = sbr.rel (%p116) target = $region20
    $region19: #{generator_synthesis_block.5} parent=5 // pred_region
      // Predicated region
      $region21: #{generator_synthesis_block.5} parent=19 // pred_check
        %p119 = pneg %p42
      $region22: #{generator_synthesis_block.5} parent=19 // pred_check_branch
        %121 = sbr.rel (%p119) target = $region24
      $region23: #{generator_synthesis_block.5} parent=19 // pred_region
        %p122 = scmp.lt.s32.totalorder %s15, 1
        %s123 = scalar_select %p122, %s15, 1
        %p124 = scmp.lt.s32.totalorder %s16, 0
        %s125 = scalar_select %p124, %s16, 0
        %s126 = smul.addr %s125, 14
        %s127 = smul.addr %s123, 14
        %s128 = sadd.s32 %s126, %s127
        %s129 = smul.addr %s128, 4
        %s130 = scalar_lea.vmem %s0, %s129
      $region24: #{generator_synthesis_block.5} parent=19 // pred_fallthru
        _
    $region20: #{generator_synthesis_block.5} parent=5 // pred_fallthru
      _
    %p131 = scmp.le.s32.totalorder 1, %s8
    %p132 = scmp.lt.s32.totalorder %s8, 3
    %p133 = pnand %p131, %p132
    %p134 = pneg %p133
    // Predicated region
    $region25: #{generator_synthesis_block.5} parent=5 // pred_check
      _
    $region26: #{generator_synthesis_block.5} parent=5 // pred_check_branch
      %136 = sbr.rel (%p133) target = $region28
    $region27: #{generator_synthesis_block.5} parent=5 // pred_region
      %s137 = ssub.s32 %s8, 1
      %p138 = scmp.lt.s32.totalorder %s17, 1
      %s139 = scalar_select %p138, %s17, 1
      %p140 = scmp.lt.s32.totalorder %s18, 0
      %s141 = scalar_select %p140, %s18, 0
      %s142 = smul.addr %s141, 14
      %s143 = smul.addr %s139, 14
      %s144 = sadd.s32 %s142, %s143
      %s145 = smul.addr %s144, 4
      %s146 = scalar_lea.vmem %s0, %s145
      %p147 = pneg %p48
      %p148 = pneg %p45
      %p149 = pneg %p69
      %p150 = pneg %p66
      %p151 = pneg %p97
      %p152 = pneg %p94
      %p153 = scmp.lt.s32.totalorder %s17, 1
      %s154 = scalar_select %p153, %s17, 1
      %p155 = scmp.lt.s32.totalorder %s18, 0
      %s156 = scalar_select %p155, %s18, 0
      %s157 = smul.addr %s156, 12
      %s158 = smul.addr %s154, 48
      %s159 = sadd.s32 %s157, %s158
      %s160 = smul.addr %s159, 8
      %s161 = scalar_lea.vmem %s2, %s160
      %p162 = scmp.lt.s32.totalorder %s17, 1
      %s163 = scalar_select %p162, %s17, 1
      %p164 = scmp.lt.s32.totalorder %s18, 0
      %s165 = scalar_select %p164, %s18, 0
      %s166 = smul.addr %s165, 14
      %s167 = smul.addr %s163, 14
      %s168 = sadd.s32 %s166, %s167
      %s169 = smul.addr %s168, 4
      %s170 = scalar_lea.vmem %s0, %s169
      %p171 = scmp.lt.s32.totalorder %s17, 1
      %s172 = scalar_select %p171, %s17, 1
      %p173 = scmp.lt.s32.totalorder %s18, 0
      %s174 = scalar_select %p173, %s18, 0
      %s175 = smul.addr %s174, 12
      %s176 = smul.addr %s172, 48
      %s177 = sadd.s32 %s175, %s176
      %s178 = smul.addr %s177, 8
      %s179 = scalar_lea.vmem %s2, %s178
      %v181 = vld [vmem:[%s170] sm:$0xf]
      %v182 = vld [vmem:[%s170 + $0x4] sm:$0xf]
      %v183 = vld [vmem:[%s170 + $0x8] sm:$0xf]
      %v184 = vld [vmem:[%s170 + $0xc] sm:$0xf]
      %v185 = vld [vmem:[%s170 + $0x10] sm:$0xf]
      %v186 = vld [vmem:[%s170 + $0x14] sm:$0xf]
      %v187 = vld [vmem:[%s170 + $0x18] sm:$0xf]
      %v188 = vld [vmem:[%s170 + $0x1c] sm:$0xf]
      %v189 = vld [vmem:[%s170 + $0x20] sm:$0xf]
      %v190 = vld [vmem:[%s170 + $0x24] sm:$0xf]
      %v191 = vld [vmem:[%s170 + $0x28] sm:$0xf]
      %v192 = vld [vmem:[%s170 + $0x2c] sm:$0x1]
      %v193 = vld [vmem:[%s1] sm:$0xf]
      %v194 = vld [vmem:[%s1 + $0x4] sm:$0xf]
      %v195 = vld [vmem:[%s170 + $0x2c] sm:$0x3]
      %s196 = scalar_lea.vmem %s1, 8
      %v197 = vld [vmem:[%s196] sm:$0xf]
      %v198 = vld [vmem:[%s196 + $0x4] sm:$0xf]
      %v211 = vunpack.c.l.b16 %v181
      %v212 = vunpack.c.l.b16 %v182
      %v213 = vunpack.c.l.b16 %v183
      %v214 = vunpack.c.l.b16 %v184
      %v215 = vunpack.c.l.b16 %v185
      %v216 = vunpack.c.l.b16 %v186
      %v217 = vunpack.c.l.b16 %v187
      %v218 = vunpack.c.l.b16 %v188
      %v219 = vunpack.c.l.b16 %v189
      %v220 = vunpack.c.l.b16 %v190
      %v221 = vunpack.c.l.b16 %v191
      %v222 = vunpack.c.l.b16 %v195
      %v223 = vpack.c.b16 %v212, %v211
      %v224 = vpack.c.b16 %v214, %v213
      %v225 = vpack.c.b16 %v216, %v215
      %v226 = vpack.c.b16 %v218, %v217
      %v227 = vpack.c.b16 %v220, %v219
      %v228 = vpack.c.b16 %v222, %v221
      %vm229 = vsmask.f32 7424
      %v231 = vshrl.u32 %v223, 16
      %v233 = vshll.u32 %v223, 16
      %v235 = vrot.slane %v233, 1
      %v236 = vor.u32 %v231, %v235
      %v238 = vshll.u32 %v224, 16
      %v240 = vrot.slane %v238, 1
      %v241 = vsel %vm229, %v236, %v240
      %v242 = vshrl.u32 %v224, 16
      %v244 = vor.u32 %v242, %v240
      %v246 = vshll.u32 %v225, 16
      %v248 = vrot.slane %v246, 1
      %v249 = vsel %vm229, %v244, %v248
      %v250 = vshrl.u32 %v225, 16
      %v252 = vor.u32 %v250, %v248
      %v254 = vshll.u32 %v226, 16
      %v256 = vrot.slane %v254, 1
      %v257 = vsel %vm229, %v252, %v256
      %v258 = vshrl.u32 %v226, 16
      %v260 = vor.u32 %v258, %v256
      %v262 = vshll.u32 %v227, 16
      %v264 = vrot.slane %v262, 1
      %v265 = vsel %vm229, %v260, %v264
      %v266 = vshrl.u32 %v227, 16
      %v268 = vor.u32 %v266, %v264
      %v270 = vshll.u32 %v228, 16
      %v272 = vrot.slane %v270, 1
      %v273 = vsel %vm229, %v268, %v272
      %v274 = vshrl.u32 %v228, 16
      %v276 = vor.u32 %v274, %v272
      %v279 = vunpack.c.l.b16 %v197
      %v280 = vunpack.c.l.b16 %v198
      %v281 = vpack.c.b16 %v280, %v279
      %vm283 = vcmask 130048
      %v285 = vsel %vm283, %v241, 0
      %v288 = vsel %vm283, %v249, 0
      %v291 = vsel %vm283, %v257, 0
      %v294 = vsel %vm283, %v265, 0
      %v297 = vsel %vm283, %v273, 0
      %v300 = vsel %vm283, %v276, 0
      %302 = vmatprep.subr.bf16.mxu0 0
      %303 = vmatpush1.bf16.msra.mxu0 0
      %304 = vmatprep.subr.bf16.mxu0 0
      %305 = vmatpush1.bf16.msra.mxu0 0
      %306 = vmatprep.subr.bf16.mxu0 0
      %307 = vmatpush1.bf16.msra.mxu0 0
      %308 = vmatprep.subr.bf16.mxu0 0
      %309 = vmatpush1.bf16.msra.mxu0 0
      %310 = vmatprep.subr.bf16.mxu0 0
      %311 = vmatpush1.bf16.msra.mxu0 0
      %312 = vmatprep.subr.bf16.mxu0 0
      %313 = vmatpush1.bf16.msra.mxu0 0
      %314 = vmatprep.subr.bf16.mxu0 0
      %315 = vmatpush1.bf16.msra.mxu0 0
      %316 = vmatprep.subr.bf16.mxu0 0
      %317 = vmatpush1.bf16.msra.mxu0 %v281
      %318 = vmatprep.subr.bf16.mxu0 0
      %319 = vmatpush2.bf16.msra.mxu0 0
      %320 = vmatprep.subr.bf16.mxu0 0
      %321 = vmatpush2.bf16.msra.mxu0 0
      %322 = vmatprep.subr.bf16.mxu0 0
      %323 = vmatpush2.bf16.msra.mxu0 0
      %324 = vmatprep.subr.bf16.mxu0 0
      %325 = vmatpush2.bf16.msra.mxu0 0
      %326 = vmatprep.subr.bf16.mxu0 0
      %327 = vmatpush2.bf16.msra.mxu0 0
      %328 = vmatprep.subr.bf16.mxu0 0
      %329 = vmatpush2.bf16.msra.mxu0 0
      %330 = vmatprep.subr.bf16.mxu0 0
      %331 = vmatpush2.bf16.msra.mxu0 0
      %332 = vmatprep.subr.bf16.mxu0 0
      %333 = vmatpush2.bf16.msra.mxu0 0
      %334 = vmatprep.mubr.bf16.mxu0 0
      %335 = vmatmul.mubr.bf16.gmra.mxu0 %v285
      %v336 = vpop.f32.mrf.mxu0
      %v337 = vadd.f32 0.0, %v336
      %v338 = vpop.f32.mrf.mxu0
      %v339 = vpop.f32.mrf.mxu0
      %v340 = vadd.f32 0.0, %v339
      %v341 = vpop.f32.mrf.mxu0
      %342 = vmatprep.mubr.bf16.mxu0 0
      %343 = vmatmul.mubr.bf16.gmra.mxu0 %v288
      %v344 = vpop.f32.mrf.mxu0
      %v345 = vadd.f32 0.0, %v344
      %v346 = vpop.f32.mrf.mxu0
      %v347 = vpop.f32.mrf.mxu0
      %v348 = vadd.f32 0.0, %v347
      %v349 = vpop.f32.mrf.mxu0
      %350 = vmatprep.mubr.bf16.mxu0 0
      %351 = vmatmul.mubr.bf16.gmra.mxu0 %v291
      %v352 = vpop.f32.mrf.mxu0
      %v353 = vadd.f32 0.0, %v352
      %v354 = vpop.f32.mrf.mxu0
      %v355 = vpop.f32.mrf.mxu0
      %v356 = vadd.f32 0.0, %v355
      %v357 = vpop.f32.mrf.mxu0
      %358 = vmatprep.mubr.bf16.mxu0 0
      %359 = vmatmul.mubr.bf16.gmra.mxu0 %v294
      %v360 = vpop.f32.mrf.mxu0
      %v361 = vadd.f32 0.0, %v360
      %v362 = vpop.f32.mrf.mxu0
      %v363 = vpop.f32.mrf.mxu0
      %v364 = vadd.f32 0.0, %v363
      %v365 = vpop.f32.mrf.mxu0
      %366 = vmatprep.mubr.bf16.mxu0 0
      %367 = vmatmul.mubr.bf16.gmra.mxu0 %v297
      %v368 = vpop.f32.mrf.mxu0
      %v369 = vadd.f32 0.0, %v368
      %v370 = vpop.f32.mrf.mxu0
      %v371 = vpop.f32.mrf.mxu0
      %v372 = vadd.f32 0.0, %v371
      %v373 = vpop.f32.mrf.mxu0
      %374 = vmatprep.mubr.bf16.mxu0 0
      %375 = vmatmul.mubr.bf16.gmra.mxu0 %v300
      %v376 = vpop.f32.mrf.mxu0
      %v377 = vadd.f32 0.0, %v376
      %v378 = vpop.f32.mrf.mxu0
      %v379 = vpop.f32.mrf.mxu0
      %v380 = vadd.f32 0.0, %v379
      %v381 = vpop.f32.mrf.mxu0
      %382 = vdwg.mxu0
      %v384 = vunpack.c.l.b16 %v192
      %v385 = vpack.c.b16 %v384, %v221
      %v388 = vunpack.c.l.b16 %v193
      %v389 = vunpack.c.l.b16 %v194
      %v390 = vpack.c.b16 %v389, %v388
      %v392 = vsel %vm283, %v223, 0
      %v394 = vsel %vm283, %v224, 0
      %v396 = vsel %vm283, %v225, 0
      %v398 = vsel %vm283, %v226, 0
      %v400 = vsel %vm283, %v227, 0
      %v403 = vsel %vm283, %v385, 0
      %405 = vmatprep.subr.bf16.mxu0 0
      %406 = vmatpush1.bf16.msra.mxu0 0
      %407 = vmatprep.subr.bf16.mxu0 0
      %408 = vmatpush1.bf16.msra.mxu0 0
      %409 = vmatprep.subr.bf16.mxu0 0
      %410 = vmatpush1.bf16.msra.mxu0 0
      %411 = vmatprep.subr.bf16.mxu0 0
      %412 = vmatpush1.bf16.msra.mxu0 0
      %413 = vmatprep.subr.bf16.mxu0 0
      %414 = vmatpush1.bf16.msra.mxu0 0
      %415 = vmatprep.subr.bf16.mxu0 0
      %416 = vmatpush1.bf16.msra.mxu0 0
      %417 = vmatprep.subr.bf16.mxu0 0
      %418 = vmatpush1.bf16.msra.mxu0 0
      %419 = vmatprep.subr.bf16.mxu0 0
      %420 = vmatpush1.bf16.msra.mxu0 %v390
      %421 = vmatprep.subr.bf16.mxu0 0
      %422 = vmatpush2.bf16.msra.mxu0 0
      %423 = vmatprep.subr.bf16.mxu0 0
      %424 = vmatpush2.bf16.msra.mxu0 0
      %425 = vmatprep.subr.bf16.mxu0 0
      %426 = vmatpush2.bf16.msra.mxu0 0
      %427 = vmatprep.subr.bf16.mxu0 0
      %428 = vmatpush2.bf16.msra.mxu0 0
      %429 = vmatprep.subr.bf16.mxu0 0
      %430 = vmatpush2.bf16.msra.mxu0 0
      %431 = vmatprep.subr.bf16.mxu0 0
      %432 = vmatpush2.bf16.msra.mxu0 0
      %433 = vmatprep.subr.bf16.mxu0 0
      %434 = vmatpush2.bf16.msra.mxu0 0
      %435 = vmatprep.subr.bf16.mxu0 0
      %436 = vmatpush2.bf16.msra.mxu0 0
      %437 = vmatprep.mubr.bf16.mxu0 0
      %438 = vmatmul.mubr.bf16.gmra.mxu0 %v392
      %v439 = vpop.f32.mrf.mxu0
      %v440 = vadd.f32 %v337, %v439
      %v441 = vpop.f32.mrf.mxu0
      %v442 = vpop.f32.mrf.mxu0
      %v443 = vadd.f32 %v340, %v442
      %v444 = vpop.f32.mrf.mxu0
      %445 = vmatprep.mubr.bf16.mxu0 0
      %446 = vmatmul.mubr.bf16.gmra.mxu0 %v394
      %v447 = vpop.f32.mrf.mxu0
      %v448 = vadd.f32 %v345, %v447
      %v449 = vpop.f32.mrf.mxu0
      %v450 = vpop.f32.mrf.mxu0
      %v451 = vadd.f32 %v348, %v450
      %v452 = vpop.f32.mrf.mxu0
      %453 = vmatprep.mubr.bf16.mxu0 0
      %454 = vmatmul.mubr.bf16.gmra.mxu0 %v396
      %v455 = vpop.f32.mrf.mxu0
      %v456 = vadd.f32 %v353, %v455
      %v457 = vpop.f32.mrf.mxu0
      %v458 = vpop.f32.mrf.mxu0
      %v459 = vadd.f32 %v356, %v458
      %v460 = vpop.f32.mrf.mxu0
      %461 = vmatprep.mubr.bf16.mxu0 0
      %462 = vmatmul.mubr.bf16.gmra.mxu0 %v398
      %v463 = vpop.f32.mrf.mxu0
      %v464 = vadd.f32 %v361, %v463
      %v465 = vpop.f32.mrf.mxu0
      %v466 = vpop.f32.mrf.mxu0
      %v467 = vadd.f32 %v364, %v466
      %v468 = vpop.f32.mrf.mxu0
      %469 = vmatprep.mubr.bf16.mxu0 0
      %470 = vmatmul.mubr.bf16.gmra.mxu0 %v400
      %v471 = vpop.f32.mrf.mxu0
      %v472 = vadd.f32 %v369, %v471
      %v473 = vpop.f32.mrf.mxu0
      %v474 = vpop.f32.mrf.mxu0
      %v475 = vadd.f32 %v372, %v474
      %v476 = vpop.f32.mrf.mxu0
      %477 = vmatprep.mubr.bf16.mxu0 0
      %478 = vmatmul.mubr.bf16.gmra.mxu0 %v403
      %v479 = vpop.f32.mrf.mxu0
      %v480 = vadd.f32 %v377, %v479
      %v481 = vpop.f32.mrf.mxu0
      %v482 = vpop.f32.mrf.mxu0
      %v483 = vadd.f32 %v380, %v482
      %v484 = vpop.f32.mrf.mxu0
      %485 = vdwg.mxu0
      %v486 = vld [vmem:[%s170 + $0x4] sm:$0xe]
      %v487 = vld [vmem:[%s170 + $0x8] sm:$0xf]
      %v488 = vld [vmem:[%s170 + $0xc] sm:$0xf]
      %v489 = vld [vmem:[%s170 + $0x10] sm:$0xf]
      %v490 = vld [vmem:[%s170 + $0x14] sm:$0xf]
      %v491 = vld [vmem:[%s170 + $0x18] sm:$0xf]
      %v492 = vld [vmem:[%s170 + $0x1c] sm:$0xf]
      %v493 = vld [vmem:[%s170 + $0x20] sm:$0xf]
      %v494 = vld [vmem:[%s170 + $0x24] sm:$0xf]
      %v495 = vld [vmem:[%s170 + $0x28] sm:$0xf]
      %v496 = vld [vmem:[%s170 + $0x2c] sm:$0xf]
      %v497 = vld [vmem:[%s170 + $0x30] sm:$0x3]
      %s498 = scalar_lea.vmem %s1, 16
      %v499 = vld [vmem:[%s498] sm:$0xf]
      %v500 = vld [vmem:[%s498 + $0x4] sm:$0xf]
      %v513 = vunpack.c.l.b16 %v486
      %v514 = vunpack.c.l.b16 %v487
      %v515 = vunpack.c.l.b16 %v488
      %v516 = vunpack.c.l.b16 %v489
      %v517 = vunpack.c.l.b16 %v490
      %v518 = vunpack.c.l.b16 %v491
      %v519 = vunpack.c.l.b16 %v492
      %v520 = vunpack.c.l.b16 %v493
      %v521 = vunpack.c.l.b16 %v494
      %v522 = vunpack.c.l.b16 %v495
      %v523 = vunpack.c.l.b16 %v496
      %v524 = vunpack.c.l.b16 %v497
      %v525 = vpack.c.b16 %v514, %v513
      %v526 = vpack.c.b16 %v516, %v515
      %v527 = vpack.c.b16 %v518, %v517
      %v528 = vpack.c.b16 %v520, %v519
      %v529 = vpack.c.b16 %v522, %v521
      %v530 = vpack.c.b16 %v524, %v523
      %vm531 = vcmask 1046528
      %v532 = vrot.slane %v525, 1
      %v533 = vrot.slane %v526, 1
      %v534 = vsel %vm531, %v532, %v533
      %v535 = vrot.slane %v527, 1
      %v536 = vsel %vm531, %v533, %v535
      %v537 = vrot.slane %v528, 1
      %v538 = vsel %vm531, %v535, %v537
      %v539 = vrot.slane %v529, 1
      %v540 = vsel %vm531, %v537, %v539
      %v541 = vrot.slane %v530, 1
      %v542 = vsel %vm531, %v539, %v541
      %v545 = vunpack.c.l.b16 %v499
      %v546 = vunpack.c.l.b16 %v500
      %v547 = vpack.c.b16 %v546, %v545
      %v550 = vsel %vm283, %v534, 0
      %v553 = vsel %vm283, %v536, 0
      %v556 = vsel %vm283, %v538, 0
      %v559 = vsel %vm283, %v540, 0
      %v562 = vsel %vm283, %v542, 0
      %v565 = vsel %vm283, %v541, 0
      %567 = vmatprep.subr.bf16.mxu0 0
      %568 = vmatpush1.bf16.msra.mxu0 0
      %569 = vmatprep.subr.bf16.mxu0 0
      %570 = vmatpush1.bf16.msra.mxu0 0
      %571 = vmatprep.subr.bf16.mxu0 0
      %572 = vmatpush1.bf16.msra.mxu0 0
      %573 = vmatprep.subr.bf16.mxu0 0
      %574 = vmatpush1.bf16.msra.mxu0 0
      %575 = vmatprep.subr.bf16.mxu0 0
      %576 = vmatpush1.bf16.msra.mxu0 0
      %577 = vmatprep.subr.bf16.mxu0 0
      %578 = vmatpush1.bf16.msra.mxu0 0
      %579 = vmatprep.subr.bf16.mxu0 0
      %580 = vmatpush1.bf16.msra.mxu0 0
      %581 = vmatprep.subr.bf16.mxu0 0
      %582 = vmatpush1.bf16.msra.mxu0 %v547
      %583 = vmatprep.subr.bf16.mxu0 0
      %584 = vmatpush2.bf16.msra.mxu0 0
      %585 = vmatprep.subr.bf16.mxu0 0
      %586 = vmatpush2.bf16.msra.mxu0 0
      %587 = vmatprep.subr.bf16.mxu0 0
      %588 = vmatpush2.bf16.msra.mxu0 0
      %589 = vmatprep.subr.bf16.mxu0 0
      %590 = vmatpush2.bf16.msra.mxu0 0
      %591 = vmatprep.subr.bf16.mxu0 0
      %592 = vmatpush2.bf16.msra.mxu0 0
      %593 = vmatprep.subr.bf16.mxu0 0
      %594 = vmatpush2.bf16.msra.mxu0 0
      %595 = vmatprep.subr.bf16.mxu0 0
      %596 = vmatpush2.bf16.msra.mxu0 0
      %597 = vmatprep.subr.bf16.mxu0 0
      %598 = vmatpush2.bf16.msra.mxu0 0
      %599 = vmatprep.mubr.bf16.mxu0 0
      %600 = vmatmul.mubr.bf16.gmra.mxu0 %v550
      %v601 = vpop.f32.mrf.mxu0
      %v602 = vadd.f32 0.0, %v601
      %v603 = vpop.f32.mrf.mxu0
      %v604 = vpop.f32.mrf.mxu0
      %v605 = vadd.f32 0.0, %v604
      %v606 = vpop.f32.mrf.mxu0
      %607 = vmatprep.mubr.bf16.mxu0 0
      %608 = vmatmul.mubr.bf16.gmra.mxu0 %v553
      %v609 = vpop.f32.mrf.mxu0
      %v610 = vadd.f32 0.0, %v609
      %v611 = vpop.f32.mrf.mxu0
      %v612 = vpop.f32.mrf.mxu0
      %v613 = vadd.f32 0.0, %v612
      %v614 = vpop.f32.mrf.mxu0
      %615 = vmatprep.mubr.bf16.mxu0 0
      %616 = vmatmul.mubr.bf16.gmra.mxu0 %v556
      %v617 = vpop.f32.mrf.mxu0
      %v618 = vadd.f32 0.0, %v617
      %v619 = vpop.f32.mrf.mxu0
      %v620 = vpop.f32.mrf.mxu0
      %v621 = vadd.f32 0.0, %v620
      %v622 = vpop.f32.mrf.mxu0
      %623 = vmatprep.mubr.bf16.mxu0 0
      %624 = vmatmul.mubr.bf16.gmra.mxu0 %v559
      %v625 = vpop.f32.mrf.mxu0
      %v626 = vadd.f32 0.0, %v625
      %v627 = vpop.f32.mrf.mxu0
      %v628 = vpop.f32.mrf.mxu0
      %v629 = vadd.f32 0.0, %v628
      %v630 = vpop.f32.mrf.mxu0
      %631 = vmatprep.mubr.bf16.mxu0 0
      %632 = vmatmul.mubr.bf16.gmra.mxu0 %v562
      %v633 = vpop.f32.mrf.mxu0
      %v634 = vadd.f32 0.0, %v633
      %v635 = vpop.f32.mrf.mxu0
      %v636 = vpop.f32.mrf.mxu0
      %v637 = vadd.f32 0.0, %v636
      %v638 = vpop.f32.mrf.mxu0
      %639 = vmatprep.mubr.bf16.mxu0 0
      %640 = vmatmul.mubr.bf16.gmra.mxu0 %v565
      %v641 = vpop.f32.mrf.mxu0
      %v642 = vadd.f32 0.0, %v641
      %v643 = vpop.f32.mrf.mxu0
      %v644 = vpop.f32.mrf.mxu0
      %v645 = vadd.f32 0.0, %v644
      %v646 = vpop.f32.mrf.mxu0
      %647 = vdwg.mxu0
      %v648 = vadd.f32 %v440, %v602
      %v649 = vadd.f32 %v443, %v605
      %v650 = vadd.f32 %v448, %v610
      %v651 = vadd.f32 %v451, %v613
      %v652 = vadd.f32 %v456, %v618
      %v653 = vadd.f32 %v459, %v621
      %v654 = vadd.f32 %v464, %v626
      %v655 = vadd.f32 %v467, %v629
      %v656 = vadd.f32 %v472, %v634
      %v657 = vadd.f32 %v475, %v637
      %v658 = vadd.f32 %v480, %v642
      %v659 = vadd.f32 %v483, %v645
      %v660 = vld [vmem:[%s170 + $0x30] sm:$0x7]
      %s661 = scalar_lea.vmem %s1, 24
      %v662 = vld [vmem:[%s661] sm:$0xf]
      %v663 = vld [vmem:[%s661 + $0x4] sm:$0xf]
      %v665 = vunpack.c.l.b16 %v660
      %v666 = vpack.c.b16 %v665, %v523
      %vm667 = vsmask.f32 6400
      %v669 = vshrl.u32 %v525, 16
      %v671 = vrot.slane %v669, 1
      %v672 = vshll.u32 %v525, 16
      %v674 = vrot.slane %v672, 2
      %v675 = vor.u32 %v671, %v674
      %v677 = vshrl.u32 %v526, 16
      %v679 = vrot.slane %v677, 1
      %v680 = vshll.u32 %v526, 16
      %v682 = vrot.slane %v680, 2
      %v683 = vor.u32 %v679, %v682
      %v684 = vsel %vm667, %v675, %v683
      %v686 = vshrl.u32 %v527, 16
      %v688 = vrot.slane %v686, 1
      %v689 = vshll.u32 %v527, 16
      %v691 = vrot.slane %v689, 2
      %v692 = vor.u32 %v688, %v691
      %v693 = vsel %vm667, %v683, %v692
      %v695 = vshrl.u32 %v528, 16
      %v697 = vrot.slane %v695, 1
      %v698 = vshll.u32 %v528, 16
      %v700 = vrot.slane %v698, 2
      %v701 = vor.u32 %v697, %v700
      %v702 = vsel %vm667, %v692, %v701
      %v704 = vshrl.u32 %v529, 16
      %v706 = vrot.slane %v704, 1
      %v707 = vshll.u32 %v529, 16
      %v709 = vrot.slane %v707, 2
      %v710 = vor.u32 %v706, %v709
      %v711 = vsel %vm667, %v701, %v710
      %v713 = vshrl.u32 %v666, 16
      %v715 = vrot.slane %v713, 1
      %v716 = vshll.u32 %v666, 16
      %v718 = vrot.slane %v716, 2
      %v719 = vor.u32 %v715, %v718
      %v720 = vsel %vm667, %v710, %v719
      %v723 = vunpack.c.l.b16 %v662
      %v724 = vunpack.c.l.b16 %v663
      %v725 = vpack.c.b16 %v724, %v723
      %v728 = vsel %vm283, %v684, 0
      %v731 = vsel %vm283, %v693, 0
      %v734 = vsel %vm283, %v702, 0
      %v737 = vsel %vm283, %v711, 0
      %v740 = vsel %vm283, %v720, 0
      %v743 = vsel %vm283, %v719, 0
      %745 = vmatprep.subr.bf16.mxu0 0
      %746 = vmatpush1.bf16.msra.mxu0 0
      %747 = vmatprep.subr.bf16.mxu0 0
      %748 = vmatpush1.bf16.msra.mxu0 0
      %749 = vmatprep.subr.bf16.mxu0 0
      %750 = vmatpush1.bf16.msra.mxu0 0
      %751 = vmatprep.subr.bf16.mxu0 0
      %752 = vmatpush1.bf16.msra.mxu0 0
      %753 = vmatprep.subr.bf16.mxu0 0
      %754 = vmatpush1.bf16.msra.mxu0 0
      %755 = vmatprep.subr.bf16.mxu0 0
      %756 = vmatpush1.bf16.msra.mxu0 0
      %757 = vmatprep.subr.bf16.mxu0 0
      %758 = vmatpush1.bf16.msra.mxu0 0
      %759 = vmatprep.subr.bf16.mxu0 0
      %760 = vmatpush1.bf16.msra.mxu0 %v725
      %761 = vmatprep.subr.bf16.mxu0 0
      %762 = vmatpush2.bf16.msra.mxu0 0
      %763 = vmatprep.subr.bf16.mxu0 0
      %764 = vmatpush2.bf16.msra.mxu0 0
      %765 = vmatprep.subr.bf16.mxu0 0
      %766 = vmatpush2.bf16.msra.mxu0 0
      %767 = vmatprep.subr.bf16.mxu0 0
      %768 = vmatpush2.bf16.msra.mxu0 0
      %769 = vmatprep.subr.bf16.mxu0 0
      %770 = vmatpush2.bf16.msra.mxu0 0
      %771 = vmatprep.subr.bf16.mxu0 0
      %772 = vmatpush2.bf16.msra.mxu0 0
      %773 = vmatprep.subr.bf16.mxu0 0
      %774 = vmatpush2.bf16.msra.mxu0 0
      %775 = vmatprep.subr.bf16.mxu0 0
      %776 = vmatpush2.bf16.msra.mxu0 0
      %777 = vmatprep.mubr.bf16.mxu0 0
      %778 = vmatmul.mubr.bf16.gmra.mxu0 %v728
      %v779 = vpop.f32.mrf.mxu0
      %v780 = vadd.f32 0.0, %v779
      %v781 = vpop.f32.mrf.mxu0
      %v782 = vpop.f32.mrf.mxu0
      %v783 = vadd.f32 0.0, %v782
      %v784 = vpop.f32.mrf.mxu0
      %785 = vmatprep.mubr.bf16.mxu0 0
      %786 = vmatmul.mubr.bf16.gmra.mxu0 %v731
      %v787 = vpop.f32.mrf.mxu0
      %v788 = vadd.f32 0.0, %v787
      %v789 = vpop.f32.mrf.mxu0
      %v790 = vpop.f32.mrf.mxu0
      %v791 = vadd.f32 0.0, %v790
      %v792 = vpop.f32.mrf.mxu0
      %793 = vmatprep.mubr.bf16.mxu0 0
      %794 = vmatmul.mubr.bf16.gmra.mxu0 %v734
      %v795 = vpop.f32.mrf.mxu0
      %v796 = vadd.f32 0.0, %v795
      %v797 = vpop.f32.mrf.mxu0
      %v798 = vpop.f32.mrf.mxu0
      %v799 = vadd.f32 0.0, %v798
      %v800 = vpop.f32.mrf.mxu0
      %801 = vmatprep.mubr.bf16.mxu0 0
      %802 = vmatmul.mubr.bf16.gmra.mxu0 %v737
      %v803 = vpop.f32.mrf.mxu0
      %v804 = vadd.f32 0.0, %v803
      %v805 = vpop.f32.mrf.mxu0
      %v806 = vpop.f32.mrf.mxu0
      %v807 = vadd.f32 0.0, %v806
      %v808 = vpop.f32.mrf.mxu0
      %809 = vmatprep.mubr.bf16.mxu0 0
      %810 = vmatmul.mubr.bf16.gmra.mxu0 %v740
      %v811 = vpop.f32.mrf.mxu0
      %v812 = vadd.f32 0.0, %v811
      %v813 = vpop.f32.mrf.mxu0
      %v814 = vpop.f32.mrf.mxu0
      %v815 = vadd.f32 0.0, %v814
      %v816 = vpop.f32.mrf.mxu0
      %817 = vmatprep.mubr.bf16.mxu0 0
      %818 = vmatmul.mubr.bf16.gmra.mxu0 %v743
      %v819 = vpop.f32.mrf.mxu0
      %v820 = vadd.f32 0.0, %v819
      %v821 = vpop.f32.mrf.mxu0
      %v822 = vpop.f32.mrf.mxu0
      %v823 = vadd.f32 0.0, %v822
      %v824 = vpop.f32.mrf.mxu0
      %825 = vdwg.mxu0
      %v826 = vadd.f32 %v648, %v780
      %v827 = vadd.f32 %v649, %v783
      %v828 = vadd.f32 %v650, %v788
      %v829 = vadd.f32 %v651, %v791
      %v830 = vadd.f32 %v652, %v796
      %v831 = vadd.f32 %v653, %v799
      %v832 = vadd.f32 %v654, %v804
      %v833 = vadd.f32 %v655, %v807
      %v834 = vadd.f32 %v656, %v812
      %v835 = vadd.f32 %v657, %v815
      %v836 = vadd.f32 %v658, %v820
      %v837 = vadd.f32 %v659, %v823
      %s838 = scalar_lea.vmem %s1, 32
      %v839 = vld [vmem:[%s838] sm:$0xf]
      %v840 = vld [vmem:[%s838 + $0x4] sm:$0xf]
      %s841 = scalar_lea.vmem %s1, 40
      %v842 = vld [vmem:[%s841] sm:$0xf]
      %v843 = vld [vmem:[%s841 + $0x4] sm:$0xf]
      %v846 = vunpack.c.l.b16 %v842
      %v847 = vunpack.c.l.b16 %v843
      %v848 = vpack.c.b16 %v847, %v846
      %850 = vmatprep.subr.bf16.mxu0 0
      %851 = vmatpush1.bf16.msra.mxu0 0
      %852 = vmatprep.subr.bf16.mxu0 0
      %853 = vmatpush1.bf16.msra.mxu0 0
      %854 = vmatprep.subr.bf16.mxu0 0
      %855 = vmatpush1.bf16.msra.mxu0 0
      %856 = vmatprep.subr.bf16.mxu0 0
      %857 = vmatpush1.bf16.msra.mxu0 0
      %858 = vmatprep.subr.bf16.mxu0 0
      %859 = vmatpush1.bf16.msra.mxu0 0
      %860 = vmatprep.subr.bf16.mxu0 0
      %861 = vmatpush1.bf16.msra.mxu0 0
      %862 = vmatprep.subr.bf16.mxu0 0
      %863 = vmatpush1.bf16.msra.mxu0 0
      %864 = vmatprep.subr.bf16.mxu0 0
      %865 = vmatpush1.bf16.msra.mxu0 %v848
      %866 = vmatprep.subr.bf16.mxu0 0
      %867 = vmatpush2.bf16.msra.mxu0 0
      %868 = vmatprep.subr.bf16.mxu0 0
      %869 = vmatpush2.bf16.msra.mxu0 0
      %870 = vmatprep.subr.bf16.mxu0 0
      %871 = vmatpush2.bf16.msra.mxu0 0
      %872 = vmatprep.subr.bf16.mxu0 0
      %873 = vmatpush2.bf16.msra.mxu0 0
      %874 = vmatprep.subr.bf16.mxu0 0
      %875 = vmatpush2.bf16.msra.mxu0 0
      %876 = vmatprep.subr.bf16.mxu0 0
      %877 = vmatpush2.bf16.msra.mxu0 0
      %878 = vmatprep.subr.bf16.mxu0 0
      %879 = vmatpush2.bf16.msra.mxu0 0
      %880 = vmatprep.subr.bf16.mxu0 0
      %881 = vmatpush2.bf16.msra.mxu0 0
      %882 = vmatprep.mubr.bf16.mxu0 0
      %883 = vmatmul.mubr.bf16.gmra.mxu0 %v728
      %v884 = vpop.f32.mrf.mxu0
      %v885 = vadd.f32 0.0, %v884
      %v886 = vpop.f32.mrf.mxu0
      %v887 = vpop.f32.mrf.mxu0
      %v888 = vadd.f32 0.0, %v887
      %v889 = vpop.f32.mrf.mxu0
      %890 = vmatprep.mubr.bf16.mxu0 0
      %891 = vmatmul.mubr.bf16.gmra.mxu0 %v731
      %v892 = vpop.f32.mrf.mxu0
      %v893 = vadd.f32 0.0, %v892
      %v894 = vpop.f32.mrf.mxu0
      %v895 = vpop.f32.mrf.mxu0
      %v896 = vadd.f32 0.0, %v895
      %v897 = vpop.f32.mrf.mxu0
      %898 = vmatprep.mubr.bf16.mxu0 0
      %899 = vmatmul.mubr.bf16.gmra.mxu0 %v734
      %v900 = vpop.f32.mrf.mxu0
      %v901 = vadd.f32 0.0, %v900
      %v902 = vpop.f32.mrf.mxu0
      %v903 = vpop.f32.mrf.mxu0
      %v904 = vadd.f32 0.0, %v903
      %v905 = vpop.f32.mrf.mxu0
      %906 = vmatprep.mubr.bf16.mxu0 0
      %907 = vmatmul.mubr.bf16.gmra.mxu0 %v737
      %v908 = vpop.f32.mrf.mxu0
      %v909 = vadd.f32 0.0, %v908
      %v910 = vpop.f32.mrf.mxu0
      %v911 = vpop.f32.mrf.mxu0
      %v912 = vadd.f32 0.0, %v911
      %v913 = vpop.f32.mrf.mxu0
      %914 = vmatprep.mubr.bf16.mxu0 0
      %915 = vmatmul.mubr.bf16.gmra.mxu0 %v740
      %v916 = vpop.f32.mrf.mxu0
      %v917 = vadd.f32 0.0, %v916
      %v918 = vpop.f32.mrf.mxu0
      %v919 = vpop.f32.mrf.mxu0
      %v920 = vadd.f32 0.0, %v919
      %v921 = vpop.f32.mrf.mxu0
      %922 = vmatprep.mubr.bf16.mxu0 0
      %923 = vmatmul.mubr.bf16.gmra.mxu0 %v743
      %v924 = vpop.f32.mrf.mxu0
      %v925 = vadd.f32 0.0, %v924
      %v926 = vpop.f32.mrf.mxu0
      %v927 = vpop.f32.mrf.mxu0
      %v928 = vadd.f32 0.0, %v927
      %v929 = vpop.f32.mrf.mxu0
      %930 = vdwg.mxu0
      %v933 = vunpack.c.l.b16 %v839
      %v934 = vunpack.c.l.b16 %v840
      %v935 = vpack.c.b16 %v934, %v933
      %937 = vmatprep.subr.bf16.mxu0 0
      %938 = vmatpush1.bf16.msra.mxu0 0
      %939 = vmatprep.subr.bf16.mxu0 0
      %940 = vmatpush1.bf16.msra.mxu0 0
      %941 = vmatprep.subr.bf16.mxu0 0
      %942 = vmatpush1.bf16.msra.mxu0 0
      %943 = vmatprep.subr.bf16.mxu0 0
      %944 = vmatpush1.bf16.msra.mxu0 0
      %945 = vmatprep.subr.bf16.mxu0 0
      %946 = vmatpush1.bf16.msra.mxu0 0
      %947 = vmatprep.subr.bf16.mxu0 0
      %948 = vmatpush1.bf16.msra.mxu0 0
      %949 = vmatprep.subr.bf16.mxu0 0
      %950 = vmatpush1.bf16.msra.mxu0 0
      %951 = vmatprep.subr.bf16.mxu0 0
      %952 = vmatpush1.bf16.msra.mxu0 %v935
      %953 = vmatprep.subr.bf16.mxu0 0
      %954 = vmatpush2.bf16.msra.mxu0 0
      %955 = vmatprep.subr.bf16.mxu0 0
      %956 = vmatpush2.bf16.msra.mxu0 0
      %957 = vmatprep.subr.bf16.mxu0 0
      %958 = vmatpush2.bf16.msra.mxu0 0
      %959 = vmatprep.subr.bf16.mxu0 0
      %960 = vmatpush2.bf16.msra.mxu0 0
      %961 = vmatprep.subr.bf16.mxu0 0
      %962 = vmatpush2.bf16.msra.mxu0 0
      %963 = vmatprep.subr.bf16.mxu0 0
      %964 = vmatpush2.bf16.msra.mxu0 0
      %965 = vmatprep.subr.bf16.mxu0 0
      %966 = vmatpush2.bf16.msra.mxu0 0
      %967 = vmatprep.subr.bf16.mxu0 0
      %968 = vmatpush2.bf16.msra.mxu0 0
      %969 = vmatprep.mubr.bf16.mxu0 0
      %970 = vmatmul.mubr.bf16.gmra.mxu0 %v285
      %v971 = vpop.f32.mrf.mxu0
      %v972 = vadd.f32 %v885, %v971
      %v973 = vpop.f32.mrf.mxu0
      %v974 = vpop.f32.mrf.mxu0
      %v975 = vadd.f32 %v888, %v974
      %v976 = vpop.f32.mrf.mxu0
      %977 = vmatprep.mubr.bf16.mxu0 0
      %978 = vmatmul.mubr.bf16.gmra.mxu0 %v288
      %v979 = vpop.f32.mrf.mxu0
      %v980 = vadd.f32 %v893, %v979
      %v981 = vpop.f32.mrf.mxu0
      %v982 = vpop.f32.mrf.mxu0
      %v983 = vadd.f32 %v896, %v982
      %v984 = vpop.f32.mrf.mxu0
      %985 = vmatprep.mubr.bf16.mxu0 0
      %986 = vmatmul.mubr.bf16.gmra.mxu0 %v291
      %v987 = vpop.f32.mrf.mxu0
      %v988 = vadd.f32 %v901, %v987
      %v989 = vpop.f32.mrf.mxu0
      %v990 = vpop.f32.mrf.mxu0
      %v991 = vadd.f32 %v904, %v990
      %v992 = vpop.f32.mrf.mxu0
      %993 = vmatprep.mubr.bf16.mxu0 0
      %994 = vmatmul.mubr.bf16.gmra.mxu0 %v294
      %v995 = vpop.f32.mrf.mxu0
      %v996 = vadd.f32 %v909, %v995
      %v997 = vpop.f32.mrf.mxu0
      %v998 = vpop.f32.mrf.mxu0
      %v999 = vadd.f32 %v912, %v998
      %v1000 = vpop.f32.mrf.mxu0
      %1001 = vmatprep.mubr.bf16.mxu0 0
      %1002 = vmatmul.mubr.bf16.gmra.mxu0 %v297
      %v1003 = vpop.f32.mrf.mxu0
      %v1004 = vadd.f32 %v917, %v1003
      %v1005 = vpop.f32.mrf.mxu0
      %v1006 = vpop.f32.mrf.mxu0
      %v1007 = vadd.f32 %v920, %v1006
      %v1008 = vpop.f32.mrf.mxu0
      %1009 = vmatprep.mubr.bf16.mxu0 0
      %1010 = vmatmul.mubr.bf16.gmra.mxu0 %v300
      %v1011 = vpop.f32.mrf.mxu0
      %v1012 = vadd.f32 %v925, %v1011
      %v1013 = vpop.f32.mrf.mxu0
      %v1014 = vpop.f32.mrf.mxu0
      %v1015 = vadd.f32 %v928, %v1014
      %v1016 = vpop.f32.mrf.mxu0
      %1017 = vdwg.mxu0
      %s1018 = scalar_lea.vmem %s1, 48
      %v1019 = vld [vmem:[%s1018] sm:$0xf]
      %v1020 = vld [vmem:[%s1018 + $0x4] sm:$0xf]
      %s1021 = scalar_lea.vmem %s1, 56
      %v1022 = vld [vmem:[%s1021] sm:$0xf]
      %v1023 = vld [vmem:[%s1021 + $0x4] sm:$0xf]
      %v1026 = vunpack.c.l.b16 %v1022
      %v1027 = vunpack.c.l.b16 %v1023
      %v1028 = vpack.c.b16 %v1027, %v1026
      %1030 = vmatprep.subr.bf16.mxu0 0
      %1031 = vmatpush1.bf16.msra.mxu0 0
      %1032 = vmatprep.subr.bf16.mxu0 0
      %1033 = vmatpush1.bf16.msra.mxu0 0
      %1034 = vmatprep.subr.bf16.mxu0 0
      %1035 = vmatpush1.bf16.msra.mxu0 0
      %1036 = vmatprep.subr.bf16.mxu0 0
      %1037 = vmatpush1.bf16.msra.mxu0 0
      %1038 = vmatprep.subr.bf16.mxu0 0
      %1039 = vmatpush1.bf16.msra.mxu0 0
      %1040 = vmatprep.subr.bf16.mxu0 0
      %1041 = vmatpush1.bf16.msra.mxu0 0
      %1042 = vmatprep.subr.bf16.mxu0 0
      %1043 = vmatpush1.bf16.msra.mxu0 0
      %1044 = vmatprep.subr.bf16.mxu0 0
      %1045 = vmatpush1.bf16.msra.mxu0 %v1028
      %1046 = vmatprep.subr.bf16.mxu0 0
      %1047 = vmatpush2.bf16.msra.mxu0 0
      %1048 = vmatprep.subr.bf16.mxu0 0
      %1049 = vmatpush2.bf16.msra.mxu0 0
      %1050 = vmatprep.subr.bf16.mxu0 0
      %1051 = vmatpush2.bf16.msra.mxu0 0
      %1052 = vmatprep.subr.bf16.mxu0 0
      %1053 = vmatpush2.bf16.msra.mxu0 0
      %1054 = vmatprep.subr.bf16.mxu0 0
      %1055 = vmatpush2.bf16.msra.mxu0 0
      %1056 = vmatprep.subr.bf16.mxu0 0
      %1057 = vmatpush2.bf16.msra.mxu0 0
      %1058 = vmatprep.subr.bf16.mxu0 0
      %1059 = vmatpush2.bf16.msra.mxu0 0
      %1060 = vmatprep.subr.bf16.mxu0 0
      %1061 = vmatpush2.bf16.msra.mxu0 0
      %1062 = vmatprep.mubr.bf16.mxu0 0
      %1063 = vmatmul.mubr.bf16.gmra.mxu0 %v728
      %v1064 = vpop.f32.mrf.mxu0
      %v1065 = vadd.f32 0.0, %v1064
      %v1066 = vpop.f32.mrf.mxu0
      %v1067 = vpop.f32.mrf.mxu0
      %v1068 = vadd.f32 0.0, %v1067
      %v1069 = vpop.f32.mrf.mxu0
      %1070 = vmatprep.mubr.bf16.mxu0 0
      %1071 = vmatmul.mubr.bf16.gmra.mxu0 %v731
      %v1072 = vpop.f32.mrf.mxu0
      %v1073 = vadd.f32 0.0, %v1072
      %v1074 = vpop.f32.mrf.mxu0
      %v1075 = vpop.f32.mrf.mxu0
      %v1076 = vadd.f32 0.0, %v1075
      %v1077 = vpop.f32.mrf.mxu0
      %1078 = vmatprep.mubr.bf16.mxu0 0
      %1079 = vmatmul.mubr.bf16.gmra.mxu0 %v734
      %v1080 = vpop.f32.mrf.mxu0
      %v1081 = vadd.f32 0.0, %v1080
      %v1082 = vpop.f32.mrf.mxu0
      %v1083 = vpop.f32.mrf.mxu0
      %v1084 = vadd.f32 0.0, %v1083
      %v1085 = vpop.f32.mrf.mxu0
      %1086 = vmatprep.mubr.bf16.mxu0 0
      %1087 = vmatmul.mubr.bf16.gmra.mxu0 %v737
      %v1088 = vpop.f32.mrf.mxu0
      %v1089 = vadd.f32 0.0, %v1088
      %v1090 = vpop.f32.mrf.mxu0
      %v1091 = vpop.f32.mrf.mxu0
      %v1092 = vadd.f32 0.0, %v1091
      %v1093 = vpop.f32.mrf.mxu0
      %1094 = vmatprep.mubr.bf16.mxu0 0
      %1095 = vmatmul.mubr.bf16.gmra.mxu0 %v740
      %v1096 = vpop.f32.mrf.mxu0
      %v1097 = vadd.f32 0.0, %v1096
      %v1098 = vpop.f32.mrf.mxu0
      %v1099 = vpop.f32.mrf.mxu0
      %v1100 = vadd.f32 0.0, %v1099
      %v1101 = vpop.f32.mrf.mxu0
      %1102 = vmatprep.mubr.bf16.mxu0 0
      %1103 = vmatmul.mubr.bf16.gmra.mxu0 %v743
      %v1104 = vpop.f32.mrf.mxu0
      %v1105 = vadd.f32 0.0, %v1104
      %v1106 = vpop.f32.mrf.mxu0
      %v1107 = vpop.f32.mrf.mxu0
      %v1108 = vadd.f32 0.0, %v1107
      %v1109 = vpop.f32.mrf.mxu0
      %1110 = vdwg.mxu0
      %v1113 = vunpack.c.l.b16 %v1019
      %v1114 = vunpack.c.l.b16 %v1020
      %v1115 = vpack.c.b16 %v1114, %v1113
      %1117 = vmatprep.subr.bf16.mxu0 0
      %1118 = vmatpush1.bf16.msra.mxu0 0
      %1119 = vmatprep.subr.bf16.mxu0 0
      %1120 = vmatpush1.bf16.msra.mxu0 0
      %1121 = vmatprep.subr.bf16.mxu0 0
      %1122 = vmatpush1.bf16.msra.mxu0 0
      %1123 = vmatprep.subr.bf16.mxu0 0
      %1124 = vmatpush1.bf16.msra.mxu0 0
      %1125 = vmatprep.subr.bf16.mxu0 0
      %1126 = vmatpush1.bf16.msra.mxu0 0
      %1127 = vmatprep.subr.bf16.mxu0 0
      %1128 = vmatpush1.bf16.msra.mxu0 0
      %1129 = vmatprep.subr.bf16.mxu0 0
      %1130 = vmatpush1.bf16.msra.mxu0 0
      %1131 = vmatprep.subr.bf16.mxu0 0
      %1132 = vmatpush1.bf16.msra.mxu0 %v1115
      %1133 = vmatprep.subr.bf16.mxu0 0
      %1134 = vmatpush2.bf16.msra.mxu0 0
      %1135 = vmatprep.subr.bf16.mxu0 0
      %1136 = vmatpush2.bf16.msra.mxu0 0
      %1137 = vmatprep.subr.bf16.mxu0 0
      %1138 = vmatpush2.bf16.msra.mxu0 0
      %1139 = vmatprep.subr.bf16.mxu0 0
      %1140 = vmatpush2.bf16.msra.mxu0 0
      %1141 = vmatprep.subr.bf16.mxu0 0
      %1142 = vmatpush2.bf16.msra.mxu0 0
      %1143 = vmatprep.subr.bf16.mxu0 0
      %1144 = vmatpush2.bf16.msra.mxu0 0
      %1145 = vmatprep.subr.bf16.mxu0 0
      %1146 = vmatpush2.bf16.msra.mxu0 0
      %1147 = vmatprep.subr.bf16.mxu0 0
      %1148 = vmatpush2.bf16.msra.mxu0 0
      %1149 = vmatprep.mubr.bf16.mxu0 0
      %1150 = vmatmul.mubr.bf16.gmra.mxu0 %v550
      %v1151 = vpop.f32.mrf.mxu0
      %v1152 = vadd.f32 %v1065, %v1151
      %v1153 = vpop.f32.mrf.mxu0
      %v1154 = vpop.f32.mrf.mxu0
      %v1155 = vadd.f32 %v1068, %v1154
      %v1156 = vpop.f32.mrf.mxu0
      %1157 = vmatprep.mubr.bf16.mxu0 0
      %1158 = vmatmul.mubr.bf16.gmra.mxu0 %v553
      %v1159 = vpop.f32.mrf.mxu0
      %v1160 = vadd.f32 %v1073, %v1159
      %v1161 = vpop.f32.mrf.mxu0
      %v1162 = vpop.f32.mrf.mxu0
      %v1163 = vadd.f32 %v1076, %v1162
      %v1164 = vpop.f32.mrf.mxu0
      %1165 = vmatprep.mubr.bf16.mxu0 0
      %1166 = vmatmul.mubr.bf16.gmra.mxu0 %v556
      %v1167 = vpop.f32.mrf.mxu0
      %v1168 = vadd.f32 %v1081, %v1167
      %v1169 = vpop.f32.mrf.mxu0
      %v1170 = vpop.f32.mrf.mxu0
      %v1171 = vadd.f32 %v1084, %v1170
      %v1172 = vpop.f32.mrf.mxu0
      %1173 = vmatprep.mubr.bf16.mxu0 0
      %1174 = vmatmul.mubr.bf16.gmra.mxu0 %v559
      %v1175 = vpop.f32.mrf.mxu0
      %v1176 = vadd.f32 %v1089, %v1175
      %v1177 = vpop.f32.mrf.mxu0
      %v1178 = vpop.f32.mrf.mxu0
      %v1179 = vadd.f32 %v1092, %v1178
      %v1180 = vpop.f32.mrf.mxu0
      %1181 = vmatprep.mubr.bf16.mxu0 0
      %1182 = vmatmul.mubr.bf16.gmra.mxu0 %v562
      %v1183 = vpop.f32.mrf.mxu0
      %v1184 = vadd.f32 %v1097, %v1183
      %v1185 = vpop.f32.mrf.mxu0
      %v1186 = vpop.f32.mrf.mxu0
      %v1187 = vadd.f32 %v1100, %v1186
      %v1188 = vpop.f32.mrf.mxu0
      %1189 = vmatprep.mubr.bf16.mxu0 0
      %1190 = vmatmul.mubr.bf16.gmra.mxu0 %v565
      %v1191 = vpop.f32.mrf.mxu0
      %v1192 = vadd.f32 %v1105, %v1191
      %v1193 = vpop.f32.mrf.mxu0
      %v1194 = vpop.f32.mrf.mxu0
      %v1195 = vadd.f32 %v1108, %v1194
      %v1196 = vpop.f32.mrf.mxu0
      %1197 = vdwg.mxu0
      %s1198 = scalar_lea.vmem %s1, 64
      %v1199 = vld [vmem:[%s1198] sm:$0xf]
      %v1200 = vld [vmem:[%s1198 + $0x4] sm:$0xf]
      %v1203 = vunpack.c.l.b16 %v1199
      %v1204 = vunpack.c.l.b16 %v1200
      %v1205 = vpack.c.b16 %v1204, %v1203
      %1207 = vmatprep.subr.bf16.mxu0 0
      %1208 = vmatpush1.bf16.msra.mxu0 0
      %1209 = vmatprep.subr.bf16.mxu0 0
      %1210 = vmatpush1.bf16.msra.mxu0 0
      %1211 = vmatprep.subr.bf16.mxu0 0
      %1212 = vmatpush1.bf16.msra.mxu0 0
      %1213 = vmatprep.subr.bf16.mxu0 0
      %1214 = vmatpush1.bf16.msra.mxu0 0
      %1215 = vmatprep.subr.bf16.mxu0 0
      %1216 = vmatpush1.bf16.msra.mxu0 0
      %1217 = vmatprep.subr.bf16.mxu0 0
      %1218 = vmatpush1.bf16.msra.mxu0 0
      %1219 = vmatprep.subr.bf16.mxu0 0
      %1220 = vmatpush1.bf16.msra.mxu0 0
      %1221 = vmatprep.subr.bf16.mxu0 0
      %1222 = vmatpush1.bf16.msra.mxu0 %v1205
      %1223 = vmatprep.subr.bf16.mxu0 0
      %1224 = vmatpush2.bf16.msra.mxu0 0
      %1225 = vmatprep.subr.bf16.mxu0 0
      %1226 = vmatpush2.bf16.msra.mxu0 0
      %1227 = vmatprep.subr.bf16.mxu0 0
      %1228 = vmatpush2.bf16.msra.mxu0 0
      %1229 = vmatprep.subr.bf16.mxu0 0
      %1230 = vmatpush2.bf16.msra.mxu0 0
      %1231 = vmatprep.subr.bf16.mxu0 0
      %1232 = vmatpush2.bf16.msra.mxu0 0
      %1233 = vmatprep.subr.bf16.mxu0 0
      %1234 = vmatpush2.bf16.msra.mxu0 0
      %1235 = vmatprep.subr.bf16.mxu0 0
      %1236 = vmatpush2.bf16.msra.mxu0 0
      %1237 = vmatprep.subr.bf16.mxu0 0
      %1238 = vmatpush2.bf16.msra.mxu0 0
      %1239 = vmatprep.mubr.bf16.mxu0 0
      %1240 = vmatmul.mubr.bf16.gmra.mxu0 %v728
      %v1241 = vpop.f32.mrf.mxu0
      %v1242 = vadd.f32 0.0, %v1241
      %v1243 = vpop.f32.mrf.mxu0
      %v1244 = vpop.f32.mrf.mxu0
      %v1245 = vadd.f32 0.0, %v1244
      %v1246 = vpop.f32.mrf.mxu0
      %1247 = vmatprep.mubr.bf16.mxu0 0
      %1248 = vmatmul.mubr.bf16.gmra.mxu0 %v731
      %v1249 = vpop.f32.mrf.mxu0
      %v1250 = vadd.f32 0.0, %v1249
      %v1251 = vpop.f32.mrf.mxu0
      %v1252 = vpop.f32.mrf.mxu0
      %v1253 = vadd.f32 0.0, %v1252
      %v1254 = vpop.f32.mrf.mxu0
      %1255 = vmatprep.mubr.bf16.mxu0 0
      %1256 = vmatmul.mubr.bf16.gmra.mxu0 %v734
      %v1257 = vpop.f32.mrf.mxu0
      %v1258 = vadd.f32 0.0, %v1257
      %v1259 = vpop.f32.mrf.mxu0
      %v1260 = vpop.f32.mrf.mxu0
      %v1261 = vadd.f32 0.0, %v1260
      %v1262 = vpop.f32.mrf.mxu0
      %1263 = vmatprep.mubr.bf16.mxu0 0
      %1264 = vmatmul.mubr.bf16.gmra.mxu0 %v737
      %v1265 = vpop.f32.mrf.mxu0
      %v1266 = vadd.f32 0.0, %v1265
      %v1267 = vpop.f32.mrf.mxu0
      %v1268 = vpop.f32.mrf.mxu0
      %v1269 = vadd.f32 0.0, %v1268
      %v1270 = vpop.f32.mrf.mxu0
      %1271 = vmatprep.mubr.bf16.mxu0 0
      %1272 = vmatmul.mubr.bf16.gmra.mxu0 %v740
      %v1273 = vpop.f32.mrf.mxu0
      %v1274 = vadd.f32 0.0, %v1273
      %v1275 = vpop.f32.mrf.mxu0
      %v1276 = vpop.f32.mrf.mxu0
      %v1277 = vadd.f32 0.0, %v1276
      %v1278 = vpop.f32.mrf.mxu0
      %1279 = vmatprep.mubr.bf16.mxu0 0
      %1280 = vmatmul.mubr.bf16.gmra.mxu0 %v743
      %v1281 = vpop.f32.mrf.mxu0
      %v1282 = vadd.f32 0.0, %v1281
      %v1283 = vpop.f32.mrf.mxu0
      %v1284 = vpop.f32.mrf.mxu0
      %v1285 = vadd.f32 0.0, %v1284
      %v1286 = vpop.f32.mrf.mxu0
      %1287 = vdwg.mxu0
      %vm1288 = vcmask 261120
      %1289 = vst.msk [vmem:[%s179] sm:$0xff] %vm1288, %v826
      %1290 = vst.msk [vmem:[%s179 + $0x8] sm:$0xff] %vm1288, %v827
      %1291 = vst.msk [vmem:[%s179 + $0x10] sm:$0xff] %vm1288, %v828
      %1292 = vst.msk [vmem:[%s179 + $0x18] sm:$0xff] %vm1288, %v829
      %1293 = vst.msk [vmem:[%s179 + $0x20] sm:$0xff] %vm1288, %v830
      %1294 = vst.msk [vmem:[%s179 + $0x28] sm:$0xff] %vm1288, %v831
      %1295 = vst.msk [vmem:[%s179 + $0x30] sm:$0xff] %vm1288, %v832
      %1296 = vst.msk [vmem:[%s179 + $0x38] sm:$0xff] %vm1288, %v833
      %1297 = vst.msk [vmem:[%s179 + $0x40] sm:$0xff] %vm1288, %v834
      %1298 = vst.msk [vmem:[%s179 + $0x48] sm:$0xff] %vm1288, %v835
      %1299 = vst.msk [vmem:[%s179 + $0x50] sm:$0xff] %vm1288, %v836
      %vm1300 = vcmask 254976
      %1301 = vst.msk [vmem:[%s179 + $0x58] sm:$0x3] %vm1300, %v837
      %s1302 = scalar_lea.vmem %s179, 96
      %1303 = vst.msk [vmem:[%s1302] sm:$0xff] %vm1288, %v972
      %1304 = vst.msk [vmem:[%s1302 + $0x8] sm:$0xff] %vm1288, %v975
      %1305 = vst.msk [vmem:[%s1302 + $0x10] sm:$0xff] %vm1288, %v980
      %1306 = vst.msk [vmem:[%s1302 + $0x18] sm:$0xff] %vm1288, %v983
      %1307 = vst.msk [vmem:[%s1302 + $0x20] sm:$0xff] %vm1288, %v988
      %1308 = vst.msk [vmem:[%s1302 + $0x28] sm:$0xff] %vm1288, %v991
      %1309 = vst.msk [vmem:[%s1302 + $0x30] sm:$0xff] %vm1288, %v996
      %1310 = vst.msk [vmem:[%s1302 + $0x38] sm:$0xff] %vm1288, %v999
      %1311 = vst.msk [vmem:[%s1302 + $0x40] sm:$0xff] %vm1288, %v1004
      %1312 = vst.msk [vmem:[%s1302 + $0x48] sm:$0xff] %vm1288, %v1007
      %1313 = vst.msk [vmem:[%s1302 + $0x50] sm:$0xff] %vm1288, %v1012
      %1314 = vst.msk [vmem:[%s1302 + $0x58] sm:$0x3] %vm1300, %v1015
      %s1315 = scalar_lea.vmem %s179, 192
      %1316 = vst.msk [vmem:[%s1315] sm:$0xff] %vm1288, %v1152
      %1317 = vst.msk [vmem:[%s1315 + $0x8] sm:$0xff] %vm1288, %v1155
      %1318 = vst.msk [vmem:[%s1315 + $0x10] sm:$0xff] %vm1288, %v1160
      %1319 = vst.msk [vmem:[%s1315 + $0x18] sm:$0xff] %vm1288, %v1163
      %1320 = vst.msk [vmem:[%s1315 + $0x20] sm:$0xff] %vm1288, %v1168
      %1321 = vst.msk [vmem:[%s1315 + $0x28] sm:$0xff] %vm1288, %v1171
      %1322 = vst.msk [vmem:[%s1315 + $0x30] sm:$0xff] %vm1288, %v1176
      %1323 = vst.msk [vmem:[%s1315 + $0x38] sm:$0xff] %vm1288, %v1179
      %1324 = vst.msk [vmem:[%s1315 + $0x40] sm:$0xff] %vm1288, %v1184
      %1325 = vst.msk [vmem:[%s1315 + $0x48] sm:$0xff] %vm1288, %v1187
      %1326 = vst.msk [vmem:[%s1315 + $0x50] sm:$0xff] %vm1288, %v1192
      %1327 = vst.msk [vmem:[%s1315 + $0x58] sm:$0x3] %vm1300, %v1195
      %s1328 = scalar_lea.vmem %s179, 288
      %1329 = vst.msk [vmem:[%s1328] sm:$0xff] %vm1288, %v1242
      %1330 = vst.msk [vmem:[%s1328 + $0x8] sm:$0xff] %vm1288, %v1245
      %1331 = vst.msk [vmem:[%s1328 + $0x10] sm:$0xff] %vm1288, %v1250
      %1332 = vst.msk [vmem:[%s1328 + $0x18] sm:$0xff] %vm1288, %v1253
      %1333 = vst.msk [vmem:[%s1328 + $0x20] sm:$0xff] %vm1288, %v1258
      %1334 = vst.msk [vmem:[%s1328 + $0x28] sm:$0xff] %vm1288, %v1261
      %1335 = vst.msk [vmem:[%s1328 + $0x30] sm:$0xff] %vm1288, %v1266
      %1336 = vst.msk [vmem:[%s1328 + $0x38] sm:$0xff] %vm1288, %v1269
      %1337 = vst.msk [vmem:[%s1328 + $0x40] sm:$0xff] %vm1288, %v1274
      %1338 = vst.msk [vmem:[%s1328 + $0x48] sm:$0xff] %vm1288, %v1277
      %1339 = vst.msk [vmem:[%s1328 + $0x50] sm:$0xff] %vm1288, %v1282
      %1340 = vst.msk [vmem:[%s1328 + $0x58] sm:$0x3] %vm1300, %v1285
      %p1341 = scmp.lt.s32.totalorder %s17, 1
      %s1342 = scalar_select %p1341, %s17, 1
      %p1343 = scmp.lt.s32.totalorder %s18, 0
      %s1344 = scalar_select %p1343, %s18, 0
      %s1345 = smul.addr %s1344, 12
      %s1346 = smul.addr %s1342, 48
      %s1347 = sadd.s32 %s1345, %s1346
      %s1348 = smul.addr %s1347, 8
      %s1349 = scalar_lea.vmem %s2, %s1348
      // Predicated region
      $region29: #{generator_synthesis_block.5} parent=27 // pred_check
        %p1350 = pneg %p94
      $region30: #{generator_synthesis_block.5} parent=27 // pred_check_branch
        %1352 = sbr.rel (%p1350) target = $region32
      $region31: #{generator_synthesis_block.5} parent=27 // pred_region
        _
      $region32: #{generator_synthesis_block.5} parent=27 // pred_fallthru
        _
    $region28: #{generator_synthesis_block.5} parent=5 // pred_fallthru
      _
    %p1353 = scmp.le.s32.totalorder 2, %s8
    // Predicated region
    $region33: #{generator_synthesis_block.5} parent=5 // pred_check
      %p1354 = pneg %p1353
    $region34: #{generator_synthesis_block.5} parent=5 // pred_check_branch
      %1356 = sbr.rel (%p1354) target = $region36
    $region35: #{generator_synthesis_block.5} parent=5 // pred_region
      %s1357 = ssub.s32 %s8, 2
      // Predicated region
      $region37: #{generator_synthesis_block.5} parent=35 // pred_check
        %p1358 = pneg %p100
      $region38: #{generator_synthesis_block.5} parent=35 // pred_check_branch
        %1360 = sbr.rel (%p1358) target = $region40
      $region39: #{generator_synthesis_block.5} parent=35 // pred_region
        %p1361 = scmp.lt.s32.totalorder %s19, 1
        %s1362 = scalar_select %p1361, %s19, 1
        %p1363 = scmp.lt.s32.totalorder %s20, 0
        %s1364 = scalar_select %p1363, %s20, 0
        %s1365 = smul.addr %s1364, 12
        %s1366 = smul.addr %s1362, 48
        %s1367 = sadd.s32 %s1365, %s1366
        %s1368 = smul.addr %s1367, 8
        %s1369 = scalar_lea.vmem %s2, %s1368
      $region40: #{generator_synthesis_block.5} parent=35 // pred_fallthru
        _
    $region36: #{generator_synthesis_block.5} parent=5 // pred_fallthru
      _
  $region6: #{generator_synthesis_block.5} parent=0 // loop_footer
    %s12 = sadd.s32 1, %s8
  $region7: #{generator_synthesis_block.5} parent=0 // loop_footer_branch
    %7 = sbr.rel target = $region3
  $region8: #{generator_synthesis_block.5} parent=0 // loop_exit
    _

// kernel: generator_synthesis_block.6
$region0: #{generator_synthesis_block.6}
  #allocation0 [shape = 'u32[]', space=smem, size = 0x4, offset = 0x4, fixed_abs, tag = 'smem constant byte address 0x4 - core index']
  #allocation1 [shape = 'u32[144,128]{1,0:T(1,128)}', space=vmem, size = 0x12000, scoped, tag = 'internal scratch']
  #allocation2 [shape = 'f32[16,19,32]{2,1,0:T(8,128)}', space=vmem, size = 0x30000, scoped, tag = 'scratch operand']
  %s0 = inlined_call_operand.vmem [shape: f32[2,1,19,19,32], index: 0, kind: input, shape index: {}]
  %s1 = inlined_call_operand.vmem [shape: f32[2,1,32], index: 1, kind: input, shape index: {}]
  %s2 = inlined_call_operand.vmem [shape: f32[16,16,1], index: 2, kind: input, shape index: {}]
  %s3 = inlined_call_operand.vmem [shape: f32[1,32], index: 3, kind: input, shape index: {}]
  %s4 = inlined_call_operand.vmem [shape: f32[2,16,16,32], index: 4, kind: output, shape index: {}]
  %s5 = sld [smem:[#allocation0]]
  $region49: #{generator_synthesis_block.6} parent=0
    _
  %s7 = ssub.s32 1, %s5
  %s8 = scalar_select 0, %s7, %s5
  loop: start=0, step=1, limit=4
  $region2: #{generator_synthesis_block.6} parent=0 // loop_pre_header
    _
  $region3: #{generator_synthesis_block.6} parent=0 // loop_header
    %s10 = sphi 0, %s14
    %p11 = scmp.ge.s32.totalorder %s10, 4
    %s17 = sphi 0, %s29
    %s18 = sphi 0, %s25
    %s19 = sphi 0, %s17
    %s20 = sphi 0, %s18
    %s21 = sphi 0, %s19
    %s22 = sphi 0, %s20
    %s34 = sphi 0, %s36
    %s37 = sphi 0, %s34
    %s38 = sphi 0, %s37
    %s54 = sphi 0, %s38
    %s60 = sphi 0, %s62
    %s63 = sphi 0, %s60
    %s64 = sphi 0, %s63
    %s80 = sphi 0, %s64
    %s86 = sphi 0, %s88
    %s89 = sphi 0, %s86
    %s90 = sphi 0, %s89
    %s106 = sphi 0, %s90
    %s110 = sphi 0, %s110
    %s112 = sphi 0, %s110
    %s113 = sphi 0, %s112
    %s127 = sphi 0, %s113
    %s135 = sphi 0, %s137
    %s138 = sphi 0, %s135
    %s139 = sphi 0, %s138
    %s155 = sphi 0, %s139
  $region4: #{generator_synthesis_block.6} parent=0 // loop_header_branch
    %13 = sbr.rel (%p11) target = $region8
  $region5: #{generator_synthesis_block.6} parent=0 // loop_body
    %s15 = ssub.s32 %s10, 1
    %s16 = ssub.s32 %s10, 2
    %s23 = sadd.s32 1, %s18
    %p24 = scmp.ge.s32.totalorder %s23, 1
    %s25 = scalar_select %p24, 0, %s23
    %s26 = sadd.s32 1, %s17
    %s27 = scalar_select %p24, %s26, %s17
    %p28 = scmp.ge.s32.totalorder %s27, 2
    %s29 = scalar_select %p28, 0, %s27
    %s30 = ssub.s32 %s17, %s29
    %s31 = ssub.s32 %s18, %s25
    %s32 = sor.u32 %s30, %s31
    %p33 = scmp.eq.s32.totalorder %s32, 0
    %s35 = sadd.s32 %s34, 1
    %s36 = scalar_select %p33, %s34, %s35
    %p39 = pneg %p33
    %p40 = scmp.eq.s32.totalorder %s10, 1
    %p41 = por %p39, %p40
    %p42 = scmp.ne.s32.totalorder %s34, %s37
    %p43 = scmp.eq.s32.totalorder %s10, 0
    %p44 = por %p42, %p43
    %p45 = scmp.ne.s32.totalorder %s34, %s37
    %p46 = scmp.eq.s32.totalorder %s15, 1
    %p47 = por %p45, %p46
    %p48 = scmp.ne.s32.totalorder %s37, %s38
    %p49 = scmp.eq.s32.totalorder %s15, 0
    %p50 = por %p48, %p49
    %p51 = scmp.ne.s32.totalorder %s37, %s38
    %p52 = scmp.eq.s32.totalorder %s16, 1
    %p53 = por %p51, %p52
    %p55 = scmp.ne.s32.totalorder %s38, %s54
    %p56 = scmp.eq.s32.totalorder %s16, 0
    %p57 = por %p55, %p56
    %s58 = ssub.s32 %s17, %s29
    %p59 = scmp.eq.s32.totalorder %s58, 0
    %s61 = sadd.s32 %s60, 1
    %s62 = scalar_select %p59, %s60, %s61
    %p65 = pneg %p59
    %p66 = scmp.eq.s32.totalorder %s10, 1
    %p67 = por %p65, %p66
    %p68 = scmp.ne.s32.totalorder %s60, %s63
    %p69 = scmp.eq.s32.totalorder %s10, 0
    %p70 = por %p68, %p69
    %p71 = scmp.ne.s32.totalorder %s60, %s63
    %p72 = scmp.eq.s32.totalorder %s15, 1
    %p73 = por %p71, %p72
    %p74 = scmp.ne.s32.totalorder %s63, %s64
    %p75 = scmp.eq.s32.totalorder %s15, 0
    %p76 = por %p74, %p75
    %p77 = scmp.ne.s32.totalorder %s63, %s64
    %p78 = scmp.eq.s32.totalorder %s16, 1
    %p79 = por %p77, %p78
    %p81 = scmp.ne.s32.totalorder %s64, %s80
    %p82 = scmp.eq.s32.totalorder %s16, 0
    %p83 = por %p81, %p82
    %s84 = ssub.s32 %s18, %s25
    %p85 = scmp.eq.s32.totalorder %s84, 0
    %s87 = sadd.s32 %s86, 1
    %s88 = scalar_select %p85, %s86, %s87
    %p91 = pneg %p85
    %p92 = scmp.eq.s32.totalorder %s10, 1
    %p93 = por %p91, %p92
    %p94 = scmp.ne.s32.totalorder %s86, %s89
    %p95 = scmp.eq.s32.totalorder %s10, 0
    %p96 = por %p94, %p95
    %p97 = scmp.ne.s32.totalorder %s86, %s89
    %p98 = scmp.eq.s32.totalorder %s15, 1
    %p99 = por %p97, %p98
    %p100 = scmp.ne.s32.totalorder %s89, %s90
    %p101 = scmp.eq.s32.totalorder %s15, 0
    %p102 = por %p100, %p101
    %p103 = scmp.ne.s32.totalorder %s89, %s90
    %p104 = scmp.eq.s32.totalorder %s16, 1
    %p105 = por %p103, %p104
    %p107 = scmp.ne.s32.totalorder %s90, %s106
    %p108 = scmp.eq.s32.totalorder %s16, 0
    %p109 = por %p107, %p108
    %s111 = sadd.s32 %s110, 1
    %p114 = scmp.eq.s32.totalorder %s10, 1
    %p115 = scmp.ne.s32.totalorder %s110, %s112
    %p116 = scmp.eq.s32.totalorder %s10, 0
    %p117 = por %p115, %p116
    %p118 = scmp.ne.s32.totalorder %s110, %s112
    %p119 = scmp.eq.s32.totalorder %s15, 1
    %p120 = por %p118, %p119
    %p121 = scmp.ne.s32.totalorder %s112, %s113
    %p122 = scmp.eq.s32.totalorder %s15, 0
    %p123 = por %p121, %p122
    %p124 = scmp.ne.s32.totalorder %s112, %s113
    %p125 = scmp.eq.s32.totalorder %s16, 1
    %p126 = por %p124, %p125
    %p128 = scmp.ne.s32.totalorder %s113, %s127
    %p129 = scmp.eq.s32.totalorder %s16, 0
    %p130 = por %p128, %p129
    %s131 = ssub.s32 %s17, %s29
    %s132 = ssub.s32 %s18, %s25
    %s133 = sor.u32 %s131, %s132
    %p134 = scmp.eq.s32.totalorder %s133, 0
    %s136 = sadd.s32 %s135, 1
    %s137 = scalar_select %p134, %s135, %s136
    %p140 = pneg %p134
    %p141 = scmp.eq.s32.totalorder %s10, 1
    %p142 = por %p140, %p141
    %p143 = scmp.ne.s32.totalorder %s135, %s138
    %p144 = scmp.eq.s32.totalorder %s10, 0
    %p145 = por %p143, %p144
    %p146 = scmp.ne.s32.totalorder %s135, %s138
    %p147 = scmp.eq.s32.totalorder %s15, 1
    %p148 = por %p146, %p147
    %p149 = scmp.ne.s32.totalorder %s138, %s139
    %p150 = scmp.eq.s32.totalorder %s15, 0
    %p151 = por %p149, %p150
    %p152 = scmp.ne.s32.totalorder %s138, %s139
    %p153 = scmp.eq.s32.totalorder %s16, 1
    %p154 = por %p152, %p153
    %p156 = scmp.ne.s32.totalorder %s139, %s155
    %p157 = scmp.eq.s32.totalorder %s16, 0
    %p158 = por %p156, %p157
    %p159 = scmp.le.s32.totalorder 1, %s10
    %p160 = scmp.lt.s32.totalorder %s10, 3
    %p161 = pnand %p159, %p160
    %p162 = pneg %p161
    // Predicated region
    $region9: #{generator_synthesis_block.6} parent=5 // pred_check
      _
    $region10: #{generator_synthesis_block.6} parent=5 // pred_check_branch
      %164 = sbr.rel (%p161) target = $region12
    $region11: #{generator_synthesis_block.6} parent=5 // pred_region
      %s165 = ssub.s32 %s10, 1
      // Predicated region
      $region13: #{generator_synthesis_block.6} parent=11 // pred_check
        %p166 = pneg %p102
      $region14: #{generator_synthesis_block.6} parent=11 // pred_check_branch
        %168 = sbr.rel (%p166) target = $region16
      $region15: #{generator_synthesis_block.6} parent=11 // pred_region
        %s169 = smul.u32 16, %s20
        %p170 = scmp.lt.s32.totalorder %s169, 15
        %s171 = scalar_select %p170, %s169, 15
        %s172 = smul.addr %s171, 2
        %s173 = smul.addr %s172, 8
        %s174 = scalar_lea.vmem %s2, %s173
        %s175 = smul.u32 16, %s20
      $region16: #{generator_synthesis_block.6} parent=11 // pred_fallthru
        _
      // Predicated region
      $region17: #{generator_synthesis_block.6} parent=11 // pred_check
        %p176 = pneg %p123
      $region18: #{generator_synthesis_block.6} parent=11 // pred_check_branch
        %178 = sbr.rel (%p176) target = $region20
      $region19: #{generator_synthesis_block.6} parent=11 // pred_region
        _
      $region20: #{generator_synthesis_block.6} parent=11 // pred_fallthru
        _
    $region12: #{generator_synthesis_block.6} parent=5 // pred_fallthru
      _
    %p179 = scmp.lt.s32.totalorder %s10, 2
    // Predicated region
    $region21: #{generator_synthesis_block.6} parent=5 // pred_check
      %p180 = pneg %p179
    $region22: #{generator_synthesis_block.6} parent=5 // pred_check_branch
      %182 = sbr.rel (%p180) target = $region24
    $region23: #{generator_synthesis_block.6} parent=5 // pred_region
      // Predicated region
      $region25: #{generator_synthesis_block.6} parent=23 // pred_check
        %p183 = pneg %p44
      $region26: #{generator_synthesis_block.6} parent=23 // pred_check_branch
        %185 = sbr.rel (%p183) target = $region28
      $region27: #{generator_synthesis_block.6} parent=23 // pred_region
        %p186 = scmp.lt.s32.totalorder %s17, 1
        %s187 = scalar_select %p186, %s17, 1
        %p188 = scmp.lt.s32.totalorder %s18, 0
        %s189 = scalar_select %p188, %s18, 0
        %s190 = smul.addr %s189, 57
        %s191 = smul.addr %s187, 57
        %s192 = sadd.s32 %s190, %s191
        %s193 = smul.addr %s192, 8
        %s194 = scalar_lea.vmem %s0, %s193
      $region28: #{generator_synthesis_block.6} parent=23 // pred_fallthru
        _
      // Predicated region
      $region29: #{generator_synthesis_block.6} parent=23 // pred_check
        %p195 = pneg %p70
      $region30: #{generator_synthesis_block.6} parent=23 // pred_check_branch
        %197 = sbr.rel (%p195) target = $region32
      $region31: #{generator_synthesis_block.6} parent=23 // pred_region
        %p198 = scmp.lt.s32.totalorder %s17, 1
        %s199 = scalar_select %p198, %s17, 1
        %s200 = scalar_lea.vmem %s1, %s199
      $region32: #{generator_synthesis_block.6} parent=23 // pred_fallthru
        _
    $region24: #{generator_synthesis_block.6} parent=5 // pred_fallthru
      _
    %p201 = scmp.le.s32.totalorder 1, %s10
    %p202 = scmp.lt.s32.totalorder %s10, 3
    %p203 = pnand %p201, %p202
    %p204 = pneg %p203
    // Predicated region
    $region33: #{generator_synthesis_block.6} parent=5 // pred_check
      _
    $region34: #{generator_synthesis_block.6} parent=5 // pred_check_branch
      %206 = sbr.rel (%p203) target = $region36
    $region35: #{generator_synthesis_block.6} parent=5 // pred_region
      %s207 = ssub.s32 %s10, 1
      %p208 = scmp.lt.s32.totalorder %s19, 1
      %s209 = scalar_select %p208, %s19, 1
      %p210 = scmp.lt.s32.totalorder %s20, 0
      %s211 = scalar_select %p210, %s20, 0
      %s212 = smul.addr %s211, 57
      %s213 = smul.addr %s209, 57
      %s214 = sadd.s32 %s212, %s213
      %s215 = smul.addr %s214, 8
      %s216 = scalar_lea.vmem %s0, %s215
      %p217 = pneg %p50
      %p218 = pneg %p47
      %p219 = scmp.lt.s32.totalorder %s19, 1
      %s220 = scalar_select %p219, %s19, 1
      %s221 = scalar_lea.vmem %s1, %s220
      %p222 = pneg %p76
      %p223 = pneg %p73
      %s224 = smul.u32 16, %s20
      %p225 = scmp.lt.s32.totalorder %s224, 15
      %s226 = scalar_select %p225, %s224, 15
      %s227 = smul.addr %s226, 2
      %s228 = smul.addr %s227, 8
      %s229 = scalar_lea.vmem %s2, %s228
      %p230 = pneg %p102
      %p231 = pneg %p99
      %p232 = pneg %p123
      %p233 = pneg %p120
      %p234 = pneg %p151
      %p235 = pneg %p148
      %s236 = smul.u32 16, %s20
      %p237 = scmp.lt.s32.totalorder %s19, 1
      %s238 = scalar_select %p237, %s19, 1
      %p239 = scmp.lt.s32.totalorder %s236, 15
      %s240 = scalar_select %p239, %s236, 15
      %s241 = smul.addr %s240, 2
      %s242 = smul.addr %s238, 32
      %s243 = sadd.s32 %s241, %s242
      %s244 = smul.addr %s243, 8
      %s245 = scalar_lea.vmem %s4, %s244
      %p246 = scmp.lt.s32.totalorder %s19, 1
      %s247 = scalar_select %p246, %s19, 1
      %p248 = scmp.lt.s32.totalorder %s20, 0
      %s249 = scalar_select %p248, %s20, 0
      %s250 = smul.addr %s249, 57
      %s251 = smul.addr %s247, 57
      %s252 = sadd.s32 %s250, %s251
      %s253 = smul.addr %s252, 8
      %s254 = scalar_lea.vmem %s0, %s253
      %p255 = scmp.lt.s32.totalorder %s19, 1
      %s256 = scalar_select %p255, %s19, 1
      %s257 = scalar_lea.vmem %s1, %s256
      %s258 = smul.u32 16, %s20
      %p259 = scmp.lt.s32.totalorder %s258, 15
      %s260 = scalar_select %p259, %s258, 15
      %s261 = smul.addr %s260, 2
      %s262 = smul.addr %s261, 8
      %s263 = scalar_lea.vmem %s2, %s262
      %s264 = smul.u32 16, %s20
      %s265 = smul.u32 16, %s20
      %p266 = scmp.lt.s32.totalorder %s19, 1
      %s267 = scalar_select %p266, %s19, 1
      %p268 = scmp.lt.s32.totalorder %s265, 15
      %s269 = scalar_select %p268, %s265, 15
      %s270 = smul.addr %s269, 2
      %s271 = smul.addr %s267, 32
      %s272 = sadd.s32 %s270, %s271
      %s273 = smul.addr %s272, 8
      %s274 = scalar_lea.vmem %s4, %s273
      %s275 = smul.u32 16, %s20
      %v276 = vld [vmem:[%s254] sm:$0xff]
      %v277 = vld [vmem:[%s254 + $0x8] sm:$0xff]
      %v278 = vld [vmem:[%s254 + $0x10] sm:$0x7]
      %v279 = vld [vmem:[%s254 + $0x18] sm:$0xff]
      %v280 = vld [vmem:[%s254 + $0x20] sm:$0xff]
      %v281 = vld [vmem:[%s254 + $0x28] sm:$0x7]
      %v282 = vld [vmem:[%s254 + $0x30] sm:$0xff]
      %v283 = vld [vmem:[%s254 + $0x38] sm:$0xff]
      %v284 = vld [vmem:[%s254 + $0x40] sm:$0x7]
      %v285 = vld [vmem:[%s254 + $0x48] sm:$0xff]
      %v286 = vld [vmem:[%s254 + $0x50] sm:$0xff]
      %v287 = vld [vmem:[%s254 + $0x58] sm:$0x7]
      %v288 = vld [vmem:[%s254 + $0x60] sm:$0xff]
      %v289 = vld [vmem:[%s254 + $0x68] sm:$0xff]
      %v290 = vld [vmem:[%s254 + $0x70] sm:$0x7]
      %v291 = vld [vmem:[%s254 + $0x78] sm:$0xff]
      %v292 = vld [vmem:[%s254 + $0x80] sm:$0xff]
      %v293 = vld [vmem:[%s254 + $0x88] sm:$0x7]
      %v294 = vld [vmem:[%s254 + $0x90] sm:$0xff]
      %v295 = vld [vmem:[%s254 + $0x98] sm:$0xff]
      %v296 = vld [vmem:[%s254 + $0xa0] sm:$0x7]
      %v297 = vld [vmem:[%s254 + $0xa8] sm:$0xff]
      %v298 = vld [vmem:[%s254 + $0xb0] sm:$0xff]
      %v299 = vld [vmem:[%s254 + $0xb8] sm:$0x7]
      %v300 = vld [vmem:[%s254 + $0xc0] sm:$0xff]
      %v301 = vld [vmem:[%s254 + $0xc8] sm:$0xff]
      %v302 = vld [vmem:[%s254 + $0xd0] sm:$0x7]
      %v303 = vld [vmem:[%s254 + $0xd8] sm:$0xff]
      %v304 = vld [vmem:[%s254 + $0xe0] sm:$0xff]
      %v305 = vld [vmem:[%s254 + $0xe8] sm:$0x7]
      %v306 = vld [vmem:[%s254 + $0xf0] sm:$0xff]
      %v307 = vld [vmem:[%s254 + $0xf8] sm:$0xff]
      %v308 = vld [vmem:[%s254 + $0x100] sm:$0x7]
      %v309 = vld [vmem:[%s254 + $0x108] sm:$0xff]
      %v310 = vld [vmem:[%s254 + $0x110] sm:$0xff]
      %v311 = vld [vmem:[%s254 + $0x118] sm:$0x7]
      %v312 = vld [vmem:[%s254 + $0x120] sm:$0xff]
      %v313 = vld [vmem:[%s254 + $0x128] sm:$0xff]
      %v314 = vld [vmem:[%s254 + $0x130] sm:$0x7]
      %v315 = vld [vmem:[%s254 + $0x138] sm:$0xff]
      %v316 = vld [vmem:[%s254 + $0x140] sm:$0xff]
      %v317 = vld [vmem:[%s254 + $0x148] sm:$0x7]
      %v318 = vld [vmem:[%s254 + $0x150] sm:$0xff]
      %v319 = vld [vmem:[%s254 + $0x158] sm:$0xff]
      %v320 = vld [vmem:[%s254 + $0x160] sm:$0x7]
      %v321 = vld [vmem:[%s254 + $0x168] sm:$0xff]
      %v322 = vld [vmem:[%s254 + $0x170] sm:$0xff]
      %v323 = vld [vmem:[%s254 + $0x178] sm:$0x7]
      %v324 = vmul.f32 %v276, 0.25
      %v325 = vmul.f32 %v277, 0.25
      %v326 = vmul.f32 %v278, 0.25
      %v327 = vmul.f32 %v279, 0.25
      %v328 = vmul.f32 %v280, 0.25
      %v329 = vmul.f32 %v281, 0.25
      %v330 = vmul.f32 %v282, 0.25
      %v331 = vmul.f32 %v283, 0.25
      %v332 = vmul.f32 %v284, 0.25
      %v333 = vmul.f32 %v285, 0.25
      %v334 = vmul.f32 %v286, 0.25
      %v335 = vmul.f32 %v287, 0.25
      %v336 = vmul.f32 %v288, 0.25
      %v337 = vmul.f32 %v289, 0.25
      %v338 = vmul.f32 %v290, 0.25
      %v339 = vmul.f32 %v291, 0.25
      %v340 = vmul.f32 %v292, 0.25
      %v341 = vmul.f32 %v293, 0.25
      %v342 = vmul.f32 %v294, 0.25
      %v343 = vmul.f32 %v295, 0.25
      %v344 = vmul.f32 %v296, 0.25
      %v345 = vmul.f32 %v297, 0.25
      %v346 = vmul.f32 %v298, 0.25
      %v347 = vmul.f32 %v299, 0.25
      %v348 = vmul.f32 %v300, 0.25
      %v349 = vmul.f32 %v301, 0.25
      %v350 = vmul.f32 %v302, 0.25
      %v351 = vmul.f32 %v303, 0.25
      %v352 = vmul.f32 %v304, 0.25
      %v353 = vmul.f32 %v305, 0.25
      %v354 = vmul.f32 %v306, 0.25
      %v355 = vmul.f32 %v307, 0.25
      %v356 = vmul.f32 %v308, 0.25
      %v357 = vmul.f32 %v309, 0.25
      %v358 = vmul.f32 %v310, 0.25
      %v359 = vmul.f32 %v311, 0.25
      %v360 = vmul.f32 %v312, 0.25
      %v361 = vmul.f32 %v313, 0.25
      %v362 = vmul.f32 %v314, 0.25
      %v363 = vmul.f32 %v315, 0.25
      %v364 = vmul.f32 %v316, 0.25
      %v365 = vmul.f32 %v317, 0.25
      %v366 = vmul.f32 %v318, 0.25
      %v367 = vmul.f32 %v319, 0.25
      %v368 = vmul.f32 %v320, 0.25
      %v369 = vmul.f32 %v321, 0.25
      %v370 = vmul.f32 %v322, 0.25
      %v371 = vmul.f32 %v323, 0.25
      %s372 = scalar_lea.vmem %s254, 24
      %v373 = vld [vmem:[%s372] sm:$0xff]
      %v374 = vld [vmem:[%s372 + $0x8] sm:$0xff]
      %v375 = vld [vmem:[%s372 + $0x10] sm:$0x7]
      %v376 = vld [vmem:[%s372 + $0x18] sm:$0xff]
      %v377 = vld [vmem:[%s372 + $0x20] sm:$0xff]
      %v378 = vld [vmem:[%s372 + $0x28] sm:$0x7]
      %v379 = vld [vmem:[%s372 + $0x30] sm:$0xff]
      %v380 = vld [vmem:[%s372 + $0x38] sm:$0xff]
      %v381 = vld [vmem:[%s372 + $0x40] sm:$0x7]
      %v382 = vld [vmem:[%s372 + $0x48] sm:$0xff]
      %v383 = vld [vmem:[%s372 + $0x50] sm:$0xff]
      %v384 = vld [vmem:[%s372 + $0x58] sm:$0x7]
      %v385 = vld [vmem:[%s372 + $0x60] sm:$0xff]
      %v386 = vld [vmem:[%s372 + $0x68] sm:$0xff]
      %v387 = vld [vmem:[%s372 + $0x70] sm:$0x7]
      %v388 = vld [vmem:[%s372 + $0x78] sm:$0xff]
      %v389 = vld [vmem:[%s372 + $0x80] sm:$0xff]
      %v390 = vld [vmem:[%s372 + $0x88] sm:$0x7]
      %v391 = vld [vmem:[%s372 + $0x90] sm:$0xff]
      %v392 = vld [vmem:[%s372 + $0x98] sm:$0xff]
      %v393 = vld [vmem:[%s372 + $0xa0] sm:$0x7]
      %v394 = vld [vmem:[%s372 + $0xa8] sm:$0xff]
      %v395 = vld [vmem:[%s372 + $0xb0] sm:$0xff]
      %v396 = vld [vmem:[%s372 + $0xb8] sm:$0x7]
      %v397 = vld [vmem:[%s372 + $0xc0] sm:$0xff]
      %v398 = vld [vmem:[%s372 + $0xc8] sm:$0xff]
      %v399 = vld [vmem:[%s372 + $0xd0] sm:$0x7]
      %v400 = vld [vmem:[%s372 + $0xd8] sm:$0xff]
      %v401 = vld [vmem:[%s372 + $0xe0] sm:$0xff]
      %v402 = vld [vmem:[%s372 + $0xe8] sm:$0x7]
      %v403 = vld [vmem:[%s372 + $0xf0] sm:$0xff]
      %v404 = vld [vmem:[%s372 + $0xf8] sm:$0xff]
      %v405 = vld [vmem:[%s372 + $0x100] sm:$0x7]
      %v406 = vld [vmem:[%s372 + $0x108] sm:$0xff]
      %v407 = vld [vmem:[%s372 + $0x110] sm:$0xff]
      %v408 = vld [vmem:[%s372 + $0x118] sm:$0x7]
      %v409 = vld [vmem:[%s372 + $0x120] sm:$0xff]
      %v410 = vld [vmem:[%s372 + $0x128] sm:$0xff]
      %v411 = vld [vmem:[%s372 + $0x130] sm:$0x7]
      %v412 = vld [vmem:[%s372 + $0x138] sm:$0xff]
      %v413 = vld [vmem:[%s372 + $0x140] sm:$0xff]
      %v414 = vld [vmem:[%s372 + $0x148] sm:$0x7]
      %v415 = vld [vmem:[%s372 + $0x150] sm:$0xff]
      %v416 = vld [vmem:[%s372 + $0x158] sm:$0xff]
      %v417 = vld [vmem:[%s372 + $0x160] sm:$0x7]
      %v418 = vld [vmem:[%s372 + $0x168] sm:$0xff]
      %v419 = vld [vmem:[%s372 + $0x170] sm:$0xff]
      %v420 = vld [vmem:[%s372 + $0x178] sm:$0x7]
      %v421 = vmul.f32 %v373, 0.75
      %v422 = vmul.f32 %v374, 0.75
      %v423 = vmul.f32 %v375, 0.75
      %v424 = vmul.f32 %v376, 0.75
      %v425 = vmul.f32 %v377, 0.75
      %v426 = vmul.f32 %v378, 0.75
      %v427 = vmul.f32 %v379, 0.75
      %v428 = vmul.f32 %v380, 0.75
      %v429 = vmul.f32 %v381, 0.75
      %v430 = vmul.f32 %v382, 0.75
      %v431 = vmul.f32 %v383, 0.75
      %v432 = vmul.f32 %v384, 0.75
      %v433 = vmul.f32 %v385, 0.75
      %v434 = vmul.f32 %v386, 0.75
      %v435 = vmul.f32 %v387, 0.75
      %v436 = vmul.f32 %v388, 0.75
      %v437 = vmul.f32 %v389, 0.75
      %v438 = vmul.f32 %v390, 0.75
      %v439 = vmul.f32 %v391, 0.75
      %v440 = vmul.f32 %v392, 0.75
      %v441 = vmul.f32 %v393, 0.75
      %v442 = vmul.f32 %v394, 0.75
      %v443 = vmul.f32 %v395, 0.75
      %v444 = vmul.f32 %v396, 0.75
      %v445 = vmul.f32 %v397, 0.75
      %v446 = vmul.f32 %v398, 0.75
      %v447 = vmul.f32 %v399, 0.75
      %v448 = vmul.f32 %v400, 0.75
      %v449 = vmul.f32 %v401, 0.75
      %v450 = vmul.f32 %v402, 0.75
      %v451 = vmul.f32 %v403, 0.75
      %v452 = vmul.f32 %v404, 0.75
      %v453 = vmul.f32 %v405, 0.75
      %v454 = vmul.f32 %v406, 0.75
      %v455 = vmul.f32 %v407, 0.75
      %v456 = vmul.f32 %v408, 0.75
      %v457 = vmul.f32 %v409, 0.75
      %v458 = vmul.f32 %v410, 0.75
      %v459 = vmul.f32 %v411, 0.75
      %v460 = vmul.f32 %v412, 0.75
      %v461 = vmul.f32 %v413, 0.75
      %v462 = vmul.f32 %v414, 0.75
      %v463 = vmul.f32 %v415, 0.75
      %v464 = vmul.f32 %v416, 0.75
      %v465 = vmul.f32 %v417, 0.75
      %v466 = vmul.f32 %v418, 0.75
      %v467 = vmul.f32 %v419, 0.75
      %v468 = vmul.f32 %v420, 0.75
      %v469 = vadd.f32 %v324, %v421
      %v470 = vadd.f32 %v325, %v422
      %v471 = vadd.f32 %v326, %v423
      %v472 = vadd.f32 %v327, %v424
      %v473 = vadd.f32 %v328, %v425
      %v474 = vadd.f32 %v329, %v426
      %v475 = vadd.f32 %v330, %v427
      %v476 = vadd.f32 %v331, %v428
      %v477 = vadd.f32 %v332, %v429
      %v478 = vadd.f32 %v333, %v430
      %v479 = vadd.f32 %v334, %v431
      %v480 = vadd.f32 %v335, %v432
      %v481 = vadd.f32 %v336, %v433
      %v482 = vadd.f32 %v337, %v434
      %v483 = vadd.f32 %v338, %v435
      %v484 = vadd.f32 %v339, %v436
      %v485 = vadd.f32 %v340, %v437
      %v486 = vadd.f32 %v341, %v438
      %v487 = vadd.f32 %v342, %v439
      %v488 = vadd.f32 %v343, %v440
      %v489 = vadd.f32 %v344, %v441
      %v490 = vadd.f32 %v345, %v442
      %v491 = vadd.f32 %v346, %v443
      %v492 = vadd.f32 %v347, %v444
      %v493 = vadd.f32 %v348, %v445
      %v494 = vadd.f32 %v349, %v446
      %v495 = vadd.f32 %v350, %v447
      %v496 = vadd.f32 %v351, %v448
      %v497 = vadd.f32 %v352, %v449
      %v498 = vadd.f32 %v353, %v450
      %v499 = vadd.f32 %v354, %v451
      %v500 = vadd.f32 %v355, %v452
      %v501 = vadd.f32 %v356, %v453
      %v502 = vadd.f32 %v357, %v454
      %v503 = vadd.f32 %v358, %v455
      %v504 = vadd.f32 %v359, %v456
      %v505 = vadd.f32 %v360, %v457
      %v506 = vadd.f32 %v361, %v458
      %v507 = vadd.f32 %v362, %v459
      %v508 = vadd.f32 %v363, %v460
      %v509 = vadd.f32 %v364, %v461
      %v510 = vadd.f32 %v365, %v462
      %v511 = vadd.f32 %v366, %v463
      %v512 = vadd.f32 %v367, %v464
      %v513 = vadd.f32 %v368, %v465
      %v514 = vadd.f32 %v369, %v466
      %v515 = vadd.f32 %v370, %v467
      %v516 = vadd.f32 %v371, %v468
      %s517 = scalar_lea.vmem %s254, 48
      %v518 = vld [vmem:[%s517] sm:$0xff]
      %v519 = vld [vmem:[%s517 + $0x8] sm:$0xff]
      %v520 = vld [vmem:[%s517 + $0x10] sm:$0x7]
      %v521 = vld [vmem:[%s517 + $0x18] sm:$0xff]
      %v522 = vld [vmem:[%s517 + $0x20] sm:$0xff]
      %v523 = vld [vmem:[%s517 + $0x28] sm:$0x7]
      %v524 = vld [vmem:[%s517 + $0x30] sm:$0xff]
      %v525 = vld [vmem:[%s517 + $0x38] sm:$0xff]
      %v526 = vld [vmem:[%s517 + $0x40] sm:$0x7]
      %v527 = vld [vmem:[%s517 + $0x48] sm:$0xff]
      %v528 = vld [vmem:[%s517 + $0x50] sm:$0xff]
      %v529 = vld [vmem:[%s517 + $0x58] sm:$0x7]
      %v530 = vld [vmem:[%s517 + $0x60] sm:$0xff]
      %v531 = vld [vmem:[%s517 + $0x68] sm:$0xff]
      %v532 = vld [vmem:[%s517 + $0x70] sm:$0x7]
      %v533 = vld [vmem:[%s517 + $0x78] sm:$0xff]
      %v534 = vld [vmem:[%s517 + $0x80] sm:$0xff]
      %v535 = vld [vmem:[%s517 + $0x88] sm:$0x7]
      %v536 = vld [vmem:[%s517 + $0x90] sm:$0xff]
      %v537 = vld [vmem:[%s517 + $0x98] sm:$0xff]
      %v538 = vld [vmem:[%s517 + $0xa0] sm:$0x7]
      %v539 = vld [vmem:[%s517 + $0xa8] sm:$0xff]
      %v540 = vld [vmem:[%s517 + $0xb0] sm:$0xff]
      %v541 = vld [vmem:[%s517 + $0xb8] sm:$0x7]
      %v542 = vld [vmem:[%s517 + $0xc0] sm:$0xff]
      %v543 = vld [vmem:[%s517 + $0xc8] sm:$0xff]
      %v544 = vld [vmem:[%s517 + $0xd0] sm:$0x7]
      %v545 = vld [vmem:[%s517 + $0xd8] sm:$0xff]
      %v546 = vld [vmem:[%s517 + $0xe0] sm:$0xff]
      %v547 = vld [vmem:[%s517 + $0xe8] sm:$0x7]
      %v548 = vld [vmem:[%s517 + $0xf0] sm:$0xff]
      %v549 = vld [vmem:[%s517 + $0xf8] sm:$0xff]
      %v550 = vld [vmem:[%s517 + $0x100] sm:$0x7]
      %v551 = vld [vmem:[%s517 + $0x108] sm:$0xff]
      %v552 = vld [vmem:[%s517 + $0x110] sm:$0xff]
      %v553 = vld [vmem:[%s517 + $0x118] sm:$0x7]
      %v554 = vld [vmem:[%s517 + $0x120] sm:$0xff]
      %v555 = vld [vmem:[%s517 + $0x128] sm:$0xff]
      %v556 = vld [vmem:[%s517 + $0x130] sm:$0x7]
      %v557 = vld [vmem:[%s517 + $0x138] sm:$0xff]
      %v558 = vld [vmem:[%s517 + $0x140] sm:$0xff]
      %v559 = vld [vmem:[%s517 + $0x148] sm:$0x7]
      %v560 = vld [vmem:[%s517 + $0x150] sm:$0xff]
      %v561 = vld [vmem:[%s517 + $0x158] sm:$0xff]
      %v562 = vld [vmem:[%s517 + $0x160] sm:$0x7]
      %v563 = vld [vmem:[%s517 + $0x168] sm:$0xff]
      %v564 = vld [vmem:[%s517 + $0x170] sm:$0xff]
      %v565 = vld [vmem:[%s517 + $0x178] sm:$0x7]
      %v566 = vmul.f32 %v518, 0.75
      %v567 = vmul.f32 %v519, 0.75
      %v568 = vmul.f32 %v520, 0.75
      %v569 = vmul.f32 %v521, 0.75
      %v570 = vmul.f32 %v522, 0.75
      %v571 = vmul.f32 %v523, 0.75
      %v572 = vmul.f32 %v524, 0.75
      %v573 = vmul.f32 %v525, 0.75
      %v574 = vmul.f32 %v526, 0.75
      %v575 = vmul.f32 %v527, 0.75
      %v576 = vmul.f32 %v528, 0.75
      %v577 = vmul.f32 %v529, 0.75
      %v578 = vmul.f32 %v530, 0.75
      %v579 = vmul.f32 %v531, 0.75
      %v580 = vmul.f32 %v532, 0.75
      %v581 = vmul.f32 %v533, 0.75
      %v582 = vmul.f32 %v534, 0.75
      %v583 = vmul.f32 %v535, 0.75
      %v584 = vmul.f32 %v536, 0.75
      %v585 = vmul.f32 %v537, 0.75
      %v586 = vmul.f32 %v538, 0.75
      %v587 = vmul.f32 %v539, 0.75
      %v588 = vmul.f32 %v540, 0.75
      %v589 = vmul.f32 %v541, 0.75
      %v590 = vmul.f32 %v542, 0.75
      %v591 = vmul.f32 %v543, 0.75
      %v592 = vmul.f32 %v544, 0.75
      %v593 = vmul.f32 %v545, 0.75
      %v594 = vmul.f32 %v546, 0.75
      %v595 = vmul.f32 %v547, 0.75
      %v596 = vmul.f32 %v548, 0.75
      %v597 = vmul.f32 %v549, 0.75
      %v598 = vmul.f32 %v550, 0.75
      %v599 = vmul.f32 %v551, 0.75
      %v600 = vmul.f32 %v552, 0.75
      %v601 = vmul.f32 %v553, 0.75
      %v602 = vmul.f32 %v554, 0.75
      %v603 = vmul.f32 %v555, 0.75
      %v604 = vmul.f32 %v556, 0.75
      %v605 = vmul.f32 %v557, 0.75
      %v606 = vmul.f32 %v558, 0.75
      %v607 = vmul.f32 %v559, 0.75
      %v608 = vmul.f32 %v560, 0.75
      %v609 = vmul.f32 %v561, 0.75
      %v610 = vmul.f32 %v562, 0.75
      %v611 = vmul.f32 %v563, 0.75
      %v612 = vmul.f32 %v564, 0.75
      %v613 = vmul.f32 %v565, 0.75
      %v614 = vadd.f32 %v469, %v566
      %v615 = vadd.f32 %v470, %v567
      %v616 = vadd.f32 %v471, %v568
      %v617 = vadd.f32 %v472, %v569
      %v618 = vadd.f32 %v473, %v570
      %v619 = vadd.f32 %v474, %v571
      %v620 = vadd.f32 %v475, %v572
      %v621 = vadd.f32 %v476, %v573
      %v622 = vadd.f32 %v477, %v574
      %v623 = vadd.f32 %v478, %v575
      %v624 = vadd.f32 %v479, %v576
      %v625 = vadd.f32 %v480, %v577
      %v626 = vadd.f32 %v481, %v578
      %v627 = vadd.f32 %v482, %v579
      %v628 = vadd.f32 %v483, %v580
      %v629 = vadd.f32 %v484, %v581
      %v630 = vadd.f32 %v485, %v582
      %v631 = vadd.f32 %v486, %v583
      %v632 = vadd.f32 %v487, %v584
      %v633 = vadd.f32 %v488, %v585
      %v634 = vadd.f32 %v489, %v586
      %v635 = vadd.f32 %v490, %v587
      %v636 = vadd.f32 %v491, %v588
      %v637 = vadd.f32 %v492, %v589
      %v638 = vadd.f32 %v493, %v590
      %v639 = vadd.f32 %v494, %v591
      %v640 = vadd.f32 %v495, %v592
      %v641 = vadd.f32 %v496, %v593
      %v642 = vadd.f32 %v497, %v594
      %v643 = vadd.f32 %v498, %v595
      %v644 = vadd.f32 %v499, %v596
      %v645 = vadd.f32 %v500, %v597
      %v646 = vadd.f32 %v501, %v598
      %v647 = vadd.f32 %v502, %v599
      %v648 = vadd.f32 %v503, %v600
      %v649 = vadd.f32 %v504, %v601
      %v650 = vadd.f32 %v505, %v602
      %v651 = vadd.f32 %v506, %v603
      %v652 = vadd.f32 %v507, %v604
      %v653 = vadd.f32 %v508, %v605
      %v654 = vadd.f32 %v509, %v606
      %v655 = vadd.f32 %v510, %v607
      %v656 = vadd.f32 %v511, %v608
      %v657 = vadd.f32 %v512, %v609
      %v658 = vadd.f32 %v513, %v610
      %v659 = vadd.f32 %v514, %v611
      %v660 = vadd.f32 %v515, %v612
      %v661 = vadd.f32 %v516, %v613
      %s662 = scalar_lea.vmem %s254, 72
      %v663 = vld [vmem:[%s662] sm:$0xff]
      %v664 = vld [vmem:[%s662 + $0x8] sm:$0xff]
      %v665 = vld [vmem:[%s662 + $0x10] sm:$0x7]
      %v666 = vld [vmem:[%s662 + $0x18] sm:$0xff]
      %v667 = vld [vmem:[%s662 + $0x20] sm:$0xff]
      %v668 = vld [vmem:[%s662 + $0x28] sm:$0x7]
      %v669 = vld [vmem:[%s662 + $0x30] sm:$0xff]
      %v670 = vld [vmem:[%s662 + $0x38] sm:$0xff]
      %v671 = vld [vmem:[%s662 + $0x40] sm:$0x7]
      %v672 = vld [vmem:[%s662 + $0x48] sm:$0xff]
      %v673 = vld [vmem:[%s662 + $0x50] sm:$0xff]
      %v674 = vld [vmem:[%s662 + $0x58] sm:$0x7]
      %v675 = vld [vmem:[%s662 + $0x60] sm:$0xff]
      %v676 = vld [vmem:[%s662 + $0x68] sm:$0xff]
      %v677 = vld [vmem:[%s662 + $0x70] sm:$0x7]
      %v678 = vld [vmem:[%s662 + $0x78] sm:$0xff]
      %v679 = vld [vmem:[%s662 + $0x80] sm:$0xff]
      %v680 = vld [vmem:[%s662 + $0x88] sm:$0x7]
      %v681 = vld [vmem:[%s662 + $0x90] sm:$0xff]
      %v682 = vld [vmem:[%s662 + $0x98] sm:$0xff]
      %v683 = vld [vmem:[%s662 + $0xa0] sm:$0x7]
      %v684 = vld [vmem:[%s662 + $0xa8] sm:$0xff]
      %v685 = vld [vmem:[%s662 + $0xb0] sm:$0xff]
      %v686 = vld [vmem:[%s662 + $0xb8] sm:$0x7]
      %v687 = vld [vmem:[%s662 + $0xc0] sm:$0xff]
      %v688 = vld [vmem:[%s662 + $0xc8] sm:$0xff]
      %v689 = vld [vmem:[%s662 + $0xd0] sm:$0x7]
      %v690 = vld [vmem:[%s662 + $0xd8] sm:$0xff]
      %v691 = vld [vmem:[%s662 + $0xe0] sm:$0xff]
      %v692 = vld [vmem:[%s662 + $0xe8] sm:$0x7]
      %v693 = vld [vmem:[%s662 + $0xf0] sm:$0xff]
      %v694 = vld [vmem:[%s662 + $0xf8] sm:$0xff]
      %v695 = vld [vmem:[%s662 + $0x100] sm:$0x7]
      %v696 = vld [vmem:[%s662 + $0x108] sm:$0xff]
      %v697 = vld [vmem:[%s662 + $0x110] sm:$0xff]
      %v698 = vld [vmem:[%s662 + $0x118] sm:$0x7]
      %v699 = vld [vmem:[%s662 + $0x120] sm:$0xff]
      %v700 = vld [vmem:[%s662 + $0x128] sm:$0xff]
      %v701 = vld [vmem:[%s662 + $0x130] sm:$0x7]
      %v702 = vld [vmem:[%s662 + $0x138] sm:$0xff]
      %v703 = vld [vmem:[%s662 + $0x140] sm:$0xff]
      %v704 = vld [vmem:[%s662 + $0x148] sm:$0x7]
      %v705 = vld [vmem:[%s662 + $0x150] sm:$0xff]
      %v706 = vld [vmem:[%s662 + $0x158] sm:$0xff]
      %v707 = vld [vmem:[%s662 + $0x160] sm:$0x7]
      %v708 = vld [vmem:[%s662 + $0x168] sm:$0xff]
      %v709 = vld [vmem:[%s662 + $0x170] sm:$0xff]
      %v710 = vld [vmem:[%s662 + $0x178] sm:$0x7]
      %v711 = vmul.f32 %v663, 0.25
      %v712 = vmul.f32 %v664, 0.25
      %v713 = vmul.f32 %v665, 0.25
      %v714 = vmul.f32 %v666, 0.25
      %v715 = vmul.f32 %v667, 0.25
      %v716 = vmul.f32 %v668, 0.25
      %v717 = vmul.f32 %v669, 0.25
      %v718 = vmul.f32 %v670, 0.25
      %v719 = vmul.f32 %v671, 0.25
      %v720 = vmul.f32 %v672, 0.25
      %v721 = vmul.f32 %v673, 0.25
      %v722 = vmul.f32 %v674, 0.25
      %v723 = vmul.f32 %v675, 0.25
      %v724 = vmul.f32 %v676, 0.25
      %v725 = vmul.f32 %v677, 0.25
      %v726 = vmul.f32 %v678, 0.25
      %v727 = vmul.f32 %v679, 0.25
      %v728 = vmul.f32 %v680, 0.25
      %v729 = vmul.f32 %v681, 0.25
      %v730 = vmul.f32 %v682, 0.25
      %v731 = vmul.f32 %v683, 0.25
      %v732 = vmul.f32 %v684, 0.25
      %v733 = vmul.f32 %v685, 0.25
      %v734 = vmul.f32 %v686, 0.25
      %v735 = vmul.f32 %v687, 0.25
      %v736 = vmul.f32 %v688, 0.25
      %v737 = vmul.f32 %v689, 0.25
      %v738 = vmul.f32 %v690, 0.25
      %v739 = vmul.f32 %v691, 0.25
      %v740 = vmul.f32 %v692, 0.25
      %v741 = vmul.f32 %v693, 0.25
      %v742 = vmul.f32 %v694, 0.25
      %v743 = vmul.f32 %v695, 0.25
      %v744 = vmul.f32 %v696, 0.25
      %v745 = vmul.f32 %v697, 0.25
      %v746 = vmul.f32 %v698, 0.25
      %v747 = vmul.f32 %v699, 0.25
      %v748 = vmul.f32 %v700, 0.25
      %v749 = vmul.f32 %v701, 0.25
      %v750 = vmul.f32 %v702, 0.25
      %v751 = vmul.f32 %v703, 0.25
      %v752 = vmul.f32 %v704, 0.25
      %v753 = vmul.f32 %v705, 0.25
      %v754 = vmul.f32 %v706, 0.25
      %v755 = vmul.f32 %v707, 0.25
      %v756 = vmul.f32 %v708, 0.25
      %v757 = vmul.f32 %v709, 0.25
      %v758 = vmul.f32 %v710, 0.25
      %v759 = vadd.f32 %v614, %v711
      %v760 = vadd.f32 %v615, %v712
      %v761 = vadd.f32 %v616, %v713
      %v762 = vadd.f32 %v617, %v714
      %v763 = vadd.f32 %v618, %v715
      %v764 = vadd.f32 %v619, %v716
      %v765 = vadd.f32 %v620, %v717
      %v766 = vadd.f32 %v621, %v718
      %v767 = vadd.f32 %v622, %v719
      %v768 = vadd.f32 %v623, %v720
      %v769 = vadd.f32 %v624, %v721
      %v770 = vadd.f32 %v625, %v722
      %v771 = vadd.f32 %v626, %v723
      %v772 = vadd.f32 %v627, %v724
      %v773 = vadd.f32 %v628, %v725
      %v774 = vadd.f32 %v629, %v726
      %v775 = vadd.f32 %v630, %v727
      %v776 = vadd.f32 %v631, %v728
      %v777 = vadd.f32 %v632, %v729
      %v778 = vadd.f32 %v633, %v730
      %v779 = vadd.f32 %v634, %v731
      %v780 = vadd.f32 %v635, %v732
      %v781 = vadd.f32 %v636, %v733
      %v782 = vadd.f32 %v637, %v734
      %v783 = vadd.f32 %v638, %v735
      %v784 = vadd.f32 %v639, %v736
      %v785 = vadd.f32 %v640, %v737
      %v786 = vadd.f32 %v641, %v738
      %v787 = vadd.f32 %v642, %v739
      %v788 = vadd.f32 %v643, %v740
      %v789 = vadd.f32 %v644, %v741
      %v790 = vadd.f32 %v645, %v742
      %v791 = vadd.f32 %v646, %v743
      %v792 = vadd.f32 %v647, %v744
      %v793 = vadd.f32 %v648, %v745
      %v794 = vadd.f32 %v649, %v746
      %v795 = vadd.f32 %v650, %v747
      %v796 = vadd.f32 %v651, %v748
      %v797 = vadd.f32 %v652, %v749
      %v798 = vadd.f32 %v653, %v750
      %v799 = vadd.f32 %v654, %v751
      %v800 = vadd.f32 %v655, %v752
      %v801 = vadd.f32 %v656, %v753
      %v802 = vadd.f32 %v657, %v754
      %v803 = vadd.f32 %v658, %v755
      %v804 = vadd.f32 %v659, %v756
      %v805 = vadd.f32 %v660, %v757
      %v806 = vadd.f32 %v661, %v758
      %vm807 = vcmask 261120
      %808 = vst.msk [vmem:[#allocation2] sm:$0xff] %vm807, %v759
      %809 = vst.msk [vmem:[#allocation2 + $0x8] sm:$0xff] %vm807, %v760
      %vm810 = vcmask 256000
      %811 = vst.msk [vmem:[#allocation2 + $0x10] sm:$0x7] %vm810, %v761
      %812 = vst.msk [vmem:[#allocation2 + $0x18] sm:$0xff] %vm807, %v762
      %813 = vst.msk [vmem:[#allocation2 + $0x20] sm:$0xff] %vm807, %v763
      %814 = vst.msk [vmem:[#allocation2 + $0x28] sm:$0x7] %vm810, %v764
      %815 = vst.msk [vmem:[#allocation2 + $0x30] sm:$0xff] %vm807, %v765
      %816 = vst.msk [vmem:[#allocation2 + $0x38] sm:$0xff] %vm807, %v766
      %817 = vst.msk [vmem:[#allocation2 + $0x40] sm:$0x7] %vm810, %v767
      %818 = vst.msk [vmem:[#allocation2 + $0x48] sm:$0xff] %vm807, %v768
      %819 = vst.msk [vmem:[#allocation2 + $0x50] sm:$0xff] %vm807, %v769
      %820 = vst.msk [vmem:[#allocation2 + $0x58] sm:$0x7] %vm810, %v770
      %821 = vst.msk [vmem:[#allocation2 + $0x60] sm:$0xff] %vm807, %v771
      %822 = vst.msk [vmem:[#allocation2 + $0x68] sm:$0xff] %vm807, %v772
      %823 = vst.msk [vmem:[#allocation2 + $0x70] sm:$0x7] %vm810, %v773
      %824 = vst.msk [vmem:[#allocation2 + $0x78] sm:$0xff] %vm807, %v774
      %825 = vst.msk [vmem:[#allocation2 + $0x80] sm:$0xff] %vm807, %v775
      %826 = vst.msk [vmem:[#allocation2 + $0x88] sm:$0x7] %vm810, %v776
      %827 = vst.msk [vmem:[#allocation2 + $0x90] sm:$0xff] %vm807, %v777
      %828 = vst.msk [vmem:[#allocation2 + $0x98] sm:$0xff] %vm807, %v778
      %829 = vst.msk [vmem:[#allocation2 + $0xa0] sm:$0x7] %vm810, %v779
      %830 = vst.msk [vmem:[#allocation2 + $0xa8] sm:$0xff] %vm807, %v780
      %831 = vst.msk [vmem:[#allocation2 + $0xb0] sm:$0xff] %vm807, %v781
      %832 = vst.msk [vmem:[#allocation2 + $0xb8] sm:$0x7] %vm810, %v782
      %833 = vst.msk [vmem:[#allocation2 + $0xc0] sm:$0xff] %vm807, %v783
      %834 = vst.msk [vmem:[#allocation2 + $0xc8] sm:$0xff] %vm807, %v784
      %835 = vst.msk [vmem:[#allocation2 + $0xd0] sm:$0x7] %vm810, %v785
      %836 = vst.msk [vmem:[#allocation2 + $0xd8] sm:$0xff] %vm807, %v786
      %837 = vst.msk [vmem:[#allocation2 + $0xe0] sm:$0xff] %vm807, %v787
      %838 = vst.msk [vmem:[#allocation2 + $0xe8] sm:$0x7] %vm810, %v788
      %839 = vst.msk [vmem:[#allocation2 + $0xf0] sm:$0xff] %vm807, %v789
      %840 = vst.msk [vmem:[#allocation2 + $0xf8] sm:$0xff] %vm807, %v790
      %841 = vst.msk [vmem:[#allocation2 + $0x100] sm:$0x7] %vm810, %v791
      %842 = vst.msk [vmem:[#allocation2 + $0x108] sm:$0xff] %vm807, %v792
      %843 = vst.msk [vmem:[#allocation2 + $0x110] sm:$0xff] %vm807, %v793
      %844 = vst.msk [vmem:[#allocation2 + $0x118] sm:$0x7] %vm810, %v794
      %845 = vst.msk [vmem:[#allocation2 + $0x120] sm:$0xff] %vm807, %v795
      %846 = vst.msk [vmem:[#allocation2 + $0x128] sm:$0xff] %vm807, %v796
      %847 = vst.msk [vmem:[#allocation2 + $0x130] sm:$0x7] %vm810, %v797
      %848 = vst.msk [vmem:[#allocation2 + $0x138] sm:$0xff] %vm807, %v798
      %849 = vst.msk [vmem:[#allocation2 + $0x140] sm:$0xff] %vm807, %v799
      %850 = vst.msk [vmem:[#allocation2 + $0x148] sm:$0x7] %vm810, %v800
      %851 = vst.msk [vmem:[#allocation2 + $0x150] sm:$0xff] %vm807, %v801
      %852 = vst.msk [vmem:[#allocation2 + $0x158] sm:$0xff] %vm807, %v802
      %853 = vst.msk [vmem:[#allocation2 + $0x160] sm:$0x7] %vm810, %v803
      %854 = vst.msk [vmem:[#allocation2 + $0x168] sm:$0xff] %vm807, %v804
      %855 = vst.msk [vmem:[#allocation2 + $0x170] sm:$0xff] %vm807, %v805
      %856 = vst.msk [vmem:[#allocation2 + $0x178] sm:$0x7] %vm810, %v806
      %v857 = vld [vmem:[#allocation2] sm:$0xff]
      %v858 = vld [vmem:[#allocation2 + $0x8] sm:$0xff]
      %v859 = vld [vmem:[#allocation2 + $0x18] sm:$0xff]
      %v860 = vld [vmem:[#allocation2 + $0x20] sm:$0xff]
      %v861 = vld [vmem:[#allocation2 + $0x30] sm:$0xff]
      %v862 = vld [vmem:[#allocation2 + $0x38] sm:$0xff]
      %v863 = vld [vmem:[#allocation2 + $0x48] sm:$0xff]
      %v864 = vld [vmem:[#allocation2 + $0x50] sm:$0xff]
      %v865 = vld [vmem:[#allocation2 + $0x60] sm:$0xff]
      %v866 = vld [vmem:[#allocation2 + $0x68] sm:$0xff]
      %v867 = vld [vmem:[#allocation2 + $0x78] sm:$0xff]
      %v868 = vld [vmem:[#allocation2 + $0x80] sm:$0xff]
      %v869 = vld [vmem:[#allocation2 + $0x90] sm:$0xff]
      %v870 = vld [vmem:[#allocation2 + $0x98] sm:$0xff]
      %v871 = vld [vmem:[#allocation2 + $0xa8] sm:$0xff]
      %v872 = vld [vmem:[#allocation2 + $0xb0] sm:$0xff]
      %v873 = vld [vmem:[#allocation2 + $0xc0] sm:$0xff]
      %v874 = vld [vmem:[#allocation2 + $0xc8] sm:$0xff]
      %v875 = vld [vmem:[#allocation2 + $0xd8] sm:$0xff]
      %v876 = vld [vmem:[#allocation2 + $0xe0] sm:$0xff]
      %v877 = vld [vmem:[#allocation2 + $0xf0] sm:$0xff]
      %v878 = vld [vmem:[#allocation2 + $0xf8] sm:$0xff]
      %v879 = vld [vmem:[#allocation2 + $0x108] sm:$0xff]
      %v880 = vld [vmem:[#allocation2 + $0x110] sm:$0xff]
      %v881 = vld [vmem:[#allocation2 + $0x120] sm:$0xff]
      %v882 = vld [vmem:[#allocation2 + $0x128] sm:$0xff]
      %v883 = vld [vmem:[#allocation2 + $0x138] sm:$0xff]
      %v884 = vld [vmem:[#allocation2 + $0x140] sm:$0xff]
      %v885 = vld [vmem:[#allocation2 + $0x150] sm:$0xff]
      %v886 = vld [vmem:[#allocation2 + $0x158] sm:$0xff]
      %v887 = vld [vmem:[#allocation2 + $0x168] sm:$0xff]
      %v888 = vld [vmem:[#allocation2 + $0x170] sm:$0xff]
      %v889 = vmul.f32 %v857, 0.25
      %v890 = vmul.f32 %v858, 0.25
      %v891 = vmul.f32 %v859, 0.25
      %v892 = vmul.f32 %v860, 0.25
      %v893 = vmul.f32 %v861, 0.25
      %v894 = vmul.f32 %v862, 0.25
      %v895 = vmul.f32 %v863, 0.25
      %v896 = vmul.f32 %v864, 0.25
      %v897 = vmul.f32 %v865, 0.25
      %v898 = vmul.f32 %v866, 0.25
      %v899 = vmul.f32 %v867, 0.25
      %v900 = vmul.f32 %v868, 0.25
      %v901 = vmul.f32 %v869, 0.25
      %v902 = vmul.f32 %v870, 0.25
      %v903 = vmul.f32 %v871, 0.25
      %v904 = vmul.f32 %v872, 0.25
      %v905 = vmul.f32 %v873, 0.25
      %v906 = vmul.f32 %v874, 0.25
      %v907 = vmul.f32 %v875, 0.25
      %v908 = vmul.f32 %v876, 0.25
      %v909 = vmul.f32 %v877, 0.25
      %v910 = vmul.f32 %v878, 0.25
      %v911 = vmul.f32 %v879, 0.25
      %v912 = vmul.f32 %v880, 0.25
      %v913 = vmul.f32 %v881, 0.25
      %v914 = vmul.f32 %v882, 0.25
      %v915 = vmul.f32 %v883, 0.25
      %v916 = vmul.f32 %v884, 0.25
      %v917 = vmul.f32 %v885, 0.25
      %v918 = vmul.f32 %v886, 0.25
      %v919 = vmul.f32 %v887, 0.25
      %v920 = vmul.f32 %v888, 0.25
      %v921 = vld [vmem:[#allocation2 + $0x1] sm:$0xff]
      %v922 = vld [vmem:[#allocation2 + $0x9] sm:$0xff]
      %v923 = vld [vmem:[#allocation2 + $0x19] sm:$0xff]
      %v924 = vld [vmem:[#allocation2 + $0x21] sm:$0xff]
      %v925 = vld [vmem:[#allocation2 + $0x31] sm:$0xff]
      %v926 = vld [vmem:[#allocation2 + $0x39] sm:$0xff]
      %v927 = vld [vmem:[#allocation2 + $0x49] sm:$0xff]
      %v928 = vld [vmem:[#allocation2 + $0x51] sm:$0xff]
      %v929 = vld [vmem:[#allocation2 + $0x61] sm:$0xff]
      %v930 = vld [vmem:[#allocation2 + $0x69] sm:$0xff]
      %v931 = vld [vmem:[#allocation2 + $0x79] sm:$0xff]
      %v932 = vld [vmem:[#allocation2 + $0x81] sm:$0xff]
      %v933 = vld [vmem:[#allocation2 + $0x91] sm:$0xff]
      %v934 = vld [vmem:[#allocation2 + $0x99] sm:$0xff]
      %v935 = vld [vmem:[#allocation2 + $0xa9] sm:$0xff]
      %v936 = vld [vmem:[#allocation2 + $0xb1] sm:$0xff]
      %v937 = vld [vmem:[#allocation2 + $0xc1] sm:$0xff]
      %v938 = vld [vmem:[#allocation2 + $0xc9] sm:$0xff]
      %v939 = vld [vmem:[#allocation2 + $0xd9] sm:$0xff]
      %v940 = vld [vmem:[#allocation2 + $0xe1] sm:$0xff]
      %v941 = vld [vmem:[#allocation2 + $0xf1] sm:$0xff]
      %v942 = vld [vmem:[#allocation2 + $0xf9] sm:$0xff]
      %v943 = vld [vmem:[#allocation2 + $0x109] sm:$0xff]
      %v944 = vld [vmem:[#allocation2 + $0x111] sm:$0xff]
      %v945 = vld [vmem:[#allocation2 + $0x121] sm:$0xff]
      %v946 = vld [vmem:[#allocation2 + $0x129] sm:$0xff]
      %v947 = vld [vmem:[#allocation2 + $0x139] sm:$0xff]
      %v948 = vld [vmem:[#allocation2 + $0x141] sm:$0xff]
      %v949 = vld [vmem:[#allocation2 + $0x151] sm:$0xff]
      %v950 = vld [vmem:[#allocation2 + $0x159] sm:$0xff]
      %v951 = vld [vmem:[#allocation2 + $0x169] sm:$0xff]
      %v952 = vld [vmem:[#allocation2 + $0x171] sm:$0xff]
      %v953 = vmul.f32 %v921, 0.75
      %v954 = vmul.f32 %v922, 0.75
      %v955 = vmul.f32 %v923, 0.75
      %v956 = vmul.f32 %v924, 0.75
      %v957 = vmul.f32 %v925, 0.75
      %v958 = vmul.f32 %v926, 0.75
      %v959 = vmul.f32 %v927, 0.75
      %v960 = vmul.f32 %v928, 0.75
      %v961 = vmul.f32 %v929, 0.75
      %v962 = vmul.f32 %v930, 0.75
      %v963 = vmul.f32 %v931, 0.75
      %v964 = vmul.f32 %v932, 0.75
      %v965 = vmul.f32 %v933, 0.75
      %v966 = vmul.f32 %v934, 0.75
      %v967 = vmul.f32 %v935, 0.75
      %v968 = vmul.f32 %v936, 0.75
      %v969 = vmul.f32 %v937, 0.75
      %v970 = vmul.f32 %v938, 0.75
      %v971 = vmul.f32 %v939, 0.75
      %v972 = vmul.f32 %v940, 0.75
      %v973 = vmul.f32 %v941, 0.75
      %v974 = vmul.f32 %v942, 0.75
      %v975 = vmul.f32 %v943, 0.75
      %v976 = vmul.f32 %v944, 0.75
      %v977 = vmul.f32 %v945, 0.75
      %v978 = vmul.f32 %v946, 0.75
      %v979 = vmul.f32 %v947, 0.75
      %v980 = vmul.f32 %v948, 0.75
      %v981 = vmul.f32 %v949, 0.75
      %v982 = vmul.f32 %v950, 0.75
      %v983 = vmul.f32 %v951, 0.75
      %v984 = vmul.f32 %v952, 0.75
      %v985 = vadd.f32 %v889, %v953
      %v986 = vadd.f32 %v890, %v954
      %v987 = vadd.f32 %v891, %v955
      %v988 = vadd.f32 %v892, %v956
      %v989 = vadd.f32 %v893, %v957
      %v990 = vadd.f32 %v894, %v958
      %v991 = vadd.f32 %v895, %v959
      %v992 = vadd.f32 %v896, %v960
      %v993 = vadd.f32 %v897, %v961
      %v994 = vadd.f32 %v898, %v962
      %v995 = vadd.f32 %v899, %v963
      %v996 = vadd.f32 %v900, %v964
      %v997 = vadd.f32 %v901, %v965
      %v998 = vadd.f32 %v902, %v966
      %v999 = vadd.f32 %v903, %v967
      %v1000 = vadd.f32 %v904, %v968
      %v1001 = vadd.f32 %v905, %v969
      %v1002 = vadd.f32 %v906, %v970
      %v1003 = vadd.f32 %v907, %v971
      %v1004 = vadd.f32 %v908, %v972
      %v1005 = vadd.f32 %v909, %v973
      %v1006 = vadd.f32 %v910, %v974
      %v1007 = vadd.f32 %v911, %v975
      %v1008 = vadd.f32 %v912, %v976
      %v1009 = vadd.f32 %v913, %v977
      %v1010 = vadd.f32 %v914, %v978
      %v1011 = vadd.f32 %v915, %v979
      %v1012 = vadd.f32 %v916, %v980
      %v1013 = vadd.f32 %v917, %v981
      %v1014 = vadd.f32 %v918, %v982
      %v1015 = vadd.f32 %v919, %v983
      %v1016 = vadd.f32 %v920, %v984
      %v1017 = vld [vmem:[#allocation2 + $0x2] sm:$0xff]
      %v1018 = vld [vmem:[#allocation2 + $0xa] sm:$0xff]
      %v1019 = vld [vmem:[#allocation2 + $0x1a] sm:$0xff]
      %v1020 = vld [vmem:[#allocation2 + $0x22] sm:$0xff]
      %v1021 = vld [vmem:[#allocation2 + $0x32] sm:$0xff]
      %v1022 = vld [vmem:[#allocation2 + $0x3a] sm:$0xff]
      %v1023 = vld [vmem:[#allocation2 + $0x4a] sm:$0xff]
      %v1024 = vld [vmem:[#allocation2 + $0x52] sm:$0xff]
      %v1025 = vld [vmem:[#allocation2 + $0x62] sm:$0xff]
      %v1026 = vld [vmem:[#allocation2 + $0x6a] sm:$0xff]
      %v1027 = vld [vmem:[#allocation2 + $0x7a] sm:$0xff]
      %v1028 = vld [vmem:[#allocation2 + $0x82] sm:$0xff]
      %v1029 = vld [vmem:[#allocation2 + $0x92] sm:$0xff]
      %v1030 = vld [vmem:[#allocation2 + $0x9a] sm:$0xff]
      %v1031 = vld [vmem:[#allocation2 + $0xaa] sm:$0xff]
      %v1032 = vld [vmem:[#allocation2 + $0xb2] sm:$0xff]
      %v1033 = vld [vmem:[#allocation2 + $0xc2] sm:$0xff]
      %v1034 = vld [vmem:[#allocation2 + $0xca] sm:$0xff]
      %v1035 = vld [vmem:[#allocation2 + $0xda] sm:$0xff]
      %v1036 = vld [vmem:[#allocation2 + $0xe2] sm:$0xff]
      %v1037 = vld [vmem:[#allocation2 + $0xf2] sm:$0xff]
      %v1038 = vld [vmem:[#allocation2 + $0xfa] sm:$0xff]
      %v1039 = vld [vmem:[#allocation2 + $0x10a] sm:$0xff]
      %v1040 = vld [vmem:[#allocation2 + $0x112] sm:$0xff]
      %v1041 = vld [vmem:[#allocation2 + $0x122] sm:$0xff]
      %v1042 = vld [vmem:[#allocation2 + $0x12a] sm:$0xff]
      %v1043 = vld [vmem:[#allocation2 + $0x13a] sm:$0xff]
      %v1044 = vld [vmem:[#allocation2 + $0x142] sm:$0xff]
      %v1045 = vld [vmem:[#allocation2 + $0x152] sm:$0xff]
      %v1046 = vld [vmem:[#allocation2 + $0x15a] sm:$0xff]
      %v1047 = vld [vmem:[#allocation2 + $0x16a] sm:$0xff]
      %v1048 = vld [vmem:[#allocation2 + $0x172] sm:$0xff]
      %v1049 = vmul.f32 %v1017, 0.75
      %v1050 = vmul.f32 %v1018, 0.75
      %v1051 = vmul.f32 %v1019, 0.75
      %v1052 = vmul.f32 %v1020, 0.75
      %v1053 = vmul.f32 %v1021, 0.75
      %v1054 = vmul.f32 %v1022, 0.75
      %v1055 = vmul.f32 %v1023, 0.75
      %v1056 = vmul.f32 %v1024, 0.75
      %v1057 = vmul.f32 %v1025, 0.75
      %v1058 = vmul.f32 %v1026, 0.75
      %v1059 = vmul.f32 %v1027, 0.75
      %v1060 = vmul.f32 %v1028, 0.75
      %v1061 = vmul.f32 %v1029, 0.75
      %v1062 = vmul.f32 %v1030, 0.75
      %v1063 = vmul.f32 %v1031, 0.75
      %v1064 = vmul.f32 %v1032, 0.75
      %v1065 = vmul.f32 %v1033, 0.75
      %v1066 = vmul.f32 %v1034, 0.75
      %v1067 = vmul.f32 %v1035, 0.75
      %v1068 = vmul.f32 %v1036, 0.75
      %v1069 = vmul.f32 %v1037, 0.75
      %v1070 = vmul.f32 %v1038, 0.75
      %v1071 = vmul.f32 %v1039, 0.75
      %v1072 = vmul.f32 %v1040, 0.75
      %v1073 = vmul.f32 %v1041, 0.75
      %v1074 = vmul.f32 %v1042, 0.75
      %v1075 = vmul.f32 %v1043, 0.75
      %v1076 = vmul.f32 %v1044, 0.75
      %v1077 = vmul.f32 %v1045, 0.75
      %v1078 = vmul.f32 %v1046, 0.75
      %v1079 = vmul.f32 %v1047, 0.75
      %v1080 = vmul.f32 %v1048, 0.75
      %v1081 = vadd.f32 %v985, %v1049
      %v1082 = vadd.f32 %v986, %v1050
      %v1083 = vadd.f32 %v987, %v1051
      %v1084 = vadd.f32 %v988, %v1052
      %v1085 = vadd.f32 %v989, %v1053
      %v1086 = vadd.f32 %v990, %v1054
      %v1087 = vadd.f32 %v991, %v1055
      %v1088 = vadd.f32 %v992, %v1056
      %v1089 = vadd.f32 %v993, %v1057
      %v1090 = vadd.f32 %v994, %v1058
      %v1091 = vadd.f32 %v995, %v1059
      %v1092 = vadd.f32 %v996, %v1060
      %v1093 = vadd.f32 %v997, %v1061
      %v1094 = vadd.f32 %v998, %v1062
      %v1095 = vadd.f32 %v999, %v1063
      %v1096 = vadd.f32 %v1000, %v1064
      %v1097 = vadd.f32 %v1001, %v1065
      %v1098 = vadd.f32 %v1002, %v1066
      %v1099 = vadd.f32 %v1003, %v1067
      %v1100 = vadd.f32 %v1004, %v1068
      %v1101 = vadd.f32 %v1005, %v1069
      %v1102 = vadd.f32 %v1006, %v1070
      %v1103 = vadd.f32 %v1007, %v1071
      %v1104 = vadd.f32 %v1008, %v1072
      %v1105 = vadd.f32 %v1009, %v1073
      %v1106 = vadd.f32 %v1010, %v1074
      %v1107 = vadd.f32 %v1011, %v1075
      %v1108 = vadd.f32 %v1012, %v1076
      %v1109 = vadd.f32 %v1013, %v1077
      %v1110 = vadd.f32 %v1014, %v1078
      %v1111 = vadd.f32 %v1015, %v1079
      %v1112 = vadd.f32 %v1016, %v1080
      %v1113 = vld [vmem:[#allocation2 + $0x3] sm:$0xff]
      %v1114 = vld [vmem:[#allocation2 + $0xb] sm:$0xff]
      %v1115 = vld [vmem:[#allocation2 + $0x1b] sm:$0xff]
      %v1116 = vld [vmem:[#allocation2 + $0x23] sm:$0xff]
      %v1117 = vld [vmem:[#allocation2 + $0x33] sm:$0xff]
      %v1118 = vld [vmem:[#allocation2 + $0x3b] sm:$0xff]
      %v1119 = vld [vmem:[#allocation2 + $0x4b] sm:$0xff]
      %v1120 = vld [vmem:[#allocation2 + $0x53] sm:$0xff]
      %v1121 = vld [vmem:[#allocation2 + $0x63] sm:$0xff]
      %v1122 = vld [vmem:[#allocation2 + $0x6b] sm:$0xff]
      %v1123 = vld [vmem:[#allocation2 + $0x7b] sm:$0xff]
      %v1124 = vld [vmem:[#allocation2 + $0x83] sm:$0xff]
      %v1125 = vld [vmem:[#allocation2 + $0x93] sm:$0xff]
      %v1126 = vld [vmem:[#allocation2 + $0x9b] sm:$0xff]
      %v1127 = vld [vmem:[#allocation2 + $0xab] sm:$0xff]
      %v1128 = vld [vmem:[#allocation2 + $0xb3] sm:$0xff]
      %v1129 = vld [vmem:[#allocation2 + $0xc3] sm:$0xff]
      %v1130 = vld [vmem:[#allocation2 + $0xcb] sm:$0xff]
      %v1131 = vld [vmem:[#allocation2 + $0xdb] sm:$0xff]
      %v1132 = vld [vmem:[#allocation2 + $0xe3] sm:$0xff]
      %v1133 = vld [vmem:[#allocation2 + $0xf3] sm:$0xff]
      %v1134 = vld [vmem:[#allocation2 + $0xfb] sm:$0xff]
      %v1135 = vld [vmem:[#allocation2 + $0x10b] sm:$0xff]
      %v1136 = vld [vmem:[#allocation2 + $0x113] sm:$0xff]
      %v1137 = vld [vmem:[#allocation2 + $0x123] sm:$0xff]
      %v1138 = vld [vmem:[#allocation2 + $0x12b] sm:$0xff]
      %v1139 = vld [vmem:[#allocation2 + $0x13b] sm:$0xff]
      %v1140 = vld [vmem:[#allocation2 + $0x143] sm:$0xff]
      %v1141 = vld [vmem:[#allocation2 + $0x153] sm:$0xff]
      %v1142 = vld [vmem:[#allocation2 + $0x15b] sm:$0xff]
      %v1143 = vld [vmem:[#allocation2 + $0x16b] sm:$0xff]
      %v1144 = vld [vmem:[#allocation2 + $0x173] sm:$0xff]
      %v1145 = vmul.f32 %v1113, 0.25
      %v1146 = vmul.f32 %v1114, 0.25
      %v1147 = vmul.f32 %v1115, 0.25
      %v1148 = vmul.f32 %v1116, 0.25
      %v1149 = vmul.f32 %v1117, 0.25
      %v1150 = vmul.f32 %v1118, 0.25
      %v1151 = vmul.f32 %v1119, 0.25
      %v1152 = vmul.f32 %v1120, 0.25
      %v1153 = vmul.f32 %v1121, 0.25
      %v1154 = vmul.f32 %v1122, 0.25
      %v1155 = vmul.f32 %v1123, 0.25
      %v1156 = vmul.f32 %v1124, 0.25
      %v1157 = vmul.f32 %v1125, 0.25
      %v1158 = vmul.f32 %v1126, 0.25
      %v1159 = vmul.f32 %v1127, 0.25
      %v1160 = vmul.f32 %v1128, 0.25
      %v1161 = vmul.f32 %v1129, 0.25
      %v1162 = vmul.f32 %v1130, 0.25
      %v1163 = vmul.f32 %v1131, 0.25
      %v1164 = vmul.f32 %v1132, 0.25
      %v1165 = vmul.f32 %v1133, 0.25
      %v1166 = vmul.f32 %v1134, 0.25
      %v1167 = vmul.f32 %v1135, 0.25
      %v1168 = vmul.f32 %v1136, 0.25
      %v1169 = vmul.f32 %v1137, 0.25
      %v1170 = vmul.f32 %v1138, 0.25
      %v1171 = vmul.f32 %v1139, 0.25
      %v1172 = vmul.f32 %v1140, 0.25
      %v1173 = vmul.f32 %v1141, 0.25
      %v1174 = vmul.f32 %v1142, 0.25
      %v1175 = vmul.f32 %v1143, 0.25
      %v1176 = vmul.f32 %v1144, 0.25
      %v1177 = vadd.f32 %v1081, %v1145
      %v1178 = vadd.f32 %v1082, %v1146
      %v1179 = vadd.f32 %v1083, %v1147
      %v1180 = vadd.f32 %v1084, %v1148
      %v1181 = vadd.f32 %v1085, %v1149
      %v1182 = vadd.f32 %v1086, %v1150
      %v1183 = vadd.f32 %v1087, %v1151
      %v1184 = vadd.f32 %v1088, %v1152
      %v1185 = vadd.f32 %v1089, %v1153
      %v1186 = vadd.f32 %v1090, %v1154
      %v1187 = vadd.f32 %v1091, %v1155
      %v1188 = vadd.f32 %v1092, %v1156
      %v1189 = vadd.f32 %v1093, %v1157
      %v1190 = vadd.f32 %v1094, %v1158
      %v1191 = vadd.f32 %v1095, %v1159
      %v1192 = vadd.f32 %v1096, %v1160
      %v1193 = vadd.f32 %v1097, %v1161
      %v1194 = vadd.f32 %v1098, %v1162
      %v1195 = vadd.f32 %v1099, %v1163
      %v1196 = vadd.f32 %v1100, %v1164
      %v1197 = vadd.f32 %v1101, %v1165
      %v1198 = vadd.f32 %v1102, %v1166
      %v1199 = vadd.f32 %v1103, %v1167
      %v1200 = vadd.f32 %v1104, %v1168
      %v1201 = vadd.f32 %v1105, %v1169
      %v1202 = vadd.f32 %v1106, %v1170
      %v1203 = vadd.f32 %v1107, %v1171
      %v1204 = vadd.f32 %v1108, %v1172
      %v1205 = vadd.f32 %v1109, %v1173
      %v1206 = vadd.f32 %v1110, %v1174
      %v1207 = vadd.f32 %v1111, %v1175
      %v1208 = vadd.f32 %v1112, %v1176
      %v1209 = vld [vmem:[%s257] sm:$0x1]
      %v1211 = vlaneseq
      %v1212 = vshrl.u32 %v1211, 7
      %v1213 = vsub.s32 0, %v1212
      %v1214 = vrot.slane %v1209, %v1213
      %v1216 = vmul.f32 %v1177, %v1214
      %v1217 = vmul.f32 %v1178, %v1214
      %v1218 = vmul.f32 %v1179, %v1214
      %v1219 = vmul.f32 %v1180, %v1214
      %v1220 = vmul.f32 %v1181, %v1214
      %v1221 = vmul.f32 %v1182, %v1214
      %v1222 = vmul.f32 %v1183, %v1214
      %v1223 = vmul.f32 %v1184, %v1214
      %v1224 = vmul.f32 %v1185, %v1214
      %v1225 = vmul.f32 %v1186, %v1214
      %v1226 = vmul.f32 %v1187, %v1214
      %v1227 = vmul.f32 %v1188, %v1214
      %v1228 = vmul.f32 %v1189, %v1214
      %v1229 = vmul.f32 %v1190, %v1214
      %v1230 = vmul.f32 %v1191, %v1214
      %v1231 = vmul.f32 %v1192, %v1214
      %v1232 = vmul.f32 %v1193, %v1214
      %v1233 = vmul.f32 %v1194, %v1214
      %v1234 = vmul.f32 %v1195, %v1214
      %v1235 = vmul.f32 %v1196, %v1214
      %v1236 = vmul.f32 %v1197, %v1214
      %v1237 = vmul.f32 %v1198, %v1214
      %v1238 = vmul.f32 %v1199, %v1214
      %v1239 = vmul.f32 %v1200, %v1214
      %v1240 = vmul.f32 %v1201, %v1214
      %v1241 = vmul.f32 %v1202, %v1214
      %v1242 = vmul.f32 %v1203, %v1214
      %v1243 = vmul.f32 %v1204, %v1214
      %v1244 = vmul.f32 %v1205, %v1214
      %v1245 = vmul.f32 %v1206, %v1214
      %v1246 = vmul.f32 %v1207, %v1214
      %v1247 = vmul.f32 %v1208, %v1214
      %v1248 = vld [vmem:[%s263] sm:$0xff]
      %v1249 = vld [vmem:[%s263 + $0x8] sm:$0xff]
      %v1250 = vld [vmem:[%s263 + $0x10] sm:$0xff]
      %v1251 = vld [vmem:[%s263 + $0x18] sm:$0xff]
      %v1252 = vld [vmem:[%s263 + $0x20] sm:$0xff]
      %v1253 = vld [vmem:[%s263 + $0x28] sm:$0xff]
      %v1254 = vld [vmem:[%s263 + $0x30] sm:$0xff]
      %v1255 = vld [vmem:[%s263 + $0x38] sm:$0xff]
      %v1256 = vld [vmem:[%s263 + $0x40] sm:$0xff]
      %v1257 = vld [vmem:[%s263 + $0x48] sm:$0xff]
      %v1258 = vld [vmem:[%s263 + $0x50] sm:$0xff]
      %v1259 = vld [vmem:[%s263 + $0x58] sm:$0xff]
      %v1260 = vld [vmem:[%s263 + $0x60] sm:$0xff]
      %v1261 = vld [vmem:[%s263 + $0x68] sm:$0xff]
      %v1262 = vld [vmem:[%s263 + $0x70] sm:$0xff]
      %v1263 = vld [vmem:[%s263 + $0x78] sm:$0xff]
      %v1264 = vld [vmem:[%s263 + $0x80] sm:$0xff]
      %v1265 = vld [vmem:[%s263 + $0x88] sm:$0xff]
      %v1266 = vld [vmem:[%s263 + $0x90] sm:$0xff]
      %v1267 = vld [vmem:[%s263 + $0x98] sm:$0xff]
      %v1268 = vld [vmem:[%s263 + $0xa0] sm:$0xff]
      %v1269 = vld [vmem:[%s263 + $0xa8] sm:$0xff]
      %v1270 = vld [vmem:[%s263 + $0xb0] sm:$0xff]
      %v1271 = vld [vmem:[%s263 + $0xb8] sm:$0xff]
      %v1272 = vld [vmem:[%s263 + $0xc0] sm:$0xff]
      %v1273 = vld [vmem:[%s263 + $0xc8] sm:$0xff]
      %v1274 = vld [vmem:[%s263 + $0xd0] sm:$0xff]
      %v1275 = vld [vmem:[%s263 + $0xd8] sm:$0xff]
      %v1276 = vld [vmem:[%s263 + $0xe0] sm:$0xff]
      %v1277 = vld [vmem:[%s263 + $0xe8] sm:$0xff]
      %v1278 = vld [vmem:[%s263 + $0xf0] sm:$0xff]
      %v1279 = vld [vmem:[%s263 + $0xf8] sm:$0xff]
      %1281 = vset.pattern.permute.xlu0 0
      %1282 = vperm.xlu0 %1281, %v1248
      %v1283 = vpop.permute.xlu0 %1282
      %1286 = vset.pattern.permute.xlu0 0
      %1287 = vperm.xlu0 %1286, %v1249
      %v1288 = vpop.permute.xlu0 %1287
      %1291 = vset.pattern.permute.xlu0 0
      %1292 = vperm.xlu0 %1291, %v1250
      %v1293 = vpop.permute.xlu0 %1292
      %1296 = vset.pattern.permute.xlu0 0
      %1297 = vperm.xlu0 %1296, %v1251
      %v1298 = vpop.permute.xlu0 %1297
      %1301 = vset.pattern.permute.xlu0 0
      %1302 = vperm.xlu0 %1301, %v1252
      %v1303 = vpop.permute.xlu0 %1302
      %1306 = vset.pattern.permute.xlu0 0
      %1307 = vperm.xlu0 %1306, %v1253
      %v1308 = vpop.permute.xlu0 %1307
      %1311 = vset.pattern.permute.xlu0 0
      %1312 = vperm.xlu0 %1311, %v1254
      %v1313 = vpop.permute.xlu0 %1312
      %1316 = vset.pattern.permute.xlu0 0
      %1317 = vperm.xlu0 %1316, %v1255
      %v1318 = vpop.permute.xlu0 %1317
      %1321 = vset.pattern.permute.xlu0 0
      %1322 = vperm.xlu0 %1321, %v1256
      %v1323 = vpop.permute.xlu0 %1322
      %1326 = vset.pattern.permute.xlu0 0
      %1327 = vperm.xlu0 %1326, %v1257
      %v1328 = vpop.permute.xlu0 %1327
      %1331 = vset.pattern.permute.xlu0 0
      %1332 = vperm.xlu0 %1331, %v1258
      %v1333 = vpop.permute.xlu0 %1332
      %1336 = vset.pattern.permute.xlu0 0
      %1337 = vperm.xlu0 %1336, %v1259
      %v1338 = vpop.permute.xlu0 %1337
      %1341 = vset.pattern.permute.xlu0 0
      %1342 = vperm.xlu0 %1341, %v1260
      %v1343 = vpop.permute.xlu0 %1342
      %1346 = vset.pattern.permute.xlu0 0
      %1347 = vperm.xlu0 %1346, %v1261
      %v1348 = vpop.permute.xlu0 %1347
      %1351 = vset.pattern.permute.xlu0 0
      %1352 = vperm.xlu0 %1351, %v1262
      %v1353 = vpop.permute.xlu0 %1352
      %1356 = vset.pattern.permute.xlu0 0
      %1357 = vperm.xlu0 %1356, %v1263
      %v1358 = vpop.permute.xlu0 %1357
      %1361 = vset.pattern.permute.xlu0 0
      %1362 = vperm.xlu0 %1361, %v1264
      %v1363 = vpop.permute.xlu0 %1362
      %1366 = vset.pattern.permute.xlu0 0
      %1367 = vperm.xlu0 %1366, %v1265
      %v1368 = vpop.permute.xlu0 %1367
      %1371 = vset.pattern.permute.xlu0 0
      %1372 = vperm.xlu0 %1371, %v1266
      %v1373 = vpop.permute.xlu0 %1372
      %1376 = vset.pattern.permute.xlu0 0
      %1377 = vperm.xlu0 %1376, %v1267
      %v1378 = vpop.permute.xlu0 %1377
      %1381 = vset.pattern.permute.xlu0 0
      %1382 = vperm.xlu0 %1381, %v1268
      %v1383 = vpop.permute.xlu0 %1382
      %1386 = vset.pattern.permute.xlu0 0
      %1387 = vperm.xlu0 %1386, %v1269
      %v1388 = vpop.permute.xlu0 %1387
      %1391 = vset.pattern.permute.xlu0 0
      %1392 = vperm.xlu0 %1391, %v1270
      %v1393 = vpop.permute.xlu0 %1392
      %1396 = vset.pattern.permute.xlu0 0
      %1397 = vperm.xlu0 %1396, %v1271
      %v1398 = vpop.permute.xlu0 %1397
      %1401 = vset.pattern.permute.xlu0 0
      %1402 = vperm.xlu0 %1401, %v1272
      %v1403 = vpop.permute.xlu0 %1402
      %1406 = vset.pattern.permute.xlu0 0
      %1407 = vperm.xlu0 %1406, %v1273
      %v1408 = vpop.permute.xlu0 %1407
      %1411 = vset.pattern.permute.xlu0 0
      %1412 = vperm.xlu0 %1411, %v1274
      %v1413 = vpop.permute.xlu0 %1412
      %1416 = vset.pattern.permute.xlu0 0
      %1417 = vperm.xlu0 %1416, %v1275
      %v1418 = vpop.permute.xlu0 %1417
      %1421 = vset.pattern.permute.xlu0 0
      %1422 = vperm.xlu0 %1421, %v1276
      %v1423 = vpop.permute.xlu0 %1422
      %1426 = vset.pattern.permute.xlu0 0
      %1427 = vperm.xlu0 %1426, %v1277
      %v1428 = vpop.permute.xlu0 %1427
      %1431 = vset.pattern.permute.xlu0 0
      %1432 = vperm.xlu0 %1431, %v1278
      %v1433 = vpop.permute.xlu0 %1432
      %1436 = vset.pattern.permute.xlu0 0
      %1437 = vperm.xlu0 %1436, %v1279
      %v1438 = vpop.permute.xlu0 %1437
      %v1440 = vadd.f32 %v1216, %v1283
      %v1441 = vadd.f32 %v1217, %v1288
      %v1442 = vadd.f32 %v1218, %v1293
      %v1443 = vadd.f32 %v1219, %v1298
      %v1444 = vadd.f32 %v1220, %v1303
      %v1445 = vadd.f32 %v1221, %v1308
      %v1446 = vadd.f32 %v1222, %v1313
      %v1447 = vadd.f32 %v1223, %v1318
      %v1448 = vadd.f32 %v1224, %v1323
      %v1449 = vadd.f32 %v1225, %v1328
      %v1450 = vadd.f32 %v1226, %v1333
      %v1451 = vadd.f32 %v1227, %v1338
      %v1452 = vadd.f32 %v1228, %v1343
      %v1453 = vadd.f32 %v1229, %v1348
      %v1454 = vadd.f32 %v1230, %v1353
      %v1455 = vadd.f32 %v1231, %v1358
      %v1456 = vadd.f32 %v1232, %v1363
      %v1457 = vadd.f32 %v1233, %v1368
      %v1458 = vadd.f32 %v1234, %v1373
      %v1459 = vadd.f32 %v1235, %v1378
      %v1460 = vadd.f32 %v1236, %v1383
      %v1461 = vadd.f32 %v1237, %v1388
      %v1462 = vadd.f32 %v1238, %v1393
      %v1463 = vadd.f32 %v1239, %v1398
      %v1464 = vadd.f32 %v1240, %v1403
      %v1465 = vadd.f32 %v1241, %v1408
      %v1466 = vadd.f32 %v1242, %v1413
      %v1467 = vadd.f32 %v1243, %v1418
      %v1468 = vadd.f32 %v1244, %v1423
      %v1469 = vadd.f32 %v1245, %v1428
      %v1470 = vadd.f32 %v1246, %v1433
      %v1471 = vadd.f32 %v1247, %v1438
      %v1472 = vld [vmem:[%s3] sm:$0x1]
      %v1474 = vlaneseq
      %v1475 = vshrl.u32 %v1474, 7
      %v1476 = vsub.s32 0, %v1475
      %v1477 = vrot.slane %v1472, %v1476
      %v1479 = vadd.f32 %v1440, %v1477
      %v1480 = vadd.f32 %v1441, %v1477
      %v1481 = vadd.f32 %v1442, %v1477
      %v1482 = vadd.f32 %v1443, %v1477
      %v1483 = vadd.f32 %v1444, %v1477
      %v1484 = vadd.f32 %v1445, %v1477
      %v1485 = vadd.f32 %v1446, %v1477
      %v1486 = vadd.f32 %v1447, %v1477
      %v1487 = vadd.f32 %v1448, %v1477
      %v1488 = vadd.f32 %v1449, %v1477
      %v1489 = vadd.f32 %v1450, %v1477
      %v1490 = vadd.f32 %v1451, %v1477
      %v1491 = vadd.f32 %v1452, %v1477
      %v1492 = vadd.f32 %v1453, %v1477
      %v1493 = vadd.f32 %v1454, %v1477
      %v1494 = vadd.f32 %v1455, %v1477
      %v1495 = vadd.f32 %v1456, %v1477
      %v1496 = vadd.f32 %v1457, %v1477
      %v1497 = vadd.f32 %v1458, %v1477
      %v1498 = vadd.f32 %v1459, %v1477
      %v1499 = vadd.f32 %v1460, %v1477
      %v1500 = vadd.f32 %v1461, %v1477
      %v1501 = vadd.f32 %v1462, %v1477
      %v1502 = vadd.f32 %v1463, %v1477
      %v1503 = vadd.f32 %v1464, %v1477
      %v1504 = vadd.f32 %v1465, %v1477
      %v1505 = vadd.f32 %v1466, %v1477
      %v1506 = vadd.f32 %v1467, %v1477
      %v1507 = vadd.f32 %v1468, %v1477
      %v1508 = vadd.f32 %v1469, %v1477
      %v1509 = vadd.f32 %v1470, %v1477
      %v1510 = vadd.f32 %v1471, %v1477
      %v1511 = vmul.f32 %v1479, 1.4142135
      %v1512 = vmul.f32 %v1480, 1.4142135
      %v1513 = vmul.f32 %v1481, 1.4142135
      %v1514 = vmul.f32 %v1482, 1.4142135
      %v1515 = vmul.f32 %v1483, 1.4142135
      %v1516 = vmul.f32 %v1484, 1.4142135
      %v1517 = vmul.f32 %v1485, 1.4142135
      %v1518 = vmul.f32 %v1486, 1.4142135
      %v1519 = vmul.f32 %v1487, 1.4142135
      %v1520 = vmul.f32 %v1488, 1.4142135
      %v1521 = vmul.f32 %v1489, 1.4142135
      %v1522 = vmul.f32 %v1490, 1.4142135
      %v1523 = vmul.f32 %v1491, 1.4142135
      %v1524 = vmul.f32 %v1492, 1.4142135
      %v1525 = vmul.f32 %v1493, 1.4142135
      %v1526 = vmul.f32 %v1494, 1.4142135
      %v1527 = vmul.f32 %v1495, 1.4142135
      %v1528 = vmul.f32 %v1496, 1.4142135
      %v1529 = vmul.f32 %v1497, 1.4142135
      %v1530 = vmul.f32 %v1498, 1.4142135
      %v1531 = vmul.f32 %v1499, 1.4142135
      %v1532 = vmul.f32 %v1500, 1.4142135
      %v1533 = vmul.f32 %v1501, 1.4142135
      %v1534 = vmul.f32 %v1502, 1.4142135
      %v1535 = vmul.f32 %v1503, 1.4142135
      %v1536 = vmul.f32 %v1504, 1.4142135
      %v1537 = vmul.f32 %v1505, 1.4142135
      %v1538 = vmul.f32 %v1506, 1.4142135
      %v1539 = vmul.f32 %v1507, 1.4142135
      %v1540 = vmul.f32 %v1508, 1.4142135
      %v1541 = vmul.f32 %v1509, 1.4142135
      %v1542 = vmul.f32 %v1510, 1.4142135
      %vm1543 = vcmp.ge.f32.partialorder %v1511, 0.0
      %vm1544 = vcmp.ge.f32.partialorder %v1512, 0.0
      %vm1545 = vcmp.ge.f32.partialorder %v1513, 0.0
      %vm1546 = vcmp.ge.f32.partialorder %v1514, 0.0
      %vm1547 = vcmp.ge.f32.partialorder %v1515, 0.0
      %vm1548 = vcmp.ge.f32.partialorder %v1516, 0.0
      %vm1549 = vcmp.ge.f32.partialorder %v1517, 0.0
      %vm1550 = vcmp.ge.f32.partialorder %v1518, 0.0
      %vm1551 = vcmp.ge.f32.partialorder %v1519, 0.0
      %vm1552 = vcmp.ge.f32.partialorder %v1520, 0.0
      %vm1553 = vcmp.ge.f32.partialorder %v1521, 0.0
      %vm1554 = vcmp.ge.f32.partialorder %v1522, 0.0
      %vm1555 = vcmp.ge.f32.partialorder %v1523, 0.0
      %vm1556 = vcmp.ge.f32.partialorder %v1524, 0.0
      %vm1557 = vcmp.ge.f32.partialorder %v1525, 0.0
      %vm1558 = vcmp.ge.f32.partialorder %v1526, 0.0
      %vm1559 = vcmp.ge.f32.partialorder %v1527, 0.0
      %vm1560 = vcmp.ge.f32.partialorder %v1528, 0.0
      %vm1561 = vcmp.ge.f32.partialorder %v1529, 0.0
      %vm1562 = vcmp.ge.f32.partialorder %v1530, 0.0
      %vm1563 = vcmp.ge.f32.partialorder %v1531, 0.0
      %vm1564 = vcmp.ge.f32.partialorder %v1532, 0.0
      %vm1565 = vcmp.ge.f32.partialorder %v1533, 0.0
      %vm1566 = vcmp.ge.f32.partialorder %v1534, 0.0
      %vm1567 = vcmp.ge.f32.partialorder %v1535, 0.0
      %vm1568 = vcmp.ge.f32.partialorder %v1536, 0.0
      %vm1569 = vcmp.ge.f32.partialorder %v1537, 0.0
      %vm1570 = vcmp.ge.f32.partialorder %v1538, 0.0
      %vm1571 = vcmp.ge.f32.partialorder %v1539, 0.0
      %vm1572 = vcmp.ge.f32.partialorder %v1540, 0.0
      %vm1573 = vcmp.ge.f32.partialorder %v1541, 0.0
      %vm1574 = vcmp.ge.f32.partialorder %v1542, 0.0
      %v1575 = vmul.f32 %v1511, 0.2
      %v1576 = vmul.f32 %v1512, 0.2
      %v1577 = vmul.f32 %v1513, 0.2
      %v1578 = vmul.f32 %v1514, 0.2
      %v1579 = vmul.f32 %v1515, 0.2
      %v1580 = vmul.f32 %v1516, 0.2
      %v1581 = vmul.f32 %v1517, 0.2
      %v1582 = vmul.f32 %v1518, 0.2
      %v1583 = vmul.f32 %v1519, 0.2
      %v1584 = vmul.f32 %v1520, 0.2
      %v1585 = vmul.f32 %v1521, 0.2
      %v1586 = vmul.f32 %v1522, 0.2
      %v1587 = vmul.f32 %v1523, 0.2
      %v1588 = vmul.f32 %v1524, 0.2
      %v1589 = vmul.f32 %v1525, 0.2
      %v1590 = vmul.f32 %v1526, 0.2
      %v1591 = vmul.f32 %v1527, 0.2
      %v1592 = vmul.f32 %v1528, 0.2
      %v1593 = vmul.f32 %v1529, 0.2
      %v1594 = vmul.f32 %v1530, 0.2
      %v1595 = vmul.f32 %v1531, 0.2
      %v1596 = vmul.f32 %v1532, 0.2
      %v1597 = vmul.f32 %v1533, 0.2
      %v1598 = vmul.f32 %v1534, 0.2
      %v1599 = vmul.f32 %v1535, 0.2
      %v1600 = vmul.f32 %v1536, 0.2
      %v1601 = vmul.f32 %v1537, 0.2
      %v1602 = vmul.f32 %v1538, 0.2
      %v1603 = vmul.f32 %v1539, 0.2
      %v1604 = vmul.f32 %v1540, 0.2
      %v1605 = vmul.f32 %v1541, 0.2
      %v1606 = vmul.f32 %v1542, 0.2
      %v1607 = vsel %vm1543, %v1511, %v1575
      %v1608 = vsel %vm1544, %v1512, %v1576
      %v1609 = vsel %vm1545, %v1513, %v1577
      %v1610 = vsel %vm1546, %v1514, %v1578
      %v1611 = vsel %vm1547, %v1515, %v1579
      %v1612 = vsel %vm1548, %v1516, %v1580
      %v1613 = vsel %vm1549, %v1517, %v1581
      %v1614 = vsel %vm1550, %v1518, %v1582
      %v1615 = vsel %vm1551, %v1519, %v1583
      %v1616 = vsel %vm1552, %v1520, %v1584
      %v1617 = vsel %vm1553, %v1521, %v1585
      %v1618 = vsel %vm1554, %v1522, %v1586
      %v1619 = vsel %vm1555, %v1523, %v1587
      %v1620 = vsel %vm1556, %v1524, %v1588
      %v1621 = vsel %vm1557, %v1525, %v1589
      %v1622 = vsel %vm1558, %v1526, %v1590
      %v1623 = vsel %vm1559, %v1527, %v1591
      %v1624 = vsel %vm1560, %v1528, %v1592
      %v1625 = vsel %vm1561, %v1529, %v1593
      %v1626 = vsel %vm1562, %v1530, %v1594
      %v1627 = vsel %vm1563, %v1531, %v1595
      %v1628 = vsel %vm1564, %v1532, %v1596
      %v1629 = vsel %vm1565, %v1533, %v1597
      %v1630 = vsel %vm1566, %v1534, %v1598
      %v1631 = vsel %vm1567, %v1535, %v1599
      %v1632 = vsel %vm1568, %v1536, %v1600
      %v1633 = vsel %vm1569, %v1537, %v1601
      %v1634 = vsel %vm1570, %v1538, %v1602
      %v1635 = vsel %vm1571, %v1539, %v1603
      %v1636 = vsel %vm1572, %v1540, %v1604
      %v1637 = vsel %vm1573, %v1541, %v1605
      %v1638 = vsel %vm1574, %v1542, %v1606
      %1639 = vst.msk [vmem:[%s274] sm:$0xff] %vm807, %v1607
      %1640 = vst.msk [vmem:[%s274 + $0x8] sm:$0xff] %vm807, %v1608
      %1641 = vst.msk [vmem:[%s274 + $0x10] sm:$0xff] %vm807, %v1609
      %1642 = vst.msk [vmem:[%s274 + $0x18] sm:$0xff] %vm807, %v1610
      %1643 = vst.msk [vmem:[%s274 + $0x20] sm:$0xff] %vm807, %v1611
      %1644 = vst.msk [vmem:[%s274 + $0x28] sm:$0xff] %vm807, %v1612
      %1645 = vst.msk [vmem:[%s274 + $0x30] sm:$0xff] %vm807, %v1613
      %1646 = vst.msk [vmem:[%s274 + $0x38] sm:$0xff] %vm807, %v1614
      %1647 = vst.msk [vmem:[%s274 + $0x40] sm:$0xff] %vm807, %v1615
      %1648 = vst.msk [vmem:[%s274 + $0x48] sm:$0xff] %vm807, %v1616
      %1649 = vst.msk [vmem:[%s274 + $0x50] sm:$0xff] %vm807, %v1617
      %1650 = vst.msk [vmem:[%s274 + $0x58] sm:$0xff] %vm807, %v1618
      %1651 = vst.msk [vmem:[%s274 + $0x60] sm:$0xff] %vm807, %v1619
      %1652 = vst.msk [vmem:[%s274 + $0x68] sm:$0xff] %vm807, %v1620
      %1653 = vst.msk [vmem:[%s274 + $0x70] sm:$0xff] %vm807, %v1621
      %1654 = vst.msk [vmem:[%s274 + $0x78] sm:$0xff] %vm807, %v1622
      %1655 = vst.msk [vmem:[%s274 + $0x80] sm:$0xff] %vm807, %v1623
      %1656 = vst.msk [vmem:[%s274 + $0x88] sm:$0xff] %vm807, %v1624
      %1657 = vst.msk [vmem:[%s274 + $0x90] sm:$0xff] %vm807, %v1625
      %1658 = vst.msk [vmem:[%s274 + $0x98] sm:$0xff] %vm807, %v1626
      %1659 = vst.msk [vmem:[%s274 + $0xa0] sm:$0xff] %vm807, %v1627
      %1660 = vst.msk [vmem:[%s274 + $0xa8] sm:$0xff] %vm807, %v1628
      %1661 = vst.msk [vmem:[%s274 + $0xb0] sm:$0xff] %vm807, %v1629
      %1662 = vst.msk [vmem:[%s274 + $0xb8] sm:$0xff] %vm807, %v1630
      %1663 = vst.msk [vmem:[%s274 + $0xc0] sm:$0xff] %vm807, %v1631
      %1664 = vst.msk [vmem:[%s274 + $0xc8] sm:$0xff] %vm807, %v1632
      %1665 = vst.msk [vmem:[%s274 + $0xd0] sm:$0xff] %vm807, %v1633
      %1666 = vst.msk [vmem:[%s274 + $0xd8] sm:$0xff] %vm807, %v1634
      %1667 = vst.msk [vmem:[%s274 + $0xe0] sm:$0xff] %vm807, %v1635
      %1668 = vst.msk [vmem:[%s274 + $0xe8] sm:$0xff] %vm807, %v1636
      %1669 = vst.msk [vmem:[%s274 + $0xf0] sm:$0xff] %vm807, %v1637
      %1670 = vst.msk [vmem:[%s274 + $0xf8] sm:$0xff] %vm807, %v1638
      %s1671 = smul.u32 16, %s20
      %p1672 = scmp.lt.s32.totalorder %s19, 1
      %s1673 = scalar_select %p1672, %s19, 1
      %p1674 = scmp.lt.s32.totalorder %s1671, 15
      %s1675 = scalar_select %p1674, %s1671, 15
      %s1676 = smul.addr %s1675, 2
      %s1677 = smul.addr %s1673, 32
      %s1678 = sadd.s32 %s1676, %s1677
      %s1679 = smul.addr %s1678, 8
      %s1680 = scalar_lea.vmem %s4, %s1679
      // Predicated region
      $region37: #{generator_synthesis_block.6} parent=35 // pred_check
        %p1681 = pneg %p148
      $region38: #{generator_synthesis_block.6} parent=35 // pred_check_branch
        %1683 = sbr.rel (%p1681) target = $region40
      $region39: #{generator_synthesis_block.6} parent=35 // pred_region
        %s1684 = smul.u32 16, %s20
      $region40: #{generator_synthesis_block.6} parent=35 // pred_fallthru
        _
    $region36: #{generator_synthesis_block.6} parent=5 // pred_fallthru
      _
    %p1685 = scmp.le.s32.totalorder 2, %s10
    // Predicated region
    $region41: #{generator_synthesis_block.6} parent=5 // pred_check
      %p1686 = pneg %p1685
    $region42: #{generator_synthesis_block.6} parent=5 // pred_check_branch
      %1688 = sbr.rel (%p1686) target = $region44
    $region43: #{generator_synthesis_block.6} parent=5 // pred_region
      %s1689 = ssub.s32 %s10, 2
      // Predicated region
      $region45: #{generator_synthesis_block.6} parent=43 // pred_check
        %p1690 = pneg %p154
      $region46: #{generator_synthesis_block.6} parent=43 // pred_check_branch
        %1692 = sbr.rel (%p1690) target = $region48
      $region47: #{generator_synthesis_block.6} parent=43 // pred_region
        %s1693 = smul.u32 16, %s22
        %p1694 = scmp.lt.s32.totalorder %s21, 1
        %s1695 = scalar_select %p1694, %s21, 1
        %p1696 = scmp.lt.s32.totalorder %s1693, 15
        %s1697 = scalar_select %p1696, %s1693, 15
        %s1698 = smul.addr %s1697, 2
        %s1699 = smul.addr %s1695, 32
        %s1700 = sadd.s32 %s1698, %s1699
        %s1701 = smul.addr %s1700, 8
        %s1702 = scalar_lea.vmem %s4, %s1701
      $region48: #{generator_synthesis_block.6} parent=43 // pred_fallthru
        _
    $region44: #{generator_synthesis_block.6} parent=5 // pred_fallthru
      _
  $region6: #{generator_synthesis_block.6} parent=0 // loop_footer
    %s14 = sadd.s32 1, %s10
  $region7: #{generator_synthesis_block.6} parent=0 // loop_footer_branch
    %9 = sbr.rel target = $region3
  $region8: #{generator_synthesis_block.6} parent=0 // loop_exit
    _

// kernel: generator_synthesis_block.8
$region0: #{generator_synthesis_block.8}
  #allocation0 [shape = 'u32[]', space=smem, size = 0x4, offset = 0x4, fixed_abs, tag = 'smem constant byte address 0x4 - core index']
  #allocation1 [shape = 'u32[144,128]{1,0:T(1,128)}', space=vmem, size = 0x12000, scoped, tag = 'internal scratch']
  %s0 = inlined_call_operand.vmem [shape: bf16[2,1,256,32], index: 0, kind: input, shape index: {}]
  %s1 = inlined_call_operand.vmem [shape: bf16[1,32,128], index: 1, kind: input, shape index: {}]
  %s2 = inlined_call_operand.vmem [shape: f32[1,128], index: 2, kind: input, shape index: {}]
  %s3 = inlined_call_operand.vmem [shape: f32[2,1,1,256,128], index: 3, kind: output, shape index: {}]
  %s4 = sld [smem:[#allocation0]]
  $region45: #{generator_synthesis_block.8} parent=0
    _
  %s6 = ssub.s32 1, %s4
  %s7 = scalar_select 0, %s6, %s4
  loop: start=0, step=1, limit=4
  $region2: #{generator_synthesis_block.8} parent=0 // loop_pre_header
    _
  $region3: #{generator_synthesis_block.8} parent=0 // loop_header
    %s9 = sphi 0, %s13
    %p10 = scmp.ge.s32.totalorder %s9, 4
    %s16 = sphi 0, %s28
    %s17 = sphi 0, %s24
    %s18 = sphi 0, %s16
    %s19 = sphi 0, %s17
    %s20 = sphi 0, %s18
    %s21 = sphi 0, %s19
    %s33 = sphi 0, %s35
    %s36 = sphi 0, %s33
    %s37 = sphi 0, %s36
    %s53 = sphi 0, %s37
    %s57 = sphi 0, %s57
    %s59 = sphi 0, %s57
    %s60 = sphi 0, %s59
    %s74 = sphi 0, %s60
    %s78 = sphi 0, %s78
    %s80 = sphi 0, %s78
    %s81 = sphi 0, %s80
    %s95 = sphi 0, %s81
    %s103 = sphi 0, %s105
    %s106 = sphi 0, %s103
    %s107 = sphi 0, %s106
    %s123 = sphi 0, %s107
  $region4: #{generator_synthesis_block.8} parent=0 // loop_header_branch
    %12 = sbr.rel (%p10) target = $region8
  $region5: #{generator_synthesis_block.8} parent=0 // loop_body
    %s14 = ssub.s32 %s9, 1
    %s15 = ssub.s32 %s9, 2
    %s22 = sadd.s32 1, %s17
    %p23 = scmp.ge.s32.totalorder %s22, 1
    %s24 = scalar_select %p23, 0, %s22
    %s25 = sadd.s32 1, %s16
    %s26 = scalar_select %p23, %s25, %s16
    %p27 = scmp.ge.s32.totalorder %s26, 2
    %s28 = scalar_select %p27, 0, %s26
    %s29 = ssub.s32 %s16, %s28
    %s30 = ssub.s32 %s17, %s24
    %s31 = sor.u32 %s29, %s30
    %p32 = scmp.eq.s32.totalorder %s31, 0
    %s34 = sadd.s32 %s33, 1
    %s35 = scalar_select %p32, %s33, %s34
    %p38 = pneg %p32
    %p39 = scmp.eq.s32.totalorder %s9, 1
    %p40 = por %p38, %p39
    %p41 = scmp.ne.s32.totalorder %s33, %s36
    %p42 = scmp.eq.s32.totalorder %s9, 0
    %p43 = por %p41, %p42
    %p44 = scmp.ne.s32.totalorder %s33, %s36
    %p45 = scmp.eq.s32.totalorder %s14, 1
    %p46 = por %p44, %p45
    %p47 = scmp.ne.s32.totalorder %s36, %s37
    %p48 = scmp.eq.s32.totalorder %s14, 0
    %p49 = por %p47, %p48
    %p50 = scmp.ne.s32.totalorder %s36, %s37
    %p51 = scmp.eq.s32.totalorder %s15, 1
    %p52 = por %p50, %p51
    %p54 = scmp.ne.s32.totalorder %s37, %s53
    %p55 = scmp.eq.s32.totalorder %s15, 0
    %p56 = por %p54, %p55
    %s58 = sadd.s32 %s57, 1
    %p61 = scmp.eq.s32.totalorder %s9, 1
    %p62 = scmp.ne.s32.totalorder %s57, %s59
    %p63 = scmp.eq.s32.totalorder %s9, 0
    %p64 = por %p62, %p63
    %p65 = scmp.ne.s32.totalorder %s57, %s59
    %p66 = scmp.eq.s32.totalorder %s14, 1
    %p67 = por %p65, %p66
    %p68 = scmp.ne.s32.totalorder %s59, %s60
    %p69 = scmp.eq.s32.totalorder %s14, 0
    %p70 = por %p68, %p69
    %p71 = scmp.ne.s32.totalorder %s59, %s60
    %p72 = scmp.eq.s32.totalorder %s15, 1
    %p73 = por %p71, %p72
    %p75 = scmp.ne.s32.totalorder %s60, %s74
    %p76 = scmp.eq.s32.totalorder %s15, 0
    %p77 = por %p75, %p76
    %s79 = sadd.s32 %s78, 1
    %p82 = scmp.eq.s32.totalorder %s9, 1
    %p83 = scmp.ne.s32.totalorder %s78, %s80
    %p84 = scmp.eq.s32.totalorder %s9, 0
    %p85 = por %p83, %p84
    %p86 = scmp.ne.s32.totalorder %s78, %s80
    %p87 = scmp.eq.s32.totalorder %s14, 1
    %p88 = por %p86, %p87
    %p89 = scmp.ne.s32.totalorder %s80, %s81
    %p90 = scmp.eq.s32.totalorder %s14, 0
    %p91 = por %p89, %p90
    %p92 = scmp.ne.s32.totalorder %s80, %s81
    %p93 = scmp.eq.s32.totalorder %s15, 1
    %p94 = por %p92, %p93
    %p96 = scmp.ne.s32.totalorder %s81, %s95
    %p97 = scmp.eq.s32.totalorder %s15, 0
    %p98 = por %p96, %p97
    %s99 = ssub.s32 %s16, %s28
    %s100 = ssub.s32 %s17, %s24
    %s101 = sor.u32 %s99, %s100
    %p102 = scmp.eq.s32.totalorder %s101, 0
    %s104 = sadd.s32 %s103, 1
    %s105 = scalar_select %p102, %s103, %s104
    %p108 = pneg %p102
    %p109 = scmp.eq.s32.totalorder %s9, 1
    %p110 = por %p108, %p109
    %p111 = scmp.ne.s32.totalorder %s103, %s106
    %p112 = scmp.eq.s32.totalorder %s9, 0
    %p113 = por %p111, %p112
    %p114 = scmp.ne.s32.totalorder %s103, %s106
    %p115 = scmp.eq.s32.totalorder %s14, 1
    %p116 = por %p114, %p115
    %p117 = scmp.ne.s32.totalorder %s106, %s107
    %p118 = scmp.eq.s32.totalorder %s14, 0
    %p119 = por %p117, %p118
    %p120 = scmp.ne.s32.totalorder %s106, %s107
    %p121 = scmp.eq.s32.totalorder %s15, 1
    %p122 = por %p120, %p121
    %p124 = scmp.ne.s32.totalorder %s107, %s123
    %p125 = scmp.eq.s32.totalorder %s15, 0
    %p126 = por %p124, %p125
    %p127 = scmp.le.s32.totalorder 1, %s9
    %p128 = scmp.lt.s32.totalorder %s9, 3
    %p129 = pnand %p127, %p128
    %p130 = pneg %p129
    // Predicated region
    $region9: #{generator_synthesis_block.8} parent=5 // pred_check
      _
    $region10: #{generator_synthesis_block.8} parent=5 // pred_check_branch
      %132 = sbr.rel (%p129) target = $region12
    $region11: #{generator_synthesis_block.8} parent=5 // pred_region
      %s133 = ssub.s32 %s9, 1
      // Predicated region
      $region13: #{generator_synthesis_block.8} parent=11 // pred_check
        %p134 = pneg %p70
      $region14: #{generator_synthesis_block.8} parent=11 // pred_check_branch
        %136 = sbr.rel (%p134) target = $region16
      $region15: #{generator_synthesis_block.8} parent=11 // pred_region
        _
      $region16: #{generator_synthesis_block.8} parent=11 // pred_fallthru
        _
      // Predicated region
      $region17: #{generator_synthesis_block.8} parent=11 // pred_check
        %p137 = pneg %p91
      $region18: #{generator_synthesis_block.8} parent=11 // pred_check_branch
        %139 = sbr.rel (%p137) target = $region20
      $region19: #{generator_synthesis_block.8} parent=11 // pred_region
        _
      $region20: #{generator_synthesis_block.8} parent=11 // pred_fallthru
        _
    $region12: #{generator_synthesis_block.8} parent=5 // pred_fallthru
      _
    %p140 = scmp.lt.s32.totalorder %s9, 2
    // Predicated region
    $region21: #{generator_synthesis_block.8} parent=5 // pred_check
      %p141 = pneg %p140
    $region22: #{generator_synthesis_block.8} parent=5 // pred_check_branch
      %143 = sbr.rel (%p141) target = $region24
    $region23: #{generator_synthesis_block.8} parent=5 // pred_region
      // Predicated region
      $region25: #{generator_synthesis_block.8} parent=23 // pred_check
        %p144 = pneg %p43
      $region26: #{generator_synthesis_block.8} parent=23 // pred_check_branch
        %146 = sbr.rel (%p144) target = $region28
      $region27: #{generator_synthesis_block.8} parent=23 // pred_region
        %p147 = scmp.lt.s32.totalorder %s16, 1
        %s148 = scalar_select %p147, %s16, 1
        %p149 = scmp.lt.s32.totalorder %s17, 0
        %s150 = scalar_select %p149, %s17, 0
        %s151 = smul.addr %s150, 32
        %s152 = smul.addr %s148, 32
        %s153 = sadd.s32 %s151, %s152
        %s154 = smul.addr %s153, 4
        %s155 = scalar_lea.vmem %s0, %s154
      $region28: #{generator_synthesis_block.8} parent=23 // pred_fallthru
        _
    $region24: #{generator_synthesis_block.8} parent=5 // pred_fallthru
      _
    %p156 = scmp.le.s32.totalorder 1, %s9
    %p157 = scmp.lt.s32.totalorder %s9, 3
    %p158 = pnand %p156, %p157
    %p159 = pneg %p158
    // Predicated region
    $region29: #{generator_synthesis_block.8} parent=5 // pred_check
      _
    $region30: #{generator_synthesis_block.8} parent=5 // pred_check_branch
      %161 = sbr.rel (%p158) target = $region32
    $region31: #{generator_synthesis_block.8} parent=5 // pred_region
      %s162 = ssub.s32 %s9, 1
      %p163 = scmp.lt.s32.totalorder %s18, 1
      %s164 = scalar_select %p163, %s18, 1
      %p165 = scmp.lt.s32.totalorder %s19, 0
      %s166 = scalar_select %p165, %s19, 0
      %s167 = smul.addr %s166, 32
      %s168 = smul.addr %s164, 32
      %s169 = sadd.s32 %s167, %s168
      %s170 = smul.addr %s169, 4
      %s171 = scalar_lea.vmem %s0, %s170
      %p172 = pneg %p49
      %p173 = pneg %p46
      %p174 = pneg %p70
      %p175 = pneg %p67
      %p176 = pneg %p91
      %p177 = pneg %p88
      %p178 = pneg %p119
      %p179 = pneg %p116
      %p180 = scmp.lt.s32.totalorder %s18, 1
      %s181 = scalar_select %p180, %s18, 1
      %p182 = scmp.lt.s32.totalorder %s19, 0
      %s183 = scalar_select %p182, %s19, 0
      %s184 = smul.addr %s183, 32
      %s185 = smul.addr %s181, 32
      %s186 = sadd.s32 %s184, %s185
      %s187 = smul.addr %s186, 8
      %s188 = scalar_lea.vmem %s3, %s187
      %p189 = scmp.lt.s32.totalorder %s18, 1
      %s190 = scalar_select %p189, %s18, 1
      %p191 = scmp.lt.s32.totalorder %s19, 0
      %s192 = scalar_select %p191, %s19, 0
      %s193 = smul.addr %s192, 32
      %s194 = smul.addr %s190, 32
      %s195 = sadd.s32 %s193, %s194
      %s196 = smul.addr %s195, 4
      %s197 = scalar_lea.vmem %s0, %s196
      %p198 = scmp.lt.s32.totalorder %s18, 1
      %s199 = scalar_select %p198, %s18, 1
      %p200 = scmp.lt.s32.totalorder %s19, 0
      %s201 = scalar_select %p200, %s19, 0
      %s202 = smul.addr %s201, 32
      %s203 = smul.addr %s199, 32
      %s204 = sadd.s32 %s202, %s203
      %s205 = smul.addr %s204, 8
      %s206 = scalar_lea.vmem %s3, %s205
      %v208 = vld [vmem:[%s197] sm:$0xf]
      %v209 = vld [vmem:[%s197 + $0x4] sm:$0xf]
      %v210 = vld [vmem:[%s197 + $0x8] sm:$0xf]
      %v211 = vld [vmem:[%s197 + $0xc] sm:$0xf]
      %v212 = vld [vmem:[%s197 + $0x10] sm:$0xf]
      %v213 = vld [vmem:[%s197 + $0x14] sm:$0xf]
      %v214 = vld [vmem:[%s197 + $0x18] sm:$0xf]
      %v215 = vld [vmem:[%s197 + $0x1c] sm:$0xf]
      %v216 = vld [vmem:[%s197 + $0x20] sm:$0xf]
      %v217 = vld [vmem:[%s197 + $0x24] sm:$0xf]
      %v218 = vld [vmem:[%s197 + $0x28] sm:$0xf]
      %v219 = vld [vmem:[%s197 + $0x2c] sm:$0xf]
      %v220 = vld [vmem:[%s197 + $0x30] sm:$0xf]
      %v221 = vld [vmem:[%s197 + $0x34] sm:$0xf]
      %v222 = vld [vmem:[%s197 + $0x38] sm:$0xf]
      %v223 = vld [vmem:[%s197 + $0x3c] sm:$0xf]
      %v224 = vld [vmem:[%s197 + $0x40] sm:$0xf]
      %v225 = vld [vmem:[%s197 + $0x44] sm:$0xf]
      %v226 = vld [vmem:[%s197 + $0x48] sm:$0xf]
      %v227 = vld [vmem:[%s197 + $0x4c] sm:$0xf]
      %v228 = vld [vmem:[%s197 + $0x50] sm:$0xf]
      %v229 = vld [vmem:[%s197 + $0x54] sm:$0xf]
      %v230 = vld [vmem:[%s197 + $0x58] sm:$0xf]
      %v231 = vld [vmem:[%s197 + $0x5c] sm:$0xf]
      %v232 = vld [vmem:[%s197 + $0x60] sm:$0xf]
      %v233 = vld [vmem:[%s197 + $0x64] sm:$0xf]
      %v234 = vld [vmem:[%s197 + $0x68] sm:$0xf]
      %v235 = vld [vmem:[%s197 + $0x6c] sm:$0xf]
      %v236 = vld [vmem:[%s197 + $0x70] sm:$0xf]
      %v237 = vld [vmem:[%s197 + $0x74] sm:$0xf]
      %v238 = vld [vmem:[%s197 + $0x78] sm:$0xf]
      %v239 = vld [vmem:[%s197 + $0x7c] sm:$0xf]
      %v240 = vld [vmem:[%s1] sm:$0xf]
      %v241 = vld [vmem:[%s1 + $0x4] sm:$0xf]
      %v242 = vld [vmem:[%s1 + $0x8] sm:$0xf]
      %v243 = vld [vmem:[%s1 + $0xc] sm:$0xf]
      %v244 = vld [vmem:[%s2] sm:$0x1]
      %v246 = vlaneseq
      %v247 = vshrl.u32 %v246, 7
      %v248 = vsub.s32 0, %v247
      %v249 = vrot.slane %v244, %v248
      %v283 = vunpack.c.l.b16 %v208
      %v284 = vunpack.c.l.b16 %v209
      %v285 = vunpack.c.l.b16 %v210
      %v286 = vunpack.c.l.b16 %v211
      %v287 = vunpack.c.l.b16 %v212
      %v288 = vunpack.c.l.b16 %v213
      %v289 = vunpack.c.l.b16 %v214
      %v290 = vunpack.c.l.b16 %v215
      %v291 = vunpack.c.l.b16 %v216
      %v292 = vunpack.c.l.b16 %v217
      %v293 = vunpack.c.l.b16 %v218
      %v294 = vunpack.c.l.b16 %v219
      %v295 = vunpack.c.l.b16 %v220
      %v296 = vunpack.c.l.b16 %v221
      %v297 = vunpack.c.l.b16 %v222
      %v298 = vunpack.c.l.b16 %v223
      %v299 = vunpack.c.l.b16 %v224
      %v300 = vunpack.c.l.b16 %v225
      %v301 = vunpack.c.l.b16 %v226
      %v302 = vunpack.c.l.b16 %v227
      %v303 = vunpack.c.l.b16 %v228
      %v304 = vunpack.c.l.b16 %v229
      %v305 = vunpack.c.l.b16 %v230
      %v306 = vunpack.c.l.b16 %v231
      %v307 = vunpack.c.l.b16 %v232
      %v308 = vunpack.c.l.b16 %v233
      %v309 = vunpack.c.l.b16 %v234
      %v310 = vunpack.c.l.b16 %v235
      %v311 = vunpack.c.l.b16 %v236
      %v312 = vunpack.c.l.b16 %v237
      %v313 = vunpack.c.l.b16 %v238
      %v314 = vunpack.c.l.b16 %v239
      %v315 = vpack.c.b16 %v284, %v283
      %v316 = vpack.c.b16 %v286, %v285
      %v317 = vpack.c.b16 %v288, %v287
      %v318 = vpack.c.b16 %v290, %v289
      %v319 = vpack.c.b16 %v292, %v291
      %v320 = vpack.c.b16 %v294, %v293
      %v321 = vpack.c.b16 %v296, %v295
      %v322 = vpack.c.b16 %v298, %v297
      %v323 = vpack.c.b16 %v300, %v299
      %v324 = vpack.c.b16 %v302, %v301
      %v325 = vpack.c.b16 %v304, %v303
      %v326 = vpack.c.b16 %v306, %v305
      %v327 = vpack.c.b16 %v308, %v307
      %v328 = vpack.c.b16 %v310, %v309
      %v329 = vpack.c.b16 %v312, %v311
      %v330 = vpack.c.b16 %v314, %v313
      %v335 = vunpack.c.l.b16 %v240
      %v336 = vunpack.c.l.b16 %v241
      %v337 = vunpack.c.l.b16 %v242
      %v338 = vunpack.c.l.b16 %v243
      %v339 = vpack.c.b16 %v336, %v335
      %v340 = vpack.c.b16 %v338, %v337
      %vm343 = vcmask 261120
      %v345 = vsel %vm343, %v315, 0
      %v348 = vsel %vm343, %v316, 0
      %v351 = vsel %vm343, %v317, 0
      %v354 = vsel %vm343, %v318, 0
      %v357 = vsel %vm343, %v319, 0
      %v360 = vsel %vm343, %v320, 0
      %v363 = vsel %vm343, %v321, 0
      %v366 = vsel %vm343, %v322, 0
      %v369 = vsel %vm343, %v323, 0
      %v372 = vsel %vm343, %v324, 0
      %v375 = vsel %vm343, %v325, 0
      %v378 = vsel %vm343, %v326, 0
      %v381 = vsel %vm343, %v327, 0
      %v384 = vsel %vm343, %v328, 0
      %v387 = vsel %vm343, %v329, 0
      %v390 = vsel %vm343, %v330, 0
      %392 = vmatprep.subr.bf16.mxu0 0
      %393 = vmatpush1.bf16.msra.mxu0 0
      %394 = vmatprep.subr.bf16.mxu0 0
      %395 = vmatpush1.bf16.msra.mxu0 0
      %396 = vmatprep.subr.bf16.mxu0 0
      %397 = vmatpush1.bf16.msra.mxu0 0
      %398 = vmatprep.subr.bf16.mxu0 0
      %399 = vmatpush1.bf16.msra.mxu0 0
      %400 = vmatprep.subr.bf16.mxu0 0
      %401 = vmatpush1.bf16.msra.mxu0 0
      %402 = vmatprep.subr.bf16.mxu0 0
      %403 = vmatpush1.bf16.msra.mxu0 0
      %404 = vmatprep.subr.bf16.mxu0 0
      %405 = vmatpush1.bf16.msra.mxu0 %v340
      %406 = vmatprep.subr.bf16.mxu0 0
      %407 = vmatpush1.bf16.msra.mxu0 %v339
      %408 = vmatprep.subr.bf16.mxu0 0
      %409 = vmatpush2.bf16.msra.mxu0 0
      %410 = vmatprep.subr.bf16.mxu0 0
      %411 = vmatpush2.bf16.msra.mxu0 0
      %412 = vmatprep.subr.bf16.mxu0 0
      %413 = vmatpush2.bf16.msra.mxu0 0
      %414 = vmatprep.subr.bf16.mxu0 0
      %415 = vmatpush2.bf16.msra.mxu0 0
      %416 = vmatprep.subr.bf16.mxu0 0
      %417 = vmatpush2.bf16.msra.mxu0 0
      %418 = vmatprep.subr.bf16.mxu0 0
      %419 = vmatpush2.bf16.msra.mxu0 0
      %420 = vmatprep.subr.bf16.mxu0 0
      %421 = vmatpush2.bf16.msra.mxu0 0
      %422 = vmatprep.subr.bf16.mxu0 0
      %423 = vmatpush2.bf16.msra.mxu0 0
      %424 = vmatprep.mubr.bf16.mxu0 0
      %425 = vmatmul.mubr.bf16.gmra.mxu0 %v345
      %v426 = vpop.f32.mrf.mxu0
      %v427 = vadd.f32 %v249, %v426
      %v428 = vpop.f32.mrf.mxu0
      %v429 = vpop.f32.mrf.mxu0
      %v430 = vadd.f32 %v249, %v429
      %v431 = vpop.f32.mrf.mxu0
      %432 = vmatprep.mubr.bf16.mxu0 0
      %433 = vmatmul.mubr.bf16.gmra.mxu0 %v348
      %v434 = vpop.f32.mrf.mxu0
      %v435 = vadd.f32 %v249, %v434
      %v436 = vpop.f32.mrf.mxu0
      %v437 = vpop.f32.mrf.mxu0
      %v438 = vadd.f32 %v249, %v437
      %v439 = vpop.f32.mrf.mxu0
      %440 = vmatprep.mubr.bf16.mxu0 0
      %441 = vmatmul.mubr.bf16.gmra.mxu0 %v351
      %v442 = vpop.f32.mrf.mxu0
      %v443 = vadd.f32 %v249, %v442
      %v444 = vpop.f32.mrf.mxu0
      %v445 = vpop.f32.mrf.mxu0
      %v446 = vadd.f32 %v249, %v445
      %v447 = vpop.f32.mrf.mxu0
      %448 = vmatprep.mubr.bf16.mxu0 0
      %449 = vmatmul.mubr.bf16.gmra.mxu0 %v354
      %v450 = vpop.f32.mrf.mxu0
      %v451 = vadd.f32 %v249, %v450
      %v452 = vpop.f32.mrf.mxu0
      %v453 = vpop.f32.mrf.mxu0
      %v454 = vadd.f32 %v249, %v453
      %v455 = vpop.f32.mrf.mxu0
      %456 = vmatprep.mubr.bf16.mxu0 0
      %457 = vmatmul.mubr.bf16.gmra.mxu0 %v357
      %v458 = vpop.f32.mrf.mxu0
      %v459 = vadd.f32 %v249, %v458
      %v460 = vpop.f32.mrf.mxu0
      %v461 = vpop.f32.mrf.mxu0
      %v462 = vadd.f32 %v249, %v461
      %v463 = vpop.f32.mrf.mxu0
      %464 = vmatprep.mubr.bf16.mxu0 0
      %465 = vmatmul.mubr.bf16.gmra.mxu0 %v360
      %v466 = vpop.f32.mrf.mxu0
      %v467 = vadd.f32 %v249, %v466
      %v468 = vpop.f32.mrf.mxu0
      %v469 = vpop.f32.mrf.mxu0
      %v470 = vadd.f32 %v249, %v469
      %v471 = vpop.f32.mrf.mxu0
      %472 = vmatprep.mubr.bf16.mxu0 0
      %473 = vmatmul.mubr.bf16.gmra.mxu0 %v363
      %v474 = vpop.f32.mrf.mxu0
      %v475 = vadd.f32 %v249, %v474
      %v476 = vpop.f32.mrf.mxu0
      %v477 = vpop.f32.mrf.mxu0
      %v478 = vadd.f32 %v249, %v477
      %v479 = vpop.f32.mrf.mxu0
      %480 = vmatprep.mubr.bf16.mxu0 0
      %481 = vmatmul.mubr.bf16.gmra.mxu0 %v366
      %v482 = vpop.f32.mrf.mxu0
      %v483 = vadd.f32 %v249, %v482
      %v484 = vpop.f32.mrf.mxu0
      %v485 = vpop.f32.mrf.mxu0
      %v486 = vadd.f32 %v249, %v485
      %v487 = vpop.f32.mrf.mxu0
      %488 = vmatprep.mubr.bf16.mxu0 0
      %489 = vmatmul.mubr.bf16.gmra.mxu0 %v369
      %v490 = vpop.f32.mrf.mxu0
      %v491 = vadd.f32 %v249, %v490
      %v492 = vpop.f32.mrf.mxu0
      %v493 = vpop.f32.mrf.mxu0
      %v494 = vadd.f32 %v249, %v493
      %v495 = vpop.f32.mrf.mxu0
      %496 = vmatprep.mubr.bf16.mxu0 0
      %497 = vmatmul.mubr.bf16.gmra.mxu0 %v372
      %v498 = vpop.f32.mrf.mxu0
      %v499 = vadd.f32 %v249, %v498
      %v500 = vpop.f32.mrf.mxu0
      %v501 = vpop.f32.mrf.mxu0
      %v502 = vadd.f32 %v249, %v501
      %v503 = vpop.f32.mrf.mxu0
      %504 = vmatprep.mubr.bf16.mxu0 0
      %505 = vmatmul.mubr.bf16.gmra.mxu0 %v375
      %v506 = vpop.f32.mrf.mxu0
      %v507 = vadd.f32 %v249, %v506
      %v508 = vpop.f32.mrf.mxu0
      %v509 = vpop.f32.mrf.mxu0
      %v510 = vadd.f32 %v249, %v509
      %v511 = vpop.f32.mrf.mxu0
      %512 = vmatprep.mubr.bf16.mxu0 0
      %513 = vmatmul.mubr.bf16.gmra.mxu0 %v378
      %v514 = vpop.f32.mrf.mxu0
      %v515 = vadd.f32 %v249, %v514
      %v516 = vpop.f32.mrf.mxu0
      %v517 = vpop.f32.mrf.mxu0
      %v518 = vadd.f32 %v249, %v517
      %v519 = vpop.f32.mrf.mxu0
      %520 = vmatprep.mubr.bf16.mxu0 0
      %521 = vmatmul.mubr.bf16.gmra.mxu0 %v381
      %v522 = vpop.f32.mrf.mxu0
      %v523 = vadd.f32 %v249, %v522
      %v524 = vpop.f32.mrf.mxu0
      %v525 = vpop.f32.mrf.mxu0
      %v526 = vadd.f32 %v249, %v525
      %v527 = vpop.f32.mrf.mxu0
      %528 = vmatprep.mubr.bf16.mxu0 0
      %529 = vmatmul.mubr.bf16.gmra.mxu0 %v384
      %v530 = vpop.f32.mrf.mxu0
      %v531 = vadd.f32 %v249, %v530
      %v532 = vpop.f32.mrf.mxu0
      %v533 = vpop.f32.mrf.mxu0
      %v534 = vadd.f32 %v249, %v533
      %v535 = vpop.f32.mrf.mxu0
      %536 = vmatprep.mubr.bf16.mxu0 0
      %537 = vmatmul.mubr.bf16.gmra.mxu0 %v387
      %v538 = vpop.f32.mrf.mxu0
      %v539 = vadd.f32 %v249, %v538
      %v540 = vpop.f32.mrf.mxu0
      %v541 = vpop.f32.mrf.mxu0
      %v542 = vadd.f32 %v249, %v541
      %v543 = vpop.f32.mrf.mxu0
      %544 = vmatprep.mubr.bf16.mxu0 0
      %545 = vmatmul.mubr.bf16.gmra.mxu0 %v390
      %v546 = vpop.f32.mrf.mxu0
      %v547 = vadd.f32 %v249, %v546
      %v548 = vpop.f32.mrf.mxu0
      %v549 = vpop.f32.mrf.mxu0
      %v550 = vadd.f32 %v249, %v549
      %v551 = vpop.f32.mrf.mxu0
      %552 = vdwg.mxu0
      %553 = vst [vmem:[%s206] sm:$0xff] %v427
      %554 = vst [vmem:[%s206 + $0x8] sm:$0xff] %v430
      %555 = vst [vmem:[%s206 + $0x10] sm:$0xff] %v435
      %556 = vst [vmem:[%s206 + $0x18] sm:$0xff] %v438
      %557 = vst [vmem:[%s206 + $0x20] sm:$0xff] %v443
      %558 = vst [vmem:[%s206 + $0x28] sm:$0xff] %v446
      %559 = vst [vmem:[%s206 + $0x30] sm:$0xff] %v451
      %560 = vst [vmem:[%s206 + $0x38] sm:$0xff] %v454
      %561 = vst [vmem:[%s206 + $0x40] sm:$0xff] %v459
      %562 = vst [vmem:[%s206 + $0x48] sm:$0xff] %v462
      %563 = vst [vmem:[%s206 + $0x50] sm:$0xff] %v467
      %564 = vst [vmem:[%s206 + $0x58] sm:$0xff] %v470
      %565 = vst [vmem:[%s206 + $0x60] sm:$0xff] %v475
      %566 = vst [vmem:[%s206 + $0x68] sm:$0xff] %v478
      %567 = vst [vmem:[%s206 + $0x70] sm:$0xff] %v483
      %568 = vst [vmem:[%s206 + $0x78] sm:$0xff] %v486
      %569 = vst [vmem:[%s206 + $0x80] sm:$0xff] %v491
      %570 = vst [vmem:[%s206 + $0x88] sm:$0xff] %v494
      %571 = vst [vmem:[%s206 + $0x90] sm:$0xff] %v499
      %572 = vst [vmem:[%s206 + $0x98] sm:$0xff] %v502
      %573 = vst [vmem:[%s206 + $0xa0] sm:$0xff] %v507
      %574 = vst [vmem:[%s206 + $0xa8] sm:$0xff] %v510
      %575 = vst [vmem:[%s206 + $0xb0] sm:$0xff] %v515
      %576 = vst [vmem:[%s206 + $0xb8] sm:$0xff] %v518
      %577 = vst [vmem:[%s206 + $0xc0] sm:$0xff] %v523
      %578 = vst [vmem:[%s206 + $0xc8] sm:$0xff] %v526
      %579 = vst [vmem:[%s206 + $0xd0] sm:$0xff] %v531
      %580 = vst [vmem:[%s206 + $0xd8] sm:$0xff] %v534
      %581 = vst [vmem:[%s206 + $0xe0] sm:$0xff] %v539
      %582 = vst [vmem:[%s206 + $0xe8] sm:$0xff] %v542
      %583 = vst [vmem:[%s206 + $0xf0] sm:$0xff] %v547
      %584 = vst [vmem:[%s206 + $0xf8] sm:$0xff] %v550
      %p585 = scmp.lt.s32.totalorder %s18, 1
      %s586 = scalar_select %p585, %s18, 1
      %p587 = scmp.lt.s32.totalorder %s19, 0
      %s588 = scalar_select %p587, %s19, 0
      %s589 = smul.addr %s588, 32
      %s590 = smul.addr %s586, 32
      %s591 = sadd.s32 %s589, %s590
      %s592 = smul.addr %s591, 8
      %s593 = scalar_lea.vmem %s3, %s592
      // Predicated region
      $region33: #{generator_synthesis_block.8} parent=31 // pred_check
        %p594 = pneg %p116
      $region34: #{generator_synthesis_block.8} parent=31 // pred_check_branch
        %596 = sbr.rel (%p594) target = $region36
      $region35: #{generator_synthesis_block.8} parent=31 // pred_region
        _
      $region36: #{generator_synthesis_block.8} parent=31 // pred_fallthru
        _
    $region32: #{generator_synthesis_block.8} parent=5 // pred_fallthru
      _
    %p597 = scmp.le.s32.totalorder 2, %s9
    // Predicated region
    $region37: #{generator_synthesis_block.8} parent=5 // pred_check
      %p598 = pneg %p597
    $region38: #{generator_synthesis_block.8} parent=5 // pred_check_branch
      %600 = sbr.rel (%p598) target = $region40
    $region39: #{generator_synthesis_block.8} parent=5 // pred_region
      %s601 = ssub.s32 %s9, 2
      // Predicated region
      $region41: #{generator_synthesis_block.8} parent=39 // pred_check
        %p602 = pneg %p122
      $region42: #{generator_synthesis_block.8} parent=39 // pred_check_branch
        %604 = sbr.rel (%p602) target = $region44
      $region43: #{generator_synthesis_block.8} parent=39 // pred_region
        %p605 = scmp.lt.s32.totalorder %s20, 1
        %s606 = scalar_select %p605, %s20, 1
        %p607 = scmp.lt.s32.totalorder %s21, 0
        %s608 = scalar_select %p607, %s21, 0
        %s609 = smul.addr %s608, 32
        %s610 = smul.addr %s606, 32
        %s611 = sadd.s32 %s609, %s610
        %s612 = smul.addr %s611, 8
        %s613 = scalar_lea.vmem %s3, %s612
      $region44: #{generator_synthesis_block.8} parent=39 // pred_fallthru
        _
    $region40: #{generator_synthesis_block.8} parent=5 // pred_fallthru
      _
  $region6: #{generator_synthesis_block.8} parent=0 // loop_footer
    %s13 = sadd.s32 1, %s9
  $region7: #{generator_synthesis_block.8} parent=0 // loop_footer_branch
    %8 = sbr.rel target = $region3
  $region8: #{generator_synthesis_block.8} parent=0 // loop_exit
    _

// kernel: generator_synthesis_block.9
$region0: #{generator_synthesis_block.9}
  #allocation0 [shape = 'u32[]', space=smem, size = 0x4, offset = 0x4, fixed_abs, tag = 'smem constant byte address 0x4 - core index']
  #allocation1 [shape = 'u32[144,128]{1,0:T(1,128)}', space=vmem, size = 0x12000, scoped, tag = 'internal scratch']
  #allocation2 [shape = 'f32[16,19,3]{2,1,0:T(8,128)}', space=vmem, size = 0x30000, scoped, tag = 'scratch operand']
  %s0 = inlined_call_operand.vmem [shape: f32[2,1,19,19,3], index: 0, kind: input, shape index: {}]
  %s1 = inlined_call_operand.vmem [shape: f32[2,16,16,3], index: 1, kind: output, shape index: {}]
  %s2 = sld [smem:[#allocation0]]
  $region37: #{generator_synthesis_block.9} parent=0
    _
  %s4 = ssub.s32 1, %s2
  %s5 = scalar_select 0, %s4, %s2
  loop: start=0, step=1, limit=4
  $region2: #{generator_synthesis_block.9} parent=0 // loop_pre_header
    _
  $region3: #{generator_synthesis_block.9} parent=0 // loop_header
    %s7 = sphi 0, %s11
    %p8 = scmp.ge.s32.totalorder %s7, 4
    %s14 = sphi 0, %s26
    %s15 = sphi 0, %s22
    %s16 = sphi 0, %s14
    %s17 = sphi 0, %s15
    %s18 = sphi 0, %s16
    %s19 = sphi 0, %s17
    %s31 = sphi 0, %s33
    %s34 = sphi 0, %s31
    %s35 = sphi 0, %s34
    %s51 = sphi 0, %s35
    %s59 = sphi 0, %s61
    %s62 = sphi 0, %s59
    %s63 = sphi 0, %s62
    %s79 = sphi 0, %s63
  $region4: #{generator_synthesis_block.9} parent=0 // loop_header_branch
    %10 = sbr.rel (%p8) target = $region8
  $region5: #{generator_synthesis_block.9} parent=0 // loop_body
    %s12 = ssub.s32 %s7, 1
    %s13 = ssub.s32 %s7, 2
    %s20 = sadd.s32 1, %s15
    %p21 = scmp.ge.s32.totalorder %s20, 1
    %s22 = scalar_select %p21, 0, %s20
    %s23 = sadd.s32 1, %s14
    %s24 = scalar_select %p21, %s23, %s14
    %p25 = scmp.ge.s32.totalorder %s24, 2
    %s26 = scalar_select %p25, 0, %s24
    %s27 = ssub.s32 %s14, %s26
    %s28 = ssub.s32 %s15, %s22
    %s29 = sor.u32 %s27, %s28
    %p30 = scmp.eq.s32.totalorder %s29, 0
    %s32 = sadd.s32 %s31, 1
    %s33 = scalar_select %p30, %s31, %s32
    %p36 = pneg %p30
    %p37 = scmp.eq.s32.totalorder %s7, 1
    %p38 = por %p36, %p37
    %p39 = scmp.ne.s32.totalorder %s31, %s34
    %p40 = scmp.eq.s32.totalorder %s7, 0
    %p41 = por %p39, %p40
    %p42 = scmp.ne.s32.totalorder %s31, %s34
    %p43 = scmp.eq.s32.totalorder %s12, 1
    %p44 = por %p42, %p43
    %p45 = scmp.ne.s32.totalorder %s34, %s35
    %p46 = scmp.eq.s32.totalorder %s12, 0
    %p47 = por %p45, %p46
    %p48 = scmp.ne.s32.totalorder %s34, %s35
    %p49 = scmp.eq.s32.totalorder %s13, 1
    %p50 = por %p48, %p49
    %p52 = scmp.ne.s32.totalorder %s35, %s51
    %p53 = scmp.eq.s32.totalorder %s13, 0
    %p54 = por %p52, %p53
    %s55 = ssub.s32 %s14, %s26
    %s56 = ssub.s32 %s15, %s22
    %s57 = sor.u32 %s55, %s56
    %p58 = scmp.eq.s32.totalorder %s57, 0
    %s60 = sadd.s32 %s59, 1
    %s61 = scalar_select %p58, %s59, %s60
    %p64 = pneg %p58
    %p65 = scmp.eq.s32.totalorder %s7, 1
    %p66 = por %p64, %p65
    %p67 = scmp.ne.s32.totalorder %s59, %s62
    %p68 = scmp.eq.s32.totalorder %s7, 0
    %p69 = por %p67, %p68
    %p70 = scmp.ne.s32.totalorder %s59, %s62
    %p71 = scmp.eq.s32.totalorder %s12, 1
    %p72 = por %p70, %p71
    %p73 = scmp.ne.s32.totalorder %s62, %s63
    %p74 = scmp.eq.s32.totalorder %s12, 0
    %p75 = por %p73, %p74
    %p76 = scmp.ne.s32.totalorder %s62, %s63
    %p77 = scmp.eq.s32.totalorder %s13, 1
    %p78 = por %p76, %p77
    %p80 = scmp.ne.s32.totalorder %s63, %s79
    %p81 = scmp.eq.s32.totalorder %s13, 0
    %p82 = por %p80, %p81
    %p83 = scmp.le.s32.totalorder 1, %s7
    %p84 = scmp.lt.s32.totalorder %s7, 3
    %p85 = pnand %p83, %p84
    %p86 = pneg %p85
    // Predicated region
    $region9: #{generator_synthesis_block.9} parent=5 // pred_check
      _
    $region10: #{generator_synthesis_block.9} parent=5 // pred_check_branch
      %88 = sbr.rel (%p85) target = $region12
    $region11: #{generator_synthesis_block.9} parent=5 // pred_region
      %s89 = ssub.s32 %s7, 1
    $region12: #{generator_synthesis_block.9} parent=5 // pred_fallthru
      _
    %p90 = scmp.lt.s32.totalorder %s7, 2
    // Predicated region
    $region13: #{generator_synthesis_block.9} parent=5 // pred_check
      %p91 = pneg %p90
    $region14: #{generator_synthesis_block.9} parent=5 // pred_check_branch
      %93 = sbr.rel (%p91) target = $region16
    $region15: #{generator_synthesis_block.9} parent=5 // pred_region
      // Predicated region
      $region17: #{generator_synthesis_block.9} parent=15 // pred_check
        %p94 = pneg %p41
      $region18: #{generator_synthesis_block.9} parent=15 // pred_check_branch
        %96 = sbr.rel (%p94) target = $region20
      $region19: #{generator_synthesis_block.9} parent=15 // pred_region
        %p97 = scmp.lt.s32.totalorder %s14, 1
        %s98 = scalar_select %p97, %s14, 1
        %p99 = scmp.lt.s32.totalorder %s15, 0
        %s100 = scalar_select %p99, %s15, 0
        %s101 = smul.addr %s100, 57
        %s102 = smul.addr %s98, 57
        %s103 = sadd.s32 %s101, %s102
        %s104 = smul.addr %s103, 8
        %s105 = scalar_lea.vmem %s0, %s104
      $region20: #{generator_synthesis_block.9} parent=15 // pred_fallthru
        _
    $region16: #{generator_synthesis_block.9} parent=5 // pred_fallthru
      _
    %p106 = scmp.le.s32.totalorder 1, %s7
    %p107 = scmp.lt.s32.totalorder %s7, 3
    %p108 = pnand %p106, %p107
    %p109 = pneg %p108
    // Predicated region
    $region21: #{generator_synthesis_block.9} parent=5 // pred_check
      _
    $region22: #{generator_synthesis_block.9} parent=5 // pred_check_branch
      %111 = sbr.rel (%p108) target = $region24
    $region23: #{generator_synthesis_block.9} parent=5 // pred_region
      %s112 = ssub.s32 %s7, 1
      %p113 = scmp.lt.s32.totalorder %s16, 1
      %s114 = scalar_select %p113, %s16, 1
      %p115 = scmp.lt.s32.totalorder %s17, 0
      %s116 = scalar_select %p115, %s17, 0
      %s117 = smul.addr %s116, 57
      %s118 = smul.addr %s114, 57
      %s119 = sadd.s32 %s117, %s118
      %s120 = smul.addr %s119, 8
      %s121 = scalar_lea.vmem %s0, %s120
      %p122 = pneg %p47
      %p123 = pneg %p44
      %p124 = pneg %p75
      %p125 = pneg %p72
      %s126 = smul.u32 16, %s17
      %p127 = scmp.lt.s32.totalorder %s16, 1
      %s128 = scalar_select %p127, %s16, 1
      %p129 = scmp.lt.s32.totalorder %s126, 15
      %s130 = scalar_select %p129, %s126, 15
      %s131 = smul.addr %s130, 2
      %s132 = smul.addr %s128, 32
      %s133 = sadd.s32 %s131, %s132
      %s134 = smul.addr %s133, 8
      %s135 = scalar_lea.vmem %s1, %s134
      %p136 = scmp.lt.s32.totalorder %s16, 1
      %s137 = scalar_select %p136, %s16, 1
      %p138 = scmp.lt.s32.totalorder %s17, 0
      %s139 = scalar_select %p138, %s17, 0
      %s140 = smul.addr %s139, 57
      %s141 = smul.addr %s137, 57
      %s142 = sadd.s32 %s140, %s141
      %s143 = smul.addr %s142, 8
      %s144 = scalar_lea.vmem %s0, %s143
      %s145 = smul.u32 16, %s17
      %p146 = scmp.lt.s32.totalorder %s16, 1
      %s147 = scalar_select %p146, %s16, 1
      %p148 = scmp.lt.s32.totalorder %s145, 15
      %s149 = scalar_select %p148, %s145, 15
      %s150 = smul.addr %s149, 2
      %s151 = smul.addr %s147, 32
      %s152 = sadd.s32 %s150, %s151
      %s153 = smul.addr %s152, 8
      %s154 = scalar_lea.vmem %s1, %s153
      %s155 = smul.u32 16, %s17
      %v156 = vld [vmem:[%s144] sm:$0xff]
      %v157 = vld [vmem:[%s144 + $0x8] sm:$0xff]
      %v158 = vld [vmem:[%s144 + $0x10] sm:$0x7]
      %v159 = vld [vmem:[%s144 + $0x18] sm:$0xff]
      %v160 = vld [vmem:[%s144 + $0x20] sm:$0xff]
      %v161 = vld [vmem:[%s144 + $0x28] sm:$0x7]
      %v162 = vld [vmem:[%s144 + $0x30] sm:$0xff]
      %v163 = vld [vmem:[%s144 + $0x38] sm:$0xff]
      %v164 = vld [vmem:[%s144 + $0x40] sm:$0x7]
      %v165 = vld [vmem:[%s144 + $0x48] sm:$0xff]
      %v166 = vld [vmem:[%s144 + $0x50] sm:$0xff]
      %v167 = vld [vmem:[%s144 + $0x58] sm:$0x7]
      %v168 = vld [vmem:[%s144 + $0x60] sm:$0xff]
      %v169 = vld [vmem:[%s144 + $0x68] sm:$0xff]
      %v170 = vld [vmem:[%s144 + $0x70] sm:$0x7]
      %v171 = vld [vmem:[%s144 + $0x78] sm:$0xff]
      %v172 = vld [vmem:[%s144 + $0x80] sm:$0xff]
      %v173 = vld [vmem:[%s144 + $0x88] sm:$0x7]
      %v174 = vld [vmem:[%s144 + $0x90] sm:$0xff]
      %v175 = vld [vmem:[%s144 + $0x98] sm:$0xff]
      %v176 = vld [vmem:[%s144 + $0xa0] sm:$0x7]
      %v177 = vld [vmem:[%s144 + $0xa8] sm:$0xff]
      %v178 = vld [vmem:[%s144 + $0xb0] sm:$0xff]
      %v179 = vld [vmem:[%s144 + $0xb8] sm:$0x7]
      %v180 = vld [vmem:[%s144 + $0xc0] sm:$0xff]
      %v181 = vld [vmem:[%s144 + $0xc8] sm:$0xff]
      %v182 = vld [vmem:[%s144 + $0xd0] sm:$0x7]
      %v183 = vld [vmem:[%s144 + $0xd8] sm:$0xff]
      %v184 = vld [vmem:[%s144 + $0xe0] sm:$0xff]
      %v185 = vld [vmem:[%s144 + $0xe8] sm:$0x7]
      %v186 = vld [vmem:[%s144 + $0xf0] sm:$0xff]
      %v187 = vld [vmem:[%s144 + $0xf8] sm:$0xff]
      %v188 = vld [vmem:[%s144 + $0x100] sm:$0x7]
      %v189 = vld [vmem:[%s144 + $0x108] sm:$0xff]
      %v190 = vld [vmem:[%s144 + $0x110] sm:$0xff]
      %v191 = vld [vmem:[%s144 + $0x118] sm:$0x7]
      %v192 = vld [vmem:[%s144 + $0x120] sm:$0xff]
      %v193 = vld [vmem:[%s144 + $0x128] sm:$0xff]
      %v194 = vld [vmem:[%s144 + $0x130] sm:$0x7]
      %v195 = vld [vmem:[%s144 + $0x138] sm:$0xff]
      %v196 = vld [vmem:[%s144 + $0x140] sm:$0xff]
      %v197 = vld [vmem:[%s144 + $0x148] sm:$0x7]
      %v198 = vld [vmem:[%s144 + $0x150] sm:$0xff]
      %v199 = vld [vmem:[%s144 + $0x158] sm:$0xff]
      %v200 = vld [vmem:[%s144 + $0x160] sm:$0x7]
      %v201 = vld [vmem:[%s144 + $0x168] sm:$0xff]
      %v202 = vld [vmem:[%s144 + $0x170] sm:$0xff]
      %v203 = vld [vmem:[%s144 + $0x178] sm:$0x7]
      %v204 = vmul.f32 %v156, 0.25
      %v205 = vmul.f32 %v157, 0.25
      %v206 = vmul.f32 %v158, 0.25
      %v207 = vmul.f32 %v159, 0.25
      %v208 = vmul.f32 %v160, 0.25
      %v209 = vmul.f32 %v161, 0.25
      %v210 = vmul.f32 %v162, 0.25
      %v211 = vmul.f32 %v163, 0.25
      %v212 = vmul.f32 %v164, 0.25
      %v213 = vmul.f32 %v165, 0.25
      %v214 = vmul.f32 %v166, 0.25
      %v215 = vmul.f32 %v167, 0.25
      %v216 = vmul.f32 %v168, 0.25
      %v217 = vmul.f32 %v169, 0.25
      %v218 = vmul.f32 %v170, 0.25
      %v219 = vmul.f32 %v171, 0.25
      %v220 = vmul.f32 %v172, 0.25
      %v221 = vmul.f32 %v173, 0.25
      %v222 = vmul.f32 %v174, 0.25
      %v223 = vmul.f32 %v175, 0.25
      %v224 = vmul.f32 %v176, 0.25
      %v225 = vmul.f32 %v177, 0.25
      %v226 = vmul.f32 %v178, 0.25
      %v227 = vmul.f32 %v179, 0.25
      %v228 = vmul.f32 %v180, 0.25
      %v229 = vmul.f32 %v181, 0.25
      %v230 = vmul.f32 %v182, 0.25
      %v231 = vmul.f32 %v183, 0.25
      %v232 = vmul.f32 %v184, 0.25
      %v233 = vmul.f32 %v185, 0.25
      %v234 = vmul.f32 %v186, 0.25
      %v235 = vmul.f32 %v187, 0.25
      %v236 = vmul.f32 %v188, 0.25
      %v237 = vmul.f32 %v189, 0.25
      %v238 = vmul.f32 %v190, 0.25
      %v239 = vmul.f32 %v191, 0.25
      %v240 = vmul.f32 %v192, 0.25
      %v241 = vmul.f32 %v193, 0.25
      %v242 = vmul.f32 %v194, 0.25
      %v243 = vmul.f32 %v195, 0.25
      %v244 = vmul.f32 %v196, 0.25
      %v245 = vmul.f32 %v197, 0.25
      %v246 = vmul.f32 %v198, 0.25
      %v247 = vmul.f32 %v199, 0.25
      %v248 = vmul.f32 %v200, 0.25
      %v249 = vmul.f32 %v201, 0.25
      %v250 = vmul.f32 %v202, 0.25
      %v251 = vmul.f32 %v203, 0.25
      %s252 = scalar_lea.vmem %s144, 24
      %v253 = vld [vmem:[%s252] sm:$0xff]
      %v254 = vld [vmem:[%s252 + $0x8] sm:$0xff]
      %v255 = vld [vmem:[%s252 + $0x10] sm:$0x7]
      %v256 = vld [vmem:[%s252 + $0x18] sm:$0xff]
      %v257 = vld [vmem:[%s252 + $0x20] sm:$0xff]
      %v258 = vld [vmem:[%s252 + $0x28] sm:$0x7]
      %v259 = vld [vmem:[%s252 + $0x30] sm:$0xff]
      %v260 = vld [vmem:[%s252 + $0x38] sm:$0xff]
      %v261 = vld [vmem:[%s252 + $0x40] sm:$0x7]
      %v262 = vld [vmem:[%s252 + $0x48] sm:$0xff]
      %v263 = vld [vmem:[%s252 + $0x50] sm:$0xff]
      %v264 = vld [vmem:[%s252 + $0x58] sm:$0x7]
      %v265 = vld [vmem:[%s252 + $0x60] sm:$0xff]
      %v266 = vld [vmem:[%s252 + $0x68] sm:$0xff]
      %v267 = vld [vmem:[%s252 + $0x70] sm:$0x7]
      %v268 = vld [vmem:[%s252 + $0x78] sm:$0xff]
      %v269 = vld [vmem:[%s252 + $0x80] sm:$0xff]
      %v270 = vld [vmem:[%s252 + $0x88] sm:$0x7]
      %v271 = vld [vmem:[%s252 + $0x90] sm:$0xff]
      %v272 = vld [vmem:[%s252 + $0x98] sm:$0xff]
      %v273 = vld [vmem:[%s252 + $0xa0] sm:$0x7]
      %v274 = vld [vmem:[%s252 + $0xa8] sm:$0xff]
      %v275 = vld [vmem:[%s252 + $0xb0] sm:$0xff]
      %v276 = vld [vmem:[%s252 + $0xb8] sm:$0x7]
      %v277 = vld [vmem:[%s252 + $0xc0] sm:$0xff]
      %v278 = vld [vmem:[%s252 + $0xc8] sm:$0xff]
      %v279 = vld [vmem:[%s252 + $0xd0] sm:$0x7]
      %v280 = vld [vmem:[%s252 + $0xd8] sm:$0xff]
      %v281 = vld [vmem:[%s252 + $0xe0] sm:$0xff]
      %v282 = vld [vmem:[%s252 + $0xe8] sm:$0x7]
      %v283 = vld [vmem:[%s252 + $0xf0] sm:$0xff]
      %v284 = vld [vmem:[%s252 + $0xf8] sm:$0xff]
      %v285 = vld [vmem:[%s252 + $0x100] sm:$0x7]
      %v286 = vld [vmem:[%s252 + $0x108] sm:$0xff]
      %v287 = vld [vmem:[%s252 + $0x110] sm:$0xff]
      %v288 = vld [vmem:[%s252 + $0x118] sm:$0x7]
      %v289 = vld [vmem:[%s252 + $0x120] sm:$0xff]
      %v290 = vld [vmem:[%s252 + $0x128] sm:$0xff]
      %v291 = vld [vmem:[%s252 + $0x130] sm:$0x7]
      %v292 = vld [vmem:[%s252 + $0x138] sm:$0xff]
      %v293 = vld [vmem:[%s252 + $0x140] sm:$0xff]
      %v294 = vld [vmem:[%s252 + $0x148] sm:$0x7]
      %v295 = vld [vmem:[%s252 + $0x150] sm:$0xff]
      %v296 = vld [vmem:[%s252 + $0x158] sm:$0xff]
      %v297 = vld [vmem:[%s252 + $0x160] sm:$0x7]
      %v298 = vld [vmem:[%s252 + $0x168] sm:$0xff]
      %v299 = vld [vmem:[%s252 + $0x170] sm:$0xff]
      %v300 = vld [vmem:[%s252 + $0x178] sm:$0x7]
      %v301 = vmul.f32 %v253, 0.75
      %v302 = vmul.f32 %v254, 0.75
      %v303 = vmul.f32 %v255, 0.75
      %v304 = vmul.f32 %v256, 0.75
      %v305 = vmul.f32 %v257, 0.75
      %v306 = vmul.f32 %v258, 0.75
      %v307 = vmul.f32 %v259, 0.75
      %v308 = vmul.f32 %v260, 0.75
      %v309 = vmul.f32 %v261, 0.75
      %v310 = vmul.f32 %v262, 0.75
      %v311 = vmul.f32 %v263, 0.75
      %v312 = vmul.f32 %v264, 0.75
      %v313 = vmul.f32 %v265, 0.75
      %v314 = vmul.f32 %v266, 0.75
      %v315 = vmul.f32 %v267, 0.75
      %v316 = vmul.f32 %v268, 0.75
      %v317 = vmul.f32 %v269, 0.75
      %v318 = vmul.f32 %v270, 0.75
      %v319 = vmul.f32 %v271, 0.75
      %v320 = vmul.f32 %v272, 0.75
      %v321 = vmul.f32 %v273, 0.75
      %v322 = vmul.f32 %v274, 0.75
      %v323 = vmul.f32 %v275, 0.75
      %v324 = vmul.f32 %v276, 0.75
      %v325 = vmul.f32 %v277, 0.75
      %v326 = vmul.f32 %v278, 0.75
      %v327 = vmul.f32 %v279, 0.75
      %v328 = vmul.f32 %v280, 0.75
      %v329 = vmul.f32 %v281, 0.75
      %v330 = vmul.f32 %v282, 0.75
      %v331 = vmul.f32 %v283, 0.75
      %v332 = vmul.f32 %v284, 0.75
      %v333 = vmul.f32 %v285, 0.75
      %v334 = vmul.f32 %v286, 0.75
      %v335 = vmul.f32 %v287, 0.75
      %v336 = vmul.f32 %v288, 0.75
      %v337 = vmul.f32 %v289, 0.75
      %v338 = vmul.f32 %v290, 0.75
      %v339 = vmul.f32 %v291, 0.75
      %v340 = vmul.f32 %v292, 0.75
      %v341 = vmul.f32 %v293, 0.75
      %v342 = vmul.f32 %v294, 0.75
      %v343 = vmul.f32 %v295, 0.75
      %v344 = vmul.f32 %v296, 0.75
      %v345 = vmul.f32 %v297, 0.75
      %v346 = vmul.f32 %v298, 0.75
      %v347 = vmul.f32 %v299, 0.75
      %v348 = vmul.f32 %v300, 0.75
      %v349 = vadd.f32 %v204, %v301
      %v350 = vadd.f32 %v205, %v302
      %v351 = vadd.f32 %v206, %v303
      %v352 = vadd.f32 %v207, %v304
      %v353 = vadd.f32 %v208, %v305
      %v354 = vadd.f32 %v209, %v306
      %v355 = vadd.f32 %v210, %v307
      %v356 = vadd.f32 %v211, %v308
      %v357 = vadd.f32 %v212, %v309
      %v358 = vadd.f32 %v213, %v310
      %v359 = vadd.f32 %v214, %v311
      %v360 = vadd.f32 %v215, %v312
      %v361 = vadd.f32 %v216, %v313
      %v362 = vadd.f32 %v217, %v314
      %v363 = vadd.f32 %v218, %v315
      %v364 = vadd.f32 %v219, %v316
      %v365 = vadd.f32 %v220, %v317
      %v366 = vadd.f32 %v221, %v318
      %v367 = vadd.f32 %v222, %v319
      %v368 = vadd.f32 %v223, %v320
      %v369 = vadd.f32 %v224, %v321
      %v370 = vadd.f32 %v225, %v322
      %v371 = vadd.f32 %v226, %v323
      %v372 = vadd.f32 %v227, %v324
      %v373 = vadd.f32 %v228, %v325
      %v374 = vadd.f32 %v229, %v326
      %v375 = vadd.f32 %v230, %v327
      %v376 = vadd.f32 %v231, %v328
      %v377 = vadd.f32 %v232, %v329
      %v378 = vadd.f32 %v233, %v330
      %v379 = vadd.f32 %v234, %v331
      %v380 = vadd.f32 %v235, %v332
      %v381 = vadd.f32 %v236, %v333
      %v382 = vadd.f32 %v237, %v334
      %v383 = vadd.f32 %v238, %v335
      %v384 = vadd.f32 %v239, %v336
      %v385 = vadd.f32 %v240, %v337
      %v386 = vadd.f32 %v241, %v338
      %v387 = vadd.f32 %v242, %v339
      %v388 = vadd.f32 %v243, %v340
      %v389 = vadd.f32 %v244, %v341
      %v390 = vadd.f32 %v245, %v342
      %v391 = vadd.f32 %v246, %v343
      %v392 = vadd.f32 %v247, %v344
      %v393 = vadd.f32 %v248, %v345
      %v394 = vadd.f32 %v249, %v346
      %v395 = vadd.f32 %v250, %v347
      %v396 = vadd.f32 %v251, %v348
      %s397 = scalar_lea.vmem %s144, 48
      %v398 = vld [vmem:[%s397] sm:$0xff]
      %v399 = vld [vmem:[%s397 + $0x8] sm:$0xff]
      %v400 = vld [vmem:[%s397 + $0x10] sm:$0x7]
      %v401 = vld [vmem:[%s397 + $0x18] sm:$0xff]
      %v402 = vld [vmem:[%s397 + $0x20] sm:$0xff]
      %v403 = vld [vmem:[%s397 + $0x28] sm:$0x7]
      %v404 = vld [vmem:[%s397 + $0x30] sm:$0xff]
      %v405 = vld [vmem:[%s397 + $0x38] sm:$0xff]
      %v406 = vld [vmem:[%s397 + $0x40] sm:$0x7]
      %v407 = vld [vmem:[%s397 + $0x48] sm:$0xff]
      %v408 = vld [vmem:[%s397 + $0x50] sm:$0xff]
      %v409 = vld [vmem:[%s397 + $0x58] sm:$0x7]
      %v410 = vld [vmem:[%s397 + $0x60] sm:$0xff]
      %v411 = vld [vmem:[%s397 + $0x68] sm:$0xff]
      %v412 = vld [vmem:[%s397 + $0x70] sm:$0x7]
      %v413 = vld [vmem:[%s397 + $0x78] sm:$0xff]
      %v414 = vld [vmem:[%s397 + $0x80] sm:$0xff]
      %v415 = vld [vmem:[%s397 + $0x88] sm:$0x7]
      %v416 = vld [vmem:[%s397 + $0x90] sm:$0xff]
      %v417 = vld [vmem:[%s397 + $0x98] sm:$0xff]
      %v418 = vld [vmem:[%s397 + $0xa0] sm:$0x7]
      %v419 = vld [vmem:[%s397 + $0xa8] sm:$0xff]
      %v420 = vld [vmem:[%s397 + $0xb0] sm:$0xff]
      %v421 = vld [vmem:[%s397 + $0xb8] sm:$0x7]
      %v422 = vld [vmem:[%s397 + $0xc0] sm:$0xff]
      %v423 = vld [vmem:[%s397 + $0xc8] sm:$0xff]
      %v424 = vld [vmem:[%s397 + $0xd0] sm:$0x7]
      %v425 = vld [vmem:[%s397 + $0xd8] sm:$0xff]
      %v426 = vld [vmem:[%s397 + $0xe0] sm:$0xff]
      %v427 = vld [vmem:[%s397 + $0xe8] sm:$0x7]
      %v428 = vld [vmem:[%s397 + $0xf0] sm:$0xff]
      %v429 = vld [vmem:[%s397 + $0xf8] sm:$0xff]
      %v430 = vld [vmem:[%s397 + $0x100] sm:$0x7]
      %v431 = vld [vmem:[%s397 + $0x108] sm:$0xff]
      %v432 = vld [vmem:[%s397 + $0x110] sm:$0xff]
      %v433 = vld [vmem:[%s397 + $0x118] sm:$0x7]
      %v434 = vld [vmem:[%s397 + $0x120] sm:$0xff]
      %v435 = vld [vmem:[%s397 + $0x128] sm:$0xff]
      %v436 = vld [vmem:[%s397 + $0x130] sm:$0x7]
      %v437 = vld [vmem:[%s397 + $0x138] sm:$0xff]
      %v438 = vld [vmem:[%s397 + $0x140] sm:$0xff]
      %v439 = vld [vmem:[%s397 + $0x148] sm:$0x7]
      %v440 = vld [vmem:[%s397 + $0x150] sm:$0xff]
      %v441 = vld [vmem:[%s397 + $0x158] sm:$0xff]
      %v442 = vld [vmem:[%s397 + $0x160] sm:$0x7]
      %v443 = vld [vmem:[%s397 + $0x168] sm:$0xff]
      %v444 = vld [vmem:[%s397 + $0x170] sm:$0xff]
      %v445 = vld [vmem:[%s397 + $0x178] sm:$0x7]
      %v446 = vmul.f32 %v398, 0.75
      %v447 = vmul.f32 %v399, 0.75
      %v448 = vmul.f32 %v400, 0.75
      %v449 = vmul.f32 %v401, 0.75
      %v450 = vmul.f32 %v402, 0.75
      %v451 = vmul.f32 %v403, 0.75
      %v452 = vmul.f32 %v404, 0.75
      %v453 = vmul.f32 %v405, 0.75
      %v454 = vmul.f32 %v406, 0.75
      %v455 = vmul.f32 %v407, 0.75
      %v456 = vmul.f32 %v408, 0.75
      %v457 = vmul.f32 %v409, 0.75
      %v458 = vmul.f32 %v410, 0.75
      %v459 = vmul.f32 %v411, 0.75
      %v460 = vmul.f32 %v412, 0.75
      %v461 = vmul.f32 %v413, 0.75
      %v462 = vmul.f32 %v414, 0.75
      %v463 = vmul.f32 %v415, 0.75
      %v464 = vmul.f32 %v416, 0.75
      %v465 = vmul.f32 %v417, 0.75
      %v466 = vmul.f32 %v418, 0.75
      %v467 = vmul.f32 %v419, 0.75
      %v468 = vmul.f32 %v420, 0.75
      %v469 = vmul.f32 %v421, 0.75
      %v470 = vmul.f32 %v422, 0.75
      %v471 = vmul.f32 %v423, 0.75
      %v472 = vmul.f32 %v424, 0.75
      %v473 = vmul.f32 %v425, 0.75
      %v474 = vmul.f32 %v426, 0.75
      %v475 = vmul.f32 %v427, 0.75
      %v476 = vmul.f32 %v428, 0.75
      %v477 = vmul.f32 %v429, 0.75
      %v478 = vmul.f32 %v430, 0.75
      %v479 = vmul.f32 %v431, 0.75
      %v480 = vmul.f32 %v432, 0.75
      %v481 = vmul.f32 %v433, 0.75
      %v482 = vmul.f32 %v434, 0.75
      %v483 = vmul.f32 %v435, 0.75
      %v484 = vmul.f32 %v436, 0.75
      %v485 = vmul.f32 %v437, 0.75
      %v486 = vmul.f32 %v438, 0.75
      %v487 = vmul.f32 %v439, 0.75
      %v488 = vmul.f32 %v440, 0.75
      %v489 = vmul.f32 %v441, 0.75
      %v490 = vmul.f32 %v442, 0.75
      %v491 = vmul.f32 %v443, 0.75
      %v492 = vmul.f32 %v444, 0.75
      %v493 = vmul.f32 %v445, 0.75
      %v494 = vadd.f32 %v349, %v446
      %v495 = vadd.f32 %v350, %v447
      %v496 = vadd.f32 %v351, %v448
      %v497 = vadd.f32 %v352, %v449
      %v498 = vadd.f32 %v353, %v450
      %v499 = vadd.f32 %v354, %v451
      %v500 = vadd.f32 %v355, %v452
      %v501 = vadd.f32 %v356, %v453
      %v502 = vadd.f32 %v357, %v454
      %v503 = vadd.f32 %v358, %v455
      %v504 = vadd.f32 %v359, %v456
      %v505 = vadd.f32 %v360, %v457
      %v506 = vadd.f32 %v361, %v458
      %v507 = vadd.f32 %v362, %v459
      %v508 = vadd.f32 %v363, %v460
      %v509 = vadd.f32 %v364, %v461
      %v510 = vadd.f32 %v365, %v462
      %v511 = vadd.f32 %v366, %v463
      %v512 = vadd.f32 %v367, %v464
      %v513 = vadd.f32 %v368, %v465
      %v514 = vadd.f32 %v369, %v466
      %v515 = vadd.f32 %v370, %v467
      %v516 = vadd.f32 %v371, %v468
      %v517 = vadd.f32 %v372, %v469
      %v518 = vadd.f32 %v373, %v470
      %v519 = vadd.f32 %v374, %v471
      %v520 = vadd.f32 %v375, %v472
      %v521 = vadd.f32 %v376, %v473
      %v522 = vadd.f32 %v377, %v474
      %v523 = vadd.f32 %v378, %v475
      %v524 = vadd.f32 %v379, %v476
      %v525 = vadd.f32 %v380, %v477
      %v526 = vadd.f32 %v381, %v478
      %v527 = vadd.f32 %v382, %v479
      %v528 = vadd.f32 %v383, %v480
      %v529 = vadd.f32 %v384, %v481
      %v530 = vadd.f32 %v385, %v482
      %v531 = vadd.f32 %v386, %v483
      %v532 = vadd.f32 %v387, %v484
      %v533 = vadd.f32 %v388, %v485
      %v534 = vadd.f32 %v389, %v486
      %v535 = vadd.f32 %v390, %v487
      %v536 = vadd.f32 %v391, %v488
      %v537 = vadd.f32 %v392, %v489
      %v538 = vadd.f32 %v393, %v490
      %v539 = vadd.f32 %v394, %v491
      %v540 = vadd.f32 %v395, %v492
      %v541 = vadd.f32 %v396, %v493
      %s542 = scalar_lea.vmem %s144, 72
      %v543 = vld [vmem:[%s542] sm:$0xff]
      %v544 = vld [vmem:[%s542 + $0x8] sm:$0xff]
      %v545 = vld [vmem:[%s542 + $0x10] sm:$0x7]
      %v546 = vld [vmem:[%s542 + $0x18] sm:$0xff]
      %v547 = vld [vmem:[%s542 + $0x20] sm:$0xff]
      %v548 = vld [vmem:[%s542 + $0x28] sm:$0x7]
      %v549 = vld [vmem:[%s542 + $0x30] sm:$0xff]
      %v550 = vld [vmem:[%s542 + $0x38] sm:$0xff]
      %v551 = vld [vmem:[%s542 + $0x40] sm:$0x7]
      %v552 = vld [vmem:[%s542 + $0x48] sm:$0xff]
      %v553 = vld [vmem:[%s542 + $0x50] sm:$0xff]
      %v554 = vld [vmem:[%s542 + $0x58] sm:$0x7]
      %v555 = vld [vmem:[%s542 + $0x60] sm:$0xff]
      %v556 = vld [vmem:[%s542 + $0x68] sm:$0xff]
      %v557 = vld [vmem:[%s542 + $0x70] sm:$0x7]
      %v558 = vld [vmem:[%s542 + $0x78] sm:$0xff]
      %v559 = vld [vmem:[%s542 + $0x80] sm:$0xff]
      %v560 = vld [vmem:[%s542 + $0x88] sm:$0x7]
      %v561 = vld [vmem:[%s542 + $0x90] sm:$0xff]
      %v562 = vld [vmem:[%s542 + $0x98] sm:$0xff]
      %v563 = vld [vmem:[%s542 + $0xa0] sm:$0x7]
      %v564 = vld [vmem:[%s542 + $0xa8] sm:$0xff]
      %v565 = vld [vmem:[%s542 + $0xb0] sm:$0xff]
      %v566 = vld [vmem:[%s542 + $0xb8] sm:$0x7]
      %v567 = vld [vmem:[%s542 + $0xc0] sm:$0xff]
      %v568 = vld [vmem:[%s542 + $0xc8] sm:$0xff]
      %v569 = vld [vmem:[%s542 + $0xd0] sm:$0x7]
      %v570 = vld [vmem:[%s542 + $0xd8] sm:$0xff]
      %v571 = vld [vmem:[%s542 + $0xe0] sm:$0xff]
      %v572 = vld [vmem:[%s542 + $0xe8] sm:$0x7]
      %v573 = vld [vmem:[%s542 + $0xf0] sm:$0xff]
      %v574 = vld [vmem:[%s542 + $0xf8] sm:$0xff]
      %v575 = vld [vmem:[%s542 + $0x100] sm:$0x7]
      %v576 = vld [vmem:[%s542 + $0x108] sm:$0xff]
      %v577 = vld [vmem:[%s542 + $0x110] sm:$0xff]
      %v578 = vld [vmem:[%s542 + $0x118] sm:$0x7]
      %v579 = vld [vmem:[%s542 + $0x120] sm:$0xff]
      %v580 = vld [vmem:[%s542 + $0x128] sm:$0xff]
      %v581 = vld [vmem:[%s542 + $0x130] sm:$0x7]
      %v582 = vld [vmem:[%s542 + $0x138] sm:$0xff]
      %v583 = vld [vmem:[%s542 + $0x140] sm:$0xff]
      %v584 = vld [vmem:[%s542 + $0x148] sm:$0x7]
      %v585 = vld [vmem:[%s542 + $0x150] sm:$0xff]
      %v586 = vld [vmem:[%s542 + $0x158] sm:$0xff]
      %v587 = vld [vmem:[%s542 + $0x160] sm:$0x7]
      %v588 = vld [vmem:[%s542 + $0x168] sm:$0xff]
      %v589 = vld [vmem:[%s542 + $0x170] sm:$0xff]
      %v590 = vld [vmem:[%s542 + $0x178] sm:$0x7]
      %v591 = vmul.f32 %v543, 0.25
      %v592 = vmul.f32 %v544, 0.25
      %v593 = vmul.f32 %v545, 0.25
      %v594 = vmul.f32 %v546, 0.25
      %v595 = vmul.f32 %v547, 0.25
      %v596 = vmul.f32 %v548, 0.25
      %v597 = vmul.f32 %v549, 0.25
      %v598 = vmul.f32 %v550, 0.25
      %v599 = vmul.f32 %v551, 0.25
      %v600 = vmul.f32 %v552, 0.25
      %v601 = vmul.f32 %v553, 0.25
      %v602 = vmul.f32 %v554, 0.25
      %v603 = vmul.f32 %v555, 0.25
      %v604 = vmul.f32 %v556, 0.25
      %v605 = vmul.f32 %v557, 0.25
      %v606 = vmul.f32 %v558, 0.25
      %v607 = vmul.f32 %v559, 0.25
      %v608 = vmul.f32 %v560, 0.25
      %v609 = vmul.f32 %v561, 0.25
      %v610 = vmul.f32 %v562, 0.25
      %v611 = vmul.f32 %v563, 0.25
      %v612 = vmul.f32 %v564, 0.25
      %v613 = vmul.f32 %v565, 0.25
      %v614 = vmul.f32 %v566, 0.25
      %v615 = vmul.f32 %v567, 0.25
      %v616 = vmul.f32 %v568, 0.25
      %v617 = vmul.f32 %v569, 0.25
      %v618 = vmul.f32 %v570, 0.25
      %v619 = vmul.f32 %v571, 0.25
      %v620 = vmul.f32 %v572, 0.25
      %v621 = vmul.f32 %v573, 0.25
      %v622 = vmul.f32 %v574, 0.25
      %v623 = vmul.f32 %v575, 0.25
      %v624 = vmul.f32 %v576, 0.25
      %v625 = vmul.f32 %v577, 0.25
      %v626 = vmul.f32 %v578, 0.25
      %v627 = vmul.f32 %v579, 0.25
      %v628 = vmul.f32 %v580, 0.25
      %v629 = vmul.f32 %v581, 0.25
      %v630 = vmul.f32 %v582, 0.25
      %v631 = vmul.f32 %v583, 0.25
      %v632 = vmul.f32 %v584, 0.25
      %v633 = vmul.f32 %v585, 0.25
      %v634 = vmul.f32 %v586, 0.25
      %v635 = vmul.f32 %v587, 0.25
      %v636 = vmul.f32 %v588, 0.25
      %v637 = vmul.f32 %v589, 0.25
      %v638 = vmul.f32 %v590, 0.25
      %v639 = vadd.f32 %v494, %v591
      %v640 = vadd.f32 %v495, %v592
      %v641 = vadd.f32 %v496, %v593
      %v642 = vadd.f32 %v497, %v594
      %v643 = vadd.f32 %v498, %v595
      %v644 = vadd.f32 %v499, %v596
      %v645 = vadd.f32 %v500, %v597
      %v646 = vadd.f32 %v501, %v598
      %v647 = vadd.f32 %v502, %v599
      %v648 = vadd.f32 %v503, %v600
      %v649 = vadd.f32 %v504, %v601
      %v650 = vadd.f32 %v505, %v602
      %v651 = vadd.f32 %v506, %v603
      %v652 = vadd.f32 %v507, %v604
      %v653 = vadd.f32 %v508, %v605
      %v654 = vadd.f32 %v509, %v606
      %v655 = vadd.f32 %v510, %v607
      %v656 = vadd.f32 %v511, %v608
      %v657 = vadd.f32 %v512, %v609
      %v658 = vadd.f32 %v513, %v610
      %v659 = vadd.f32 %v514, %v611
      %v660 = vadd.f32 %v515, %v612
      %v661 = vadd.f32 %v516, %v613
      %v662 = vadd.f32 %v517, %v614
      %v663 = vadd.f32 %v518, %v615
      %v664 = vadd.f32 %v519, %v616
      %v665 = vadd.f32 %v520, %v617
      %v666 = vadd.f32 %v521, %v618
      %v667 = vadd.f32 %v522, %v619
      %v668 = vadd.f32 %v523, %v620
      %v669 = vadd.f32 %v524, %v621
      %v670 = vadd.f32 %v525, %v622
      %v671 = vadd.f32 %v526, %v623
      %v672 = vadd.f32 %v527, %v624
      %v673 = vadd.f32 %v528, %v625
      %v674 = vadd.f32 %v529, %v626
      %v675 = vadd.f32 %v530, %v627
      %v676 = vadd.f32 %v531, %v628
      %v677 = vadd.f32 %v532, %v629
      %v678 = vadd.f32 %v533, %v630
      %v679 = vadd.f32 %v534, %v631
      %v680 = vadd.f32 %v535, %v632
      %v681 = vadd.f32 %v536, %v633
      %v682 = vadd.f32 %v537, %v634
      %v683 = vadd.f32 %v538, %v635
      %v684 = vadd.f32 %v539, %v636
      %v685 = vadd.f32 %v540, %v637
      %v686 = vadd.f32 %v541, %v638
      %vm687 = vcmask 23552
      %688 = vst.msk [vmem:[#allocation2] sm:$0xff] %vm687, %v639
      %689 = vst.msk [vmem:[#allocation2 + $0x8] sm:$0xff] %vm687, %v640
      %vm690 = vcmask 18432
      %691 = vst.msk [vmem:[#allocation2 + $0x10] sm:$0x7] %vm690, %v641
      %692 = vst.msk [vmem:[#allocation2 + $0x18] sm:$0xff] %vm687, %v642
      %693 = vst.msk [vmem:[#allocation2 + $0x20] sm:$0xff] %vm687, %v643
      %694 = vst.msk [vmem:[#allocation2 + $0x28] sm:$0x7] %vm690, %v644
      %695 = vst.msk [vmem:[#allocation2 + $0x30] sm:$0xff] %vm687, %v645
      %696 = vst.msk [vmem:[#allocation2 + $0x38] sm:$0xff] %vm687, %v646
      %697 = vst.msk [vmem:[#allocation2 + $0x40] sm:$0x7] %vm690, %v647
      %698 = vst.msk [vmem:[#allocation2 + $0x48] sm:$0xff] %vm687, %v648
      %699 = vst.msk [vmem:[#allocation2 + $0x50] sm:$0xff] %vm687, %v649
      %700 = vst.msk [vmem:[#allocation2 + $0x58] sm:$0x7] %vm690, %v650
      %701 = vst.msk [vmem:[#allocation2 + $0x60] sm:$0xff] %vm687, %v651
      %702 = vst.msk [vmem:[#allocation2 + $0x68] sm:$0xff] %vm687, %v652
      %703 = vst.msk [vmem:[#allocation2 + $0x70] sm:$0x7] %vm690, %v653
      %704 = vst.msk [vmem:[#allocation2 + $0x78] sm:$0xff] %vm687, %v654
      %705 = vst.msk [vmem:[#allocation2 + $0x80] sm:$0xff] %vm687, %v655
      %706 = vst.msk [vmem:[#allocation2 + $0x88] sm:$0x7] %vm690, %v656
      %707 = vst.msk [vmem:[#allocation2 + $0x90] sm:$0xff] %vm687, %v657
      %708 = vst.msk [vmem:[#allocation2 + $0x98] sm:$0xff] %vm687, %v658
      %709 = vst.msk [vmem:[#allocation2 + $0xa0] sm:$0x7] %vm690, %v659
      %710 = vst.msk [vmem:[#allocation2 + $0xa8] sm:$0xff] %vm687, %v660
      %711 = vst.msk [vmem:[#allocation2 + $0xb0] sm:$0xff] %vm687, %v661
      %712 = vst.msk [vmem:[#allocation2 + $0xb8] sm:$0x7] %vm690, %v662
      %713 = vst.msk [vmem:[#allocation2 + $0xc0] sm:$0xff] %vm687, %v663
      %714 = vst.msk [vmem:[#allocation2 + $0xc8] sm:$0xff] %vm687, %v664
      %715 = vst.msk [vmem:[#allocation2 + $0xd0] sm:$0x7] %vm690, %v665
      %716 = vst.msk [vmem:[#allocation2 + $0xd8] sm:$0xff] %vm687, %v666
      %717 = vst.msk [vmem:[#allocation2 + $0xe0] sm:$0xff] %vm687, %v667
      %718 = vst.msk [vmem:[#allocation2 + $0xe8] sm:$0x7] %vm690, %v668
      %719 = vst.msk [vmem:[#allocation2 + $0xf0] sm:$0xff] %vm687, %v669
      %720 = vst.msk [vmem:[#allocation2 + $0xf8] sm:$0xff] %vm687, %v670
      %721 = vst.msk [vmem:[#allocation2 + $0x100] sm:$0x7] %vm690, %v671
      %722 = vst.msk [vmem:[#allocation2 + $0x108] sm:$0xff] %vm687, %v672
      %723 = vst.msk [vmem:[#allocation2 + $0x110] sm:$0xff] %vm687, %v673
      %724 = vst.msk [vmem:[#allocation2 + $0x118] sm:$0x7] %vm690, %v674
      %725 = vst.msk [vmem:[#allocation2 + $0x120] sm:$0xff] %vm687, %v675
      %726 = vst.msk [vmem:[#allocation2 + $0x128] sm:$0xff] %vm687, %v676
      %727 = vst.msk [vmem:[#allocation2 + $0x130] sm:$0x7] %vm690, %v677
      %728 = vst.msk [vmem:[#allocation2 + $0x138] sm:$0xff] %vm687, %v678
      %729 = vst.msk [vmem:[#allocation2 + $0x140] sm:$0xff] %vm687, %v679
      %730 = vst.msk [vmem:[#allocation2 + $0x148] sm:$0x7] %vm690, %v680
      %731 = vst.msk [vmem:[#allocation2 + $0x150] sm:$0xff] %vm687, %v681
      %732 = vst.msk [vmem:[#allocation2 + $0x158] sm:$0xff] %vm687, %v682
      %733 = vst.msk [vmem:[#allocation2 + $0x160] sm:$0x7] %vm690, %v683
      %734 = vst.msk [vmem:[#allocation2 + $0x168] sm:$0xff] %vm687, %v684
      %735 = vst.msk [vmem:[#allocation2 + $0x170] sm:$0xff] %vm687, %v685
      %736 = vst.msk [vmem:[#allocation2 + $0x178] sm:$0x7] %vm690, %v686
      %v737 = vld [vmem:[#allocation2] sm:$0xff]
      %v738 = vld [vmem:[#allocation2 + $0x8] sm:$0xff]
      %v739 = vld [vmem:[#allocation2 + $0x18] sm:$0xff]
      %v740 = vld [vmem:[#allocation2 + $0x20] sm:$0xff]
      %v741 = vld [vmem:[#allocation2 + $0x30] sm:$0xff]
      %v742 = vld [vmem:[#allocation2 + $0x38] sm:$0xff]
      %v743 = vld [vmem:[#allocation2 + $0x48] sm:$0xff]
      %v744 = vld [vmem:[#allocation2 + $0x50] sm:$0xff]
      %v745 = vld [vmem:[#allocation2 + $0x60] sm:$0xff]
      %v746 = vld [vmem:[#allocation2 + $0x68] sm:$0xff]
      %v747 = vld [vmem:[#allocation2 + $0x78] sm:$0xff]
      %v748 = vld [vmem:[#allocation2 + $0x80] sm:$0xff]
      %v749 = vld [vmem:[#allocation2 + $0x90] sm:$0xff]
      %v750 = vld [vmem:[#allocation2 + $0x98] sm:$0xff]
      %v751 = vld [vmem:[#allocation2 + $0xa8] sm:$0xff]
      %v752 = vld [vmem:[#allocation2 + $0xb0] sm:$0xff]
      %v753 = vld [vmem:[#allocation2 + $0xc0] sm:$0xff]
      %v754 = vld [vmem:[#allocation2 + $0xc8] sm:$0xff]
      %v755 = vld [vmem:[#allocation2 + $0xd8] sm:$0xff]
      %v756 = vld [vmem:[#allocation2 + $0xe0] sm:$0xff]
      %v757 = vld [vmem:[#allocation2 + $0xf0] sm:$0xff]
      %v758 = vld [vmem:[#allocation2 + $0xf8] sm:$0xff]
      %v759 = vld [vmem:[#allocation2 + $0x108] sm:$0xff]
      %v760 = vld [vmem:[#allocation2 + $0x110] sm:$0xff]
      %v761 = vld [vmem:[#allocation2 + $0x120] sm:$0xff]
      %v762 = vld [vmem:[#allocation2 + $0x128] sm:$0xff]
      %v763 = vld [vmem:[#allocation2 + $0x138] sm:$0xff]
      %v764 = vld [vmem:[#allocation2 + $0x140] sm:$0xff]
      %v765 = vld [vmem:[#allocation2 + $0x150] sm:$0xff]
      %v766 = vld [vmem:[#allocation2 + $0x158] sm:$0xff]
      %v767 = vld [vmem:[#allocation2 + $0x168] sm:$0xff]
      %v768 = vld [vmem:[#allocation2 + $0x170] sm:$0xff]
      %v769 = vmul.f32 %v737, 0.25
      %v770 = vmul.f32 %v738, 0.25
      %v771 = vmul.f32 %v739, 0.25
      %v772 = vmul.f32 %v740, 0.25
      %v773 = vmul.f32 %v741, 0.25
      %v774 = vmul.f32 %v742, 0.25
      %v775 = vmul.f32 %v743, 0.25
      %v776 = vmul.f32 %v744, 0.25
      %v777 = vmul.f32 %v745, 0.25
      %v778 = vmul.f32 %v746, 0.25
      %v779 = vmul.f32 %v747, 0.25
      %v780 = vmul.f32 %v748, 0.25
      %v781 = vmul.f32 %v749, 0.25
      %v782 = vmul.f32 %v750, 0.25
      %v783 = vmul.f32 %v751, 0.25
      %v784 = vmul.f32 %v752, 0.25
      %v785 = vmul.f32 %v753, 0.25
      %v786 = vmul.f32 %v754, 0.25
      %v787 = vmul.f32 %v755, 0.25
      %v788 = vmul.f32 %v756, 0.25
      %v789 = vmul.f32 %v757, 0.25
      %v790 = vmul.f32 %v758, 0.25
      %v791 = vmul.f32 %v759, 0.25
      %v792 = vmul.f32 %v760, 0.25
      %v793 = vmul.f32 %v761, 0.25
      %v794 = vmul.f32 %v762, 0.25
      %v795 = vmul.f32 %v763, 0.25
      %v796 = vmul.f32 %v764, 0.25
      %v797 = vmul.f32 %v765, 0.25
      %v798 = vmul.f32 %v766, 0.25
      %v799 = vmul.f32 %v767, 0.25
      %v800 = vmul.f32 %v768, 0.25
      %v801 = vld [vmem:[#allocation2 + $0x1] sm:$0xff]
      %v802 = vld [vmem:[#allocation2 + $0x9] sm:$0xff]
      %v803 = vld [vmem:[#allocation2 + $0x19] sm:$0xff]
      %v804 = vld [vmem:[#allocation2 + $0x21] sm:$0xff]
      %v805 = vld [vmem:[#allocation2 + $0x31] sm:$0xff]
      %v806 = vld [vmem:[#allocation2 + $0x39] sm:$0xff]
      %v807 = vld [vmem:[#allocation2 + $0x49] sm:$0xff]
      %v808 = vld [vmem:[#allocation2 + $0x51] sm:$0xff]
      %v809 = vld [vmem:[#allocation2 + $0x61] sm:$0xff]
      %v810 = vld [vmem:[#allocation2 + $0x69] sm:$0xff]
      %v811 = vld [vmem:[#allocation2 + $0x79] sm:$0xff]
      %v812 = vld [vmem:[#allocation2 + $0x81] sm:$0xff]
      %v813 = vld [vmem:[#allocation2 + $0x91] sm:$0xff]
      %v814 = vld [vmem:[#allocation2 + $0x99] sm:$0xff]
      %v815 = vld [vmem:[#allocation2 + $0xa9] sm:$0xff]
      %v816 = vld [vmem:[#allocation2 + $0xb1] sm:$0xff]
      %v817 = vld [vmem:[#allocation2 + $0xc1] sm:$0xff]
      %v818 = vld [vmem:[#allocation2 + $0xc9] sm:$0xff]
      %v819 = vld [vmem:[#allocation2 + $0xd9] sm:$0xff]
      %v820 = vld [vmem:[#allocation2 + $0xe1] sm:$0xff]
      %v821 = vld [vmem:[#allocation2 + $0xf1] sm:$0xff]
      %v822 = vld [vmem:[#allocation2 + $0xf9] sm:$0xff]
      %v823 = vld [vmem:[#allocation2 + $0x109] sm:$0xff]
      %v824 = vld [vmem:[#allocation2 + $0x111] sm:$0xff]
      %v825 = vld [vmem:[#allocation2 + $0x121] sm:$0xff]
      %v826 = vld [vmem:[#allocation2 + $0x129] sm:$0xff]
      %v827 = vld [vmem:[#allocation2 + $0x139] sm:$0xff]
      %v828 = vld [vmem:[#allocation2 + $0x141] sm:$0xff]
      %v829 = vld [vmem:[#allocation2 + $0x151] sm:$0xff]
      %v830 = vld [vmem:[#allocation2 + $0x159] sm:$0xff]
      %v831 = vld [vmem:[#allocation2 + $0x169] sm:$0xff]
      %v832 = vld [vmem:[#allocation2 + $0x171] sm:$0xff]
      %v833 = vmul.f32 %v801, 0.75
      %v834 = vmul.f32 %v802, 0.75
      %v835 = vmul.f32 %v803, 0.75
      %v836 = vmul.f32 %v804, 0.75
      %v837 = vmul.f32 %v805, 0.75
      %v838 = vmul.f32 %v806, 0.75
      %v839 = vmul.f32 %v807, 0.75
      %v840 = vmul.f32 %v808, 0.75
      %v841 = vmul.f32 %v809, 0.75
      %v842 = vmul.f32 %v810, 0.75
      %v843 = vmul.f32 %v811, 0.75
      %v844 = vmul.f32 %v812, 0.75
      %v845 = vmul.f32 %v813, 0.75
      %v846 = vmul.f32 %v814, 0.75
      %v847 = vmul.f32 %v815, 0.75
      %v848 = vmul.f32 %v816, 0.75
      %v849 = vmul.f32 %v817, 0.75
      %v850 = vmul.f32 %v818, 0.75
      %v851 = vmul.f32 %v819, 0.75
      %v852 = vmul.f32 %v820, 0.75
      %v853 = vmul.f32 %v821, 0.75
      %v854 = vmul.f32 %v822, 0.75
      %v855 = vmul.f32 %v823, 0.75
      %v856 = vmul.f32 %v824, 0.75
      %v857 = vmul.f32 %v825, 0.75
      %v858 = vmul.f32 %v826, 0.75
      %v859 = vmul.f32 %v827, 0.75
      %v860 = vmul.f32 %v828, 0.75
      %v861 = vmul.f32 %v829, 0.75
      %v862 = vmul.f32 %v830, 0.75
      %v863 = vmul.f32 %v831, 0.75
      %v864 = vmul.f32 %v832, 0.75
      %v865 = vadd.f32 %v769, %v833
      %v866 = vadd.f32 %v770, %v834
      %v867 = vadd.f32 %v771, %v835
      %v868 = vadd.f32 %v772, %v836
      %v869 = vadd.f32 %v773, %v837
      %v870 = vadd.f32 %v774, %v838
      %v871 = vadd.f32 %v775, %v839
      %v872 = vadd.f32 %v776, %v840
      %v873 = vadd.f32 %v777, %v841
      %v874 = vadd.f32 %v778, %v842
      %v875 = vadd.f32 %v779, %v843
      %v876 = vadd.f32 %v780, %v844
      %v877 = vadd.f32 %v781, %v845
      %v878 = vadd.f32 %v782, %v846
      %v879 = vadd.f32 %v783, %v847
      %v880 = vadd.f32 %v784, %v848
      %v881 = vadd.f32 %v785, %v849
      %v882 = vadd.f32 %v786, %v850
      %v883 = vadd.f32 %v787, %v851
      %v884 = vadd.f32 %v788, %v852
      %v885 = vadd.f32 %v789, %v853
      %v886 = vadd.f32 %v790, %v854
      %v887 = vadd.f32 %v791, %v855
      %v888 = vadd.f32 %v792, %v856
      %v889 = vadd.f32 %v793, %v857
      %v890 = vadd.f32 %v794, %v858
      %v891 = vadd.f32 %v795, %v859
      %v892 = vadd.f32 %v796, %v860
      %v893 = vadd.f32 %v797, %v861
      %v894 = vadd.f32 %v798, %v862
      %v895 = vadd.f32 %v799, %v863
      %v896 = vadd.f32 %v800, %v864
      %v897 = vld [vmem:[#allocation2 + $0x2] sm:$0xff]
      %v898 = vld [vmem:[#allocation2 + $0xa] sm:$0xff]
      %v899 = vld [vmem:[#allocation2 + $0x1a] sm:$0xff]
      %v900 = vld [vmem:[#allocation2 + $0x22] sm:$0xff]
      %v901 = vld [vmem:[#allocation2 + $0x32] sm:$0xff]
      %v902 = vld [vmem:[#allocation2 + $0x3a] sm:$0xff]
      %v903 = vld [vmem:[#allocation2 + $0x4a] sm:$0xff]
      %v904 = vld [vmem:[#allocation2 + $0x52] sm:$0xff]
      %v905 = vld [vmem:[#allocation2 + $0x62] sm:$0xff]
      %v906 = vld [vmem:[#allocation2 + $0x6a] sm:$0xff]
      %v907 = vld [vmem:[#allocation2 + $0x7a] sm:$0xff]
      %v908 = vld [vmem:[#allocation2 + $0x82] sm:$0xff]
      %v909 = vld [vmem:[#allocation2 + $0x92] sm:$0xff]
      %v910 = vld [vmem:[#allocation2 + $0x9a] sm:$0xff]
      %v911 = vld [vmem:[#allocation2 + $0xaa] sm:$0xff]
      %v912 = vld [vmem:[#allocation2 + $0xb2] sm:$0xff]
      %v913 = vld [vmem:[#allocation2 + $0xc2] sm:$0xff]
      %v914 = vld [vmem:[#allocation2 + $0xca] sm:$0xff]
      %v915 = vld [vmem:[#allocation2 + $0xda] sm:$0xff]
      %v916 = vld [vmem:[#allocation2 + $0xe2] sm:$0xff]
      %v917 = vld [vmem:[#allocation2 + $0xf2] sm:$0xff]
      %v918 = vld [vmem:[#allocation2 + $0xfa] sm:$0xff]
      %v919 = vld [vmem:[#allocation2 + $0x10a] sm:$0xff]
      %v920 = vld [vmem:[#allocation2 + $0x112] sm:$0xff]
      %v921 = vld [vmem:[#allocation2 + $0x122] sm:$0xff]
      %v922 = vld [vmem:[#allocation2 + $0x12a] sm:$0xff]
      %v923 = vld [vmem:[#allocation2 + $0x13a] sm:$0xff]
      %v924 = vld [vmem:[#allocation2 + $0x142] sm:$0xff]
      %v925 = vld [vmem:[#allocation2 + $0x152] sm:$0xff]
      %v926 = vld [vmem:[#allocation2 + $0x15a] sm:$0xff]
      %v927 = vld [vmem:[#allocation2 + $0x16a] sm:$0xff]
      %v928 = vld [vmem:[#allocation2 + $0x172] sm:$0xff]
      %v929 = vmul.f32 %v897, 0.75
      %v930 = vmul.f32 %v898, 0.75
      %v931 = vmul.f32 %v899, 0.75
      %v932 = vmul.f32 %v900, 0.75
      %v933 = vmul.f32 %v901, 0.75
      %v934 = vmul.f32 %v902, 0.75
      %v935 = vmul.f32 %v903, 0.75
      %v936 = vmul.f32 %v904, 0.75
      %v937 = vmul.f32 %v905, 0.75
      %v938 = vmul.f32 %v906, 0.75
      %v939 = vmul.f32 %v907, 0.75
      %v940 = vmul.f32 %v908, 0.75
      %v941 = vmul.f32 %v909, 0.75
      %v942 = vmul.f32 %v910, 0.75
      %v943 = vmul.f32 %v911, 0.75
      %v944 = vmul.f32 %v912, 0.75
      %v945 = vmul.f32 %v913, 0.75
      %v946 = vmul.f32 %v914, 0.75
      %v947 = vmul.f32 %v915, 0.75
      %v948 = vmul.f32 %v916, 0.75
      %v949 = vmul.f32 %v917, 0.75
      %v950 = vmul.f32 %v918, 0.75
      %v951 = vmul.f32 %v919, 0.75
      %v952 = vmul.f32 %v920, 0.75
      %v953 = vmul.f32 %v921, 0.75
      %v954 = vmul.f32 %v922, 0.75
      %v955 = vmul.f32 %v923, 0.75
      %v956 = vmul.f32 %v924, 0.75
      %v957 = vmul.f32 %v925, 0.75
      %v958 = vmul.f32 %v926, 0.75
      %v959 = vmul.f32 %v927, 0.75
      %v960 = vmul.f32 %v928, 0.75
      %v961 = vadd.f32 %v865, %v929
      %v962 = vadd.f32 %v866, %v930
      %v963 = vadd.f32 %v867, %v931
      %v964 = vadd.f32 %v868, %v932
      %v965 = vadd.f32 %v869, %v933
      %v966 = vadd.f32 %v870, %v934
      %v967 = vadd.f32 %v871, %v935
      %v968 = vadd.f32 %v872, %v936
      %v969 = vadd.f32 %v873, %v937
      %v970 = vadd.f32 %v874, %v938
      %v971 = vadd.f32 %v875, %v939
      %v972 = vadd.f32 %v876, %v940
      %v973 = vadd.f32 %v877, %v941
      %v974 = vadd.f32 %v878, %v942
      %v975 = vadd.f32 %v879, %v943
      %v976 = vadd.f32 %v880, %v944
      %v977 = vadd.f32 %v881, %v945
      %v978 = vadd.f32 %v882, %v946
      %v979 = vadd.f32 %v883, %v947
      %v980 = vadd.f32 %v884, %v948
      %v981 = vadd.f32 %v885, %v949
      %v982 = vadd.f32 %v886, %v950
      %v983 = vadd.f32 %v887, %v951
      %v984 = vadd.f32 %v888, %v952
      %v985 = vadd.f32 %v889, %v953
      %v986 = vadd.f32 %v890, %v954
      %v987 = vadd.f32 %v891, %v955
      %v988 = vadd.f32 %v892, %v956
      %v989 = vadd.f32 %v893, %v957
      %v990 = vadd.f32 %v894, %v958
      %v991 = vadd.f32 %v895, %v959
      %v992 = vadd.f32 %v896, %v960
      %v993 = vld [vmem:[#allocation2 + $0x3] sm:$0xff]
      %v994 = vld [vmem:[#allocation2 + $0xb] sm:$0xff]
      %v995 = vld [vmem:[#allocation2 + $0x1b] sm:$0xff]
      %v996 = vld [vmem:[#allocation2 + $0x23] sm:$0xff]
      %v997 = vld [vmem:[#allocation2 + $0x33] sm:$0xff]
      %v998 = vld [vmem:[#allocation2 + $0x3b] sm:$0xff]
      %v999 = vld [vmem:[#allocation2 + $0x4b] sm:$0xff]
      %v1000 = vld [vmem:[#allocation2 + $0x53] sm:$0xff]
      %v1001 = vld [vmem:[#allocation2 + $0x63] sm:$0xff]
      %v1002 = vld [vmem:[#allocation2 + $0x6b] sm:$0xff]
      %v1003 = vld [vmem:[#allocation2 + $0x7b] sm:$0xff]
      %v1004 = vld [vmem:[#allocation2 + $0x83] sm:$0xff]
      %v1005 = vld [vmem:[#allocation2 + $0x93] sm:$0xff]
      %v1006 = vld [vmem:[#allocation2 + $0x9b] sm:$0xff]
      %v1007 = vld [vmem:[#allocation2 + $0xab] sm:$0xff]
      %v1008 = vld [vmem:[#allocation2 + $0xb3] sm:$0xff]
      %v1009 = vld [vmem:[#allocation2 + $0xc3] sm:$0xff]
      %v1010 = vld [vmem:[#allocation2 + $0xcb] sm:$0xff]
      %v1011 = vld [vmem:[#allocation2 + $0xdb] sm:$0xff]
      %v1012 = vld [vmem:[#allocation2 + $0xe3] sm:$0xff]
      %v1013 = vld [vmem:[#allocation2 + $0xf3] sm:$0xff]
      %v1014 = vld [vmem:[#allocation2 + $0xfb] sm:$0xff]
      %v1015 = vld [vmem:[#allocation2 + $0x10b] sm:$0xff]
      %v1016 = vld [vmem:[#allocation2 + $0x113] sm:$0xff]
      %v1017 = vld [vmem:[#allocation2 + $0x123] sm:$0xff]
      %v1018 = vld [vmem:[#allocation2 + $0x12b] sm:$0xff]
      %v1019 = vld [vmem:[#allocation2 + $0x13b] sm:$0xff]
      %v1020 = vld [vmem:[#allocation2 + $0x143] sm:$0xff]
      %v1021 = vld [vmem:[#allocation2 + $0x153] sm:$0xff]
      %v1022 = vld [vmem:[#allocation2 + $0x15b] sm:$0xff]
      %v1023 = vld [vmem:[#allocation2 + $0x16b] sm:$0xff]
      %v1024 = vld [vmem:[#allocation2 + $0x173] sm:$0xff]
      %v1025 = vmul.f32 %v993, 0.25
      %v1026 = vmul.f32 %v994, 0.25
      %v1027 = vmul.f32 %v995, 0.25
      %v1028 = vmul.f32 %v996, 0.25
      %v1029 = vmul.f32 %v997, 0.25
      %v1030 = vmul.f32 %v998, 0.25
      %v1031 = vmul.f32 %v999, 0.25
      %v1032 = vmul.f32 %v1000, 0.25
      %v1033 = vmul.f32 %v1001, 0.25
      %v1034 = vmul.f32 %v1002, 0.25
      %v1035 = vmul.f32 %v1003, 0.25
      %v1036 = vmul.f32 %v1004, 0.25
      %v1037 = vmul.f32 %v1005, 0.25
      %v1038 = vmul.f32 %v1006, 0.25
      %v1039 = vmul.f32 %v1007, 0.25
      %v1040 = vmul.f32 %v1008, 0.25
      %v1041 = vmul.f32 %v1009, 0.25
      %v1042 = vmul.f32 %v1010, 0.25
      %v1043 = vmul.f32 %v1011, 0.25
      %v1044 = vmul.f32 %v1012, 0.25
      %v1045 = vmul.f32 %v1013, 0.25
      %v1046 = vmul.f32 %v1014, 0.25
      %v1047 = vmul.f32 %v1015, 0.25
      %v1048 = vmul.f32 %v1016, 0.25
      %v1049 = vmul.f32 %v1017, 0.25
      %v1050 = vmul.f32 %v1018, 0.25
      %v1051 = vmul.f32 %v1019, 0.25
      %v1052 = vmul.f32 %v1020, 0.25
      %v1053 = vmul.f32 %v1021, 0.25
      %v1054 = vmul.f32 %v1022, 0.25
      %v1055 = vmul.f32 %v1023, 0.25
      %v1056 = vmul.f32 %v1024, 0.25
      %v1057 = vadd.f32 %v961, %v1025
      %v1058 = vadd.f32 %v962, %v1026
      %v1059 = vadd.f32 %v963, %v1027
      %v1060 = vadd.f32 %v964, %v1028
      %v1061 = vadd.f32 %v965, %v1029
      %v1062 = vadd.f32 %v966, %v1030
      %v1063 = vadd.f32 %v967, %v1031
      %v1064 = vadd.f32 %v968, %v1032
      %v1065 = vadd.f32 %v969, %v1033
      %v1066 = vadd.f32 %v970, %v1034
      %v1067 = vadd.f32 %v971, %v1035
      %v1068 = vadd.f32 %v972, %v1036
      %v1069 = vadd.f32 %v973, %v1037
      %v1070 = vadd.f32 %v974, %v1038
      %v1071 = vadd.f32 %v975, %v1039
      %v1072 = vadd.f32 %v976, %v1040
      %v1073 = vadd.f32 %v977, %v1041
      %v1074 = vadd.f32 %v978, %v1042
      %v1075 = vadd.f32 %v979, %v1043
      %v1076 = vadd.f32 %v980, %v1044
      %v1077 = vadd.f32 %v981, %v1045
      %v1078 = vadd.f32 %v982, %v1046
      %v1079 = vadd.f32 %v983, %v1047
      %v1080 = vadd.f32 %v984, %v1048
      %v1081 = vadd.f32 %v985, %v1049
      %v1082 = vadd.f32 %v986, %v1050
      %v1083 = vadd.f32 %v987, %v1051
      %v1084 = vadd.f32 %v988, %v1052
      %v1085 = vadd.f32 %v989, %v1053
      %v1086 = vadd.f32 %v990, %v1054
      %v1087 = vadd.f32 %v991, %v1055
      %v1088 = vadd.f32 %v992, %v1056
      %1089 = vst.msk [vmem:[%s154] sm:$0xff] %vm687, %v1057
      %1090 = vst.msk [vmem:[%s154 + $0x8] sm:$0xff] %vm687, %v1058
      %1091 = vst.msk [vmem:[%s154 + $0x10] sm:$0xff] %vm687, %v1059
      %1092 = vst.msk [vmem:[%s154 + $0x18] sm:$0xff] %vm687, %v1060
      %1093 = vst.msk [vmem:[%s154 + $0x20] sm:$0xff] %vm687, %v1061
      %1094 = vst.msk [vmem:[%s154 + $0x28] sm:$0xff] %vm687, %v1062
      %1095 = vst.msk [vmem:[%s154 + $0x30] sm:$0xff] %vm687, %v1063
      %1096 = vst.msk [vmem:[%s154 + $0x38] sm:$0xff] %vm687, %v1064
      %1097 = vst.msk [vmem:[%s154 + $0x40] sm:$0xff] %vm687, %v1065
      %1098 = vst.msk [vmem:[%s154 + $0x48] sm:$0xff] %vm687, %v1066
      %1099 = vst.msk [vmem:[%s154 + $0x50] sm:$0xff] %vm687, %v1067
      %1100 = vst.msk [vmem:[%s154 + $0x58] sm:$0xff] %vm687, %v1068
      %1101 = vst.msk [vmem:[%s154 + $0x60] sm:$0xff] %vm687, %v1069
      %1102 = vst.msk [vmem:[%s154 + $0x68] sm:$0xff] %vm687, %v1070
      %1103 = vst.msk [vmem:[%s154 + $0x70] sm:$0xff] %vm687, %v1071
      %1104 = vst.msk [vmem:[%s154 + $0x78] sm:$0xff] %vm687, %v1072
      %1105 = vst.msk [vmem:[%s154 + $0x80] sm:$0xff] %vm687, %v1073
      %1106 = vst.msk [vmem:[%s154 + $0x88] sm:$0xff] %vm687, %v1074
      %1107 = vst.msk [vmem:[%s154 + $0x90] sm:$0xff] %vm687, %v1075
      %1108 = vst.msk [vmem:[%s154 + $0x98] sm:$0xff] %vm687, %v1076
      %1109 = vst.msk [vmem:[%s154 + $0xa0] sm:$0xff] %vm687, %v1077
      %1110 = vst.msk [vmem:[%s154 + $0xa8] sm:$0xff] %vm687, %v1078
      %1111 = vst.msk [vmem:[%s154 + $0xb0] sm:$0xff] %vm687, %v1079
      %1112 = vst.msk [vmem:[%s154 + $0xb8] sm:$0xff] %vm687, %v1080
      %1113 = vst.msk [vmem:[%s154 + $0xc0] sm:$0xff] %vm687, %v1081
      %1114 = vst.msk [vmem:[%s154 + $0xc8] sm:$0xff] %vm687, %v1082
      %1115 = vst.msk [vmem:[%s154 + $0xd0] sm:$0xff] %vm687, %v1083
      %1116 = vst.msk [vmem:[%s154 + $0xd8] sm:$0xff] %vm687, %v1084
      %1117 = vst.msk [vmem:[%s154 + $0xe0] sm:$0xff] %vm687, %v1085
      %1118 = vst.msk [vmem:[%s154 + $0xe8] sm:$0xff] %vm687, %v1086
      %1119 = vst.msk [vmem:[%s154 + $0xf0] sm:$0xff] %vm687, %v1087
      %1120 = vst.msk [vmem:[%s154 + $0xf8] sm:$0xff] %vm687, %v1088
      %s1121 = smul.u32 16, %s17
      %p1122 = scmp.lt.s32.totalorder %s16, 1
      %s1123 = scalar_select %p1122, %s16, 1
      %p1124 = scmp.lt.s32.totalorder %s1121, 15
      %s1125 = scalar_select %p1124, %s1121, 15
      %s1126 = smul.addr %s1125, 2
      %s1127 = smul.addr %s1123, 32
      %s1128 = sadd.s32 %s1126, %s1127
      %s1129 = smul.addr %s1128, 8
      %s1130 = scalar_lea.vmem %s1, %s1129
      // Predicated region
      $region25: #{generator_synthesis_block.9} parent=23 // pred_check
        %p1131 = pneg %p72
      $region26: #{generator_synthesis_block.9} parent=23 // pred_check_branch
        %1133 = sbr.rel (%p1131) target = $region28
      $region27: #{generator_synthesis_block.9} parent=23 // pred_region
        %s1134 = smul.u32 16, %s17
      $region28: #{generator_synthesis_block.9} parent=23 // pred_fallthru
        _
    $region24: #{generator_synthesis_block.9} parent=5 // pred_fallthru
      _
    %p1135 = scmp.le.s32.totalorder 2, %s7
    // Predicated region
    $region29: #{generator_synthesis_block.9} parent=5 // pred_check
      %p1136 = pneg %p1135
    $region30: #{generator_synthesis_block.9} parent=5 // pred_check_branch
      %1138 = sbr.rel (%p1136) target = $region32
    $region31: #{generator_synthesis_block.9} parent=5 // pred_region
      %s1139 = ssub.s32 %s7, 2
      // Predicated region
      $region33: #{generator_synthesis_block.9} parent=31 // pred_check
        %p1140 = pneg %p78
      $region34: #{generator_synthesis_block.9} parent=31 // pred_check_branch
        %1142 = sbr.rel (%p1140) target = $region36
      $region35: #{generator_synthesis_block.9} parent=31 // pred_region
        %s1143 = smul.u32 16, %s19
        %p1144 = scmp.lt.s32.totalorder %s18, 1
        %s1145 = scalar_select %p1144, %s18, 1
        %p1146 = scmp.lt.s32.totalorder %s1143, 15
        %s1147 = scalar_select %p1146, %s1143, 15
        %s1148 = smul.addr %s1147, 2
        %s1149 = smul.addr %s1145, 32
        %s1150 = sadd.s32 %s1148, %s1149
        %s1151 = smul.addr %s1150, 8
        %s1152 = scalar_lea.vmem %s1, %s1151
      $region36: #{generator_synthesis_block.9} parent=31 // pred_fallthru
        _
    $region32: #{generator_synthesis_block.9} parent=5 // pred_fallthru
      _
  $region6: #{generator_synthesis_block.9} parent=0 // loop_footer
    %s11 = sadd.s32 1, %s7
  $region7: #{generator_synthesis_block.9} parent=0 // loop_footer_branch
    %6 = sbr.rel target = $region3
  $region8: #{generator_synthesis_block.9} parent=0 // loop_exit
    _

// kernel: generator_synthesis_block.7
$region0: #{generator_synthesis_block.7}
  #allocation0 [shape = 'u32[]', space=smem, size = 0x4, offset = 0x4, fixed_abs, tag = 'smem constant byte address 0x4 - core index']
  #allocation1 [shape = 'u32[144,128]{1,0:T(1,128)}', space=vmem, size = 0x12000, scoped, tag = 'internal scratch']
  %s0 = inlined_call_operand.vmem [shape: bf16[2,1,342,32], index: 0, kind: input, shape index: {}]
  %s1 = inlined_call_operand.vmem [shape: bf16[9,32,32], index: 1, kind: input, shape index: {}]
  %s2 = inlined_call_operand.vmem [shape: f32[2,1,32], index: 2, kind: input, shape index: {}]
  %s3 = inlined_call_operand.vmem [shape: f32[1,288,1], index: 3, kind: input, shape index: {}]
  %s4 = inlined_call_operand.vmem [shape: f32[1,32], index: 4, kind: input, shape index: {}]
  %s5 = inlined_call_operand.vmem [shape: f32[2,1,1,288,32], index: 5, kind: output, shape index: {}]
  %s6 = sld [smem:[#allocation0]]
  $region53: #{generator_synthesis_block.7} parent=0
    _
  %s8 = ssub.s32 1, %s6
  %s9 = scalar_select 0, %s8, %s6
  loop: start=0, step=1, limit=4
  $region2: #{generator_synthesis_block.7} parent=0 // loop_pre_header
    _
  $region3: #{generator_synthesis_block.7} parent=0 // loop_header
    %s11 = sphi 0, %s15
    %p12 = scmp.ge.s32.totalorder %s11, 4
    %s18 = sphi 0, %s30
    %s19 = sphi 0, %s26
    %s20 = sphi 0, %s18
    %s21 = sphi 0, %s19
    %s22 = sphi 0, %s20
    %s23 = sphi 0, %s21
    %s35 = sphi 0, %s37
    %s38 = sphi 0, %s35
    %s39 = sphi 0, %s38
    %s55 = sphi 0, %s39
    %s59 = sphi 0, %s59
    %s61 = sphi 0, %s59
    %s62 = sphi 0, %s61
    %s76 = sphi 0, %s62
    %s82 = sphi 0, %s84
    %s85 = sphi 0, %s82
    %s86 = sphi 0, %s85
    %s102 = sphi 0, %s86
    %s108 = sphi 0, %s110
    %s111 = sphi 0, %s108
    %s112 = sphi 0, %s111
    %s128 = sphi 0, %s112
    %s132 = sphi 0, %s132
    %s134 = sphi 0, %s132
    %s135 = sphi 0, %s134
    %s149 = sphi 0, %s135
    %s157 = sphi 0, %s159
    %s160 = sphi 0, %s157
    %s161 = sphi 0, %s160
    %s177 = sphi 0, %s161
  $region4: #{generator_synthesis_block.7} parent=0 // loop_header_branch
    %14 = sbr.rel (%p12) target = $region8
  $region5: #{generator_synthesis_block.7} parent=0 // loop_body
    %s16 = ssub.s32 %s11, 1
    %s17 = ssub.s32 %s11, 2
    %s24 = sadd.s32 1, %s19
    %p25 = scmp.ge.s32.totalorder %s24, 1
    %s26 = scalar_select %p25, 0, %s24
    %s27 = sadd.s32 1, %s18
    %s28 = scalar_select %p25, %s27, %s18
    %p29 = scmp.ge.s32.totalorder %s28, 2
    %s30 = scalar_select %p29, 0, %s28
    %s31 = ssub.s32 %s18, %s30
    %s32 = ssub.s32 %s19, %s26
    %s33 = sor.u32 %s31, %s32
    %p34 = scmp.eq.s32.totalorder %s33, 0
    %s36 = sadd.s32 %s35, 1
    %s37 = scalar_select %p34, %s35, %s36
    %p40 = pneg %p34
    %p41 = scmp.eq.s32.totalorder %s11, 1
    %p42 = por %p40, %p41
    %p43 = scmp.ne.s32.totalorder %s35, %s38
    %p44 = scmp.eq.s32.totalorder %s11, 0
    %p45 = por %p43, %p44
    %p46 = scmp.ne.s32.totalorder %s35, %s38
    %p47 = scmp.eq.s32.totalorder %s16, 1
    %p48 = por %p46, %p47
    %p49 = scmp.ne.s32.totalorder %s38, %s39
    %p50 = scmp.eq.s32.totalorder %s16, 0
    %p51 = por %p49, %p50
    %p52 = scmp.ne.s32.totalorder %s38, %s39
    %p53 = scmp.eq.s32.totalorder %s17, 1
    %p54 = por %p52, %p53
    %p56 = scmp.ne.s32.totalorder %s39, %s55
    %p57 = scmp.eq.s32.totalorder %s17, 0
    %p58 = por %p56, %p57
    %s60 = sadd.s32 %s59, 1
    %p63 = scmp.eq.s32.totalorder %s11, 1
    %p64 = scmp.ne.s32.totalorder %s59, %s61
    %p65 = scmp.eq.s32.totalorder %s11, 0
    %p66 = por %p64, %p65
    %p67 = scmp.ne.s32.totalorder %s59, %s61
    %p68 = scmp.eq.s32.totalorder %s16, 1
    %p69 = por %p67, %p68
    %p70 = scmp.ne.s32.totalorder %s61, %s62
    %p71 = scmp.eq.s32.totalorder %s16, 0
    %p72 = por %p70, %p71
    %p73 = scmp.ne.s32.totalorder %s61, %s62
    %p74 = scmp.eq.s32.totalorder %s17, 1
    %p75 = por %p73, %p74
    %p77 = scmp.ne.s32.totalorder %s62, %s76
    %p78 = scmp.eq.s32.totalorder %s17, 0
    %p79 = por %p77, %p78
    %s80 = ssub.s32 %s18, %s30
    %p81 = scmp.eq.s32.totalorder %s80, 0
    %s83 = sadd.s32 %s82, 1
    %s84 = scalar_select %p81, %s82, %s83
    %p87 = pneg %p81
    %p88 = scmp.eq.s32.totalorder %s11, 1
    %p89 = por %p87, %p88
    %p90 = scmp.ne.s32.totalorder %s82, %s85
    %p91 = scmp.eq.s32.totalorder %s11, 0
    %p92 = por %p90, %p91
    %p93 = scmp.ne.s32.totalorder %s82, %s85
    %p94 = scmp.eq.s32.totalorder %s16, 1
    %p95 = por %p93, %p94
    %p96 = scmp.ne.s32.totalorder %s85, %s86
    %p97 = scmp.eq.s32.totalorder %s16, 0
    %p98 = por %p96, %p97
    %p99 = scmp.ne.s32.totalorder %s85, %s86
    %p100 = scmp.eq.s32.totalorder %s17, 1
    %p101 = por %p99, %p100
    %p103 = scmp.ne.s32.totalorder %s86, %s102
    %p104 = scmp.eq.s32.totalorder %s17, 0
    %p105 = por %p103, %p104
    %s106 = ssub.s32 %s19, %s26
    %p107 = scmp.eq.s32.totalorder %s106, 0
    %s109 = sadd.s32 %s108, 1
    %s110 = scalar_select %p107, %s108, %s109
    %p113 = pneg %p107
    %p114 = scmp.eq.s32.totalorder %s11, 1
    %p115 = por %p113, %p114
    %p116 = scmp.ne.s32.totalorder %s108, %s111
    %p117 = scmp.eq.s32.totalorder %s11, 0
    %p118 = por %p116, %p117
    %p119 = scmp.ne.s32.totalorder %s108, %s111
    %p120 = scmp.eq.s32.totalorder %s16, 1
    %p121 = por %p119, %p120
    %p122 = scmp.ne.s32.totalorder %s111, %s112
    %p123 = scmp.eq.s32.totalorder %s16, 0
    %p124 = por %p122, %p123
    %p125 = scmp.ne.s32.totalorder %s111, %s112
    %p126 = scmp.eq.s32.totalorder %s17, 1
    %p127 = por %p125, %p126
    %p129 = scmp.ne.s32.totalorder %s112, %s128
    %p130 = scmp.eq.s32.totalorder %s17, 0
    %p131 = por %p129, %p130
    %s133 = sadd.s32 %s132, 1
    %p136 = scmp.eq.s32.totalorder %s11, 1
    %p137 = scmp.ne.s32.totalorder %s132, %s134
    %p138 = scmp.eq.s32.totalorder %s11, 0
    %p139 = por %p137, %p138
    %p140 = scmp.ne.s32.totalorder %s132, %s134
    %p141 = scmp.eq.s32.totalorder %s16, 1
    %p142 = por %p140, %p141
    %p143 = scmp.ne.s32.totalorder %s134, %s135
    %p144 = scmp.eq.s32.totalorder %s16, 0
    %p145 = por %p143, %p144
    %p146 = scmp.ne.s32.totalorder %s134, %s135
    %p147 = scmp.eq.s32.totalorder %s17, 1
    %p148 = por %p146, %p147
    %p150 = scmp.ne.s32.totalorder %s135, %s149
    %p151 = scmp.eq.s32.totalorder %s17, 0
    %p152 = por %p150, %p151
    %s153 = ssub.s32 %s18, %s30
    %s154 = ssub.s32 %s19, %s26
    %s155 = sor.u32 %s153, %s154
    %p156 = scmp.eq.s32.totalorder %s155, 0
    %s158 = sadd.s32 %s157, 1
    %s159 = scalar_select %p156, %s157, %s158
    %p162 = pneg %p156
    %p163 = scmp.eq.s32.totalorder %s11, 1
    %p164 = por %p162, %p163
    %p165 = scmp.ne.s32.totalorder %s157, %s160
    %p166 = scmp.eq.s32.totalorder %s11, 0
    %p167 = por %p165, %p166
    %p168 = scmp.ne.s32.totalorder %s157, %s160
    %p169 = scmp.eq.s32.totalorder %s16, 1
    %p170 = por %p168, %p169
    %p171 = scmp.ne.s32.totalorder %s160, %s161
    %p172 = scmp.eq.s32.totalorder %s16, 0
    %p173 = por %p171, %p172
    %p174 = scmp.ne.s32.totalorder %s160, %s161
    %p175 = scmp.eq.s32.totalorder %s17, 1
    %p176 = por %p174, %p175
    %p178 = scmp.ne.s32.totalorder %s161, %s177
    %p179 = scmp.eq.s32.totalorder %s17, 0
    %p180 = por %p178, %p179
    %p181 = scmp.le.s32.totalorder 1, %s11
    %p182 = scmp.lt.s32.totalorder %s11, 3
    %p183 = pnand %p181, %p182
    %p184 = pneg %p183
    // Predicated region
    $region9: #{generator_synthesis_block.7} parent=5 // pred_check
      _
    $region10: #{generator_synthesis_block.7} parent=5 // pred_check_branch
      %186 = sbr.rel (%p183) target = $region12
    $region11: #{generator_synthesis_block.7} parent=5 // pred_region
      %s187 = ssub.s32 %s11, 1
      // Predicated region
      $region13: #{generator_synthesis_block.7} parent=11 // pred_check
        %p188 = pneg %p72
      $region14: #{generator_synthesis_block.7} parent=11 // pred_check_branch
        %190 = sbr.rel (%p188) target = $region16
      $region15: #{generator_synthesis_block.7} parent=11 // pred_region
        _
      $region16: #{generator_synthesis_block.7} parent=11 // pred_fallthru
        _
      // Predicated region
      $region17: #{generator_synthesis_block.7} parent=11 // pred_check
        %p191 = pneg %p124
      $region18: #{generator_synthesis_block.7} parent=11 // pred_check_branch
        %193 = sbr.rel (%p191) target = $region20
      $region19: #{generator_synthesis_block.7} parent=11 // pred_region
        %p194 = scmp.lt.s32.totalorder %s21, 0
        %s195 = scalar_select %p194, %s21, 0
        %s196 = smul.addr %s195, 36
        %s197 = smul.addr %s196, 8
        %s198 = scalar_lea.vmem %s3, %s197
      $region20: #{generator_synthesis_block.7} parent=11 // pred_fallthru
        _
      // Predicated region
      $region21: #{generator_synthesis_block.7} parent=11 // pred_check
        %p199 = pneg %p145
      $region22: #{generator_synthesis_block.7} parent=11 // pred_check_branch
        %201 = sbr.rel (%p199) target = $region24
      $region23: #{generator_synthesis_block.7} parent=11 // pred_region
        _
      $region24: #{generator_synthesis_block.7} parent=11 // pred_fallthru
        _
    $region12: #{generator_synthesis_block.7} parent=5 // pred_fallthru
      _
    %p202 = scmp.lt.s32.totalorder %s11, 2
    // Predicated region
    $region25: #{generator_synthesis_block.7} parent=5 // pred_check
      %p203 = pneg %p202
    $region26: #{generator_synthesis_block.7} parent=5 // pred_check_branch
      %205 = sbr.rel (%p203) target = $region28
    $region27: #{generator_synthesis_block.7} parent=5 // pred_region
      // Predicated region
      $region29: #{generator_synthesis_block.7} parent=27 // pred_check
        %p206 = pneg %p45
      $region30: #{generator_synthesis_block.7} parent=27 // pred_check_branch
        %208 = sbr.rel (%p206) target = $region32
      $region31: #{generator_synthesis_block.7} parent=27 // pred_region
        %p209 = scmp.lt.s32.totalorder %s18, 1
        %s210 = scalar_select %p209, %s18, 1
        %p211 = scmp.lt.s32.totalorder %s19, 0
        %s212 = scalar_select %p211, %s19, 0
        %s213 = smul.addr %s212, 43
        %s214 = smul.addr %s210, 43
        %s215 = sadd.s32 %s213, %s214
        %s216 = smul.addr %s215, 4
        %s217 = scalar_lea.vmem %s0, %s216
      $region32: #{generator_synthesis_block.7} parent=27 // pred_fallthru
        _
      // Predicated region
      $region33: #{generator_synthesis_block.7} parent=27 // pred_check
        %p218 = pneg %p92
      $region34: #{generator_synthesis_block.7} parent=27 // pred_check_branch
        %220 = sbr.rel (%p218) target = $region36
      $region35: #{generator_synthesis_block.7} parent=27 // pred_region
        %p221 = scmp.lt.s32.totalorder %s18, 1
        %s222 = scalar_select %p221, %s18, 1
        %s223 = scalar_lea.vmem %s2, %s222
      $region36: #{generator_synthesis_block.7} parent=27 // pred_fallthru
        _
    $region28: #{generator_synthesis_block.7} parent=5 // pred_fallthru
      _
    %p224 = scmp.le.s32.totalorder 1, %s11
    %p225 = scmp.lt.s32.totalorder %s11, 3
    %p226 = pnand %p224, %p225
    %p227 = pneg %p226
    // Predicated region
    $region37: #{generator_synthesis_block.7} parent=5 // pred_check
      _
    $region38: #{generator_synthesis_block.7} parent=5 // pred_check_branch
      %229 = sbr.rel (%p226) target = $region40
    $region39: #{generator_synthesis_block.7} parent=5 // pred_region
      %s230 = ssub.s32 %s11, 1
      %p231 = scmp.lt.s32.totalorder %s20, 1
      %s232 = scalar_select %p231, %s20, 1
      %p233 = scmp.lt.s32.totalorder %s21, 0
      %s234 = scalar_select %p233, %s21, 0
      %s235 = smul.addr %s234, 43
      %s236 = smul.addr %s232, 43
      %s237 = sadd.s32 %s235, %s236
      %s238 = smul.addr %s237, 4
      %s239 = scalar_lea.vmem %s0, %s238
      %p240 = pneg %p51
      %p241 = pneg %p48
      %p242 = pneg %p72
      %p243 = pneg %p69
      %p244 = scmp.lt.s32.totalorder %s20, 1
      %s245 = scalar_select %p244, %s20, 1
      %s246 = scalar_lea.vmem %s2, %s245
      %p247 = pneg %p98
      %p248 = pneg %p95
      %p249 = scmp.lt.s32.totalorder %s21, 0
      %s250 = scalar_select %p249, %s21, 0
      %s251 = smul.addr %s250, 36
      %s252 = smul.addr %s251, 8
      %s253 = scalar_lea.vmem %s3, %s252
      %p254 = pneg %p124
      %p255 = pneg %p121
      %p256 = pneg %p145
      %p257 = pneg %p142
      %p258 = pneg %p173
      %p259 = pneg %p170
      %p260 = scmp.lt.s32.totalorder %s20, 1
      %s261 = scalar_select %p260, %s20, 1
      %p262 = scmp.lt.s32.totalorder %s21, 0
      %s263 = scalar_select %p262, %s21, 0
      %s264 = smul.addr %s263, 36
      %s265 = smul.addr %s261, 36
      %s266 = sadd.s32 %s264, %s265
      %s267 = smul.addr %s266, 8
      %s268 = scalar_lea.vmem %s5, %s267
      %p269 = scmp.lt.s32.totalorder %s20, 1
      %s270 = scalar_select %p269, %s20, 1
      %p271 = scmp.lt.s32.totalorder %s21, 0
      %s272 = scalar_select %p271, %s21, 0
      %s273 = smul.addr %s272, 43
      %s274 = smul.addr %s270, 43
      %s275 = sadd.s32 %s273, %s274
      %s276 = smul.addr %s275, 4
      %s277 = scalar_lea.vmem %s0, %s276
      %p278 = scmp.lt.s32.totalorder %s20, 1
      %s279 = scalar_select %p278, %s20, 1
      %s280 = scalar_lea.vmem %s2, %s279
      %p281 = scmp.lt.s32.totalorder %s21, 0
      %s282 = scalar_select %p281, %s21, 0
      %s283 = smul.addr %s282, 36
      %s284 = smul.addr %s283, 8
      %s285 = scalar_lea.vmem %s3, %s284
      %p286 = scmp.lt.s32.totalorder %s20, 1
      %s287 = scalar_select %p286, %s20, 1
      %p288 = scmp.lt.s32.totalorder %s21, 0
      %s289 = scalar_select %p288, %s21, 0
      %s290 = smul.addr %s289, 36
      %s291 = smul.addr %s287, 36
      %s292 = sadd.s32 %s290, %s291
      %s293 = smul.addr %s292, 8
      %s294 = scalar_lea.vmem %s5, %s293
      %v296 = vld [vmem:[%s277] sm:$0xf]
      %v297 = vld [vmem:[%s277 + $0x4] sm:$0xf]
      %v298 = vld [vmem:[%s277 + $0x8] sm:$0xf]
      %v299 = vld [vmem:[%s277 + $0xc] sm:$0xf]
      %v300 = vld [vmem:[%s277 + $0x10] sm:$0xf]
      %v301 = vld [vmem:[%s277 + $0x14] sm:$0xf]
      %v302 = vld [vmem:[%s277 + $0x18] sm:$0xf]
      %v303 = vld [vmem:[%s277 + $0x1c] sm:$0xf]
      %v304 = vld [vmem:[%s277 + $0x20] sm:$0xf]
      %v305 = vld [vmem:[%s277 + $0x24] sm:$0xf]
      %v306 = vld [vmem:[%s277 + $0x28] sm:$0xf]
      %v307 = vld [vmem:[%s277 + $0x2c] sm:$0xf]
      %v308 = vld [vmem:[%s277 + $0x30] sm:$0xf]
      %v309 = vld [vmem:[%s277 + $0x34] sm:$0xf]
      %v310 = vld [vmem:[%s277 + $0x38] sm:$0xf]
      %v311 = vld [vmem:[%s277 + $0x3c] sm:$0xf]
      %v312 = vld [vmem:[%s277 + $0x40] sm:$0xf]
      %v313 = vld [vmem:[%s277 + $0x44] sm:$0xf]
      %v314 = vld [vmem:[%s277 + $0x48] sm:$0xf]
      %v315 = vld [vmem:[%s277 + $0x4c] sm:$0xf]
      %v316 = vld [vmem:[%s277 + $0x50] sm:$0xf]
      %v317 = vld [vmem:[%s277 + $0x54] sm:$0xf]
      %v318 = vld [vmem:[%s277 + $0x58] sm:$0xf]
      %v319 = vld [vmem:[%s277 + $0x5c] sm:$0xf]
      %v320 = vld [vmem:[%s277 + $0x60] sm:$0xf]
      %v321 = vld [vmem:[%s277 + $0x64] sm:$0xf]
      %v322 = vld [vmem:[%s277 + $0x68] sm:$0xf]
      %v323 = vld [vmem:[%s277 + $0x6c] sm:$0xf]
      %v324 = vld [vmem:[%s277 + $0x70] sm:$0xf]
      %v325 = vld [vmem:[%s277 + $0x74] sm:$0xf]
      %v326 = vld [vmem:[%s277 + $0x78] sm:$0xf]
      %v327 = vld [vmem:[%s277 + $0x7c] sm:$0xf]
      %v328 = vld [vmem:[%s277 + $0x80] sm:$0xf]
      %v329 = vld [vmem:[%s277 + $0x84] sm:$0xf]
      %v330 = vld [vmem:[%s277 + $0x88] sm:$0xf]
      %v331 = vld [vmem:[%s277 + $0x8c] sm:$0xf]
      %v332 = vld [vmem:[%s1] sm:$0xf]
      %v333 = vld [vmem:[%s1 + $0x4] sm:$0xf]
      %v334 = vld [vmem:[%s1 + $0x8] sm:$0xf]
      %v335 = vld [vmem:[%s1 + $0xc] sm:$0xf]
      %v336 = vld [vmem:[%s277 + $0x90] sm:$0x1]
      %s337 = scalar_lea.vmem %s1, 16
      %v338 = vld [vmem:[%s337] sm:$0xf]
      %v339 = vld [vmem:[%s337 + $0x4] sm:$0xf]
      %v340 = vld [vmem:[%s337 + $0x8] sm:$0xf]
      %v341 = vld [vmem:[%s337 + $0xc] sm:$0xf]
      %v379 = vunpack.c.l.b16 %v296
      %v380 = vunpack.c.l.b16 %v297
      %v381 = vunpack.c.l.b16 %v298
      %v382 = vunpack.c.l.b16 %v299
      %v383 = vunpack.c.l.b16 %v300
      %v384 = vunpack.c.l.b16 %v301
      %v385 = vunpack.c.l.b16 %v302
      %v386 = vunpack.c.l.b16 %v303
      %v387 = vunpack.c.l.b16 %v304
      %v388 = vunpack.c.l.b16 %v305
      %v389 = vunpack.c.l.b16 %v306
      %v390 = vunpack.c.l.b16 %v307
      %v391 = vunpack.c.l.b16 %v308
      %v392 = vunpack.c.l.b16 %v309
      %v393 = vunpack.c.l.b16 %v310
      %v394 = vunpack.c.l.b16 %v311
      %v395 = vunpack.c.l.b16 %v312
      %v396 = vunpack.c.l.b16 %v313
      %v397 = vunpack.c.l.b16 %v314
      %v398 = vunpack.c.l.b16 %v315
      %v399 = vunpack.c.l.b16 %v316
      %v400 = vunpack.c.l.b16 %v317
      %v401 = vunpack.c.l.b16 %v318
      %v402 = vunpack.c.l.b16 %v319
      %v403 = vunpack.c.l.b16 %v320
      %v404 = vunpack.c.l.b16 %v321
      %v405 = vunpack.c.l.b16 %v322
      %v406 = vunpack.c.l.b16 %v323
      %v407 = vunpack.c.l.b16 %v324
      %v408 = vunpack.c.l.b16 %v325
      %v409 = vunpack.c.l.b16 %v326
      %v410 = vunpack.c.l.b16 %v327
      %v411 = vunpack.c.l.b16 %v328
      %v412 = vunpack.c.l.b16 %v329
      %v413 = vunpack.c.l.b16 %v330
      %v414 = vunpack.c.l.b16 %v331
      %v415 = vunpack.c.l.b16 %v336
      %v416 = vpack.c.b16 %v380, %v379
      %v417 = vpack.c.b16 %v382, %v381
      %v418 = vpack.c.b16 %v384, %v383
      %v419 = vpack.c.b16 %v386, %v385
      %v420 = vpack.c.b16 %v388, %v387
      %v421 = vpack.c.b16 %v390, %v389
      %v422 = vpack.c.b16 %v392, %v391
      %v423 = vpack.c.b16 %v394, %v393
      %v424 = vpack.c.b16 %v396, %v395
      %v425 = vpack.c.b16 %v398, %v397
      %v426 = vpack.c.b16 %v400, %v399
      %v427 = vpack.c.b16 %v402, %v401
      %v428 = vpack.c.b16 %v404, %v403
      %v429 = vpack.c.b16 %v406, %v405
      %v430 = vpack.c.b16 %v408, %v407
      %v431 = vpack.c.b16 %v410, %v409
      %v432 = vpack.c.b16 %v412, %v411
      %v433 = vpack.c.b16 %v414, %v413
      %v434 = vpack.c.b16 %v415, %v415
      %vm435 = vsmask.f32 7424
      %v437 = vshrl.u32 %v416, 16
      %v439 = vshll.u32 %v416, 16
      %v441 = vrot.slane %v439, 1
      %v442 = vor.u32 %v437, %v441
      %v444 = vshll.u32 %v417, 16
      %v446 = vrot.slane %v444, 1
      %v447 = vsel %vm435, %v442, %v446
      %v448 = vshrl.u32 %v417, 16
      %v450 = vor.u32 %v448, %v446
      %v452 = vshll.u32 %v418, 16
      %v454 = vrot.slane %v452, 1
      %v455 = vsel %vm435, %v450, %v454
      %v456 = vshrl.u32 %v418, 16
      %v458 = vor.u32 %v456, %v454
      %v460 = vshll.u32 %v419, 16
      %v462 = vrot.slane %v460, 1
      %v463 = vsel %vm435, %v458, %v462
      %v464 = vshrl.u32 %v419, 16
      %v466 = vor.u32 %v464, %v462
      %v468 = vshll.u32 %v420, 16
      %v470 = vrot.slane %v468, 1
      %v471 = vsel %vm435, %v466, %v470
      %v472 = vshrl.u32 %v420, 16
      %v474 = vor.u32 %v472, %v470
      %v476 = vshll.u32 %v421, 16
      %v478 = vrot.slane %v476, 1
      %v479 = vsel %vm435, %v474, %v478
      %v480 = vshrl.u32 %v421, 16
      %v482 = vor.u32 %v480, %v478
      %v484 = vshll.u32 %v422, 16
      %v486 = vrot.slane %v484, 1
      %v487 = vsel %vm435, %v482, %v486
      %v488 = vshrl.u32 %v422, 16
      %v490 = vor.u32 %v488, %v486
      %v492 = vshll.u32 %v423, 16
      %v494 = vrot.slane %v492, 1
      %v495 = vsel %vm435, %v490, %v494
      %v496 = vshrl.u32 %v423, 16
      %v498 = vor.u32 %v496, %v494
      %v500 = vshll.u32 %v424, 16
      %v502 = vrot.slane %v500, 1
      %v503 = vsel %vm435, %v498, %v502
      %v504 = vshrl.u32 %v424, 16
      %v506 = vor.u32 %v504, %v502
      %v508 = vshll.u32 %v425, 16
      %v510 = vrot.slane %v508, 1
      %v511 = vsel %vm435, %v506, %v510
      %v512 = vshrl.u32 %v425, 16
      %v514 = vor.u32 %v512, %v510
      %v516 = vshll.u32 %v426, 16
      %v518 = vrot.slane %v516, 1
      %v519 = vsel %vm435, %v514, %v518
      %v520 = vshrl.u32 %v426, 16
      %v522 = vor.u32 %v520, %v518
      %v524 = vshll.u32 %v427, 16
      %v526 = vrot.slane %v524, 1
      %v527 = vsel %vm435, %v522, %v526
      %v528 = vshrl.u32 %v427, 16
      %v530 = vor.u32 %v528, %v526
      %v532 = vshll.u32 %v428, 16
      %v534 = vrot.slane %v532, 1
      %v535 = vsel %vm435, %v530, %v534
      %v536 = vshrl.u32 %v428, 16
      %v538 = vor.u32 %v536, %v534
      %v540 = vshll.u32 %v429, 16
      %v542 = vrot.slane %v540, 1
      %v543 = vsel %vm435, %v538, %v542
      %v544 = vshrl.u32 %v429, 16
      %v546 = vor.u32 %v544, %v542
      %v548 = vshll.u32 %v430, 16
      %v550 = vrot.slane %v548, 1
      %v551 = vsel %vm435, %v546, %v550
      %v552 = vshrl.u32 %v430, 16
      %v554 = vor.u32 %v552, %v550
      %v556 = vshll.u32 %v431, 16
      %v558 = vrot.slane %v556, 1
      %v559 = vsel %vm435, %v554, %v558
      %v560 = vshrl.u32 %v431, 16
      %v562 = vor.u32 %v560, %v558
      %v564 = vshll.u32 %v432, 16
      %v566 = vrot.slane %v564, 1
      %v567 = vsel %vm435, %v562, %v566
      %v568 = vshrl.u32 %v432, 16
      %v570 = vor.u32 %v568, %v566
      %v572 = vshll.u32 %v433, 16
      %v574 = vrot.slane %v572, 1
      %v575 = vsel %vm435, %v570, %v574
      %v576 = vshrl.u32 %v433, 16
      %v578 = vor.u32 %v576, %v574
      %v580 = vshll.u32 %v434, 16
      %v582 = vrot.slane %v580, 1
      %v583 = vsel %vm435, %v578, %v582
      %v588 = vunpack.c.l.b16 %v338
      %v589 = vunpack.c.l.b16 %v339
      %v590 = vunpack.c.l.b16 %v340
      %v591 = vunpack.c.l.b16 %v341
      %v592 = vpack.c.b16 %v589, %v588
      %v593 = vpack.c.b16 %v591, %v590
      %vm596 = vcmask 261120
      %v598 = vsel %vm596, %v447, 0
      %v601 = vsel %vm596, %v455, 0
      %v604 = vsel %vm596, %v463, 0
      %v607 = vsel %vm596, %v471, 0
      %v610 = vsel %vm596, %v479, 0
      %v613 = vsel %vm596, %v487, 0
      %v616 = vsel %vm596, %v495, 0
      %v619 = vsel %vm596, %v503, 0
      %v622 = vsel %vm596, %v511, 0
      %v625 = vsel %vm596, %v519, 0
      %v628 = vsel %vm596, %v527, 0
      %v631 = vsel %vm596, %v535, 0
      %v634 = vsel %vm596, %v543, 0
      %v637 = vsel %vm596, %v551, 0
      %v640 = vsel %vm596, %v559, 0
      %v643 = vsel %vm596, %v567, 0
      %v646 = vsel %vm596, %v575, 0
      %v649 = vsel %vm596, %v583, 0
      %651 = vmatprep.subr.bf16.mxu0 0
      %652 = vmatpush1.bf16.msra.mxu0 0
      %653 = vmatprep.subr.bf16.mxu0 0
      %654 = vmatpush1.bf16.msra.mxu0 0
      %655 = vmatprep.subr.bf16.mxu0 0
      %656 = vmatpush1.bf16.msra.mxu0 0
      %657 = vmatprep.subr.bf16.mxu0 0
      %658 = vmatpush1.bf16.msra.mxu0 0
      %659 = vmatprep.subr.bf16.mxu0 0
      %660 = vmatpush1.bf16.msra.mxu0 0
      %661 = vmatprep.subr.bf16.mxu0 0
      %662 = vmatpush1.bf16.msra.mxu0 0
      %663 = vmatprep.subr.bf16.mxu0 0
      %664 = vmatpush1.bf16.msra.mxu0 %v593
      %665 = vmatprep.subr.bf16.mxu0 0
      %666 = vmatpush1.bf16.msra.mxu0 %v592
      %667 = vmatprep.subr.bf16.mxu0 0
      %668 = vmatpush2.bf16.msra.mxu0 0
      %669 = vmatprep.subr.bf16.mxu0 0
      %670 = vmatpush2.bf16.msra.mxu0 0
      %671 = vmatprep.subr.bf16.mxu0 0
      %672 = vmatpush2.bf16.msra.mxu0 0
      %673 = vmatprep.subr.bf16.mxu0 0
      %674 = vmatpush2.bf16.msra.mxu0 0
      %675 = vmatprep.subr.bf16.mxu0 0
      %676 = vmatpush2.bf16.msra.mxu0 0
      %677 = vmatprep.subr.bf16.mxu0 0
      %678 = vmatpush2.bf16.msra.mxu0 0
      %679 = vmatprep.subr.bf16.mxu0 0
      %680 = vmatpush2.bf16.msra.mxu0 0
      %681 = vmatprep.subr.bf16.mxu0 0
      %682 = vmatpush2.bf16.msra.mxu0 0
      %683 = vmatprep.mubr.bf16.mxu0 0
      %684 = vmatmul.mubr.bf16.gmra.mxu0 %v598
      %v685 = vpop.f32.mrf.mxu0
      %v686 = vadd.f32 0.0, %v685
      %v687 = vpop.f32.mrf.mxu0
      %v688 = vpop.f32.mrf.mxu0
      %v689 = vadd.f32 0.0, %v688
      %v690 = vpop.f32.mrf.mxu0
      %691 = vmatprep.mubr.bf16.mxu0 0
      %692 = vmatmul.mubr.bf16.gmra.mxu0 %v601
      %v693 = vpop.f32.mrf.mxu0
      %v694 = vadd.f32 0.0, %v693
      %v695 = vpop.f32.mrf.mxu0
      %v696 = vpop.f32.mrf.mxu0
      %v697 = vadd.f32 0.0, %v696
      %v698 = vpop.f32.mrf.mxu0
      %699 = vmatprep.mubr.bf16.mxu0 0
      %700 = vmatmul.mubr.bf16.gmra.mxu0 %v604
      %v701 = vpop.f32.mrf.mxu0
      %v702 = vadd.f32 0.0, %v701
      %v703 = vpop.f32.mrf.mxu0
      %v704 = vpop.f32.mrf.mxu0
      %v705 = vadd.f32 0.0, %v704
      %v706 = vpop.f32.mrf.mxu0
      %707 = vmatprep.mubr.bf16.mxu0 0
      %708 = vmatmul.mubr.bf16.gmra.mxu0 %v607
      %v709 = vpop.f32.mrf.mxu0
      %v710 = vadd.f32 0.0, %v709
      %v711 = vpop.f32.mrf.mxu0
      %v712 = vpop.f32.mrf.mxu0
      %v713 = vadd.f32 0.0, %v712
      %v714 = vpop.f32.mrf.mxu0
      %715 = vmatprep.mubr.bf16.mxu0 0
      %716 = vmatmul.mubr.bf16.gmra.mxu0 %v610
      %v717 = vpop.f32.mrf.mxu0
      %v718 = vadd.f32 0.0, %v717
      %v719 = vpop.f32.mrf.mxu0
      %v720 = vpop.f32.mrf.mxu0
      %v721 = vadd.f32 0.0, %v720
      %v722 = vpop.f32.mrf.mxu0
      %723 = vmatprep.mubr.bf16.mxu0 0
      %724 = vmatmul.mubr.bf16.gmra.mxu0 %v613
      %v725 = vpop.f32.mrf.mxu0
      %v726 = vadd.f32 0.0, %v725
      %v727 = vpop.f32.mrf.mxu0
      %v728 = vpop.f32.mrf.mxu0
      %v729 = vadd.f32 0.0, %v728
      %v730 = vpop.f32.mrf.mxu0
      %731 = vmatprep.mubr.bf16.mxu0 0
      %732 = vmatmul.mubr.bf16.gmra.mxu0 %v616
      %v733 = vpop.f32.mrf.mxu0
      %v734 = vadd.f32 0.0, %v733
      %v735 = vpop.f32.mrf.mxu0
      %v736 = vpop.f32.mrf.mxu0
      %v737 = vadd.f32 0.0, %v736
      %v738 = vpop.f32.mrf.mxu0
      %739 = vmatprep.mubr.bf16.mxu0 0
      %740 = vmatmul.mubr.bf16.gmra.mxu0 %v619
      %v741 = vpop.f32.mrf.mxu0
      %v742 = vadd.f32 0.0, %v741
      %v743 = vpop.f32.mrf.mxu0
      %v744 = vpop.f32.mrf.mxu0
      %v745 = vadd.f32 0.0, %v744
      %v746 = vpop.f32.mrf.mxu0
      %747 = vmatprep.mubr.bf16.mxu0 0
      %748 = vmatmul.mubr.bf16.gmra.mxu0 %v622
      %v749 = vpop.f32.mrf.mxu0
      %v750 = vadd.f32 0.0, %v749
      %v751 = vpop.f32.mrf.mxu0
      %v752 = vpop.f32.mrf.mxu0
      %v753 = vadd.f32 0.0, %v752
      %v754 = vpop.f32.mrf.mxu0
      %755 = vmatprep.mubr.bf16.mxu0 0
      %756 = vmatmul.mubr.bf16.gmra.mxu0 %v625
      %v757 = vpop.f32.mrf.mxu0
      %v758 = vadd.f32 0.0, %v757
      %v759 = vpop.f32.mrf.mxu0
      %v760 = vpop.f32.mrf.mxu0
      %v761 = vadd.f32 0.0, %v760
      %v762 = vpop.f32.mrf.mxu0
      %763 = vmatprep.mubr.bf16.mxu0 0
      %764 = vmatmul.mubr.bf16.gmra.mxu0 %v628
      %v765 = vpop.f32.mrf.mxu0
      %v766 = vadd.f32 0.0, %v765
      %v767 = vpop.f32.mrf.mxu0
      %v768 = vpop.f32.mrf.mxu0
      %v769 = vadd.f32 0.0, %v768
      %v770 = vpop.f32.mrf.mxu0
      %771 = vmatprep.mubr.bf16.mxu0 0
      %772 = vmatmul.mubr.bf16.gmra.mxu0 %v631
      %v773 = vpop.f32.mrf.mxu0
      %v774 = vadd.f32 0.0, %v773
      %v775 = vpop.f32.mrf.mxu0
      %v776 = vpop.f32.mrf.mxu0
      %v777 = vadd.f32 0.0, %v776
      %v778 = vpop.f32.mrf.mxu0
      %779 = vmatprep.mubr.bf16.mxu0 0
      %780 = vmatmul.mubr.bf16.gmra.mxu0 %v634
      %v781 = vpop.f32.mrf.mxu0
      %v782 = vadd.f32 0.0, %v781
      %v783 = vpop.f32.mrf.mxu0
      %v784 = vpop.f32.mrf.mxu0
      %v785 = vadd.f32 0.0, %v784
      %v786 = vpop.f32.mrf.mxu0
      %787 = vmatprep.mubr.bf16.mxu0 0
      %788 = vmatmul.mubr.bf16.gmra.mxu0 %v637
      %v789 = vpop.f32.mrf.mxu0
      %v790 = vadd.f32 0.0, %v789
      %v791 = vpop.f32.mrf.mxu0
      %v792 = vpop.f32.mrf.mxu0
      %v793 = vadd.f32 0.0, %v792
      %v794 = vpop.f32.mrf.mxu0
      %795 = vmatprep.mubr.bf16.mxu0 0
      %796 = vmatmul.mubr.bf16.gmra.mxu0 %v640
      %v797 = vpop.f32.mrf.mxu0
      %v798 = vadd.f32 0.0, %v797
      %v799 = vpop.f32.mrf.mxu0
      %v800 = vpop.f32.mrf.mxu0
      %v801 = vadd.f32 0.0, %v800
      %v802 = vpop.f32.mrf.mxu0
      %803 = vmatprep.mubr.bf16.mxu0 0
      %804 = vmatmul.mubr.bf16.gmra.mxu0 %v643
      %v805 = vpop.f32.mrf.mxu0
      %v806 = vadd.f32 0.0, %v805
      %v807 = vpop.f32.mrf.mxu0
      %v808 = vpop.f32.mrf.mxu0
      %v809 = vadd.f32 0.0, %v808
      %v810 = vpop.f32.mrf.mxu0
      %811 = vmatprep.mubr.bf16.mxu0 0
      %812 = vmatmul.mubr.bf16.gmra.mxu0 %v646
      %v813 = vpop.f32.mrf.mxu0
      %v814 = vadd.f32 0.0, %v813
      %v815 = vpop.f32.mrf.mxu0
      %v816 = vpop.f32.mrf.mxu0
      %v817 = vadd.f32 0.0, %v816
      %v818 = vpop.f32.mrf.mxu0
      %819 = vmatprep.mubr.bf16.mxu0 0
      %820 = vmatmul.mubr.bf16.gmra.mxu0 %v649
      %v821 = vpop.f32.mrf.mxu0
      %v822 = vadd.f32 0.0, %v821
      %v823 = vpop.f32.mrf.mxu0
      %v824 = vpop.f32.mrf.mxu0
      %v825 = vadd.f32 0.0, %v824
      %v826 = vpop.f32.mrf.mxu0
      %827 = vdwg.mxu0
      %v832 = vunpack.c.l.b16 %v332
      %v833 = vunpack.c.l.b16 %v333
      %v834 = vunpack.c.l.b16 %v334
      %v835 = vunpack.c.l.b16 %v335
      %v836 = vpack.c.b16 %v833, %v832
      %v837 = vpack.c.b16 %v835, %v834
      %v840 = vsel %vm596, %v416, 0
      %v842 = vsel %vm596, %v417, 0
      %v844 = vsel %vm596, %v418, 0
      %v846 = vsel %vm596, %v419, 0
      %v848 = vsel %vm596, %v420, 0
      %v850 = vsel %vm596, %v421, 0
      %v852 = vsel %vm596, %v422, 0
      %v854 = vsel %vm596, %v423, 0
      %v856 = vsel %vm596, %v424, 0
      %v858 = vsel %vm596, %v425, 0
      %v860 = vsel %vm596, %v426, 0
      %v862 = vsel %vm596, %v427, 0
      %v864 = vsel %vm596, %v428, 0
      %v866 = vsel %vm596, %v429, 0
      %v868 = vsel %vm596, %v430, 0
      %v870 = vsel %vm596, %v431, 0
      %v872 = vsel %vm596, %v432, 0
      %v874 = vsel %vm596, %v433, 0
      %876 = vmatprep.subr.bf16.mxu0 0
      %877 = vmatpush1.bf16.msra.mxu0 0
      %878 = vmatprep.subr.bf16.mxu0 0
      %879 = vmatpush1.bf16.msra.mxu0 0
      %880 = vmatprep.subr.bf16.mxu0 0
      %881 = vmatpush1.bf16.msra.mxu0 0
      %882 = vmatprep.subr.bf16.mxu0 0
      %883 = vmatpush1.bf16.msra.mxu0 0
      %884 = vmatprep.subr.bf16.mxu0 0
      %885 = vmatpush1.bf16.msra.mxu0 0
      %886 = vmatprep.subr.bf16.mxu0 0
      %887 = vmatpush1.bf16.msra.mxu0 0
      %888 = vmatprep.subr.bf16.mxu0 0
      %889 = vmatpush1.bf16.msra.mxu0 %v837
      %890 = vmatprep.subr.bf16.mxu0 0
      %891 = vmatpush1.bf16.msra.mxu0 %v836
      %892 = vmatprep.subr.bf16.mxu0 0
      %893 = vmatpush2.bf16.msra.mxu0 0
      %894 = vmatprep.subr.bf16.mxu0 0
      %895 = vmatpush2.bf16.msra.mxu0 0
      %896 = vmatprep.subr.bf16.mxu0 0
      %897 = vmatpush2.bf16.msra.mxu0 0
      %898 = vmatprep.subr.bf16.mxu0 0
      %899 = vmatpush2.bf16.msra.mxu0 0
      %900 = vmatprep.subr.bf16.mxu0 0
      %901 = vmatpush2.bf16.msra.mxu0 0
      %902 = vmatprep.subr.bf16.mxu0 0
      %903 = vmatpush2.bf16.msra.mxu0 0
      %904 = vmatprep.subr.bf16.mxu0 0
      %905 = vmatpush2.bf16.msra.mxu0 0
      %906 = vmatprep.subr.bf16.mxu0 0
      %907 = vmatpush2.bf16.msra.mxu0 0
      %908 = vmatprep.mubr.bf16.mxu0 0
      %909 = vmatmul.mubr.bf16.gmra.mxu0 %v840
      %v910 = vpop.f32.mrf.mxu0
      %v911 = vadd.f32 %v686, %v910
      %v912 = vpop.f32.mrf.mxu0
      %v913 = vpop.f32.mrf.mxu0
      %v914 = vadd.f32 %v689, %v913
      %v915 = vpop.f32.mrf.mxu0
      %916 = vmatprep.mubr.bf16.mxu0 0
      %917 = vmatmul.mubr.bf16.gmra.mxu0 %v842
      %v918 = vpop.f32.mrf.mxu0
      %v919 = vadd.f32 %v694, %v918
      %v920 = vpop.f32.mrf.mxu0
      %v921 = vpop.f32.mrf.mxu0
      %v922 = vadd.f32 %v697, %v921
      %v923 = vpop.f32.mrf.mxu0
      %924 = vmatprep.mubr.bf16.mxu0 0
      %925 = vmatmul.mubr.bf16.gmra.mxu0 %v844
      %v926 = vpop.f32.mrf.mxu0
      %v927 = vadd.f32 %v702, %v926
      %v928 = vpop.f32.mrf.mxu0
      %v929 = vpop.f32.mrf.mxu0
      %v930 = vadd.f32 %v705, %v929
      %v931 = vpop.f32.mrf.mxu0
      %932 = vmatprep.mubr.bf16.mxu0 0
      %933 = vmatmul.mubr.bf16.gmra.mxu0 %v846
      %v934 = vpop.f32.mrf.mxu0
      %v935 = vadd.f32 %v710, %v934
      %v936 = vpop.f32.mrf.mxu0
      %v937 = vpop.f32.mrf.mxu0
      %v938 = vadd.f32 %v713, %v937
      %v939 = vpop.f32.mrf.mxu0
      %940 = vmatprep.mubr.bf16.mxu0 0
      %941 = vmatmul.mubr.bf16.gmra.mxu0 %v848
      %v942 = vpop.f32.mrf.mxu0
      %v943 = vadd.f32 %v718, %v942
      %v944 = vpop.f32.mrf.mxu0
      %v945 = vpop.f32.mrf.mxu0
      %v946 = vadd.f32 %v721, %v945
      %v947 = vpop.f32.mrf.mxu0
      %948 = vmatprep.mubr.bf16.mxu0 0
      %949 = vmatmul.mubr.bf16.gmra.mxu0 %v850
      %v950 = vpop.f32.mrf.mxu0
      %v951 = vadd.f32 %v726, %v950
      %v952 = vpop.f32.mrf.mxu0
      %v953 = vpop.f32.mrf.mxu0
      %v954 = vadd.f32 %v729, %v953
      %v955 = vpop.f32.mrf.mxu0
      %956 = vmatprep.mubr.bf16.mxu0 0
      %957 = vmatmul.mubr.bf16.gmra.mxu0 %v852
      %v958 = vpop.f32.mrf.mxu0
      %v959 = vadd.f32 %v734, %v958
      %v960 = vpop.f32.mrf.mxu0
      %v961 = vpop.f32.mrf.mxu0
      %v962 = vadd.f32 %v737, %v961
      %v963 = vpop.f32.mrf.mxu0
      %964 = vmatprep.mubr.bf16.mxu0 0
      %965 = vmatmul.mubr.bf16.gmra.mxu0 %v854
      %v966 = vpop.f32.mrf.mxu0
      %v967 = vadd.f32 %v742, %v966
      %v968 = vpop.f32.mrf.mxu0
      %v969 = vpop.f32.mrf.mxu0
      %v970 = vadd.f32 %v745, %v969
      %v971 = vpop.f32.mrf.mxu0
      %972 = vmatprep.mubr.bf16.mxu0 0
      %973 = vmatmul.mubr.bf16.gmra.mxu0 %v856
      %v974 = vpop.f32.mrf.mxu0
      %v975 = vadd.f32 %v750, %v974
      %v976 = vpop.f32.mrf.mxu0
      %v977 = vpop.f32.mrf.mxu0
      %v978 = vadd.f32 %v753, %v977
      %v979 = vpop.f32.mrf.mxu0
      %980 = vmatprep.mubr.bf16.mxu0 0
      %981 = vmatmul.mubr.bf16.gmra.mxu0 %v858
      %v982 = vpop.f32.mrf.mxu0
      %v983 = vadd.f32 %v758, %v982
      %v984 = vpop.f32.mrf.mxu0
      %v985 = vpop.f32.mrf.mxu0
      %v986 = vadd.f32 %v761, %v985
      %v987 = vpop.f32.mrf.mxu0
      %988 = vmatprep.mubr.bf16.mxu0 0
      %989 = vmatmul.mubr.bf16.gmra.mxu0 %v860
      %v990 = vpop.f32.mrf.mxu0
      %v991 = vadd.f32 %v766, %v990
      %v992 = vpop.f32.mrf.mxu0
      %v993 = vpop.f32.mrf.mxu0
      %v994 = vadd.f32 %v769, %v993
      %v995 = vpop.f32.mrf.mxu0
      %996 = vmatprep.mubr.bf16.mxu0 0
      %997 = vmatmul.mubr.bf16.gmra.mxu0 %v862
      %v998 = vpop.f32.mrf.mxu0
      %v999 = vadd.f32 %v774, %v998
      %v1000 = vpop.f32.mrf.mxu0
      %v1001 = vpop.f32.mrf.mxu0
      %v1002 = vadd.f32 %v777, %v1001
      %v1003 = vpop.f32.mrf.mxu0
      %1004 = vmatprep.mubr.bf16.mxu0 0
      %1005 = vmatmul.mubr.bf16.gmra.mxu0 %v864
      %v1006 = vpop.f32.mrf.mxu0
      %v1007 = vadd.f32 %v782, %v1006
      %v1008 = vpop.f32.mrf.mxu0
      %v1009 = vpop.f32.mrf.mxu0
      %v1010 = vadd.f32 %v785, %v1009
      %v1011 = vpop.f32.mrf.mxu0
      %1012 = vmatprep.mubr.bf16.mxu0 0
      %1013 = vmatmul.mubr.bf16.gmra.mxu0 %v866
      %v1014 = vpop.f32.mrf.mxu0
      %v1015 = vadd.f32 %v790, %v1014
      %v1016 = vpop.f32.mrf.mxu0
      %v1017 = vpop.f32.mrf.mxu0
      %v1018 = vadd.f32 %v793, %v1017
      %v1019 = vpop.f32.mrf.mxu0
      %1020 = vmatprep.mubr.bf16.mxu0 0
      %1021 = vmatmul.mubr.bf16.gmra.mxu0 %v868
      %v1022 = vpop.f32.mrf.mxu0
      %v1023 = vadd.f32 %v798, %v1022
      %v1024 = vpop.f32.mrf.mxu0
      %v1025 = vpop.f32.mrf.mxu0
      %v1026 = vadd.f32 %v801, %v1025
      %v1027 = vpop.f32.mrf.mxu0
      %1028 = vmatprep.mubr.bf16.mxu0 0
      %1029 = vmatmul.mubr.bf16.gmra.mxu0 %v870
      %v1030 = vpop.f32.mrf.mxu0
      %v1031 = vadd.f32 %v806, %v1030
      %v1032 = vpop.f32.mrf.mxu0
      %v1033 = vpop.f32.mrf.mxu0
      %v1034 = vadd.f32 %v809, %v1033
      %v1035 = vpop.f32.mrf.mxu0
      %1036 = vmatprep.mubr.bf16.mxu0 0
      %1037 = vmatmul.mubr.bf16.gmra.mxu0 %v872
      %v1038 = vpop.f32.mrf.mxu0
      %v1039 = vadd.f32 %v814, %v1038
      %v1040 = vpop.f32.mrf.mxu0
      %v1041 = vpop.f32.mrf.mxu0
      %v1042 = vadd.f32 %v817, %v1041
      %v1043 = vpop.f32.mrf.mxu0
      %1044 = vmatprep.mubr.bf16.mxu0 0
      %1045 = vmatmul.mubr.bf16.gmra.mxu0 %v874
      %v1046 = vpop.f32.mrf.mxu0
      %v1047 = vadd.f32 %v822, %v1046
      %v1048 = vpop.f32.mrf.mxu0
      %v1049 = vpop.f32.mrf.mxu0
      %v1050 = vadd.f32 %v825, %v1049
      %v1051 = vpop.f32.mrf.mxu0
      %1052 = vdwg.mxu0
      %v1053 = vld [vmem:[%s277] sm:$0xe]
      %s1054 = scalar_lea.vmem %s1, 32
      %v1055 = vld [vmem:[%s1054] sm:$0xf]
      %v1056 = vld [vmem:[%s1054 + $0x4] sm:$0xf]
      %v1057 = vld [vmem:[%s1054 + $0x8] sm:$0xf]
      %v1058 = vld [vmem:[%s1054 + $0xc] sm:$0xf]
      %v1060 = vunpack.c.l.b16 %v1053
      %v1061 = vpack.c.b16 %v380, %v1060
      %vm1062 = vcmask 1046528
      %v1063 = vrot.slane %v1061, 1
      %v1064 = vrot.slane %v417, 1
      %v1065 = vsel %vm1062, %v1063, %v1064
      %v1066 = vrot.slane %v418, 1
      %v1067 = vsel %vm1062, %v1064, %v1066
      %v1068 = vrot.slane %v419, 1
      %v1069 = vsel %vm1062, %v1066, %v1068
      %v1070 = vrot.slane %v420, 1
      %v1071 = vsel %vm1062, %v1068, %v1070
      %v1072 = vrot.slane %v421, 1
      %v1073 = vsel %vm1062, %v1070, %v1072
      %v1074 = vrot.slane %v422, 1
      %v1075 = vsel %vm1062, %v1072, %v1074
      %v1076 = vrot.slane %v423, 1
      %v1077 = vsel %vm1062, %v1074, %v1076
      %v1078 = vrot.slane %v424, 1
      %v1079 = vsel %vm1062, %v1076, %v1078
      %v1080 = vrot.slane %v425, 1
      %v1081 = vsel %vm1062, %v1078, %v1080
      %v1082 = vrot.slane %v426, 1
      %v1083 = vsel %vm1062, %v1080, %v1082
      %v1084 = vrot.slane %v427, 1
      %v1085 = vsel %vm1062, %v1082, %v1084
      %v1086 = vrot.slane %v428, 1
      %v1087 = vsel %vm1062, %v1084, %v1086
      %v1088 = vrot.slane %v429, 1
      %v1089 = vsel %vm1062, %v1086, %v1088
      %v1090 = vrot.slane %v430, 1
      %v1091 = vsel %vm1062, %v1088, %v1090
      %v1092 = vrot.slane %v431, 1
      %v1093 = vsel %vm1062, %v1090, %v1092
      %v1094 = vrot.slane %v432, 1
      %v1095 = vsel %vm1062, %v1092, %v1094
      %v1096 = vrot.slane %v433, 1
      %v1097 = vsel %vm1062, %v1094, %v1096
      %v1098 = vrot.slane %v434, 1
      %v1099 = vsel %vm1062, %v1096, %v1098
      %v1104 = vunpack.c.l.b16 %v1055
      %v1105 = vunpack.c.l.b16 %v1056
      %v1106 = vunpack.c.l.b16 %v1057
      %v1107 = vunpack.c.l.b16 %v1058
      %v1108 = vpack.c.b16 %v1105, %v1104
      %v1109 = vpack.c.b16 %v1107, %v1106
      %v1113 = vsel %vm596, %v1065, 0
      %v1116 = vsel %vm596, %v1067, 0
      %v1119 = vsel %vm596, %v1069, 0
      %v1122 = vsel %vm596, %v1071, 0
      %v1125 = vsel %vm596, %v1073, 0
      %v1128 = vsel %vm596, %v1075, 0
      %v1131 = vsel %vm596, %v1077, 0
      %v1134 = vsel %vm596, %v1079, 0
      %v1137 = vsel %vm596, %v1081, 0
      %v1140 = vsel %vm596, %v1083, 0
      %v1143 = vsel %vm596, %v1085, 0
      %v1146 = vsel %vm596, %v1087, 0
      %v1149 = vsel %vm596, %v1089, 0
      %v1152 = vsel %vm596, %v1091, 0
      %v1155 = vsel %vm596, %v1093, 0
      %v1158 = vsel %vm596, %v1095, 0
      %v1161 = vsel %vm596, %v1097, 0
      %v1164 = vsel %vm596, %v1099, 0
      %1166 = vmatprep.subr.bf16.mxu0 0
      %1167 = vmatpush1.bf16.msra.mxu0 0
      %1168 = vmatprep.subr.bf16.mxu0 0
      %1169 = vmatpush1.bf16.msra.mxu0 0
      %1170 = vmatprep.subr.bf16.mxu0 0
      %1171 = vmatpush1.bf16.msra.mxu0 0
      %1172 = vmatprep.subr.bf16.mxu0 0
      %1173 = vmatpush1.bf16.msra.mxu0 0
      %1174 = vmatprep.subr.bf16.mxu0 0
      %1175 = vmatpush1.bf16.msra.mxu0 0
      %1176 = vmatprep.subr.bf16.mxu0 0
      %1177 = vmatpush1.bf16.msra.mxu0 0
      %1178 = vmatprep.subr.bf16.mxu0 0
      %1179 = vmatpush1.bf16.msra.mxu0 %v1109
      %1180 = vmatprep.subr.bf16.mxu0 0
      %1181 = vmatpush1.bf16.msra.mxu0 %v1108
      %1182 = vmatprep.subr.bf16.mxu0 0
      %1183 = vmatpush2.bf16.msra.mxu0 0
      %1184 = vmatprep.subr.bf16.mxu0 0
      %1185 = vmatpush2.bf16.msra.mxu0 0
      %1186 = vmatprep.subr.bf16.mxu0 0
      %1187 = vmatpush2.bf16.msra.mxu0 0
      %1188 = vmatprep.subr.bf16.mxu0 0
      %1189 = vmatpush2.bf16.msra.mxu0 0
      %1190 = vmatprep.subr.bf16.mxu0 0
      %1191 = vmatpush2.bf16.msra.mxu0 0
      %1192 = vmatprep.subr.bf16.mxu0 0
      %1193 = vmatpush2.bf16.msra.mxu0 0
      %1194 = vmatprep.subr.bf16.mxu0 0
      %1195 = vmatpush2.bf16.msra.mxu0 0
      %1196 = vmatprep.subr.bf16.mxu0 0
      %1197 = vmatpush2.bf16.msra.mxu0 0
      %1198 = vmatprep.mubr.bf16.mxu0 0
      %1199 = vmatmul.mubr.bf16.gmra.mxu0 %v1113
      %v1200 = vpop.f32.mrf.mxu0
      %v1201 = vadd.f32 0.0, %v1200
      %v1202 = vpop.f32.mrf.mxu0
      %v1203 = vpop.f32.mrf.mxu0
      %v1204 = vadd.f32 0.0, %v1203
      %v1205 = vpop.f32.mrf.mxu0
      %1206 = vmatprep.mubr.bf16.mxu0 0
      %1207 = vmatmul.mubr.bf16.gmra.mxu0 %v1116
      %v1208 = vpop.f32.mrf.mxu0
      %v1209 = vadd.f32 0.0, %v1208
      %v1210 = vpop.f32.mrf.mxu0
      %v1211 = vpop.f32.mrf.mxu0
      %v1212 = vadd.f32 0.0, %v1211
      %v1213 = vpop.f32.mrf.mxu0
      %1214 = vmatprep.mubr.bf16.mxu0 0
      %1215 = vmatmul.mubr.bf16.gmra.mxu0 %v1119
      %v1216 = vpop.f32.mrf.mxu0
      %v1217 = vadd.f32 0.0, %v1216
      %v1218 = vpop.f32.mrf.mxu0
      %v1219 = vpop.f32.mrf.mxu0
      %v1220 = vadd.f32 0.0, %v1219
      %v1221 = vpop.f32.mrf.mxu0
      %1222 = vmatprep.mubr.bf16.mxu0 0
      %1223 = vmatmul.mubr.bf16.gmra.mxu0 %v1122
      %v1224 = vpop.f32.mrf.mxu0
      %v1225 = vadd.f32 0.0, %v1224
      %v1226 = vpop.f32.mrf.mxu0
      %v1227 = vpop.f32.mrf.mxu0
      %v1228 = vadd.f32 0.0, %v1227
      %v1229 = vpop.f32.mrf.mxu0
      %1230 = vmatprep.mubr.bf16.mxu0 0
      %1231 = vmatmul.mubr.bf16.gmra.mxu0 %v1125
      %v1232 = vpop.f32.mrf.mxu0
      %v1233 = vadd.f32 0.0, %v1232
      %v1234 = vpop.f32.mrf.mxu0
      %v1235 = vpop.f32.mrf.mxu0
      %v1236 = vadd.f32 0.0, %v1235
      %v1237 = vpop.f32.mrf.mxu0
      %1238 = vmatprep.mubr.bf16.mxu0 0
      %1239 = vmatmul.mubr.bf16.gmra.mxu0 %v1128
      %v1240 = vpop.f32.mrf.mxu0
      %v1241 = vadd.f32 0.0, %v1240
      %v1242 = vpop.f32.mrf.mxu0
      %v1243 = vpop.f32.mrf.mxu0
      %v1244 = vadd.f32 0.0, %v1243
      %v1245 = vpop.f32.mrf.mxu0
      %1246 = vmatprep.mubr.bf16.mxu0 0
      %1247 = vmatmul.mubr.bf16.gmra.mxu0 %v1131
      %v1248 = vpop.f32.mrf.mxu0
      %v1249 = vadd.f32 0.0, %v1248
      %v1250 = vpop.f32.mrf.mxu0
      %v1251 = vpop.f32.mrf.mxu0
      %v1252 = vadd.f32 0.0, %v1251
      %v1253 = vpop.f32.mrf.mxu0
      %1254 = vmatprep.mubr.bf16.mxu0 0
      %1255 = vmatmul.mubr.bf16.gmra.mxu0 %v1134
      %v1256 = vpop.f32.mrf.mxu0
      %v1257 = vadd.f32 0.0, %v1256
      %v1258 = vpop.f32.mrf.mxu0
      %v1259 = vpop.f32.mrf.mxu0
      %v1260 = vadd.f32 0.0, %v1259
      %v1261 = vpop.f32.mrf.mxu0
      %1262 = vmatprep.mubr.bf16.mxu0 0
      %1263 = vmatmul.mubr.bf16.gmra.mxu0 %v1137
      %v1264 = vpop.f32.mrf.mxu0
      %v1265 = vadd.f32 0.0, %v1264
      %v1266 = vpop.f32.mrf.mxu0
      %v1267 = vpop.f32.mrf.mxu0
      %v1268 = vadd.f32 0.0, %v1267
      %v1269 = vpop.f32.mrf.mxu0
      %1270 = vmatprep.mubr.bf16.mxu0 0
      %1271 = vmatmul.mubr.bf16.gmra.mxu0 %v1140
      %v1272 = vpop.f32.mrf.mxu0
      %v1273 = vadd.f32 0.0, %v1272
      %v1274 = vpop.f32.mrf.mxu0
      %v1275 = vpop.f32.mrf.mxu0
      %v1276 = vadd.f32 0.0, %v1275
      %v1277 = vpop.f32.mrf.mxu0
      %1278 = vmatprep.mubr.bf16.mxu0 0
      %1279 = vmatmul.mubr.bf16.gmra.mxu0 %v1143
      %v1280 = vpop.f32.mrf.mxu0
      %v1281 = vadd.f32 0.0, %v1280
      %v1282 = vpop.f32.mrf.mxu0
      %v1283 = vpop.f32.mrf.mxu0
      %v1284 = vadd.f32 0.0, %v1283
      %v1285 = vpop.f32.mrf.mxu0
      %1286 = vmatprep.mubr.bf16.mxu0 0
      %1287 = vmatmul.mubr.bf16.gmra.mxu0 %v1146
      %v1288 = vpop.f32.mrf.mxu0
      %v1289 = vadd.f32 0.0, %v1288
      %v1290 = vpop.f32.mrf.mxu0
      %v1291 = vpop.f32.mrf.mxu0
      %v1292 = vadd.f32 0.0, %v1291
      %v1293 = vpop.f32.mrf.mxu0
      %1294 = vmatprep.mubr.bf16.mxu0 0
      %1295 = vmatmul.mubr.bf16.gmra.mxu0 %v1149
      %v1296 = vpop.f32.mrf.mxu0
      %v1297 = vadd.f32 0.0, %v1296
      %v1298 = vpop.f32.mrf.mxu0
      %v1299 = vpop.f32.mrf.mxu0
      %v1300 = vadd.f32 0.0, %v1299
      %v1301 = vpop.f32.mrf.mxu0
      %1302 = vmatprep.mubr.bf16.mxu0 0
      %1303 = vmatmul.mubr.bf16.gmra.mxu0 %v1152
      %v1304 = vpop.f32.mrf.mxu0
      %v1305 = vadd.f32 0.0, %v1304
      %v1306 = vpop.f32.mrf.mxu0
      %v1307 = vpop.f32.mrf.mxu0
      %v1308 = vadd.f32 0.0, %v1307
      %v1309 = vpop.f32.mrf.mxu0
      %1310 = vmatprep.mubr.bf16.mxu0 0
      %1311 = vmatmul.mubr.bf16.gmra.mxu0 %v1155
      %v1312 = vpop.f32.mrf.mxu0
      %v1313 = vadd.f32 0.0, %v1312
      %v1314 = vpop.f32.mrf.mxu0
      %v1315 = vpop.f32.mrf.mxu0
      %v1316 = vadd.f32 0.0, %v1315
      %v1317 = vpop.f32.mrf.mxu0
      %1318 = vmatprep.mubr.bf16.mxu0 0
      %1319 = vmatmul.mubr.bf16.gmra.mxu0 %v1158
      %v1320 = vpop.f32.mrf.mxu0
      %v1321 = vadd.f32 0.0, %v1320
      %v1322 = vpop.f32.mrf.mxu0
      %v1323 = vpop.f32.mrf.mxu0
      %v1324 = vadd.f32 0.0, %v1323
      %v1325 = vpop.f32.mrf.mxu0
      %1326 = vmatprep.mubr.bf16.mxu0 0
      %1327 = vmatmul.mubr.bf16.gmra.mxu0 %v1161
      %v1328 = vpop.f32.mrf.mxu0
      %v1329 = vadd.f32 0.0, %v1328
      %v1330 = vpop.f32.mrf.mxu0
      %v1331 = vpop.f32.mrf.mxu0
      %v1332 = vadd.f32 0.0, %v1331
      %v1333 = vpop.f32.mrf.mxu0
      %1334 = vmatprep.mubr.bf16.mxu0 0
      %1335 = vmatmul.mubr.bf16.gmra.mxu0 %v1164
      %v1336 = vpop.f32.mrf.mxu0
      %v1337 = vadd.f32 0.0, %v1336
      %v1338 = vpop.f32.mrf.mxu0
      %v1339 = vpop.f32.mrf.mxu0
      %v1340 = vadd.f32 0.0, %v1339
      %v1341 = vpop.f32.mrf.mxu0
      %1342 = vdwg.mxu0
      %v1343 = vadd.f32 %v911, %v1201
      %v1344 = vadd.f32 %v914, %v1204
      %v1345 = vadd.f32 %v919, %v1209
      %v1346 = vadd.f32 %v922, %v1212
      %v1347 = vadd.f32 %v927, %v1217
      %v1348 = vadd.f32 %v930, %v1220
      %v1349 = vadd.f32 %v935, %v1225
      %v1350 = vadd.f32 %v938, %v1228
      %v1351 = vadd.f32 %v943, %v1233
      %v1352 = vadd.f32 %v946, %v1236
      %v1353 = vadd.f32 %v951, %v1241
      %v1354 = vadd.f32 %v954, %v1244
      %v1355 = vadd.f32 %v959, %v1249
      %v1356 = vadd.f32 %v962, %v1252
      %v1357 = vadd.f32 %v967, %v1257
      %v1358 = vadd.f32 %v970, %v1260
      %v1359 = vadd.f32 %v975, %v1265
      %v1360 = vadd.f32 %v978, %v1268
      %v1361 = vadd.f32 %v983, %v1273
      %v1362 = vadd.f32 %v986, %v1276
      %v1363 = vadd.f32 %v991, %v1281
      %v1364 = vadd.f32 %v994, %v1284
      %v1365 = vadd.f32 %v999, %v1289
      %v1366 = vadd.f32 %v1002, %v1292
      %v1367 = vadd.f32 %v1007, %v1297
      %v1368 = vadd.f32 %v1010, %v1300
      %v1369 = vadd.f32 %v1015, %v1305
      %v1370 = vadd.f32 %v1018, %v1308
      %v1371 = vadd.f32 %v1023, %v1313
      %v1372 = vadd.f32 %v1026, %v1316
      %v1373 = vadd.f32 %v1031, %v1321
      %v1374 = vadd.f32 %v1034, %v1324
      %v1375 = vadd.f32 %v1039, %v1329
      %v1376 = vadd.f32 %v1042, %v1332
      %v1377 = vadd.f32 %v1047, %v1337
      %v1378 = vadd.f32 %v1050, %v1340
      %v1379 = vld [vmem:[%s277 + $0x8] sm:$0xe]
      %v1380 = vld [vmem:[%s277 + $0xc] sm:$0xf]
      %v1381 = vld [vmem:[%s277 + $0x10] sm:$0xf]
      %v1382 = vld [vmem:[%s277 + $0x14] sm:$0xf]
      %v1383 = vld [vmem:[%s277 + $0x18] sm:$0xf]
      %v1384 = vld [vmem:[%s277 + $0x1c] sm:$0xf]
      %v1385 = vld [vmem:[%s277 + $0x20] sm:$0xf]
      %v1386 = vld [vmem:[%s277 + $0x24] sm:$0xf]
      %v1387 = vld [vmem:[%s277 + $0x28] sm:$0xf]
      %v1388 = vld [vmem:[%s277 + $0x2c] sm:$0xf]
      %v1389 = vld [vmem:[%s277 + $0x30] sm:$0xf]
      %v1390 = vld [vmem:[%s277 + $0x34] sm:$0xf]
      %v1391 = vld [vmem:[%s277 + $0x38] sm:$0xf]
      %v1392 = vld [vmem:[%s277 + $0x3c] sm:$0xf]
      %v1393 = vld [vmem:[%s277 + $0x40] sm:$0xf]
      %v1394 = vld [vmem:[%s277 + $0x44] sm:$0xf]
      %v1395 = vld [vmem:[%s277 + $0x48] sm:$0xf]
      %v1396 = vld [vmem:[%s277 + $0x4c] sm:$0xf]
      %v1397 = vld [vmem:[%s277 + $0x50] sm:$0xf]
      %v1398 = vld [vmem:[%s277 + $0x54] sm:$0xf]
      %v1399 = vld [vmem:[%s277 + $0x58] sm:$0xf]
      %v1400 = vld [vmem:[%s277 + $0x5c] sm:$0xf]
      %v1401 = vld [vmem:[%s277 + $0x60] sm:$0xf]
      %v1402 = vld [vmem:[%s277 + $0x64] sm:$0xf]
      %v1403 = vld [vmem:[%s277 + $0x68] sm:$0xf]
      %v1404 = vld [vmem:[%s277 + $0x6c] sm:$0xf]
      %v1405 = vld [vmem:[%s277 + $0x70] sm:$0xf]
      %v1406 = vld [vmem:[%s277 + $0x74] sm:$0xf]
      %v1407 = vld [vmem:[%s277 + $0x78] sm:$0xf]
      %v1408 = vld [vmem:[%s277 + $0x7c] sm:$0xf]
      %v1409 = vld [vmem:[%s277 + $0x80] sm:$0xf]
      %v1410 = vld [vmem:[%s277 + $0x84] sm:$0xf]
      %v1411 = vld [vmem:[%s277 + $0x88] sm:$0xf]
      %v1412 = vld [vmem:[%s277 + $0x8c] sm:$0xf]
      %v1413 = vld [vmem:[%s277 + $0x90] sm:$0xf]
      %v1414 = vld [vmem:[%s277 + $0x94] sm:$0xf]
      %v1415 = vld [vmem:[%s277 + $0x98] sm:$0x1]
      %s1416 = scalar_lea.vmem %s1, 48
      %v1417 = vld [vmem:[%s1416] sm:$0xf]
      %v1418 = vld [vmem:[%s1416 + $0x4] sm:$0xf]
      %v1419 = vld [vmem:[%s1416 + $0x8] sm:$0xf]
      %v1420 = vld [vmem:[%s1416 + $0xc] sm:$0xf]
      %v1458 = vunpack.c.l.b16 %v1379
      %v1459 = vunpack.c.l.b16 %v1380
      %v1460 = vunpack.c.l.b16 %v1381
      %v1461 = vunpack.c.l.b16 %v1382
      %v1462 = vunpack.c.l.b16 %v1383
      %v1463 = vunpack.c.l.b16 %v1384
      %v1464 = vunpack.c.l.b16 %v1385
      %v1465 = vunpack.c.l.b16 %v1386
      %v1466 = vunpack.c.l.b16 %v1387
      %v1467 = vunpack.c.l.b16 %v1388
      %v1468 = vunpack.c.l.b16 %v1389
      %v1469 = vunpack.c.l.b16 %v1390
      %v1470 = vunpack.c.l.b16 %v1391
      %v1471 = vunpack.c.l.b16 %v1392
      %v1472 = vunpack.c.l.b16 %v1393
      %v1473 = vunpack.c.l.b16 %v1394
      %v1474 = vunpack.c.l.b16 %v1395
      %v1475 = vunpack.c.l.b16 %v1396
      %v1476 = vunpack.c.l.b16 %v1397
      %v1477 = vunpack.c.l.b16 %v1398
      %v1478 = vunpack.c.l.b16 %v1399
      %v1479 = vunpack.c.l.b16 %v1400
      %v1480 = vunpack.c.l.b16 %v1401
      %v1481 = vunpack.c.l.b16 %v1402
      %v1482 = vunpack.c.l.b16 %v1403
      %v1483 = vunpack.c.l.b16 %v1404
      %v1484 = vunpack.c.l.b16 %v1405
      %v1485 = vunpack.c.l.b16 %v1406
      %v1486 = vunpack.c.l.b16 %v1407
      %v1487 = vunpack.c.l.b16 %v1408
      %v1488 = vunpack.c.l.b16 %v1409
      %v1489 = vunpack.c.l.b16 %v1410
      %v1490 = vunpack.c.l.b16 %v1411
      %v1491 = vunpack.c.l.b16 %v1412
      %v1492 = vunpack.c.l.b16 %v1413
      %v1493 = vunpack.c.l.b16 %v1414
      %v1494 = vunpack.c.l.b16 %v1415
      %v1495 = vpack.c.b16 %v1459, %v1458
      %v1496 = vpack.c.b16 %v1461, %v1460
      %v1497 = vpack.c.b16 %v1463, %v1462
      %v1498 = vpack.c.b16 %v1465, %v1464
      %v1499 = vpack.c.b16 %v1467, %v1466
      %v1500 = vpack.c.b16 %v1469, %v1468
      %v1501 = vpack.c.b16 %v1471, %v1470
      %v1502 = vpack.c.b16 %v1473, %v1472
      %v1503 = vpack.c.b16 %v1475, %v1474
      %v1504 = vpack.c.b16 %v1477, %v1476
      %v1505 = vpack.c.b16 %v1479, %v1478
      %v1506 = vpack.c.b16 %v1481, %v1480
      %v1507 = vpack.c.b16 %v1483, %v1482
      %v1508 = vpack.c.b16 %v1485, %v1484
      %v1509 = vpack.c.b16 %v1487, %v1486
      %v1510 = vpack.c.b16 %v1489, %v1488
      %v1511 = vpack.c.b16 %v1491, %v1490
      %v1512 = vpack.c.b16 %v1493, %v1492
      %v1513 = vpack.c.b16 %v1494, %v1494
      %v1514 = vrot.slane %v1495, 1
      %v1515 = vrot.slane %v1496, 1
      %v1516 = vsel %vm1062, %v1514, %v1515
      %v1517 = vrot.slane %v1497, 1
      %v1518 = vsel %vm1062, %v1515, %v1517
      %v1519 = vrot.slane %v1498, 1
      %v1520 = vsel %vm1062, %v1517, %v1519
      %v1521 = vrot.slane %v1499, 1
      %v1522 = vsel %vm1062, %v1519, %v1521
      %v1523 = vrot.slane %v1500, 1
      %v1524 = vsel %vm1062, %v1521, %v1523
      %v1525 = vrot.slane %v1501, 1
      %v1526 = vsel %vm1062, %v1523, %v1525
      %v1527 = vrot.slane %v1502, 1
      %v1528 = vsel %vm1062, %v1525, %v1527
      %v1529 = vrot.slane %v1503, 1
      %v1530 = vsel %vm1062, %v1527, %v1529
      %v1531 = vrot.slane %v1504, 1
      %v1532 = vsel %vm1062, %v1529, %v1531
      %v1533 = vrot.slane %v1505, 1
      %v1534 = vsel %vm1062, %v1531, %v1533
      %v1535 = vrot.slane %v1506, 1
      %v1536 = vsel %vm1062, %v1533, %v1535
      %v1537 = vrot.slane %v1507, 1
      %v1538 = vsel %vm1062, %v1535, %v1537
      %v1539 = vrot.slane %v1508, 1
      %v1540 = vsel %vm1062, %v1537, %v1539
      %v1541 = vrot.slane %v1509, 1
      %v1542 = vsel %vm1062, %v1539, %v1541
      %v1543 = vrot.slane %v1510, 1
      %v1544 = vsel %vm1062, %v1541, %v1543
      %v1545 = vrot.slane %v1511, 1
      %v1546 = vsel %vm1062, %v1543, %v1545
      %v1547 = vrot.slane %v1512, 1
      %v1548 = vsel %vm1062, %v1545, %v1547
      %v1549 = vrot.slane %v1513, 1
      %v1550 = vsel %vm1062, %v1547, %v1549
      %v1555 = vunpack.c.l.b16 %v1417
      %v1556 = vunpack.c.l.b16 %v1418
      %v1557 = vunpack.c.l.b16 %v1419
      %v1558 = vunpack.c.l.b16 %v1420
      %v1559 = vpack.c.b16 %v1556, %v1555
      %v1560 = vpack.c.b16 %v1558, %v1557
      %v1564 = vsel %vm596, %v1516, 0
      %v1567 = vsel %vm596, %v1518, 0
      %v1570 = vsel %vm596, %v1520, 0
      %v1573 = vsel %vm596, %v1522, 0
      %v1576 = vsel %vm596, %v1524, 0
      %v1579 = vsel %vm596, %v1526, 0
      %v1582 = vsel %vm596, %v1528, 0
      %v1585 = vsel %vm596, %v1530, 0
      %v1588 = vsel %vm596, %v1532, 0
      %v1591 = vsel %vm596, %v1534, 0
      %v1594 = vsel %vm596, %v1536, 0
      %v1597 = vsel %vm596, %v1538, 0
      %v1600 = vsel %vm596, %v1540, 0
      %v1603 = vsel %vm596, %v1542, 0
      %v1606 = vsel %vm596, %v1544, 0
      %v1609 = vsel %vm596, %v1546, 0
      %v1612 = vsel %vm596, %v1548, 0
      %v1615 = vsel %vm596, %v1550, 0
      %1617 = vmatprep.subr.bf16.mxu0 0
      %1618 = vmatpush1.bf16.msra.mxu0 0
      %1619 = vmatprep.subr.bf16.mxu0 0
      %1620 = vmatpush1.bf16.msra.mxu0 0
      %1621 = vmatprep.subr.bf16.mxu0 0
      %1622 = vmatpush1.bf16.msra.mxu0 0
      %1623 = vmatprep.subr.bf16.mxu0 0
      %1624 = vmatpush1.bf16.msra.mxu0 0
      %1625 = vmatprep.subr.bf16.mxu0 0
      %1626 = vmatpush1.bf16.msra.mxu0 0
      %1627 = vmatprep.subr.bf16.mxu0 0
      %1628 = vmatpush1.bf16.msra.mxu0 0
      %1629 = vmatprep.subr.bf16.mxu0 0
      %1630 = vmatpush1.bf16.msra.mxu0 %v1560
      %1631 = vmatprep.subr.bf16.mxu0 0
      %1632 = vmatpush1.bf16.msra.mxu0 %v1559
      %1633 = vmatprep.subr.bf16.mxu0 0
      %1634 = vmatpush2.bf16.msra.mxu0 0
      %1635 = vmatprep.subr.bf16.mxu0 0
      %1636 = vmatpush2.bf16.msra.mxu0 0
      %1637 = vmatprep.subr.bf16.mxu0 0
      %1638 = vmatpush2.bf16.msra.mxu0 0
      %1639 = vmatprep.subr.bf16.mxu0 0
      %1640 = vmatpush2.bf16.msra.mxu0 0
      %1641 = vmatprep.subr.bf16.mxu0 0
      %1642 = vmatpush2.bf16.msra.mxu0 0
      %1643 = vmatprep.subr.bf16.mxu0 0
      %1644 = vmatpush2.bf16.msra.mxu0 0
      %1645 = vmatprep.subr.bf16.mxu0 0
      %1646 = vmatpush2.bf16.msra.mxu0 0
      %1647 = vmatprep.subr.bf16.mxu0 0
      %1648 = vmatpush2.bf16.msra.mxu0 0
      %1649 = vmatprep.mubr.bf16.mxu0 0
      %1650 = vmatmul.mubr.bf16.gmra.mxu0 %v1564
      %v1651 = vpop.f32.mrf.mxu0
      %v1652 = vadd.f32 0.0, %v1651
      %v1653 = vpop.f32.mrf.mxu0
      %v1654 = vpop.f32.mrf.mxu0
      %v1655 = vadd.f32 0.0, %v1654
      %v1656 = vpop.f32.mrf.mxu0
      %1657 = vmatprep.mubr.bf16.mxu0 0
      %1658 = vmatmul.mubr.bf16.gmra.mxu0 %v1567
      %v1659 = vpop.f32.mrf.mxu0
      %v1660 = vadd.f32 0.0, %v1659
      %v1661 = vpop.f32.mrf.mxu0
      %v1662 = vpop.f32.mrf.mxu0
      %v1663 = vadd.f32 0.0, %v1662
      %v1664 = vpop.f32.mrf.mxu0
      %1665 = vmatprep.mubr.bf16.mxu0 0
      %1666 = vmatmul.mubr.bf16.gmra.mxu0 %v1570
      %v1667 = vpop.f32.mrf.mxu0
      %v1668 = vadd.f32 0.0, %v1667
      %v1669 = vpop.f32.mrf.mxu0
      %v1670 = vpop.f32.mrf.mxu0
      %v1671 = vadd.f32 0.0, %v1670
      %v1672 = vpop.f32.mrf.mxu0
      %1673 = vmatprep.mubr.bf16.mxu0 0
      %1674 = vmatmul.mubr.bf16.gmra.mxu0 %v1573
      %v1675 = vpop.f32.mrf.mxu0
      %v1676 = vadd.f32 0.0, %v1675
      %v1677 = vpop.f32.mrf.mxu0
      %v1678 = vpop.f32.mrf.mxu0
      %v1679 = vadd.f32 0.0, %v1678
      %v1680 = vpop.f32.mrf.mxu0
      %1681 = vmatprep.mubr.bf16.mxu0 0
      %1682 = vmatmul.mubr.bf16.gmra.mxu0 %v1576
      %v1683 = vpop.f32.mrf.mxu0
      %v1684 = vadd.f32 0.0, %v1683
      %v1685 = vpop.f32.mrf.mxu0
      %v1686 = vpop.f32.mrf.mxu0
      %v1687 = vadd.f32 0.0, %v1686
      %v1688 = vpop.f32.mrf.mxu0
      %1689 = vmatprep.mubr.bf16.mxu0 0
      %1690 = vmatmul.mubr.bf16.gmra.mxu0 %v1579
      %v1691 = vpop.f32.mrf.mxu0
      %v1692 = vadd.f32 0.0, %v1691
      %v1693 = vpop.f32.mrf.mxu0
      %v1694 = vpop.f32.mrf.mxu0
      %v1695 = vadd.f32 0.0, %v1694
      %v1696 = vpop.f32.mrf.mxu0
      %1697 = vmatprep.mubr.bf16.mxu0 0
      %1698 = vmatmul.mubr.bf16.gmra.mxu0 %v1582
      %v1699 = vpop.f32.mrf.mxu0
      %v1700 = vadd.f32 0.0, %v1699
      %v1701 = vpop.f32.mrf.mxu0
      %v1702 = vpop.f32.mrf.mxu0
      %v1703 = vadd.f32 0.0, %v1702
      %v1704 = vpop.f32.mrf.mxu0
      %1705 = vmatprep.mubr.bf16.mxu0 0
      %1706 = vmatmul.mubr.bf16.gmra.mxu0 %v1585
      %v1707 = vpop.f32.mrf.mxu0
      %v1708 = vadd.f32 0.0, %v1707
      %v1709 = vpop.f32.mrf.mxu0
      %v1710 = vpop.f32.mrf.mxu0
      %v1711 = vadd.f32 0.0, %v1710
      %v1712 = vpop.f32.mrf.mxu0
      %1713 = vmatprep.mubr.bf16.mxu0 0
      %1714 = vmatmul.mubr.bf16.gmra.mxu0 %v1588
      %v1715 = vpop.f32.mrf.mxu0
      %v1716 = vadd.f32 0.0, %v1715
      %v1717 = vpop.f32.mrf.mxu0
      %v1718 = vpop.f32.mrf.mxu0
      %v1719 = vadd.f32 0.0, %v1718
      %v1720 = vpop.f32.mrf.mxu0
      %1721 = vmatprep.mubr.bf16.mxu0 0
      %1722 = vmatmul.mubr.bf16.gmra.mxu0 %v1591
      %v1723 = vpop.f32.mrf.mxu0
      %v1724 = vadd.f32 0.0, %v1723
      %v1725 = vpop.f32.mrf.mxu0
      %v1726 = vpop.f32.mrf.mxu0
      %v1727 = vadd.f32 0.0, %v1726
      %v1728 = vpop.f32.mrf.mxu0
      %1729 = vmatprep.mubr.bf16.mxu0 0
      %1730 = vmatmul.mubr.bf16.gmra.mxu0 %v1594
      %v1731 = vpop.f32.mrf.mxu0
      %v1732 = vadd.f32 0.0, %v1731
      %v1733 = vpop.f32.mrf.mxu0
      %v1734 = vpop.f32.mrf.mxu0
      %v1735 = vadd.f32 0.0, %v1734
      %v1736 = vpop.f32.mrf.mxu0
      %1737 = vmatprep.mubr.bf16.mxu0 0
      %1738 = vmatmul.mubr.bf16.gmra.mxu0 %v1597
      %v1739 = vpop.f32.mrf.mxu0
      %v1740 = vadd.f32 0.0, %v1739
      %v1741 = vpop.f32.mrf.mxu0
      %v1742 = vpop.f32.mrf.mxu0
      %v1743 = vadd.f32 0.0, %v1742
      %v1744 = vpop.f32.mrf.mxu0
      %1745 = vmatprep.mubr.bf16.mxu0 0
      %1746 = vmatmul.mubr.bf16.gmra.mxu0 %v1600
      %v1747 = vpop.f32.mrf.mxu0
      %v1748 = vadd.f32 0.0, %v1747
      %v1749 = vpop.f32.mrf.mxu0
      %v1750 = vpop.f32.mrf.mxu0
      %v1751 = vadd.f32 0.0, %v1750
      %v1752 = vpop.f32.mrf.mxu0
      %1753 = vmatprep.mubr.bf16.mxu0 0
      %1754 = vmatmul.mubr.bf16.gmra.mxu0 %v1603
      %v1755 = vpop.f32.mrf.mxu0
      %v1756 = vadd.f32 0.0, %v1755
      %v1757 = vpop.f32.mrf.mxu0
      %v1758 = vpop.f32.mrf.mxu0
      %v1759 = vadd.f32 0.0, %v1758
      %v1760 = vpop.f32.mrf.mxu0
      %1761 = vmatprep.mubr.bf16.mxu0 0
      %1762 = vmatmul.mubr.bf16.gmra.mxu0 %v1606
      %v1763 = vpop.f32.mrf.mxu0
      %v1764 = vadd.f32 0.0, %v1763
      %v1765 = vpop.f32.mrf.mxu0
      %v1766 = vpop.f32.mrf.mxu0
      %v1767 = vadd.f32 0.0, %v1766
      %v1768 = vpop.f32.mrf.mxu0
      %1769 = vmatprep.mubr.bf16.mxu0 0
      %1770 = vmatmul.mubr.bf16.gmra.mxu0 %v1609
      %v1771 = vpop.f32.mrf.mxu0
      %v1772 = vadd.f32 0.0, %v1771
      %v1773 = vpop.f32.mrf.mxu0
      %v1774 = vpop.f32.mrf.mxu0
      %v1775 = vadd.f32 0.0, %v1774
      %v1776 = vpop.f32.mrf.mxu0
      %1777 = vmatprep.mubr.bf16.mxu0 0
      %1778 = vmatmul.mubr.bf16.gmra.mxu0 %v1612
      %v1779 = vpop.f32.mrf.mxu0
      %v1780 = vadd.f32 0.0, %v1779
      %v1781 = vpop.f32.mrf.mxu0
      %v1782 = vpop.f32.mrf.mxu0
      %v1783 = vadd.f32 0.0, %v1782
      %v1784 = vpop.f32.mrf.mxu0
      %1785 = vmatprep.mubr.bf16.mxu0 0
      %1786 = vmatmul.mubr.bf16.gmra.mxu0 %v1615
      %v1787 = vpop.f32.mrf.mxu0
      %v1788 = vadd.f32 0.0, %v1787
      %v1789 = vpop.f32.mrf.mxu0
      %v1790 = vpop.f32.mrf.mxu0
      %v1791 = vadd.f32 0.0, %v1790
      %v1792 = vpop.f32.mrf.mxu0
      %1793 = vdwg.mxu0
      %v1794 = vadd.f32 %v1343, %v1652
      %v1795 = vadd.f32 %v1344, %v1655
      %v1796 = vadd.f32 %v1345, %v1660
      %v1797 = vadd.f32 %v1346, %v1663
      %v1798 = vadd.f32 %v1347, %v1668
      %v1799 = vadd.f32 %v1348, %v1671
      %v1800 = vadd.f32 %v1349, %v1676
      %v1801 = vadd.f32 %v1350, %v1679
      %v1802 = vadd.f32 %v1351, %v1684
      %v1803 = vadd.f32 %v1352, %v1687
      %v1804 = vadd.f32 %v1353, %v1692
      %v1805 = vadd.f32 %v1354, %v1695
      %v1806 = vadd.f32 %v1355, %v1700
      %v1807 = vadd.f32 %v1356, %v1703
      %v1808 = vadd.f32 %v1357, %v1708
      %v1809 = vadd.f32 %v1358, %v1711
      %v1810 = vadd.f32 %v1359, %v1716
      %v1811 = vadd.f32 %v1360, %v1719
      %v1812 = vadd.f32 %v1361, %v1724
      %v1813 = vadd.f32 %v1362, %v1727
      %v1814 = vadd.f32 %v1363, %v1732
      %v1815 = vadd.f32 %v1364, %v1735
      %v1816 = vadd.f32 %v1365, %v1740
      %v1817 = vadd.f32 %v1366, %v1743
      %v1818 = vadd.f32 %v1367, %v1748
      %v1819 = vadd.f32 %v1368, %v1751
      %v1820 = vadd.f32 %v1369, %v1756
      %v1821 = vadd.f32 %v1370, %v1759
      %v1822 = vadd.f32 %v1371, %v1764
      %v1823 = vadd.f32 %v1372, %v1767
      %v1824 = vadd.f32 %v1373, %v1772
      %v1825 = vadd.f32 %v1374, %v1775
      %v1826 = vadd.f32 %v1375, %v1780
      %v1827 = vadd.f32 %v1376, %v1783
      %v1828 = vadd.f32 %v1377, %v1788
      %v1829 = vadd.f32 %v1378, %v1791
      %v1830 = vld [vmem:[%s277 + $0x98] sm:$0x3]
      %s1831 = scalar_lea.vmem %s1, 64
      %v1832 = vld [vmem:[%s1831] sm:$0xf]
      %v1833 = vld [vmem:[%s1831 + $0x4] sm:$0xf]
      %v1834 = vld [vmem:[%s1831 + $0x8] sm:$0xf]
      %v1835 = vld [vmem:[%s1831 + $0xc] sm:$0xf]
      %v1837 = vunpack.c.l.b16 %v1830
      %v1838 = vpack.c.b16 %v1837, %v1837
      %vm1839 = vsmask.f32 6400
      %v1841 = vshrl.u32 %v1495, 16
      %v1843 = vrot.slane %v1841, 1
      %v1844 = vshll.u32 %v1495, 16
      %v1846 = vrot.slane %v1844, 2
      %v1847 = vor.u32 %v1843, %v1846
      %v1849 = vshrl.u32 %v1496, 16
      %v1851 = vrot.slane %v1849, 1
      %v1852 = vshll.u32 %v1496, 16
      %v1854 = vrot.slane %v1852, 2
      %v1855 = vor.u32 %v1851, %v1854
      %v1856 = vsel %vm1839, %v1847, %v1855
      %v1858 = vshrl.u32 %v1497, 16
      %v1860 = vrot.slane %v1858, 1
      %v1861 = vshll.u32 %v1497, 16
      %v1863 = vrot.slane %v1861, 2
      %v1864 = vor.u32 %v1860, %v1863
      %v1865 = vsel %vm1839, %v1855, %v1864
      %v1867 = vshrl.u32 %v1498, 16
      %v1869 = vrot.slane %v1867, 1
      %v1870 = vshll.u32 %v1498, 16
      %v1872 = vrot.slane %v1870, 2
      %v1873 = vor.u32 %v1869, %v1872
      %v1874 = vsel %vm1839, %v1864, %v1873
      %v1876 = vshrl.u32 %v1499, 16
      %v1878 = vrot.slane %v1876, 1
      %v1879 = vshll.u32 %v1499, 16
      %v1881 = vrot.slane %v1879, 2
      %v1882 = vor.u32 %v1878, %v1881
      %v1883 = vsel %vm1839, %v1873, %v1882
      %v1885 = vshrl.u32 %v1500, 16
      %v1887 = vrot.slane %v1885, 1
      %v1888 = vshll.u32 %v1500, 16
      %v1890 = vrot.slane %v1888, 2
      %v1891 = vor.u32 %v1887, %v1890
      %v1892 = vsel %vm1839, %v1882, %v1891
      %v1894 = vshrl.u32 %v1501, 16
      %v1896 = vrot.slane %v1894, 1
      %v1897 = vshll.u32 %v1501, 16
      %v1899 = vrot.slane %v1897, 2
      %v1900 = vor.u32 %v1896, %v1899
      %v1901 = vsel %vm1839, %v1891, %v1900
      %v1903 = vshrl.u32 %v1502, 16
      %v1905 = vrot.slane %v1903, 1
      %v1906 = vshll.u32 %v1502, 16
      %v1908 = vrot.slane %v1906, 2
      %v1909 = vor.u32 %v1905, %v1908
      %v1910 = vsel %vm1839, %v1900, %v1909
      %v1912 = vshrl.u32 %v1503, 16
      %v1914 = vrot.slane %v1912, 1
      %v1915 = vshll.u32 %v1503, 16
      %v1917 = vrot.slane %v1915, 2
      %v1918 = vor.u32 %v1914, %v1917
      %v1919 = vsel %vm1839, %v1909, %v1918
      %v1921 = vshrl.u32 %v1504, 16
      %v1923 = vrot.slane %v1921, 1
      %v1924 = vshll.u32 %v1504, 16
      %v1926 = vrot.slane %v1924, 2
      %v1927 = vor.u32 %v1923, %v1926
      %v1928 = vsel %vm1839, %v1918, %v1927
      %v1930 = vshrl.u32 %v1505, 16
      %v1932 = vrot.slane %v1930, 1
      %v1933 = vshll.u32 %v1505, 16
      %v1935 = vrot.slane %v1933, 2
      %v1936 = vor.u32 %v1932, %v1935
      %v1937 = vsel %vm1839, %v1927, %v1936
      %v1939 = vshrl.u32 %v1506, 16
      %v1941 = vrot.slane %v1939, 1
      %v1942 = vshll.u32 %v1506, 16
      %v1944 = vrot.slane %v1942, 2
      %v1945 = vor.u32 %v1941, %v1944
      %v1946 = vsel %vm1839, %v1936, %v1945
      %v1948 = vshrl.u32 %v1507, 16
      %v1950 = vrot.slane %v1948, 1
      %v1951 = vshll.u32 %v1507, 16
      %v1953 = vrot.slane %v1951, 2
      %v1954 = vor.u32 %v1950, %v1953
      %v1955 = vsel %vm1839, %v1945, %v1954
      %v1957 = vshrl.u32 %v1508, 16
      %v1959 = vrot.slane %v1957, 1
      %v1960 = vshll.u32 %v1508, 16
      %v1962 = vrot.slane %v1960, 2
      %v1963 = vor.u32 %v1959, %v1962
      %v1964 = vsel %vm1839, %v1954, %v1963
      %v1966 = vshrl.u32 %v1509, 16
      %v1968 = vrot.slane %v1966, 1
      %v1969 = vshll.u32 %v1509, 16
      %v1971 = vrot.slane %v1969, 2
      %v1972 = vor.u32 %v1968, %v1971
      %v1973 = vsel %vm1839, %v1963, %v1972
      %v1975 = vshrl.u32 %v1510, 16
      %v1977 = vrot.slane %v1975, 1
      %v1978 = vshll.u32 %v1510, 16
      %v1980 = vrot.slane %v1978, 2
      %v1981 = vor.u32 %v1977, %v1980
      %v1982 = vsel %vm1839, %v1972, %v1981
      %v1984 = vshrl.u32 %v1511, 16
      %v1986 = vrot.slane %v1984, 1
      %v1987 = vshll.u32 %v1511, 16
      %v1989 = vrot.slane %v1987, 2
      %v1990 = vor.u32 %v1986, %v1989
      %v1991 = vsel %vm1839, %v1981, %v1990
      %v1993 = vshrl.u32 %v1512, 16
      %v1995 = vrot.slane %v1993, 1
      %v1996 = vshll.u32 %v1512, 16
      %v1998 = vrot.slane %v1996, 2
      %v1999 = vor.u32 %v1995, %v1998
      %v2000 = vsel %vm1839, %v1990, %v1999
      %v2002 = vshrl.u32 %v1838, 16
      %v2004 = vrot.slane %v2002, 1
      %v2005 = vshll.u32 %v1838, 16
      %v2007 = vrot.slane %v2005, 2
      %v2008 = vor.u32 %v2004, %v2007
      %v2009 = vsel %vm1839, %v1999, %v2008
      %v2014 = vunpack.c.l.b16 %v1832
      %v2015 = vunpack.c.l.b16 %v1833
      %v2016 = vunpack.c.l.b16 %v1834
      %v2017 = vunpack.c.l.b16 %v1835
      %v2018 = vpack.c.b16 %v2015, %v2014
      %v2019 = vpack.c.b16 %v2017, %v2016
      %v2023 = vsel %vm596, %v1856, 0
      %v2026 = vsel %vm596, %v1865, 0
      %v2029 = vsel %vm596, %v1874, 0
      %v2032 = vsel %vm596, %v1883, 0
      %v2035 = vsel %vm596, %v1892, 0
      %v2038 = vsel %vm596, %v1901, 0
      %v2041 = vsel %vm596, %v1910, 0
      %v2044 = vsel %vm596, %v1919, 0
      %v2047 = vsel %vm596, %v1928, 0
      %v2050 = vsel %vm596, %v1937, 0
      %v2053 = vsel %vm596, %v1946, 0
      %v2056 = vsel %vm596, %v1955, 0
      %v2059 = vsel %vm596, %v1964, 0
      %v2062 = vsel %vm596, %v1973, 0
      %v2065 = vsel %vm596, %v1982, 0
      %v2068 = vsel %vm596, %v1991, 0
      %v2071 = vsel %vm596, %v2000, 0
      %v2074 = vsel %vm596, %v2009, 0
      %2076 = vmatprep.subr.bf16.mxu0 0
      %2077 = vmatpush1.bf16.msra.mxu0 0
      %2078 = vmatprep.subr.bf16.mxu0 0
      %2079 = vmatpush1.bf16.msra.mxu0 0
      %2080 = vmatprep.subr.bf16.mxu0 0
      %2081 = vmatpush1.bf16.msra.mxu0 0
      %2082 = vmatprep.subr.bf16.mxu0 0
      %2083 = vmatpush1.bf16.msra.mxu0 0
      %2084 = vmatprep.subr.bf16.mxu0 0
      %2085 = vmatpush1.bf16.msra.mxu0 0
      %2086 = vmatprep.subr.bf16.mxu0 0
      %2087 = vmatpush1.bf16.msra.mxu0 0
      %2088 = vmatprep.subr.bf16.mxu0 0
      %2089 = vmatpush1.bf16.msra.mxu0 %v2019
      %2090 = vmatprep.subr.bf16.mxu0 0
      %2091 = vmatpush1.bf16.msra.mxu0 %v2018
      %2092 = vmatprep.subr.bf16.mxu0 0
      %2093 = vmatpush2.bf16.msra.mxu0 0
      %2094 = vmatprep.subr.bf16.mxu0 0
      %2095 = vmatpush2.bf16.msra.mxu0 0
      %2096 = vmatprep.subr.bf16.mxu0 0
      %2097 = vmatpush2.bf16.msra.mxu0 0
      %2098 = vmatprep.subr.bf16.mxu0 0
      %2099 = vmatpush2.bf16.msra.mxu0 0
      %2100 = vmatprep.subr.bf16.mxu0 0
      %2101 = vmatpush2.bf16.msra.mxu0 0
      %2102 = vmatprep.subr.bf16.mxu0 0
      %2103 = vmatpush2.bf16.msra.mxu0 0
      %2104 = vmatprep.subr.bf16.mxu0 0
      %2105 = vmatpush2.bf16.msra.mxu0 0
      %2106 = vmatprep.subr.bf16.mxu0 0
      %2107 = vmatpush2.bf16.msra.mxu0 0
      %2108 = vmatprep.mubr.bf16.mxu0 0
      %2109 = vmatmul.mubr.bf16.gmra.mxu0 %v2023
      %v2110 = vpop.f32.mrf.mxu0
      %v2111 = vadd.f32 0.0, %v2110
      %v2112 = vpop.f32.mrf.mxu0
      %v2113 = vpop.f32.mrf.mxu0
      %v2114 = vadd.f32 0.0, %v2113
      %v2115 = vpop.f32.mrf.mxu0
      %2116 = vmatprep.mubr.bf16.mxu0 0
      %2117 = vmatmul.mubr.bf16.gmra.mxu0 %v2026
      %v2118 = vpop.f32.mrf.mxu0
      %v2119 = vadd.f32 0.0, %v2118
      %v2120 = vpop.f32.mrf.mxu0
      %v2121 = vpop.f32.mrf.mxu0
      %v2122 = vadd.f32 0.0, %v2121
      %v2123 = vpop.f32.mrf.mxu0
      %2124 = vmatprep.mubr.bf16.mxu0 0
      %2125 = vmatmul.mubr.bf16.gmra.mxu0 %v2029
      %v2126 = vpop.f32.mrf.mxu0
      %v2127 = vadd.f32 0.0, %v2126
      %v2128 = vpop.f32.mrf.mxu0
      %v2129 = vpop.f32.mrf.mxu0
      %v2130 = vadd.f32 0.0, %v2129
      %v2131 = vpop.f32.mrf.mxu0
      %2132 = vmatprep.mubr.bf16.mxu0 0
      %2133 = vmatmul.mubr.bf16.gmra.mxu0 %v2032
      %v2134 = vpop.f32.mrf.mxu0
      %v2135 = vadd.f32 0.0, %v2134
      %v2136 = vpop.f32.mrf.mxu0
      %v2137 = vpop.f32.mrf.mxu0
      %v2138 = vadd.f32 0.0, %v2137
      %v2139 = vpop.f32.mrf.mxu0
      %2140 = vmatprep.mubr.bf16.mxu0 0
      %2141 = vmatmul.mubr.bf16.gmra.mxu0 %v2035
      %v2142 = vpop.f32.mrf.mxu0
      %v2143 = vadd.f32 0.0, %v2142
      %v2144 = vpop.f32.mrf.mxu0
      %v2145 = vpop.f32.mrf.mxu0
      %v2146 = vadd.f32 0.0, %v2145
      %v2147 = vpop.f32.mrf.mxu0
      %2148 = vmatprep.mubr.bf16.mxu0 0
      %2149 = vmatmul.mubr.bf16.gmra.mxu0 %v2038
      %v2150 = vpop.f32.mrf.mxu0
      %v2151 = vadd.f32 0.0, %v2150
      %v2152 = vpop.f32.mrf.mxu0
      %v2153 = vpop.f32.mrf.mxu0
      %v2154 = vadd.f32 0.0, %v2153
      %v2155 = vpop.f32.mrf.mxu0
      %2156 = vmatprep.mubr.bf16.mxu0 0
      %2157 = vmatmul.mubr.bf16.gmra.mxu0 %v2041
      %v2158 = vpop.f32.mrf.mxu0
      %v2159 = vadd.f32 0.0, %v2158
      %v2160 = vpop.f32.mrf.mxu0
      %v2161 = vpop.f32.mrf.mxu0
      %v2162 = vadd.f32 0.0, %v2161
      %v2163 = vpop.f32.mrf.mxu0
      %2164 = vmatprep.mubr.bf16.mxu0 0
      %2165 = vmatmul.mubr.bf16.gmra.mxu0 %v2044
      %v2166 = vpop.f32.mrf.mxu0
      %v2167 = vadd.f32 0.0, %v2166
      %v2168 = vpop.f32.mrf.mxu0
      %v2169 = vpop.f32.mrf.mxu0
      %v2170 = vadd.f32 0.0, %v2169
      %v2171 = vpop.f32.mrf.mxu0
      %2172 = vmatprep.mubr.bf16.mxu0 0
      %2173 = vmatmul.mubr.bf16.gmra.mxu0 %v2047
      %v2174 = vpop.f32.mrf.mxu0
      %v2175 = vadd.f32 0.0, %v2174
      %v2176 = vpop.f32.mrf.mxu0
      %v2177 = vpop.f32.mrf.mxu0
      %v2178 = vadd.f32 0.0, %v2177
      %v2179 = vpop.f32.mrf.mxu0
      %2180 = vmatprep.mubr.bf16.mxu0 0
      %2181 = vmatmul.mubr.bf16.gmra.mxu0 %v2050
      %v2182 = vpop.f32.mrf.mxu0
      %v2183 = vadd.f32 0.0, %v2182
      %v2184 = vpop.f32.mrf.mxu0
      %v2185 = vpop.f32.mrf.mxu0
      %v2186 = vadd.f32 0.0, %v2185
      %v2187 = vpop.f32.mrf.mxu0
      %2188 = vmatprep.mubr.bf16.mxu0 0
      %2189 = vmatmul.mubr.bf16.gmra.mxu0 %v2053
      %v2190 = vpop.f32.mrf.mxu0
      %v2191 = vadd.f32 0.0, %v2190
      %v2192 = vpop.f32.mrf.mxu0
      %v2193 = vpop.f32.mrf.mxu0
      %v2194 = vadd.f32 0.0, %v2193
      %v2195 = vpop.f32.mrf.mxu0
      %2196 = vmatprep.mubr.bf16.mxu0 0
      %2197 = vmatmul.mubr.bf16.gmra.mxu0 %v2056
      %v2198 = vpop.f32.mrf.mxu0
      %v2199 = vadd.f32 0.0, %v2198
      %v2200 = vpop.f32.mrf.mxu0
      %v2201 = vpop.f32.mrf.mxu0
      %v2202 = vadd.f32 0.0, %v2201
      %v2203 = vpop.f32.mrf.mxu0
      %2204 = vmatprep.mubr.bf16.mxu0 0
      %2205 = vmatmul.mubr.bf16.gmra.mxu0 %v2059
      %v2206 = vpop.f32.mrf.mxu0
      %v2207 = vadd.f32 0.0, %v2206
      %v2208 = vpop.f32.mrf.mxu0
      %v2209 = vpop.f32.mrf.mxu0
      %v2210 = vadd.f32 0.0, %v2209
      %v2211 = vpop.f32.mrf.mxu0
      %2212 = vmatprep.mubr.bf16.mxu0 0
      %2213 = vmatmul.mubr.bf16.gmra.mxu0 %v2062
      %v2214 = vpop.f32.mrf.mxu0
      %v2215 = vadd.f32 0.0, %v2214
      %v2216 = vpop.f32.mrf.mxu0
      %v2217 = vpop.f32.mrf.mxu0
      %v2218 = vadd.f32 0.0, %v2217
      %v2219 = vpop.f32.mrf.mxu0
      %2220 = vmatprep.mubr.bf16.mxu0 0
      %2221 = vmatmul.mubr.bf16.gmra.mxu0 %v2065
      %v2222 = vpop.f32.mrf.mxu0
      %v2223 = vadd.f32 0.0, %v2222
      %v2224 = vpop.f32.mrf.mxu0
      %v2225 = vpop.f32.mrf.mxu0
      %v2226 = vadd.f32 0.0, %v2225
      %v2227 = vpop.f32.mrf.mxu0
      %2228 = vmatprep.mubr.bf16.mxu0 0
      %2229 = vmatmul.mubr.bf16.gmra.mxu0 %v2068
      %v2230 = vpop.f32.mrf.mxu0
      %v2231 = vadd.f32 0.0, %v2230
      %v2232 = vpop.f32.mrf.mxu0
      %v2233 = vpop.f32.mrf.mxu0
      %v2234 = vadd.f32 0.0, %v2233
      %v2235 = vpop.f32.mrf.mxu0
      %2236 = vmatprep.mubr.bf16.mxu0 0
      %2237 = vmatmul.mubr.bf16.gmra.mxu0 %v2071
      %v2238 = vpop.f32.mrf.mxu0
      %v2239 = vadd.f32 0.0, %v2238
      %v2240 = vpop.f32.mrf.mxu0
      %v2241 = vpop.f32.mrf.mxu0
      %v2242 = vadd.f32 0.0, %v2241
      %v2243 = vpop.f32.mrf.mxu0
      %2244 = vmatprep.mubr.bf16.mxu0 0
      %2245 = vmatmul.mubr.bf16.gmra.mxu0 %v2074
      %v2246 = vpop.f32.mrf.mxu0
      %v2247 = vadd.f32 0.0, %v2246
      %v2248 = vpop.f32.mrf.mxu0
      %v2249 = vpop.f32.mrf.mxu0
      %v2250 = vadd.f32 0.0, %v2249
      %v2251 = vpop.f32.mrf.mxu0
      %2252 = vdwg.mxu0
      %v2253 = vadd.f32 %v1794, %v2111
      %v2254 = vadd.f32 %v1795, %v2114
      %v2255 = vadd.f32 %v1796, %v2119
      %v2256 = vadd.f32 %v1797, %v2122
      %v2257 = vadd.f32 %v1798, %v2127
      %v2258 = vadd.f32 %v1799, %v2130
      %v2259 = vadd.f32 %v1800, %v2135
      %v2260 = vadd.f32 %v1801, %v2138
      %v2261 = vadd.f32 %v1802, %v2143
      %v2262 = vadd.f32 %v1803, %v2146
      %v2263 = vadd.f32 %v1804, %v2151
      %v2264 = vadd.f32 %v1805, %v2154
      %v2265 = vadd.f32 %v1806, %v2159
      %v2266 = vadd.f32 %v1807, %v2162
      %v2267 = vadd.f32 %v1808, %v2167
      %v2268 = vadd.f32 %v1809, %v2170
      %v2269 = vadd.f32 %v1810, %v2175
      %v2270 = vadd.f32 %v1811, %v2178
      %v2271 = vadd.f32 %v1812, %v2183
      %v2272 = vadd.f32 %v1813, %v2186
      %v2273 = vadd.f32 %v1814, %v2191
      %v2274 = vadd.f32 %v1815, %v2194
      %v2275 = vadd.f32 %v1816, %v2199
      %v2276 = vadd.f32 %v1817, %v2202
      %v2277 = vadd.f32 %v1818, %v2207
      %v2278 = vadd.f32 %v1819, %v2210
      %v2279 = vadd.f32 %v1820, %v2215
      %v2280 = vadd.f32 %v1821, %v2218
      %v2281 = vadd.f32 %v1822, %v2223
      %v2282 = vadd.f32 %v1823, %v2226
      %v2283 = vadd.f32 %v1824, %v2231
      %v2284 = vadd.f32 %v1825, %v2234
      %v2285 = vadd.f32 %v1826, %v2239
      %v2286 = vadd.f32 %v1827, %v2242
      %v2287 = vadd.f32 %v1828, %v2247
      %v2288 = vadd.f32 %v1829, %v2250
      %v2289 = vld [vmem:[%s277 + $0x8] sm:$0xc]
      %s2290 = scalar_lea.vmem %s1, 80
      %v2291 = vld [vmem:[%s2290] sm:$0xf]
      %v2292 = vld [vmem:[%s2290 + $0x4] sm:$0xf]
      %v2293 = vld [vmem:[%s2290 + $0x8] sm:$0xf]
      %v2294 = vld [vmem:[%s2290 + $0xc] sm:$0xf]
      %v2296 = vunpack.c.l.b16 %v2289
      %v2297 = vpack.c.b16 %v1459, %v2296
      %vm2298 = vcmask 1045504
      %v2299 = vrot.slane %v2297, 2
      %v2300 = vrot.slane %v1496, 2
      %v2301 = vsel %vm2298, %v2299, %v2300
      %v2302 = vrot.slane %v1497, 2
      %v2303 = vsel %vm2298, %v2300, %v2302
      %v2304 = vrot.slane %v1498, 2
      %v2305 = vsel %vm2298, %v2302, %v2304
      %v2306 = vrot.slane %v1499, 2
      %v2307 = vsel %vm2298, %v2304, %v2306
      %v2308 = vrot.slane %v1500, 2
      %v2309 = vsel %vm2298, %v2306, %v2308
      %v2310 = vrot.slane %v1501, 2
      %v2311 = vsel %vm2298, %v2308, %v2310
      %v2312 = vrot.slane %v1502, 2
      %v2313 = vsel %vm2298, %v2310, %v2312
      %v2314 = vrot.slane %v1503, 2
      %v2315 = vsel %vm2298, %v2312, %v2314
      %v2316 = vrot.slane %v1504, 2
      %v2317 = vsel %vm2298, %v2314, %v2316
      %v2318 = vrot.slane %v1505, 2
      %v2319 = vsel %vm2298, %v2316, %v2318
      %v2320 = vrot.slane %v1506, 2
      %v2321 = vsel %vm2298, %v2318, %v2320
      %v2322 = vrot.slane %v1507, 2
      %v2323 = vsel %vm2298, %v2320, %v2322
      %v2324 = vrot.slane %v1508, 2
      %v2325 = vsel %vm2298, %v2322, %v2324
      %v2326 = vrot.slane %v1509, 2
      %v2327 = vsel %vm2298, %v2324, %v2326
      %v2328 = vrot.slane %v1510, 2
      %v2329 = vsel %vm2298, %v2326, %v2328
      %v2330 = vrot.slane %v1511, 2
      %v2331 = vsel %vm2298, %v2328, %v2330
      %v2332 = vrot.slane %v1512, 2
      %v2333 = vsel %vm2298, %v2330, %v2332
      %v2334 = vrot.slane %v1838, 2
      %v2335 = vsel %vm2298, %v2332, %v2334
      %v2340 = vunpack.c.l.b16 %v2291
      %v2341 = vunpack.c.l.b16 %v2292
      %v2342 = vunpack.c.l.b16 %v2293
      %v2343 = vunpack.c.l.b16 %v2294
      %v2344 = vpack.c.b16 %v2341, %v2340
      %v2345 = vpack.c.b16 %v2343, %v2342
      %v2349 = vsel %vm596, %v2301, 0
      %v2352 = vsel %vm596, %v2303, 0
      %v2355 = vsel %vm596, %v2305, 0
      %v2358 = vsel %vm596, %v2307, 0
      %v2361 = vsel %vm596, %v2309, 0
      %v2364 = vsel %vm596, %v2311, 0
      %v2367 = vsel %vm596, %v2313, 0
      %v2370 = vsel %vm596, %v2315, 0
      %v2373 = vsel %vm596, %v2317, 0
      %v2376 = vsel %vm596, %v2319, 0
      %v2379 = vsel %vm596, %v2321, 0
      %v2382 = vsel %vm596, %v2323, 0
      %v2385 = vsel %vm596, %v2325, 0
      %v2388 = vsel %vm596, %v2327, 0
      %v2391 = vsel %vm596, %v2329, 0
      %v2394 = vsel %vm596, %v2331, 0
      %v2397 = vsel %vm596, %v2333, 0
      %v2400 = vsel %vm596, %v2335, 0
      %2402 = vmatprep.subr.bf16.mxu0 0
      %2403 = vmatpush1.bf16.msra.mxu0 0
      %2404 = vmatprep.subr.bf16.mxu0 0
      %2405 = vmatpush1.bf16.msra.mxu0 0
      %2406 = vmatprep.subr.bf16.mxu0 0
      %2407 = vmatpush1.bf16.msra.mxu0 0
      %2408 = vmatprep.subr.bf16.mxu0 0
      %2409 = vmatpush1.bf16.msra.mxu0 0
      %2410 = vmatprep.subr.bf16.mxu0 0
      %2411 = vmatpush1.bf16.msra.mxu0 0
      %2412 = vmatprep.subr.bf16.mxu0 0
      %2413 = vmatpush1.bf16.msra.mxu0 0
      %2414 = vmatprep.subr.bf16.mxu0 0
      %2415 = vmatpush1.bf16.msra.mxu0 %v2345
      %2416 = vmatprep.subr.bf16.mxu0 0
      %2417 = vmatpush1.bf16.msra.mxu0 %v2344
      %2418 = vmatprep.subr.bf16.mxu0 0
      %2419 = vmatpush2.bf16.msra.mxu0 0
      %2420 = vmatprep.subr.bf16.mxu0 0
      %2421 = vmatpush2.bf16.msra.mxu0 0
      %2422 = vmatprep.subr.bf16.mxu0 0
      %2423 = vmatpush2.bf16.msra.mxu0 0
      %2424 = vmatprep.subr.bf16.mxu0 0
      %2425 = vmatpush2.bf16.msra.mxu0 0
      %2426 = vmatprep.subr.bf16.mxu0 0
      %2427 = vmatpush2.bf16.msra.mxu0 0
      %2428 = vmatprep.subr.bf16.mxu0 0
      %2429 = vmatpush2.bf16.msra.mxu0 0
      %2430 = vmatprep.subr.bf16.mxu0 0
      %2431 = vmatpush2.bf16.msra.mxu0 0
      %2432 = vmatprep.subr.bf16.mxu0 0
      %2433 = vmatpush2.bf16.msra.mxu0 0
      %2434 = vmatprep.mubr.bf16.mxu0 0
      %2435 = vmatmul.mubr.bf16.gmra.mxu0 %v2349
      %v2436 = vpop.f32.mrf.mxu0
      %v2437 = vadd.f32 0.0, %v2436
      %v2438 = vpop.f32.mrf.mxu0
      %v2439 = vpop.f32.mrf.mxu0
      %v2440 = vadd.f32 0.0, %v2439
      %v2441 = vpop.f32.mrf.mxu0
      %2442 = vmatprep.mubr.bf16.mxu0 0
      %2443 = vmatmul.mubr.bf16.gmra.mxu0 %v2352
      %v2444 = vpop.f32.mrf.mxu0
      %v2445 = vadd.f32 0.0, %v2444
      %v2446 = vpop.f32.mrf.mxu0
      %v2447 = vpop.f32.mrf.mxu0
      %v2448 = vadd.f32 0.0, %v2447
      %v2449 = vpop.f32.mrf.mxu0
      %2450 = vmatprep.mubr.bf16.mxu0 0
      %2451 = vmatmul.mubr.bf16.gmra.mxu0 %v2355
      %v2452 = vpop.f32.mrf.mxu0
      %v2453 = vadd.f32 0.0, %v2452
      %v2454 = vpop.f32.mrf.mxu0
      %v2455 = vpop.f32.mrf.mxu0
      %v2456 = vadd.f32 0.0, %v2455
      %v2457 = vpop.f32.mrf.mxu0
      %2458 = vmatprep.mubr.bf16.mxu0 0
      %2459 = vmatmul.mubr.bf16.gmra.mxu0 %v2358
      %v2460 = vpop.f32.mrf.mxu0
      %v2461 = vadd.f32 0.0, %v2460
      %v2462 = vpop.f32.mrf.mxu0
      %v2463 = vpop.f32.mrf.mxu0
      %v2464 = vadd.f32 0.0, %v2463
      %v2465 = vpop.f32.mrf.mxu0
      %2466 = vmatprep.mubr.bf16.mxu0 0
      %2467 = vmatmul.mubr.bf16.gmra.mxu0 %v2361
      %v2468 = vpop.f32.mrf.mxu0
      %v2469 = vadd.f32 0.0, %v2468
      %v2470 = vpop.f32.mrf.mxu0
      %v2471 = vpop.f32.mrf.mxu0
      %v2472 = vadd.f32 0.0, %v2471
      %v2473 = vpop.f32.mrf.mxu0
      %2474 = vmatprep.mubr.bf16.mxu0 0
      %2475 = vmatmul.mubr.bf16.gmra.mxu0 %v2364
      %v2476 = vpop.f32.mrf.mxu0
      %v2477 = vadd.f32 0.0, %v2476
      %v2478 = vpop.f32.mrf.mxu0
      %v2479 = vpop.f32.mrf.mxu0
      %v2480 = vadd.f32 0.0, %v2479
      %v2481 = vpop.f32.mrf.mxu0
      %2482 = vmatprep.mubr.bf16.mxu0 0
      %2483 = vmatmul.mubr.bf16.gmra.mxu0 %v2367
      %v2484 = vpop.f32.mrf.mxu0
      %v2485 = vadd.f32 0.0, %v2484
      %v2486 = vpop.f32.mrf.mxu0
      %v2487 = vpop.f32.mrf.mxu0
      %v2488 = vadd.f32 0.0, %v2487
      %v2489 = vpop.f32.mrf.mxu0
      %2490 = vmatprep.mubr.bf16.mxu0 0
      %2491 = vmatmul.mubr.bf16.gmra.mxu0 %v2370
      %v2492 = vpop.f32.mrf.mxu0
      %v2493 = vadd.f32 0.0, %v2492
      %v2494 = vpop.f32.mrf.mxu0
      %v2495 = vpop.f32.mrf.mxu0
      %v2496 = vadd.f32 0.0, %v2495
      %v2497 = vpop.f32.mrf.mxu0
      %2498 = vmatprep.mubr.bf16.mxu0 0
      %2499 = vmatmul.mubr.bf16.gmra.mxu0 %v2373
      %v2500 = vpop.f32.mrf.mxu0
      %v2501 = vadd.f32 0.0, %v2500
      %v2502 = vpop.f32.mrf.mxu0
      %v2503 = vpop.f32.mrf.mxu0
      %v2504 = vadd.f32 0.0, %v2503
      %v2505 = vpop.f32.mrf.mxu0
      %2506 = vmatprep.mubr.bf16.mxu0 0
      %2507 = vmatmul.mubr.bf16.gmra.mxu0 %v2376
      %v2508 = vpop.f32.mrf.mxu0
      %v2509 = vadd.f32 0.0, %v2508
      %v2510 = vpop.f32.mrf.mxu0
      %v2511 = vpop.f32.mrf.mxu0
      %v2512 = vadd.f32 0.0, %v2511
      %v2513 = vpop.f32.mrf.mxu0
      %2514 = vmatprep.mubr.bf16.mxu0 0
      %2515 = vmatmul.mubr.bf16.gmra.mxu0 %v2379
      %v2516 = vpop.f32.mrf.mxu0
      %v2517 = vadd.f32 0.0, %v2516
      %v2518 = vpop.f32.mrf.mxu0
      %v2519 = vpop.f32.mrf.mxu0
      %v2520 = vadd.f32 0.0, %v2519
      %v2521 = vpop.f32.mrf.mxu0
      %2522 = vmatprep.mubr.bf16.mxu0 0
      %2523 = vmatmul.mubr.bf16.gmra.mxu0 %v2382
      %v2524 = vpop.f32.mrf.mxu0
      %v2525 = vadd.f32 0.0, %v2524
      %v2526 = vpop.f32.mrf.mxu0
      %v2527 = vpop.f32.mrf.mxu0
      %v2528 = vadd.f32 0.0, %v2527
      %v2529 = vpop.f32.mrf.mxu0
      %2530 = vmatprep.mubr.bf16.mxu0 0
      %2531 = vmatmul.mubr.bf16.gmra.mxu0 %v2385
      %v2532 = vpop.f32.mrf.mxu0
      %v2533 = vadd.f32 0.0, %v2532
      %v2534 = vpop.f32.mrf.mxu0
      %v2535 = vpop.f32.mrf.mxu0
      %v2536 = vadd.f32 0.0, %v2535
      %v2537 = vpop.f32.mrf.mxu0
      %2538 = vmatprep.mubr.bf16.mxu0 0
      %2539 = vmatmul.mubr.bf16.gmra.mxu0 %v2388
      %v2540 = vpop.f32.mrf.mxu0
      %v2541 = vadd.f32 0.0, %v2540
      %v2542 = vpop.f32.mrf.mxu0
      %v2543 = vpop.f32.mrf.mxu0
      %v2544 = vadd.f32 0.0, %v2543
      %v2545 = vpop.f32.mrf.mxu0
      %2546 = vmatprep.mubr.bf16.mxu0 0
      %2547 = vmatmul.mubr.bf16.gmra.mxu0 %v2391
      %v2548 = vpop.f32.mrf.mxu0
      %v2549 = vadd.f32 0.0, %v2548
      %v2550 = vpop.f32.mrf.mxu0
      %v2551 = vpop.f32.mrf.mxu0
      %v2552 = vadd.f32 0.0, %v2551
      %v2553 = vpop.f32.mrf.mxu0
      %2554 = vmatprep.mubr.bf16.mxu0 0
      %2555 = vmatmul.mubr.bf16.gmra.mxu0 %v2394
      %v2556 = vpop.f32.mrf.mxu0
      %v2557 = vadd.f32 0.0, %v2556
      %v2558 = vpop.f32.mrf.mxu0
      %v2559 = vpop.f32.mrf.mxu0
      %v2560 = vadd.f32 0.0, %v2559
      %v2561 = vpop.f32.mrf.mxu0
      %2562 = vmatprep.mubr.bf16.mxu0 0
      %2563 = vmatmul.mubr.bf16.gmra.mxu0 %v2397
      %v2564 = vpop.f32.mrf.mxu0
      %v2565 = vadd.f32 0.0, %v2564
      %v2566 = vpop.f32.mrf.mxu0
      %v2567 = vpop.f32.mrf.mxu0
      %v2568 = vadd.f32 0.0, %v2567
      %v2569 = vpop.f32.mrf.mxu0
      %2570 = vmatprep.mubr.bf16.mxu0 0
      %2571 = vmatmul.mubr.bf16.gmra.mxu0 %v2400
      %v2572 = vpop.f32.mrf.mxu0
      %v2573 = vadd.f32 0.0, %v2572
      %v2574 = vpop.f32.mrf.mxu0
      %v2575 = vpop.f32.mrf.mxu0
      %v2576 = vadd.f32 0.0, %v2575
      %v2577 = vpop.f32.mrf.mxu0
      %2578 = vdwg.mxu0
      %v2579 = vadd.f32 %v2253, %v2437
      %v2580 = vadd.f32 %v2254, %v2440
      %v2581 = vadd.f32 %v2255, %v2445
      %v2582 = vadd.f32 %v2256, %v2448
      %v2583 = vadd.f32 %v2257, %v2453
      %v2584 = vadd.f32 %v2258, %v2456
      %v2585 = vadd.f32 %v2259, %v2461
      %v2586 = vadd.f32 %v2260, %v2464
      %v2587 = vadd.f32 %v2261, %v2469
      %v2588 = vadd.f32 %v2262, %v2472
      %v2589 = vadd.f32 %v2263, %v2477
      %v2590 = vadd.f32 %v2264, %v2480
      %v2591 = vadd.f32 %v2265, %v2485
      %v2592 = vadd.f32 %v2266, %v2488
      %v2593 = vadd.f32 %v2267, %v2493
      %v2594 = vadd.f32 %v2268, %v2496
      %v2595 = vadd.f32 %v2269, %v2501
      %v2596 = vadd.f32 %v2270, %v2504
      %v2597 = vadd.f32 %v2271, %v2509
      %v2598 = vadd.f32 %v2272, %v2512
      %v2599 = vadd.f32 %v2273, %v2517
      %v2600 = vadd.f32 %v2274, %v2520
      %v2601 = vadd.f32 %v2275, %v2525
      %v2602 = vadd.f32 %v2276, %v2528
      %v2603 = vadd.f32 %v2277, %v2533
      %v2604 = vadd.f32 %v2278, %v2536
      %v2605 = vadd.f32 %v2279, %v2541
      %v2606 = vadd.f32 %v2280, %v2544
      %v2607 = vadd.f32 %v2281, %v2549
      %v2608 = vadd.f32 %v2282, %v2552
      %v2609 = vadd.f32 %v2283, %v2557
      %v2610 = vadd.f32 %v2284, %v2560
      %v2611 = vadd.f32 %v2285, %v2565
      %v2612 = vadd.f32 %v2286, %v2568
      %v2613 = vadd.f32 %v2287, %v2573
      %v2614 = vadd.f32 %v2288, %v2576
      %v2615 = vld [vmem:[%s277 + $0x10] sm:$0xc]
      %v2616 = vld [vmem:[%s277 + $0x14] sm:$0xf]
      %v2617 = vld [vmem:[%s277 + $0x18] sm:$0xf]
      %v2618 = vld [vmem:[%s277 + $0x1c] sm:$0xf]
      %v2619 = vld [vmem:[%s277 + $0x20] sm:$0xf]
      %v2620 = vld [vmem:[%s277 + $0x24] sm:$0xf]
      %v2621 = vld [vmem:[%s277 + $0x28] sm:$0xf]
      %v2622 = vld [vmem:[%s277 + $0x2c] sm:$0xf]
      %v2623 = vld [vmem:[%s277 + $0x30] sm:$0xf]
      %v2624 = vld [vmem:[%s277 + $0x34] sm:$0xf]
      %v2625 = vld [vmem:[%s277 + $0x38] sm:$0xf]
      %v2626 = vld [vmem:[%s277 + $0x3c] sm:$0xf]
      %v2627 = vld [vmem:[%s277 + $0x40] sm:$0xf]
      %v2628 = vld [vmem:[%s277 + $0x44] sm:$0xf]
      %v2629 = vld [vmem:[%s277 + $0x48] sm:$0xf]
      %v2630 = vld [vmem:[%s277 + $0x4c] sm:$0xf]
      %v2631 = vld [vmem:[%s277 + $0x50] sm:$0xf]
      %v2632 = vld [vmem:[%s277 + $0x54] sm:$0xf]
      %v2633 = vld [vmem:[%s277 + $0x58] sm:$0xf]
      %v2634 = vld [vmem:[%s277 + $0x5c] sm:$0xf]
      %v2635 = vld [vmem:[%s277 + $0x60] sm:$0xf]
      %v2636 = vld [vmem:[%s277 + $0x64] sm:$0xf]
      %v2637 = vld [vmem:[%s277 + $0x68] sm:$0xf]
      %v2638 = vld [vmem:[%s277 + $0x6c] sm:$0xf]
      %v2639 = vld [vmem:[%s277 + $0x70] sm:$0xf]
      %v2640 = vld [vmem:[%s277 + $0x74] sm:$0xf]
      %v2641 = vld [vmem:[%s277 + $0x78] sm:$0xf]
      %v2642 = vld [vmem:[%s277 + $0x7c] sm:$0xf]
      %v2643 = vld [vmem:[%s277 + $0x80] sm:$0xf]
      %v2644 = vld [vmem:[%s277 + $0x84] sm:$0xf]
      %v2645 = vld [vmem:[%s277 + $0x88] sm:$0xf]
      %v2646 = vld [vmem:[%s277 + $0x8c] sm:$0xf]
      %v2647 = vld [vmem:[%s277 + $0x90] sm:$0xf]
      %v2648 = vld [vmem:[%s277 + $0x94] sm:$0xf]
      %v2649 = vld [vmem:[%s277 + $0x98] sm:$0xf]
      %v2650 = vld [vmem:[%s277 + $0x9c] sm:$0xf]
      %v2651 = vld [vmem:[%s277 + $0xa0] sm:$0x3]
      %s2652 = scalar_lea.vmem %s1, 96
      %v2653 = vld [vmem:[%s2652] sm:$0xf]
      %v2654 = vld [vmem:[%s2652 + $0x4] sm:$0xf]
      %v2655 = vld [vmem:[%s2652 + $0x8] sm:$0xf]
      %v2656 = vld [vmem:[%s2652 + $0xc] sm:$0xf]
      %v2694 = vunpack.c.l.b16 %v2615
      %v2695 = vunpack.c.l.b16 %v2616
      %v2696 = vunpack.c.l.b16 %v2617
      %v2697 = vunpack.c.l.b16 %v2618
      %v2698 = vunpack.c.l.b16 %v2619
      %v2699 = vunpack.c.l.b16 %v2620
      %v2700 = vunpack.c.l.b16 %v2621
      %v2701 = vunpack.c.l.b16 %v2622
      %v2702 = vunpack.c.l.b16 %v2623
      %v2703 = vunpack.c.l.b16 %v2624
      %v2704 = vunpack.c.l.b16 %v2625
      %v2705 = vunpack.c.l.b16 %v2626
      %v2706 = vunpack.c.l.b16 %v2627
      %v2707 = vunpack.c.l.b16 %v2628
      %v2708 = vunpack.c.l.b16 %v2629
      %v2709 = vunpack.c.l.b16 %v2630
      %v2710 = vunpack.c.l.b16 %v2631
      %v2711 = vunpack.c.l.b16 %v2632
      %v2712 = vunpack.c.l.b16 %v2633
      %v2713 = vunpack.c.l.b16 %v2634
      %v2714 = vunpack.c.l.b16 %v2635
      %v2715 = vunpack.c.l.b16 %v2636
      %v2716 = vunpack.c.l.b16 %v2637
      %v2717 = vunpack.c.l.b16 %v2638
      %v2718 = vunpack.c.l.b16 %v2639
      %v2719 = vunpack.c.l.b16 %v2640
      %v2720 = vunpack.c.l.b16 %v2641
      %v2721 = vunpack.c.l.b16 %v2642
      %v2722 = vunpack.c.l.b16 %v2643
      %v2723 = vunpack.c.l.b16 %v2644
      %v2724 = vunpack.c.l.b16 %v2645
      %v2725 = vunpack.c.l.b16 %v2646
      %v2726 = vunpack.c.l.b16 %v2647
      %v2727 = vunpack.c.l.b16 %v2648
      %v2728 = vunpack.c.l.b16 %v2649
      %v2729 = vunpack.c.l.b16 %v2650
      %v2730 = vunpack.c.l.b16 %v2651
      %v2731 = vpack.c.b16 %v2695, %v2694
      %v2732 = vpack.c.b16 %v2697, %v2696
      %v2733 = vpack.c.b16 %v2699, %v2698
      %v2734 = vpack.c.b16 %v2701, %v2700
      %v2735 = vpack.c.b16 %v2703, %v2702
      %v2736 = vpack.c.b16 %v2705, %v2704
      %v2737 = vpack.c.b16 %v2707, %v2706
      %v2738 = vpack.c.b16 %v2709, %v2708
      %v2739 = vpack.c.b16 %v2711, %v2710
      %v2740 = vpack.c.b16 %v2713, %v2712
      %v2741 = vpack.c.b16 %v2715, %v2714
      %v2742 = vpack.c.b16 %v2717, %v2716
      %v2743 = vpack.c.b16 %v2719, %v2718
      %v2744 = vpack.c.b16 %v2721, %v2720
      %v2745 = vpack.c.b16 %v2723, %v2722
      %v2746 = vpack.c.b16 %v2725, %v2724
      %v2747 = vpack.c.b16 %v2727, %v2726
      %v2748 = vpack.c.b16 %v2729, %v2728
      %v2749 = vpack.c.b16 %v2730, %v2730
      %v2750 = vrot.slane %v2731, 2
      %v2751 = vrot.slane %v2732, 2
      %v2752 = vsel %vm2298, %v2750, %v2751
      %v2753 = vrot.slane %v2733, 2
      %v2754 = vsel %vm2298, %v2751, %v2753
      %v2755 = vrot.slane %v2734, 2
      %v2756 = vsel %vm2298, %v2753, %v2755
      %v2757 = vrot.slane %v2735, 2
      %v2758 = vsel %vm2298, %v2755, %v2757
      %v2759 = vrot.slane %v2736, 2
      %v2760 = vsel %vm2298, %v2757, %v2759
      %v2761 = vrot.slane %v2737, 2
      %v2762 = vsel %vm2298, %v2759, %v2761
      %v2763 = vrot.slane %v2738, 2
      %v2764 = vsel %vm2298, %v2761, %v2763
      %v2765 = vrot.slane %v2739, 2
      %v2766 = vsel %vm2298, %v2763, %v2765
      %v2767 = vrot.slane %v2740, 2
      %v2768 = vsel %vm2298, %v2765, %v2767
      %v2769 = vrot.slane %v2741, 2
      %v2770 = vsel %vm2298, %v2767, %v2769
      %v2771 = vrot.slane %v2742, 2
      %v2772 = vsel %vm2298, %v2769, %v2771
      %v2773 = vrot.slane %v2743, 2
      %v2774 = vsel %vm2298, %v2771, %v2773
      %v2775 = vrot.slane %v2744, 2
      %v2776 = vsel %vm2298, %v2773, %v2775
      %v2777 = vrot.slane %v2745, 2
      %v2778 = vsel %vm2298, %v2775, %v2777
      %v2779 = vrot.slane %v2746, 2
      %v2780 = vsel %vm2298, %v2777, %v2779
      %v2781 = vrot.slane %v2747, 2
      %v2782 = vsel %vm2298, %v2779, %v2781
      %v2783 = vrot.slane %v2748, 2
      %v2784 = vsel %vm2298, %v2781, %v2783
      %v2785 = vrot.slane %v2749, 2
      %v2786 = vsel %vm2298, %v2783, %v2785
      %v2791 = vunpack.c.l.b16 %v2653
      %v2792 = vunpack.c.l.b16 %v2654
      %v2793 = vunpack.c.l.b16 %v2655
      %v2794 = vunpack.c.l.b16 %v2656
      %v2795 = vpack.c.b16 %v2792, %v2791
      %v2796 = vpack.c.b16 %v2794, %v2793
      %v2800 = vsel %vm596, %v2752, 0
      %v2803 = vsel %vm596, %v2754, 0
      %v2806 = vsel %vm596, %v2756, 0
      %v2809 = vsel %vm596, %v2758, 0
      %v2812 = vsel %vm596, %v2760, 0
      %v2815 = vsel %vm596, %v2762, 0
      %v2818 = vsel %vm596, %v2764, 0
      %v2821 = vsel %vm596, %v2766, 0
      %v2824 = vsel %vm596, %v2768, 0
      %v2827 = vsel %vm596, %v2770, 0
      %v2830 = vsel %vm596, %v2772, 0
      %v2833 = vsel %vm596, %v2774, 0
      %v2836 = vsel %vm596, %v2776, 0
      %v2839 = vsel %vm596, %v2778, 0
      %v2842 = vsel %vm596, %v2780, 0
      %v2845 = vsel %vm596, %v2782, 0
      %v2848 = vsel %vm596, %v2784, 0
      %v2851 = vsel %vm596, %v2786, 0
      %2853 = vmatprep.subr.bf16.mxu0 0
      %2854 = vmatpush1.bf16.msra.mxu0 0
      %2855 = vmatprep.subr.bf16.mxu0 0
      %2856 = vmatpush1.bf16.msra.mxu0 0
      %2857 = vmatprep.subr.bf16.mxu0 0
      %2858 = vmatpush1.bf16.msra.mxu0 0
      %2859 = vmatprep.subr.bf16.mxu0 0
      %2860 = vmatpush1.bf16.msra.mxu0 0
      %2861 = vmatprep.subr.bf16.mxu0 0
      %2862 = vmatpush1.bf16.msra.mxu0 0
      %2863 = vmatprep.subr.bf16.mxu0 0
      %2864 = vmatpush1.bf16.msra.mxu0 0
      %2865 = vmatprep.subr.bf16.mxu0 0
      %2866 = vmatpush1.bf16.msra.mxu0 %v2796
      %2867 = vmatprep.subr.bf16.mxu0 0
      %2868 = vmatpush1.bf16.msra.mxu0 %v2795
      %2869 = vmatprep.subr.bf16.mxu0 0
      %2870 = vmatpush2.bf16.msra.mxu0 0
      %2871 = vmatprep.subr.bf16.mxu0 0
      %2872 = vmatpush2.bf16.msra.mxu0 0
      %2873 = vmatprep.subr.bf16.mxu0 0
      %2874 = vmatpush2.bf16.msra.mxu0 0
      %2875 = vmatprep.subr.bf16.mxu0 0
      %2876 = vmatpush2.bf16.msra.mxu0 0
      %2877 = vmatprep.subr.bf16.mxu0 0
      %2878 = vmatpush2.bf16.msra.mxu0 0
      %2879 = vmatprep.subr.bf16.mxu0 0
      %2880 = vmatpush2.bf16.msra.mxu0 0
      %2881 = vmatprep.subr.bf16.mxu0 0
      %2882 = vmatpush2.bf16.msra.mxu0 0
      %2883 = vmatprep.subr.bf16.mxu0 0
      %2884 = vmatpush2.bf16.msra.mxu0 0
      %2885 = vmatprep.mubr.bf16.mxu0 0
      %2886 = vmatmul.mubr.bf16.gmra.mxu0 %v2800
      %v2887 = vpop.f32.mrf.mxu0
      %v2888 = vadd.f32 0.0, %v2887
      %v2889 = vpop.f32.mrf.mxu0
      %v2890 = vpop.f32.mrf.mxu0
      %v2891 = vadd.f32 0.0, %v2890
      %v2892 = vpop.f32.mrf.mxu0
      %2893 = vmatprep.mubr.bf16.mxu0 0
      %2894 = vmatmul.mubr.bf16.gmra.mxu0 %v2803
      %v2895 = vpop.f32.mrf.mxu0
      %v2896 = vadd.f32 0.0, %v2895
      %v2897 = vpop.f32.mrf.mxu0
      %v2898 = vpop.f32.mrf.mxu0
      %v2899 = vadd.f32 0.0, %v2898
      %v2900 = vpop.f32.mrf.mxu0
      %2901 = vmatprep.mubr.bf16.mxu0 0
      %2902 = vmatmul.mubr.bf16.gmra.mxu0 %v2806
      %v2903 = vpop.f32.mrf.mxu0
      %v2904 = vadd.f32 0.0, %v2903
      %v2905 = vpop.f32.mrf.mxu0
      %v2906 = vpop.f32.mrf.mxu0
      %v2907 = vadd.f32 0.0, %v2906
      %v2908 = vpop.f32.mrf.mxu0
      %2909 = vmatprep.mubr.bf16.mxu0 0
      %2910 = vmatmul.mubr.bf16.gmra.mxu0 %v2809
      %v2911 = vpop.f32.mrf.mxu0
      %v2912 = vadd.f32 0.0, %v2911
      %v2913 = vpop.f32.mrf.mxu0
      %v2914 = vpop.f32.mrf.mxu0
      %v2915 = vadd.f32 0.0, %v2914
      %v2916 = vpop.f32.mrf.mxu0
      %2917 = vmatprep.mubr.bf16.mxu0 0
      %2918 = vmatmul.mubr.bf16.gmra.mxu0 %v2812
      %v2919 = vpop.f32.mrf.mxu0
      %v2920 = vadd.f32 0.0, %v2919
      %v2921 = vpop.f32.mrf.mxu0
      %v2922 = vpop.f32.mrf.mxu0
      %v2923 = vadd.f32 0.0, %v2922
      %v2924 = vpop.f32.mrf.mxu0
      %2925 = vmatprep.mubr.bf16.mxu0 0
      %2926 = vmatmul.mubr.bf16.gmra.mxu0 %v2815
      %v2927 = vpop.f32.mrf.mxu0
      %v2928 = vadd.f32 0.0, %v2927
      %v2929 = vpop.f32.mrf.mxu0
      %v2930 = vpop.f32.mrf.mxu0
      %v2931 = vadd.f32 0.0, %v2930
      %v2932 = vpop.f32.mrf.mxu0
      %2933 = vmatprep.mubr.bf16.mxu0 0
      %2934 = vmatmul.mubr.bf16.gmra.mxu0 %v2818
      %v2935 = vpop.f32.mrf.mxu0
      %v2936 = vadd.f32 0.0, %v2935
      %v2937 = vpop.f32.mrf.mxu0
      %v2938 = vpop.f32.mrf.mxu0
      %v2939 = vadd.f32 0.0, %v2938
      %v2940 = vpop.f32.mrf.mxu0
      %2941 = vmatprep.mubr.bf16.mxu0 0
      %2942 = vmatmul.mubr.bf16.gmra.mxu0 %v2821
      %v2943 = vpop.f32.mrf.mxu0
      %v2944 = vadd.f32 0.0, %v2943
      %v2945 = vpop.f32.mrf.mxu0
      %v2946 = vpop.f32.mrf.mxu0
      %v2947 = vadd.f32 0.0, %v2946
      %v2948 = vpop.f32.mrf.mxu0
      %2949 = vmatprep.mubr.bf16.mxu0 0
      %2950 = vmatmul.mubr.bf16.gmra.mxu0 %v2824
      %v2951 = vpop.f32.mrf.mxu0
      %v2952 = vadd.f32 0.0, %v2951
      %v2953 = vpop.f32.mrf.mxu0
      %v2954 = vpop.f32.mrf.mxu0
      %v2955 = vadd.f32 0.0, %v2954
      %v2956 = vpop.f32.mrf.mxu0
      %2957 = vmatprep.mubr.bf16.mxu0 0
      %2958 = vmatmul.mubr.bf16.gmra.mxu0 %v2827
      %v2959 = vpop.f32.mrf.mxu0
      %v2960 = vadd.f32 0.0, %v2959
      %v2961 = vpop.f32.mrf.mxu0
      %v2962 = vpop.f32.mrf.mxu0
      %v2963 = vadd.f32 0.0, %v2962
      %v2964 = vpop.f32.mrf.mxu0
      %2965 = vmatprep.mubr.bf16.mxu0 0
      %2966 = vmatmul.mubr.bf16.gmra.mxu0 %v2830
      %v2967 = vpop.f32.mrf.mxu0
      %v2968 = vadd.f32 0.0, %v2967
      %v2969 = vpop.f32.mrf.mxu0
      %v2970 = vpop.f32.mrf.mxu0
      %v2971 = vadd.f32 0.0, %v2970
      %v2972 = vpop.f32.mrf.mxu0
      %2973 = vmatprep.mubr.bf16.mxu0 0
      %2974 = vmatmul.mubr.bf16.gmra.mxu0 %v2833
      %v2975 = vpop.f32.mrf.mxu0
      %v2976 = vadd.f32 0.0, %v2975
      %v2977 = vpop.f32.mrf.mxu0
      %v2978 = vpop.f32.mrf.mxu0
      %v2979 = vadd.f32 0.0, %v2978
      %v2980 = vpop.f32.mrf.mxu0
      %2981 = vmatprep.mubr.bf16.mxu0 0
      %2982 = vmatmul.mubr.bf16.gmra.mxu0 %v2836
      %v2983 = vpop.f32.mrf.mxu0
      %v2984 = vadd.f32 0.0, %v2983
      %v2985 = vpop.f32.mrf.mxu0
      %v2986 = vpop.f32.mrf.mxu0
      %v2987 = vadd.f32 0.0, %v2986
      %v2988 = vpop.f32.mrf.mxu0
      %2989 = vmatprep.mubr.bf16.mxu0 0
      %2990 = vmatmul.mubr.bf16.gmra.mxu0 %v2839
      %v2991 = vpop.f32.mrf.mxu0
      %v2992 = vadd.f32 0.0, %v2991
      %v2993 = vpop.f32.mrf.mxu0
      %v2994 = vpop.f32.mrf.mxu0
      %v2995 = vadd.f32 0.0, %v2994
      %v2996 = vpop.f32.mrf.mxu0
      %2997 = vmatprep.mubr.bf16.mxu0 0
      %2998 = vmatmul.mubr.bf16.gmra.mxu0 %v2842
      %v2999 = vpop.f32.mrf.mxu0
      %v3000 = vadd.f32 0.0, %v2999
      %v3001 = vpop.f32.mrf.mxu0
      %v3002 = vpop.f32.mrf.mxu0
      %v3003 = vadd.f32 0.0, %v3002
      %v3004 = vpop.f32.mrf.mxu0
      %3005 = vmatprep.mubr.bf16.mxu0 0
      %3006 = vmatmul.mubr.bf16.gmra.mxu0 %v2845
      %v3007 = vpop.f32.mrf.mxu0
      %v3008 = vadd.f32 0.0, %v3007
      %v3009 = vpop.f32.mrf.mxu0
      %v3010 = vpop.f32.mrf.mxu0
      %v3011 = vadd.f32 0.0, %v3010
      %v3012 = vpop.f32.mrf.mxu0
      %3013 = vmatprep.mubr.bf16.mxu0 0
      %3014 = vmatmul.mubr.bf16.gmra.mxu0 %v2848
      %v3015 = vpop.f32.mrf.mxu0
      %v3016 = vadd.f32 0.0, %v3015
      %v3017 = vpop.f32.mrf.mxu0
      %v3018 = vpop.f32.mrf.mxu0
      %v3019 = vadd.f32 0.0, %v3018
      %v3020 = vpop.f32.mrf.mxu0
      %3021 = vmatprep.mubr.bf16.mxu0 0
      %3022 = vmatmul.mubr.bf16.gmra.mxu0 %v2851
      %v3023 = vpop.f32.mrf.mxu0
      %v3024 = vadd.f32 0.0, %v3023
      %v3025 = vpop.f32.mrf.mxu0
      %v3026 = vpop.f32.mrf.mxu0
      %v3027 = vadd.f32 0.0, %v3026
      %v3028 = vpop.f32.mrf.mxu0
      %3029 = vdwg.mxu0
      %v3030 = vadd.f32 %v2579, %v2888
      %v3031 = vadd.f32 %v2580, %v2891
      %v3032 = vadd.f32 %v2581, %v2896
      %v3033 = vadd.f32 %v2582, %v2899
      %v3034 = vadd.f32 %v2583, %v2904
      %v3035 = vadd.f32 %v2584, %v2907
      %v3036 = vadd.f32 %v2585, %v2912
      %v3037 = vadd.f32 %v2586, %v2915
      %v3038 = vadd.f32 %v2587, %v2920
      %v3039 = vadd.f32 %v2588, %v2923
      %v3040 = vadd.f32 %v2589, %v2928
      %v3041 = vadd.f32 %v2590, %v2931
      %v3042 = vadd.f32 %v2591, %v2936
      %v3043 = vadd.f32 %v2592, %v2939
      %v3044 = vadd.f32 %v2593, %v2944
      %v3045 = vadd.f32 %v2594, %v2947
      %v3046 = vadd.f32 %v2595, %v2952
      %v3047 = vadd.f32 %v2596, %v2955
      %v3048 = vadd.f32 %v2597, %v2960
      %v3049 = vadd.f32 %v2598, %v2963
      %v3050 = vadd.f32 %v2599, %v2968
      %v3051 = vadd.f32 %v2600, %v2971
      %v3052 = vadd.f32 %v2601, %v2976
      %v3053 = vadd.f32 %v2602, %v2979
      %v3054 = vadd.f32 %v2603, %v2984
      %v3055 = vadd.f32 %v2604, %v2987
      %v3056 = vadd.f32 %v2605, %v2992
      %v3057 = vadd.f32 %v2606, %v2995
      %v3058 = vadd.f32 %v2607, %v3000
      %v3059 = vadd.f32 %v2608, %v3003
      %v3060 = vadd.f32 %v2609, %v3008
      %v3061 = vadd.f32 %v2610, %v3011
      %v3062 = vadd.f32 %v2611, %v3016
      %v3063 = vadd.f32 %v2612, %v3019
      %v3064 = vadd.f32 %v2613, %v3024
      %v3065 = vadd.f32 %v2614, %v3027
      %v3066 = vld [vmem:[%s277 + $0xa0] sm:$0x7]
      %s3067 = scalar_lea.vmem %s1, 112
      %v3068 = vld [vmem:[%s3067] sm:$0xf]
      %v3069 = vld [vmem:[%s3067 + $0x4] sm:$0xf]
      %v3070 = vld [vmem:[%s3067 + $0x8] sm:$0xf]
      %v3071 = vld [vmem:[%s3067 + $0xc] sm:$0xf]
      %v3073 = vunpack.c.l.b16 %v3066
      %v3074 = vpack.c.b16 %v3073, %v3073
      %vm3075 = vsmask.f32 5376
      %v3077 = vshrl.u32 %v2731, 16
      %v3079 = vrot.slane %v3077, 2
      %v3080 = vshll.u32 %v2731, 16
      %v3082 = vrot.slane %v3080, 3
      %v3083 = vor.u32 %v3079, %v3082
      %v3085 = vshrl.u32 %v2732, 16
      %v3087 = vrot.slane %v3085, 2
      %v3088 = vshll.u32 %v2732, 16
      %v3090 = vrot.slane %v3088, 3
      %v3091 = vor.u32 %v3087, %v3090
      %v3092 = vsel %vm3075, %v3083, %v3091
      %v3094 = vshrl.u32 %v2733, 16
      %v3096 = vrot.slane %v3094, 2
      %v3097 = vshll.u32 %v2733, 16
      %v3099 = vrot.slane %v3097, 3
      %v3100 = vor.u32 %v3096, %v3099
      %v3101 = vsel %vm3075, %v3091, %v3100
      %v3103 = vshrl.u32 %v2734, 16
      %v3105 = vrot.slane %v3103, 2
      %v3106 = vshll.u32 %v2734, 16
      %v3108 = vrot.slane %v3106, 3
      %v3109 = vor.u32 %v3105, %v3108
      %v3110 = vsel %vm3075, %v3100, %v3109
      %v3112 = vshrl.u32 %v2735, 16
      %v3114 = vrot.slane %v3112, 2
      %v3115 = vshll.u32 %v2735, 16
      %v3117 = vrot.slane %v3115, 3
      %v3118 = vor.u32 %v3114, %v3117
      %v3119 = vsel %vm3075, %v3109, %v3118
      %v3121 = vshrl.u32 %v2736, 16
      %v3123 = vrot.slane %v3121, 2
      %v3124 = vshll.u32 %v2736, 16
      %v3126 = vrot.slane %v3124, 3
      %v3127 = vor.u32 %v3123, %v3126
      %v3128 = vsel %vm3075, %v3118, %v3127
      %v3130 = vshrl.u32 %v2737, 16
      %v3132 = vrot.slane %v3130, 2
      %v3133 = vshll.u32 %v2737, 16
      %v3135 = vrot.slane %v3133, 3
      %v3136 = vor.u32 %v3132, %v3135
      %v3137 = vsel %vm3075, %v3127, %v3136
      %v3139 = vshrl.u32 %v2738, 16
      %v3141 = vrot.slane %v3139, 2
      %v3142 = vshll.u32 %v2738, 16
      %v3144 = vrot.slane %v3142, 3
      %v3145 = vor.u32 %v3141, %v3144
      %v3146 = vsel %vm3075, %v3136, %v3145
      %v3148 = vshrl.u32 %v2739, 16
      %v3150 = vrot.slane %v3148, 2
      %v3151 = vshll.u32 %v2739, 16
      %v3153 = vrot.slane %v3151, 3
      %v3154 = vor.u32 %v3150, %v3153
      %v3155 = vsel %vm3075, %v3145, %v3154
      %v3157 = vshrl.u32 %v2740, 16
      %v3159 = vrot.slane %v3157, 2
      %v3160 = vshll.u32 %v2740, 16
      %v3162 = vrot.slane %v3160, 3
      %v3163 = vor.u32 %v3159, %v3162
      %v3164 = vsel %vm3075, %v3154, %v3163
      %v3166 = vshrl.u32 %v2741, 16
      %v3168 = vrot.slane %v3166, 2
      %v3169 = vshll.u32 %v2741, 16
      %v3171 = vrot.slane %v3169, 3
      %v3172 = vor.u32 %v3168, %v3171
      %v3173 = vsel %vm3075, %v3163, %v3172
      %v3175 = vshrl.u32 %v2742, 16
      %v3177 = vrot.slane %v3175, 2
      %v3178 = vshll.u32 %v2742, 16
      %v3180 = vrot.slane %v3178, 3
      %v3181 = vor.u32 %v3177, %v3180
      %v3182 = vsel %vm3075, %v3172, %v3181
      %v3184 = vshrl.u32 %v2743, 16
      %v3186 = vrot.slane %v3184, 2
      %v3187 = vshll.u32 %v2743, 16
      %v3189 = vrot.slane %v3187, 3
      %v3190 = vor.u32 %v3186, %v3189
      %v3191 = vsel %vm3075, %v3181, %v3190
      %v3193 = vshrl.u32 %v2744, 16
      %v3195 = vrot.slane %v3193, 2
      %v3196 = vshll.u32 %v2744, 16
      %v3198 = vrot.slane %v3196, 3
      %v3199 = vor.u32 %v3195, %v3198
      %v3200 = vsel %vm3075, %v3190, %v3199
      %v3202 = vshrl.u32 %v2745, 16
      %v3204 = vrot.slane %v3202, 2
      %v3205 = vshll.u32 %v2745, 16
      %v3207 = vrot.slane %v3205, 3
      %v3208 = vor.u32 %v3204, %v3207
      %v3209 = vsel %vm3075, %v3199, %v3208
      %v3211 = vshrl.u32 %v2746, 16
      %v3213 = vrot.slane %v3211, 2
      %v3214 = vshll.u32 %v2746, 16
      %v3216 = vrot.slane %v3214, 3
      %v3217 = vor.u32 %v3213, %v3216
      %v3218 = vsel %vm3075, %v3208, %v3217
      %v3220 = vshrl.u32 %v2747, 16
      %v3222 = vrot.slane %v3220, 2
      %v3223 = vshll.u32 %v2747, 16
      %v3225 = vrot.slane %v3223, 3
      %v3226 = vor.u32 %v3222, %v3225
      %v3227 = vsel %vm3075, %v3217, %v3226
      %v3229 = vshrl.u32 %v2748, 16
      %v3231 = vrot.slane %v3229, 2
      %v3232 = vshll.u32 %v2748, 16
      %v3234 = vrot.slane %v3232, 3
      %v3235 = vor.u32 %v3231, %v3234
      %v3236 = vsel %vm3075, %v3226, %v3235
      %v3238 = vshrl.u32 %v3074, 16
      %v3240 = vrot.slane %v3238, 2
      %v3241 = vshll.u32 %v3074, 16
      %v3243 = vrot.slane %v3241, 3
      %v3244 = vor.u32 %v3240, %v3243
      %v3245 = vsel %vm3075, %v3235, %v3244
      %v3250 = vunpack.c.l.b16 %v3068
      %v3251 = vunpack.c.l.b16 %v3069
      %v3252 = vunpack.c.l.b16 %v3070
      %v3253 = vunpack.c.l.b16 %v3071
      %v3254 = vpack.c.b16 %v3251, %v3250
      %v3255 = vpack.c.b16 %v3253, %v3252
      %v3259 = vsel %vm596, %v3092, 0
      %v3262 = vsel %vm596, %v3101, 0
      %v3265 = vsel %vm596, %v3110, 0
      %v3268 = vsel %vm596, %v3119, 0
      %v3271 = vsel %vm596, %v3128, 0
      %v3274 = vsel %vm596, %v3137, 0
      %v3277 = vsel %vm596, %v3146, 0
      %v3280 = vsel %vm596, %v3155, 0
      %v3283 = vsel %vm596, %v3164, 0
      %v3286 = vsel %vm596, %v3173, 0
      %v3289 = vsel %vm596, %v3182, 0
      %v3292 = vsel %vm596, %v3191, 0
      %v3295 = vsel %vm596, %v3200, 0
      %v3298 = vsel %vm596, %v3209, 0
      %v3301 = vsel %vm596, %v3218, 0
      %v3304 = vsel %vm596, %v3227, 0
      %v3307 = vsel %vm596, %v3236, 0
      %v3310 = vsel %vm596, %v3245, 0
      %3312 = vmatprep.subr.bf16.mxu0 0
      %3313 = vmatpush1.bf16.msra.mxu0 0
      %3314 = vmatprep.subr.bf16.mxu0 0
      %3315 = vmatpush1.bf16.msra.mxu0 0
      %3316 = vmatprep.subr.bf16.mxu0 0
      %3317 = vmatpush1.bf16.msra.mxu0 0
      %3318 = vmatprep.subr.bf16.mxu0 0
      %3319 = vmatpush1.bf16.msra.mxu0 0
      %3320 = vmatprep.subr.bf16.mxu0 0
      %3321 = vmatpush1.bf16.msra.mxu0 0
      %3322 = vmatprep.subr.bf16.mxu0 0
      %3323 = vmatpush1.bf16.msra.mxu0 0
      %3324 = vmatprep.subr.bf16.mxu0 0
      %3325 = vmatpush1.bf16.msra.mxu0 %v3255
      %3326 = vmatprep.subr.bf16.mxu0 0
      %3327 = vmatpush1.bf16.msra.mxu0 %v3254
      %3328 = vmatprep.subr.bf16.mxu0 0
      %3329 = vmatpush2.bf16.msra.mxu0 0
      %3330 = vmatprep.subr.bf16.mxu0 0
      %3331 = vmatpush2.bf16.msra.mxu0 0
      %3332 = vmatprep.subr.bf16.mxu0 0
      %3333 = vmatpush2.bf16.msra.mxu0 0
      %3334 = vmatprep.subr.bf16.mxu0 0
      %3335 = vmatpush2.bf16.msra.mxu0 0
      %3336 = vmatprep.subr.bf16.mxu0 0
      %3337 = vmatpush2.bf16.msra.mxu0 0
      %3338 = vmatprep.subr.bf16.mxu0 0
      %3339 = vmatpush2.bf16.msra.mxu0 0
      %3340 = vmatprep.subr.bf16.mxu0 0
      %3341 = vmatpush2.bf16.msra.mxu0 0
      %3342 = vmatprep.subr.bf16.mxu0 0
      %3343 = vmatpush2.bf16.msra.mxu0 0
      %3344 = vmatprep.mubr.bf16.mxu0 0
      %3345 = vmatmul.mubr.bf16.gmra.mxu0 %v3259
      %v3346 = vpop.f32.mrf.mxu0
      %v3347 = vadd.f32 0.0, %v3346
      %v3348 = vpop.f32.mrf.mxu0
      %v3349 = vpop.f32.mrf.mxu0
      %v3350 = vadd.f32 0.0, %v3349
      %v3351 = vpop.f32.mrf.mxu0
      %3352 = vmatprep.mubr.bf16.mxu0 0
      %3353 = vmatmul.mubr.bf16.gmra.mxu0 %v3262
      %v3354 = vpop.f32.mrf.mxu0
      %v3355 = vadd.f32 0.0, %v3354
      %v3356 = vpop.f32.mrf.mxu0
      %v3357 = vpop.f32.mrf.mxu0
      %v3358 = vadd.f32 0.0, %v3357
      %v3359 = vpop.f32.mrf.mxu0
      %3360 = vmatprep.mubr.bf16.mxu0 0
      %3361 = vmatmul.mubr.bf16.gmra.mxu0 %v3265
      %v3362 = vpop.f32.mrf.mxu0
      %v3363 = vadd.f32 0.0, %v3362
      %v3364 = vpop.f32.mrf.mxu0
      %v3365 = vpop.f32.mrf.mxu0
      %v3366 = vadd.f32 0.0, %v3365
      %v3367 = vpop.f32.mrf.mxu0
      %3368 = vmatprep.mubr.bf16.mxu0 0
      %3369 = vmatmul.mubr.bf16.gmra.mxu0 %v3268
      %v3370 = vpop.f32.mrf.mxu0
      %v3371 = vadd.f32 0.0, %v3370
      %v3372 = vpop.f32.mrf.mxu0
      %v3373 = vpop.f32.mrf.mxu0
      %v3374 = vadd.f32 0.0, %v3373
      %v3375 = vpop.f32.mrf.mxu0
      %3376 = vmatprep.mubr.bf16.mxu0 0
      %3377 = vmatmul.mubr.bf16.gmra.mxu0 %v3271
      %v3378 = vpop.f32.mrf.mxu0
      %v3379 = vadd.f32 0.0, %v3378
      %v3380 = vpop.f32.mrf.mxu0
      %v3381 = vpop.f32.mrf.mxu0
      %v3382 = vadd.f32 0.0, %v3381
      %v3383 = vpop.f32.mrf.mxu0
      %3384 = vmatprep.mubr.bf16.mxu0 0
      %3385 = vmatmul.mubr.bf16.gmra.mxu0 %v3274
      %v3386 = vpop.f32.mrf.mxu0
      %v3387 = vadd.f32 0.0, %v3386
      %v3388 = vpop.f32.mrf.mxu0
      %v3389 = vpop.f32.mrf.mxu0
      %v3390 = vadd.f32 0.0, %v3389
      %v3391 = vpop.f32.mrf.mxu0
      %3392 = vmatprep.mubr.bf16.mxu0 0
      %3393 = vmatmul.mubr.bf16.gmra.mxu0 %v3277
      %v3394 = vpop.f32.mrf.mxu0
      %v3395 = vadd.f32 0.0, %v3394
      %v3396 = vpop.f32.mrf.mxu0
      %v3397 = vpop.f32.mrf.mxu0
      %v3398 = vadd.f32 0.0, %v3397
      %v3399 = vpop.f32.mrf.mxu0
      %3400 = vmatprep.mubr.bf16.mxu0 0
      %3401 = vmatmul.mubr.bf16.gmra.mxu0 %v3280
      %v3402 = vpop.f32.mrf.mxu0
      %v3403 = vadd.f32 0.0, %v3402
      %v3404 = vpop.f32.mrf.mxu0
      %v3405 = vpop.f32.mrf.mxu0
      %v3406 = vadd.f32 0.0, %v3405
      %v3407 = vpop.f32.mrf.mxu0
      %3408 = vmatprep.mubr.bf16.mxu0 0
      %3409 = vmatmul.mubr.bf16.gmra.mxu0 %v3283
      %v3410 = vpop.f32.mrf.mxu0
      %v3411 = vadd.f32 0.0, %v3410
      %v3412 = vpop.f32.mrf.mxu0
      %v3413 = vpop.f32.mrf.mxu0
      %v3414 = vadd.f32 0.0, %v3413
      %v3415 = vpop.f32.mrf.mxu0
      %3416 = vmatprep.mubr.bf16.mxu0 0
      %3417 = vmatmul.mubr.bf16.gmra.mxu0 %v3286
      %v3418 = vpop.f32.mrf.mxu0
      %v3419 = vadd.f32 0.0, %v3418
      %v3420 = vpop.f32.mrf.mxu0
      %v3421 = vpop.f32.mrf.mxu0
      %v3422 = vadd.f32 0.0, %v3421
      %v3423 = vpop.f32.mrf.mxu0
      %3424 = vmatprep.mubr.bf16.mxu0 0
      %3425 = vmatmul.mubr.bf16.gmra.mxu0 %v3289
      %v3426 = vpop.f32.mrf.mxu0
      %v3427 = vadd.f32 0.0, %v3426
      %v3428 = vpop.f32.mrf.mxu0
      %v3429 = vpop.f32.mrf.mxu0
      %v3430 = vadd.f32 0.0, %v3429
      %v3431 = vpop.f32.mrf.mxu0
      %3432 = vmatprep.mubr.bf16.mxu0 0
      %3433 = vmatmul.mubr.bf16.gmra.mxu0 %v3292
      %v3434 = vpop.f32.mrf.mxu0
      %v3435 = vadd.f32 0.0, %v3434
      %v3436 = vpop.f32.mrf.mxu0
      %v3437 = vpop.f32.mrf.mxu0
      %v3438 = vadd.f32 0.0, %v3437
      %v3439 = vpop.f32.mrf.mxu0
      %3440 = vmatprep.mubr.bf16.mxu0 0
      %3441 = vmatmul.mubr.bf16.gmra.mxu0 %v3295
      %v3442 = vpop.f32.mrf.mxu0
      %v3443 = vadd.f32 0.0, %v3442
      %v3444 = vpop.f32.mrf.mxu0
      %v3445 = vpop.f32.mrf.mxu0
      %v3446 = vadd.f32 0.0, %v3445
      %v3447 = vpop.f32.mrf.mxu0
      %3448 = vmatprep.mubr.bf16.mxu0 0
      %3449 = vmatmul.mubr.bf16.gmra.mxu0 %v3298
      %v3450 = vpop.f32.mrf.mxu0
      %v3451 = vadd.f32 0.0, %v3450
      %v3452 = vpop.f32.mrf.mxu0
      %v3453 = vpop.f32.mrf.mxu0
      %v3454 = vadd.f32 0.0, %v3453
      %v3455 = vpop.f32.mrf.mxu0
      %3456 = vmatprep.mubr.bf16.mxu0 0
      %3457 = vmatmul.mubr.bf16.gmra.mxu0 %v3301
      %v3458 = vpop.f32.mrf.mxu0
      %v3459 = vadd.f32 0.0, %v3458
      %v3460 = vpop.f32.mrf.mxu0
      %v3461 = vpop.f32.mrf.mxu0
      %v3462 = vadd.f32 0.0, %v3461
      %v3463 = vpop.f32.mrf.mxu0
      %3464 = vmatprep.mubr.bf16.mxu0 0
      %3465 = vmatmul.mubr.bf16.gmra.mxu0 %v3304
      %v3466 = vpop.f32.mrf.mxu0
      %v3467 = vadd.f32 0.0, %v3466
      %v3468 = vpop.f32.mrf.mxu0
      %v3469 = vpop.f32.mrf.mxu0
      %v3470 = vadd.f32 0.0, %v3469
      %v3471 = vpop.f32.mrf.mxu0
      %3472 = vmatprep.mubr.bf16.mxu0 0
      %3473 = vmatmul.mubr.bf16.gmra.mxu0 %v3307
      %v3474 = vpop.f32.mrf.mxu0
      %v3475 = vadd.f32 0.0, %v3474
      %v3476 = vpop.f32.mrf.mxu0
      %v3477 = vpop.f32.mrf.mxu0
      %v3478 = vadd.f32 0.0, %v3477
      %v3479 = vpop.f32.mrf.mxu0
      %3480 = vmatprep.mubr.bf16.mxu0 0
      %3481 = vmatmul.mubr.bf16.gmra.mxu0 %v3310
      %v3482 = vpop.f32.mrf.mxu0
      %v3483 = vadd.f32 0.0, %v3482
      %v3484 = vpop.f32.mrf.mxu0
      %v3485 = vpop.f32.mrf.mxu0
      %v3486 = vadd.f32 0.0, %v3485
      %v3487 = vpop.f32.mrf.mxu0
      %3488 = vdwg.mxu0
      %v3489 = vadd.f32 %v3030, %v3347
      %v3490 = vadd.f32 %v3031, %v3350
      %v3491 = vadd.f32 %v3032, %v3355
      %v3492 = vadd.f32 %v3033, %v3358
      %v3493 = vadd.f32 %v3034, %v3363
      %v3494 = vadd.f32 %v3035, %v3366
      %v3495 = vadd.f32 %v3036, %v3371
      %v3496 = vadd.f32 %v3037, %v3374
      %v3497 = vadd.f32 %v3038, %v3379
      %v3498 = vadd.f32 %v3039, %v3382
      %v3499 = vadd.f32 %v3040, %v3387
      %v3500 = vadd.f32 %v3041, %v3390
      %v3501 = vadd.f32 %v3042, %v3395
      %v3502 = vadd.f32 %v3043, %v3398
      %v3503 = vadd.f32 %v3044, %v3403
      %v3504 = vadd.f32 %v3045, %v3406
      %v3505 = vadd.f32 %v3046, %v3411
      %v3506 = vadd.f32 %v3047, %v3414
      %v3507 = vadd.f32 %v3048, %v3419
      %v3508 = vadd.f32 %v3049, %v3422
      %v3509 = vadd.f32 %v3050, %v3427
      %v3510 = vadd.f32 %v3051, %v3430
      %v3511 = vadd.f32 %v3052, %v3435
      %v3512 = vadd.f32 %v3053, %v3438
      %v3513 = vadd.f32 %v3054, %v3443
      %v3514 = vadd.f32 %v3055, %v3446
      %v3515 = vadd.f32 %v3056, %v3451
      %v3516 = vadd.f32 %v3057, %v3454
      %v3517 = vadd.f32 %v3058, %v3459
      %v3518 = vadd.f32 %v3059, %v3462
      %v3519 = vadd.f32 %v3060, %v3467
      %v3520 = vadd.f32 %v3061, %v3470
      %v3521 = vadd.f32 %v3062, %v3475
      %v3522 = vadd.f32 %v3063, %v3478
      %v3523 = vadd.f32 %v3064, %v3483
      %v3524 = vadd.f32 %v3065, %v3486
      %v3525 = vld [vmem:[%s277 + $0x10] sm:$0x8]
      %s3526 = scalar_lea.vmem %s1, 128
      %v3527 = vld [vmem:[%s3526] sm:$0xf]
      %v3528 = vld [vmem:[%s3526 + $0x4] sm:$0xf]
      %v3529 = vld [vmem:[%s3526 + $0x8] sm:$0xf]
      %v3530 = vld [vmem:[%s3526 + $0xc] sm:$0xf]
      %v3532 = vunpack.c.l.b16 %v3525
      %v3533 = vpack.c.b16 %v2695, %v3532
      %vm3534 = vcmask 1044480
      %v3535 = vrot.slane %v3533, 3
      %v3536 = vrot.slane %v2732, 3
      %v3537 = vsel %vm3534, %v3535, %v3536
      %v3538 = vrot.slane %v2733, 3
      %v3539 = vsel %vm3534, %v3536, %v3538
      %v3540 = vrot.slane %v2734, 3
      %v3541 = vsel %vm3534, %v3538, %v3540
      %v3542 = vrot.slane %v2735, 3
      %v3543 = vsel %vm3534, %v3540, %v3542
      %v3544 = vrot.slane %v2736, 3
      %v3545 = vsel %vm3534, %v3542, %v3544
      %v3546 = vrot.slane %v2737, 3
      %v3547 = vsel %vm3534, %v3544, %v3546
      %v3548 = vrot.slane %v2738, 3
      %v3549 = vsel %vm3534, %v3546, %v3548
      %v3550 = vrot.slane %v2739, 3
      %v3551 = vsel %vm3534, %v3548, %v3550
      %v3552 = vrot.slane %v2740, 3
      %v3553 = vsel %vm3534, %v3550, %v3552
      %v3554 = vrot.slane %v2741, 3
      %v3555 = vsel %vm3534, %v3552, %v3554
      %v3556 = vrot.slane %v2742, 3
      %v3557 = vsel %vm3534, %v3554, %v3556
      %v3558 = vrot.slane %v2743, 3
      %v3559 = vsel %vm3534, %v3556, %v3558
      %v3560 = vrot.slane %v2744, 3
      %v3561 = vsel %vm3534, %v3558, %v3560
      %v3562 = vrot.slane %v2745, 3
      %v3563 = vsel %vm3534, %v3560, %v3562
      %v3564 = vrot.slane %v2746, 3
      %v3565 = vsel %vm3534, %v3562, %v3564
      %v3566 = vrot.slane %v2747, 3
      %v3567 = vsel %vm3534, %v3564, %v3566
      %v3568 = vrot.slane %v2748, 3
      %v3569 = vsel %vm3534, %v3566, %v3568
      %v3570 = vrot.slane %v3074, 3
      %v3571 = vsel %vm3534, %v3568, %v3570
      %v3576 = vunpack.c.l.b16 %v3527
      %v3577 = vunpack.c.l.b16 %v3528
      %v3578 = vunpack.c.l.b16 %v3529
      %v3579 = vunpack.c.l.b16 %v3530
      %v3580 = vpack.c.b16 %v3577, %v3576
      %v3581 = vpack.c.b16 %v3579, %v3578
      %v3585 = vsel %vm596, %v3537, 0
      %v3588 = vsel %vm596, %v3539, 0
      %v3591 = vsel %vm596, %v3541, 0
      %v3594 = vsel %vm596, %v3543, 0
      %v3597 = vsel %vm596, %v3545, 0
      %v3600 = vsel %vm596, %v3547, 0
      %v3603 = vsel %vm596, %v3549, 0
      %v3606 = vsel %vm596, %v3551, 0
      %v3609 = vsel %vm596, %v3553, 0
      %v3612 = vsel %vm596, %v3555, 0
      %v3615 = vsel %vm596, %v3557, 0
      %v3618 = vsel %vm596, %v3559, 0
      %v3621 = vsel %vm596, %v3561, 0
      %v3624 = vsel %vm596, %v3563, 0
      %v3627 = vsel %vm596, %v3565, 0
      %v3630 = vsel %vm596, %v3567, 0
      %v3633 = vsel %vm596, %v3569, 0
      %v3636 = vsel %vm596, %v3571, 0
      %3638 = vmatprep.subr.bf16.mxu0 0
      %3639 = vmatpush1.bf16.msra.mxu0 0
      %3640 = vmatprep.subr.bf16.mxu0 0
      %3641 = vmatpush1.bf16.msra.mxu0 0
      %3642 = vmatprep.subr.bf16.mxu0 0
      %3643 = vmatpush1.bf16.msra.mxu0 0
      %3644 = vmatprep.subr.bf16.mxu0 0
      %3645 = vmatpush1.bf16.msra.mxu0 0
      %3646 = vmatprep.subr.bf16.mxu0 0
      %3647 = vmatpush1.bf16.msra.mxu0 0
      %3648 = vmatprep.subr.bf16.mxu0 0
      %3649 = vmatpush1.bf16.msra.mxu0 0
      %3650 = vmatprep.subr.bf16.mxu0 0
      %3651 = vmatpush1.bf16.msra.mxu0 %v3581
      %3652 = vmatprep.subr.bf16.mxu0 0
      %3653 = vmatpush1.bf16.msra.mxu0 %v3580
      %3654 = vmatprep.subr.bf16.mxu0 0
      %3655 = vmatpush2.bf16.msra.mxu0 0
      %3656 = vmatprep.subr.bf16.mxu0 0
      %3657 = vmatpush2.bf16.msra.mxu0 0
      %3658 = vmatprep.subr.bf16.mxu0 0
      %3659 = vmatpush2.bf16.msra.mxu0 0
      %3660 = vmatprep.subr.bf16.mxu0 0
      %3661 = vmatpush2.bf16.msra.mxu0 0
      %3662 = vmatprep.subr.bf16.mxu0 0
      %3663 = vmatpush2.bf16.msra.mxu0 0
      %3664 = vmatprep.subr.bf16.mxu0 0
      %3665 = vmatpush2.bf16.msra.mxu0 0
      %3666 = vmatprep.subr.bf16.mxu0 0
      %3667 = vmatpush2.bf16.msra.mxu0 0
      %3668 = vmatprep.subr.bf16.mxu0 0
      %3669 = vmatpush2.bf16.msra.mxu0 0
      %3670 = vmatprep.mubr.bf16.mxu0 0
      %3671 = vmatmul.mubr.bf16.gmra.mxu0 %v3585
      %v3672 = vpop.f32.mrf.mxu0
      %v3673 = vadd.f32 0.0, %v3672
      %v3674 = vpop.f32.mrf.mxu0
      %v3675 = vpop.f32.mrf.mxu0
      %v3676 = vadd.f32 0.0, %v3675
      %v3677 = vpop.f32.mrf.mxu0
      %3678 = vmatprep.mubr.bf16.mxu0 0
      %3679 = vmatmul.mubr.bf16.gmra.mxu0 %v3588
      %v3680 = vpop.f32.mrf.mxu0
      %v3681 = vadd.f32 0.0, %v3680
      %v3682 = vpop.f32.mrf.mxu0
      %v3683 = vpop.f32.mrf.mxu0
      %v3684 = vadd.f32 0.0, %v3683
      %v3685 = vpop.f32.mrf.mxu0
      %3686 = vmatprep.mubr.bf16.mxu0 0
      %3687 = vmatmul.mubr.bf16.gmra.mxu0 %v3591
      %v3688 = vpop.f32.mrf.mxu0
      %v3689 = vadd.f32 0.0, %v3688
      %v3690 = vpop.f32.mrf.mxu0
      %v3691 = vpop.f32.mrf.mxu0
      %v3692 = vadd.f32 0.0, %v3691
      %v3693 = vpop.f32.mrf.mxu0
      %3694 = vmatprep.mubr.bf16.mxu0 0
      %3695 = vmatmul.mubr.bf16.gmra.mxu0 %v3594
      %v3696 = vpop.f32.mrf.mxu0
      %v3697 = vadd.f32 0.0, %v3696
      %v3698 = vpop.f32.mrf.mxu0
      %v3699 = vpop.f32.mrf.mxu0
      %v3700 = vadd.f32 0.0, %v3699
      %v3701 = vpop.f32.mrf.mxu0
      %3702 = vmatprep.mubr.bf16.mxu0 0
      %3703 = vmatmul.mubr.bf16.gmra.mxu0 %v3597
      %v3704 = vpop.f32.mrf.mxu0
      %v3705 = vadd.f32 0.0, %v3704
      %v3706 = vpop.f32.mrf.mxu0
      %v3707 = vpop.f32.mrf.mxu0
      %v3708 = vadd.f32 0.0, %v3707
      %v3709 = vpop.f32.mrf.mxu0
      %3710 = vmatprep.mubr.bf16.mxu0 0
      %3711 = vmatmul.mubr.bf16.gmra.mxu0 %v3600
      %v3712 = vpop.f32.mrf.mxu0
      %v3713 = vadd.f32 0.0, %v3712
      %v3714 = vpop.f32.mrf.mxu0
      %v3715 = vpop.f32.mrf.mxu0
      %v3716 = vadd.f32 0.0, %v3715
      %v3717 = vpop.f32.mrf.mxu0
      %3718 = vmatprep.mubr.bf16.mxu0 0
      %3719 = vmatmul.mubr.bf16.gmra.mxu0 %v3603
      %v3720 = vpop.f32.mrf.mxu0
      %v3721 = vadd.f32 0.0, %v3720
      %v3722 = vpop.f32.mrf.mxu0
      %v3723 = vpop.f32.mrf.mxu0
      %v3724 = vadd.f32 0.0, %v3723
      %v3725 = vpop.f32.mrf.mxu0
      %3726 = vmatprep.mubr.bf16.mxu0 0
      %3727 = vmatmul.mubr.bf16.gmra.mxu0 %v3606
      %v3728 = vpop.f32.mrf.mxu0
      %v3729 = vadd.f32 0.0, %v3728
      %v3730 = vpop.f32.mrf.mxu0
      %v3731 = vpop.f32.mrf.mxu0
      %v3732 = vadd.f32 0.0, %v3731
      %v3733 = vpop.f32.mrf.mxu0
      %3734 = vmatprep.mubr.bf16.mxu0 0
      %3735 = vmatmul.mubr.bf16.gmra.mxu0 %v3609
      %v3736 = vpop.f32.mrf.mxu0
      %v3737 = vadd.f32 0.0, %v3736
      %v3738 = vpop.f32.mrf.mxu0
      %v3739 = vpop.f32.mrf.mxu0
      %v3740 = vadd.f32 0.0, %v3739
      %v3741 = vpop.f32.mrf.mxu0
      %3742 = vmatprep.mubr.bf16.mxu0 0
      %3743 = vmatmul.mubr.bf16.gmra.mxu0 %v3612
      %v3744 = vpop.f32.mrf.mxu0
      %v3745 = vadd.f32 0.0, %v3744
      %v3746 = vpop.f32.mrf.mxu0
      %v3747 = vpop.f32.mrf.mxu0
      %v3748 = vadd.f32 0.0, %v3747
      %v3749 = vpop.f32.mrf.mxu0
      %3750 = vmatprep.mubr.bf16.mxu0 0
      %3751 = vmatmul.mubr.bf16.gmra.mxu0 %v3615
      %v3752 = vpop.f32.mrf.mxu0
      %v3753 = vadd.f32 0.0, %v3752
      %v3754 = vpop.f32.mrf.mxu0
      %v3755 = vpop.f32.mrf.mxu0
      %v3756 = vadd.f32 0.0, %v3755
      %v3757 = vpop.f32.mrf.mxu0
      %3758 = vmatprep.mubr.bf16.mxu0 0
      %3759 = vmatmul.mubr.bf16.gmra.mxu0 %v3618
      %v3760 = vpop.f32.mrf.mxu0
      %v3761 = vadd.f32 0.0, %v3760
      %v3762 = vpop.f32.mrf.mxu0
      %v3763 = vpop.f32.mrf.mxu0
      %v3764 = vadd.f32 0.0, %v3763
      %v3765 = vpop.f32.mrf.mxu0
      %3766 = vmatprep.mubr.bf16.mxu0 0
      %3767 = vmatmul.mubr.bf16.gmra.mxu0 %v3621
      %v3768 = vpop.f32.mrf.mxu0
      %v3769 = vadd.f32 0.0, %v3768
      %v3770 = vpop.f32.mrf.mxu0
      %v3771 = vpop.f32.mrf.mxu0
      %v3772 = vadd.f32 0.0, %v3771
      %v3773 = vpop.f32.mrf.mxu0
      %3774 = vmatprep.mubr.bf16.mxu0 0
      %3775 = vmatmul.mubr.bf16.gmra.mxu0 %v3624
      %v3776 = vpop.f32.mrf.mxu0
      %v3777 = vadd.f32 0.0, %v3776
      %v3778 = vpop.f32.mrf.mxu0
      %v3779 = vpop.f32.mrf.mxu0
      %v3780 = vadd.f32 0.0, %v3779
      %v3781 = vpop.f32.mrf.mxu0
      %3782 = vmatprep.mubr.bf16.mxu0 0
      %3783 = vmatmul.mubr.bf16.gmra.mxu0 %v3627
      %v3784 = vpop.f32.mrf.mxu0
      %v3785 = vadd.f32 0.0, %v3784
      %v3786 = vpop.f32.mrf.mxu0
      %v3787 = vpop.f32.mrf.mxu0
      %v3788 = vadd.f32 0.0, %v3787
      %v3789 = vpop.f32.mrf.mxu0
      %3790 = vmatprep.mubr.bf16.mxu0 0
      %3791 = vmatmul.mubr.bf16.gmra.mxu0 %v3630
      %v3792 = vpop.f32.mrf.mxu0
      %v3793 = vadd.f32 0.0, %v3792
      %v3794 = vpop.f32.mrf.mxu0
      %v3795 = vpop.f32.mrf.mxu0
      %v3796 = vadd.f32 0.0, %v3795
      %v3797 = vpop.f32.mrf.mxu0
      %3798 = vmatprep.mubr.bf16.mxu0 0
      %3799 = vmatmul.mubr.bf16.gmra.mxu0 %v3633
      %v3800 = vpop.f32.mrf.mxu0
      %v3801 = vadd.f32 0.0, %v3800
      %v3802 = vpop.f32.mrf.mxu0
      %v3803 = vpop.f32.mrf.mxu0
      %v3804 = vadd.f32 0.0, %v3803
      %v3805 = vpop.f32.mrf.mxu0
      %3806 = vmatprep.mubr.bf16.mxu0 0
      %3807 = vmatmul.mubr.bf16.gmra.mxu0 %v3636
      %v3808 = vpop.f32.mrf.mxu0
      %v3809 = vadd.f32 0.0, %v3808
      %v3810 = vpop.f32.mrf.mxu0
      %v3811 = vpop.f32.mrf.mxu0
      %v3812 = vadd.f32 0.0, %v3811
      %v3813 = vpop.f32.mrf.mxu0
      %3814 = vdwg.mxu0
      %v3815 = vadd.f32 %v3489, %v3673
      %v3816 = vadd.f32 %v3490, %v3676
      %v3817 = vadd.f32 %v3491, %v3681
      %v3818 = vadd.f32 %v3492, %v3684
      %v3819 = vadd.f32 %v3493, %v3689
      %v3820 = vadd.f32 %v3494, %v3692
      %v3821 = vadd.f32 %v3495, %v3697
      %v3822 = vadd.f32 %v3496, %v3700
      %v3823 = vadd.f32 %v3497, %v3705
      %v3824 = vadd.f32 %v3498, %v3708
      %v3825 = vadd.f32 %v3499, %v3713
      %v3826 = vadd.f32 %v3500, %v3716
      %v3827 = vadd.f32 %v3501, %v3721
      %v3828 = vadd.f32 %v3502, %v3724
      %v3829 = vadd.f32 %v3503, %v3729
      %v3830 = vadd.f32 %v3504, %v3732
      %v3831 = vadd.f32 %v3505, %v3737
      %v3832 = vadd.f32 %v3506, %v3740
      %v3833 = vadd.f32 %v3507, %v3745
      %v3834 = vadd.f32 %v3508, %v3748
      %v3835 = vadd.f32 %v3509, %v3753
      %v3836 = vadd.f32 %v3510, %v3756
      %v3837 = vadd.f32 %v3511, %v3761
      %v3838 = vadd.f32 %v3512, %v3764
      %v3839 = vadd.f32 %v3513, %v3769
      %v3840 = vadd.f32 %v3514, %v3772
      %v3841 = vadd.f32 %v3515, %v3777
      %v3842 = vadd.f32 %v3516, %v3780
      %v3843 = vadd.f32 %v3517, %v3785
      %v3844 = vadd.f32 %v3518, %v3788
      %v3845 = vadd.f32 %v3519, %v3793
      %v3846 = vadd.f32 %v3520, %v3796
      %v3847 = vadd.f32 %v3521, %v3801
      %v3848 = vadd.f32 %v3522, %v3804
      %v3849 = vadd.f32 %v3523, %v3809
      %v3850 = vadd.f32 %v3524, %v3812
      %v3851 = vld [vmem:[%s280] sm:$0x1]
      %v3853 = vlaneseq
      %v3854 = vshrl.u32 %v3853, 7
      %v3855 = vsub.s32 0, %v3854
      %v3856 = vrot.slane %v3851, %v3855
      %v3858 = vmul.f32 %v3815, %v3856
      %v3859 = vmul.f32 %v3816, %v3856
      %v3860 = vmul.f32 %v3817, %v3856
      %v3861 = vmul.f32 %v3818, %v3856
      %v3862 = vmul.f32 %v3819, %v3856
      %v3863 = vmul.f32 %v3820, %v3856
      %v3864 = vmul.f32 %v3821, %v3856
      %v3865 = vmul.f32 %v3822, %v3856
      %v3866 = vmul.f32 %v3823, %v3856
      %v3867 = vmul.f32 %v3824, %v3856
      %v3868 = vmul.f32 %v3825, %v3856
      %v3869 = vmul.f32 %v3826, %v3856
      %v3870 = vmul.f32 %v3827, %v3856
      %v3871 = vmul.f32 %v3828, %v3856
      %v3872 = vmul.f32 %v3829, %v3856
      %v3873 = vmul.f32 %v3830, %v3856
      %v3874 = vmul.f32 %v3831, %v3856
      %v3875 = vmul.f32 %v3832, %v3856
      %v3876 = vmul.f32 %v3833, %v3856
      %v3877 = vmul.f32 %v3834, %v3856
      %v3878 = vmul.f32 %v3835, %v3856
      %v3879 = vmul.f32 %v3836, %v3856
      %v3880 = vmul.f32 %v3837, %v3856
      %v3881 = vmul.f32 %v3838, %v3856
      %v3882 = vmul.f32 %v3839, %v3856
      %v3883 = vmul.f32 %v3840, %v3856
      %v3884 = vmul.f32 %v3841, %v3856
      %v3885 = vmul.f32 %v3842, %v3856
      %v3886 = vmul.f32 %v3843, %v3856
      %v3887 = vmul.f32 %v3844, %v3856
      %v3888 = vmul.f32 %v3845, %v3856
      %v3889 = vmul.f32 %v3846, %v3856
      %v3890 = vmul.f32 %v3847, %v3856
      %v3891 = vmul.f32 %v3848, %v3856
      %v3892 = vmul.f32 %v3849, %v3856
      %v3893 = vmul.f32 %v3850, %v3856
      %v3894 = vld [vmem:[%s285] sm:$0xff]
      %v3895 = vld [vmem:[%s285 + $0x8] sm:$0xff]
      %v3896 = vld [vmem:[%s285 + $0x10] sm:$0xff]
      %v3897 = vld [vmem:[%s285 + $0x18] sm:$0xff]
      %v3898 = vld [vmem:[%s285 + $0x20] sm:$0xff]
      %v3899 = vld [vmem:[%s285 + $0x28] sm:$0xff]
      %v3900 = vld [vmem:[%s285 + $0x30] sm:$0xff]
      %v3901 = vld [vmem:[%s285 + $0x38] sm:$0xff]
      %v3902 = vld [vmem:[%s285 + $0x40] sm:$0xff]
      %v3903 = vld [vmem:[%s285 + $0x48] sm:$0xff]
      %v3904 = vld [vmem:[%s285 + $0x50] sm:$0xff]
      %v3905 = vld [vmem:[%s285 + $0x58] sm:$0xff]
      %v3906 = vld [vmem:[%s285 + $0x60] sm:$0xff]
      %v3907 = vld [vmem:[%s285 + $0x68] sm:$0xff]
      %v3908 = vld [vmem:[%s285 + $0x70] sm:$0xff]
      %v3909 = vld [vmem:[%s285 + $0x78] sm:$0xff]
      %v3910 = vld [vmem:[%s285 + $0x80] sm:$0xff]
      %v3911 = vld [vmem:[%s285 + $0x88] sm:$0xff]
      %v3912 = vld [vmem:[%s285 + $0x90] sm:$0xff]
      %v3913 = vld [vmem:[%s285 + $0x98] sm:$0xff]
      %v3914 = vld [vmem:[%s285 + $0xa0] sm:$0xff]
      %v3915 = vld [vmem:[%s285 + $0xa8] sm:$0xff]
      %v3916 = vld [vmem:[%s285 + $0xb0] sm:$0xff]
      %v3917 = vld [vmem:[%s285 + $0xb8] sm:$0xff]
      %v3918 = vld [vmem:[%s285 + $0xc0] sm:$0xff]
      %v3919 = vld [vmem:[%s285 + $0xc8] sm:$0xff]
      %v3920 = vld [vmem:[%s285 + $0xd0] sm:$0xff]
      %v3921 = vld [vmem:[%s285 + $0xd8] sm:$0xff]
      %v3922 = vld [vmem:[%s285 + $0xe0] sm:$0xff]
      %v3923 = vld [vmem:[%s285 + $0xe8] sm:$0xff]
      %v3924 = vld [vmem:[%s285 + $0xf0] sm:$0xff]
      %v3925 = vld [vmem:[%s285 + $0xf8] sm:$0xff]
      %v3926 = vld [vmem:[%s285 + $0x100] sm:$0xff]
      %v3927 = vld [vmem:[%s285 + $0x108] sm:$0xff]
      %v3928 = vld [vmem:[%s285 + $0x110] sm:$0xff]
      %v3929 = vld [vmem:[%s285 + $0x118] sm:$0xff]
      %3931 = vset.pattern.permute.xlu0 0
      %3932 = vperm.xlu0 %3931, %v3894
      %v3933 = vpop.permute.xlu0 %3932
      %3936 = vset.pattern.permute.xlu0 0
      %3937 = vperm.xlu0 %3936, %v3895
      %v3938 = vpop.permute.xlu0 %3937
      %3941 = vset.pattern.permute.xlu0 0
      %3942 = vperm.xlu0 %3941, %v3896
      %v3943 = vpop.permute.xlu0 %3942
      %3946 = vset.pattern.permute.xlu0 0
      %3947 = vperm.xlu0 %3946, %v3897
      %v3948 = vpop.permute.xlu0 %3947
      %3951 = vset.pattern.permute.xlu0 0
      %3952 = vperm.xlu0 %3951, %v3898
      %v3953 = vpop.permute.xlu0 %3952
      %3956 = vset.pattern.permute.xlu0 0
      %3957 = vperm.xlu0 %3956, %v3899
      %v3958 = vpop.permute.xlu0 %3957
      %3961 = vset.pattern.permute.xlu0 0
      %3962 = vperm.xlu0 %3961, %v3900
      %v3963 = vpop.permute.xlu0 %3962
      %3966 = vset.pattern.permute.xlu0 0
      %3967 = vperm.xlu0 %3966, %v3901
      %v3968 = vpop.permute.xlu0 %3967
      %3971 = vset.pattern.permute.xlu0 0
      %3972 = vperm.xlu0 %3971, %v3902
      %v3973 = vpop.permute.xlu0 %3972
      %3976 = vset.pattern.permute.xlu0 0
      %3977 = vperm.xlu0 %3976, %v3903
      %v3978 = vpop.permute.xlu0 %3977
      %3981 = vset.pattern.permute.xlu0 0
      %3982 = vperm.xlu0 %3981, %v3904
      %v3983 = vpop.permute.xlu0 %3982
      %3986 = vset.pattern.permute.xlu0 0
      %3987 = vperm.xlu0 %3986, %v3905
      %v3988 = vpop.permute.xlu0 %3987
      %3991 = vset.pattern.permute.xlu0 0
      %3992 = vperm.xlu0 %3991, %v3906
      %v3993 = vpop.permute.xlu0 %3992
      %3996 = vset.pattern.permute.xlu0 0
      %3997 = vperm.xlu0 %3996, %v3907
      %v3998 = vpop.permute.xlu0 %3997
      %4001 = vset.pattern.permute.xlu0 0
      %4002 = vperm.xlu0 %4001, %v3908
      %v4003 = vpop.permute.xlu0 %4002
      %4006 = vset.pattern.permute.xlu0 0
      %4007 = vperm.xlu0 %4006, %v3909
      %v4008 = vpop.permute.xlu0 %4007
      %4011 = vset.pattern.permute.xlu0 0
      %4012 = vperm.xlu0 %4011, %v3910
      %v4013 = vpop.permute.xlu0 %4012
      %4016 = vset.pattern.permute.xlu0 0
      %4017 = vperm.xlu0 %4016, %v3911
      %v4018 = vpop.permute.xlu0 %4017
      %4021 = vset.pattern.permute.xlu0 0
      %4022 = vperm.xlu0 %4021, %v3912
      %v4023 = vpop.permute.xlu0 %4022
      %4026 = vset.pattern.permute.xlu0 0
      %4027 = vperm.xlu0 %4026, %v3913
      %v4028 = vpop.permute.xlu0 %4027
      %4031 = vset.pattern.permute.xlu0 0
      %4032 = vperm.xlu0 %4031, %v3914
      %v4033 = vpop.permute.xlu0 %4032
      %4036 = vset.pattern.permute.xlu0 0
      %4037 = vperm.xlu0 %4036, %v3915
      %v4038 = vpop.permute.xlu0 %4037
      %4041 = vset.pattern.permute.xlu0 0
      %4042 = vperm.xlu0 %4041, %v3916
      %v4043 = vpop.permute.xlu0 %4042
      %4046 = vset.pattern.permute.xlu0 0
      %4047 = vperm.xlu0 %4046, %v3917
      %v4048 = vpop.permute.xlu0 %4047
      %4051 = vset.pattern.permute.xlu0 0
      %4052 = vperm.xlu0 %4051, %v3918
      %v4053 = vpop.permute.xlu0 %4052
      %4056 = vset.pattern.permute.xlu0 0
      %4057 = vperm.xlu0 %4056, %v3919
      %v4058 = vpop.permute.xlu0 %4057
      %4061 = vset.pattern.permute.xlu0 0
      %4062 = vperm.xlu0 %4061, %v3920
      %v4063 = vpop.permute.xlu0 %4062
      %4066 = vset.pattern.permute.xlu0 0
      %4067 = vperm.xlu0 %4066, %v3921
      %v4068 = vpop.permute.xlu0 %4067
      %4071 = vset.pattern.permute.xlu0 0
      %4072 = vperm.xlu0 %4071, %v3922
      %v4073 = vpop.permute.xlu0 %4072
      %4076 = vset.pattern.permute.xlu0 0
      %4077 = vperm.xlu0 %4076, %v3923
      %v4078 = vpop.permute.xlu0 %4077
      %4081 = vset.pattern.permute.xlu0 0
      %4082 = vperm.xlu0 %4081, %v3924
      %v4083 = vpop.permute.xlu0 %4082
      %4086 = vset.pattern.permute.xlu0 0
      %4087 = vperm.xlu0 %4086, %v3925
      %v4088 = vpop.permute.xlu0 %4087
      %4091 = vset.pattern.permute.xlu0 0
      %4092 = vperm.xlu0 %4091, %v3926
      %v4093 = vpop.permute.xlu0 %4092
      %4096 = vset.pattern.permute.xlu0 0
      %4097 = vperm.xlu0 %4096, %v3927
      %v4098 = vpop.permute.xlu0 %4097
      %4101 = vset.pattern.permute.xlu0 0
      %4102 = vperm.xlu0 %4101, %v3928
      %v4103 = vpop.permute.xlu0 %4102
      %4106 = vset.pattern.permute.xlu0 0
      %4107 = vperm.xlu0 %4106, %v3929
      %v4108 = vpop.permute.xlu0 %4107
      %v4110 = vadd.f32 %v3858, %v3933
      %v4111 = vadd.f32 %v3859, %v3938
      %v4112 = vadd.f32 %v3860, %v3943
      %v4113 = vadd.f32 %v3861, %v3948
      %v4114 = vadd.f32 %v3862, %v3953
      %v4115 = vadd.f32 %v3863, %v3958
      %v4116 = vadd.f32 %v3864, %v3963
      %v4117 = vadd.f32 %v3865, %v3968
      %v4118 = vadd.f32 %v3866, %v3973
      %v4119 = vadd.f32 %v3867, %v3978
      %v4120 = vadd.f32 %v3868, %v3983
      %v4121 = vadd.f32 %v3869, %v3988
      %v4122 = vadd.f32 %v3870, %v3993
      %v4123 = vadd.f32 %v3871, %v3998
      %v4124 = vadd.f32 %v3872, %v4003
      %v4125 = vadd.f32 %v3873, %v4008
      %v4126 = vadd.f32 %v3874, %v4013
      %v4127 = vadd.f32 %v3875, %v4018
      %v4128 = vadd.f32 %v3876, %v4023
      %v4129 = vadd.f32 %v3877, %v4028
      %v4130 = vadd.f32 %v3878, %v4033
      %v4131 = vadd.f32 %v3879, %v4038
      %v4132 = vadd.f32 %v3880, %v4043
      %v4133 = vadd.f32 %v3881, %v4048
      %v4134 = vadd.f32 %v3882, %v4053
      %v4135 = vadd.f32 %v3883, %v4058
      %v4136 = vadd.f32 %v3884, %v4063
      %v4137 = vadd.f32 %v3885, %v4068
      %v4138 = vadd.f32 %v3886, %v4073
      %v4139 = vadd.f32 %v3887, %v4078
      %v4140 = vadd.f32 %v3888, %v4083
      %v4141 = vadd.f32 %v3889, %v4088
      %v4142 = vadd.f32 %v3890, %v4093
      %v4143 = vadd.f32 %v3891, %v4098
      %v4144 = vadd.f32 %v3892, %v4103
      %v4145 = vadd.f32 %v3893, %v4108
      %v4146 = vld [vmem:[%s4] sm:$0x1]
      %v4148 = vlaneseq
      %v4149 = vshrl.u32 %v4148, 7
      %v4150 = vsub.s32 0, %v4149
      %v4151 = vrot.slane %v4146, %v4150
      %v4153 = vadd.f32 %v4110, %v4151
      %v4154 = vadd.f32 %v4111, %v4151
      %v4155 = vadd.f32 %v4112, %v4151
      %v4156 = vadd.f32 %v4113, %v4151
      %v4157 = vadd.f32 %v4114, %v4151
      %v4158 = vadd.f32 %v4115, %v4151
      %v4159 = vadd.f32 %v4116, %v4151
      %v4160 = vadd.f32 %v4117, %v4151
      %v4161 = vadd.f32 %v4118, %v4151
      %v4162 = vadd.f32 %v4119, %v4151
      %v4163 = vadd.f32 %v4120, %v4151
      %v4164 = vadd.f32 %v4121, %v4151
      %v4165 = vadd.f32 %v4122, %v4151
      %v4166 = vadd.f32 %v4123, %v4151
      %v4167 = vadd.f32 %v4124, %v4151
      %v4168 = vadd.f32 %v4125, %v4151
      %v4169 = vadd.f32 %v4126, %v4151
      %v4170 = vadd.f32 %v4127, %v4151
      %v4171 = vadd.f32 %v4128, %v4151
      %v4172 = vadd.f32 %v4129, %v4151
      %v4173 = vadd.f32 %v4130, %v4151
      %v4174 = vadd.f32 %v4131, %v4151
      %v4175 = vadd.f32 %v4132, %v4151
      %v4176 = vadd.f32 %v4133, %v4151
      %v4177 = vadd.f32 %v4134, %v4151
      %v4178 = vadd.f32 %v4135, %v4151
      %v4179 = vadd.f32 %v4136, %v4151
      %v4180 = vadd.f32 %v4137, %v4151
      %v4181 = vadd.f32 %v4138, %v4151
      %v4182 = vadd.f32 %v4139, %v4151
      %v4183 = vadd.f32 %v4140, %v4151
      %v4184 = vadd.f32 %v4141, %v4151
      %v4185 = vadd.f32 %v4142, %v4151
      %v4186 = vadd.f32 %v4143, %v4151
      %v4187 = vadd.f32 %v4144, %v4151
      %v4188 = vadd.f32 %v4145, %v4151
      %v4189 = vmul.f32 %v4153, 1.4142135
      %v4190 = vmul.f32 %v4154, 1.4142135
      %v4191 = vmul.f32 %v4155, 1.4142135
      %v4192 = vmul.f32 %v4156, 1.4142135
      %v4193 = vmul.f32 %v4157, 1.4142135
      %v4194 = vmul.f32 %v4158, 1.4142135
      %v4195 = vmul.f32 %v4159, 1.4142135
      %v4196 = vmul.f32 %v4160, 1.4142135
      %v4197 = vmul.f32 %v4161, 1.4142135
      %v4198 = vmul.f32 %v4162, 1.4142135
      %v4199 = vmul.f32 %v4163, 1.4142135
      %v4200 = vmul.f32 %v4164, 1.4142135
      %v4201 = vmul.f32 %v4165, 1.4142135
      %v4202 = vmul.f32 %v4166, 1.4142135
      %v4203 = vmul.f32 %v4167, 1.4142135
      %v4204 = vmul.f32 %v4168, 1.4142135
      %v4205 = vmul.f32 %v4169, 1.4142135
      %v4206 = vmul.f32 %v4170, 1.4142135
      %v4207 = vmul.f32 %v4171, 1.4142135
      %v4208 = vmul.f32 %v4172, 1.4142135
      %v4209 = vmul.f32 %v4173, 1.4142135
      %v4210 = vmul.f32 %v4174, 1.4142135
      %v4211 = vmul.f32 %v4175, 1.4142135
      %v4212 = vmul.f32 %v4176, 1.4142135
      %v4213 = vmul.f32 %v4177, 1.4142135
      %v4214 = vmul.f32 %v4178, 1.4142135
      %v4215 = vmul.f32 %v4179, 1.4142135
      %v4216 = vmul.f32 %v4180, 1.4142135
      %v4217 = vmul.f32 %v4181, 1.4142135
      %v4218 = vmul.f32 %v4182, 1.4142135
      %v4219 = vmul.f32 %v4183, 1.4142135
      %v4220 = vmul.f32 %v4184, 1.4142135
      %v4221 = vmul.f32 %v4185, 1.4142135
      %v4222 = vmul.f32 %v4186, 1.4142135
      %v4223 = vmul.f32 %v4187, 1.4142135
      %v4224 = vmul.f32 %v4188, 1.4142135
      %vm4225 = vcmp.ge.f32.partialorder %v4189, 0.0
      %vm4226 = vcmp.ge.f32.partialorder %v4190, 0.0
      %vm4227 = vcmp.ge.f32.partialorder %v4191, 0.0
      %vm4228 = vcmp.ge.f32.partialorder %v4192, 0.0
      %vm4229 = vcmp.ge.f32.partialorder %v4193, 0.0
      %vm4230 = vcmp.ge.f32.partialorder %v4194, 0.0
      %vm4231 = vcmp.ge.f32.partialorder %v4195, 0.0
      %vm4232 = vcmp.ge.f32.partialorder %v4196, 0.0
      %vm4233 = vcmp.ge.f32.partialorder %v4197, 0.0
      %vm4234 = vcmp.ge.f32.partialorder %v4198, 0.0
      %vm4235 = vcmp.ge.f32.partialorder %v4199, 0.0
      %vm4236 = vcmp.ge.f32.partialorder %v4200, 0.0
      %vm4237 = vcmp.ge.f32.partialorder %v4201, 0.0
      %vm4238 = vcmp.ge.f32.partialorder %v4202, 0.0
      %vm4239 = vcmp.ge.f32.partialorder %v4203, 0.0
      %vm4240 = vcmp.ge.f32.partialorder %v4204, 0.0
      %vm4241 = vcmp.ge.f32.partialorder %v4205, 0.0
      %vm4242 = vcmp.ge.f32.partialorder %v4206, 0.0
      %vm4243 = vcmp.ge.f32.partialorder %v4207, 0.0
      %vm4244 = vcmp.ge.f32.partialorder %v4208, 0.0
      %vm4245 = vcmp.ge.f32.partialorder %v4209, 0.0
      %vm4246 = vcmp.ge.f32.partialorder %v4210, 0.0
      %vm4247 = vcmp.ge.f32.partialorder %v4211, 0.0
      %vm4248 = vcmp.ge.f32.partialorder %v4212, 0.0
      %vm4249 = vcmp.ge.f32.partialorder %v4213, 0.0
      %vm4250 = vcmp.ge.f32.partialorder %v4214, 0.0
      %vm4251 = vcmp.ge.f32.partialorder %v4215, 0.0
      %vm4252 = vcmp.ge.f32.partialorder %v4216, 0.0
      %vm4253 = vcmp.ge.f32.partialorder %v4217, 0.0
      %vm4254 = vcmp.ge.f32.partialorder %v4218, 0.0
      %vm4255 = vcmp.ge.f32.partialorder %v4219, 0.0
      %vm4256 = vcmp.ge.f32.partialorder %v4220, 0.0
      %vm4257 = vcmp.ge.f32.partialorder %v4221, 0.0
      %vm4258 = vcmp.ge.f32.partialorder %v4222, 0.0
      %vm4259 = vcmp.ge.f32.partialorder %v4223, 0.0
      %vm4260 = vcmp.ge.f32.partialorder %v4224, 0.0
      %v4261 = vmul.f32 %v4189, 0.2
      %v4262 = vmul.f32 %v4190, 0.2
      %v4263 = vmul.f32 %v4191, 0.2
      %v4264 = vmul.f32 %v4192, 0.2
      %v4265 = vmul.f32 %v4193, 0.2
      %v4266 = vmul.f32 %v4194, 0.2
      %v4267 = vmul.f32 %v4195, 0.2
      %v4268 = vmul.f32 %v4196, 0.2
      %v4269 = vmul.f32 %v4197, 0.2
      %v4270 = vmul.f32 %v4198, 0.2
      %v4271 = vmul.f32 %v4199, 0.2
      %v4272 = vmul.f32 %v4200, 0.2
      %v4273 = vmul.f32 %v4201, 0.2
      %v4274 = vmul.f32 %v4202, 0.2
      %v4275 = vmul.f32 %v4203, 0.2
      %v4276 = vmul.f32 %v4204, 0.2
      %v4277 = vmul.f32 %v4205, 0.2
      %v4278 = vmul.f32 %v4206, 0.2
      %v4279 = vmul.f32 %v4207, 0.2
      %v4280 = vmul.f32 %v4208, 0.2
      %v4281 = vmul.f32 %v4209, 0.2
      %v4282 = vmul.f32 %v4210, 0.2
      %v4283 = vmul.f32 %v4211, 0.2
      %v4284 = vmul.f32 %v4212, 0.2
      %v4285 = vmul.f32 %v4213, 0.2
      %v4286 = vmul.f32 %v4214, 0.2
      %v4287 = vmul.f32 %v4215, 0.2
      %v4288 = vmul.f32 %v4216, 0.2
      %v4289 = vmul.f32 %v4217, 0.2
      %v4290 = vmul.f32 %v4218, 0.2
      %v4291 = vmul.f32 %v4219, 0.2
      %v4292 = vmul.f32 %v4220, 0.2
      %v4293 = vmul.f32 %v4221, 0.2
      %v4294 = vmul.f32 %v4222, 0.2
      %v4295 = vmul.f32 %v4223, 0.2
      %v4296 = vmul.f32 %v4224, 0.2
      %v4297 = vsel %vm4225, %v4189, %v4261
      %v4298 = vsel %vm4226, %v4190, %v4262
      %v4299 = vsel %vm4227, %v4191, %v4263
      %v4300 = vsel %vm4228, %v4192, %v4264
      %v4301 = vsel %vm4229, %v4193, %v4265
      %v4302 = vsel %vm4230, %v4194, %v4266
      %v4303 = vsel %vm4231, %v4195, %v4267
      %v4304 = vsel %vm4232, %v4196, %v4268
      %v4305 = vsel %vm4233, %v4197, %v4269
      %v4306 = vsel %vm4234, %v4198, %v4270
      %v4307 = vsel %vm4235, %v4199, %v4271
      %v4308 = vsel %vm4236, %v4200, %v4272
      %v4309 = vsel %vm4237, %v4201, %v4273
      %v4310 = vsel %vm4238, %v4202, %v4274
      %v4311 = vsel %vm4239, %v4203, %v4275
      %v4312 = vsel %vm4240, %v4204, %v4276
      %v4313 = vsel %vm4241, %v4205, %v4277
      %v4314 = vsel %vm4242, %v4206, %v4278
      %v4315 = vsel %vm4243, %v4207, %v4279
      %v4316 = vsel %vm4244, %v4208, %v4280
      %v4317 = vsel %vm4245, %v4209, %v4281
      %v4318 = vsel %vm4246, %v4210, %v4282
      %v4319 = vsel %vm4247, %v4211, %v4283
      %v4320 = vsel %vm4248, %v4212, %v4284
      %v4321 = vsel %vm4249, %v4213, %v4285
      %v4322 = vsel %vm4250, %v4214, %v4286
      %v4323 = vsel %vm4251, %v4215, %v4287
      %v4324 = vsel %vm4252, %v4216, %v4288
      %v4325 = vsel %vm4253, %v4217, %v4289
      %v4326 = vsel %vm4254, %v4218, %v4290
      %v4327 = vsel %vm4255, %v4219, %v4291
      %v4328 = vsel %vm4256, %v4220, %v4292
      %v4329 = vsel %vm4257, %v4221, %v4293
      %v4330 = vsel %vm4258, %v4222, %v4294
      %v4331 = vsel %vm4259, %v4223, %v4295
      %v4332 = vsel %vm4260, %v4224, %v4296
      %4333 = vst.msk [vmem:[%s294] sm:$0xff] %vm596, %v4297
      %4334 = vst.msk [vmem:[%s294 + $0x8] sm:$0xff] %vm596, %v4298
      %4335 = vst.msk [vmem:[%s294 + $0x10] sm:$0xff] %vm596, %v4299
      %4336 = vst.msk [vmem:[%s294 + $0x18] sm:$0xff] %vm596, %v4300
      %4337 = vst.msk [vmem:[%s294 + $0x20] sm:$0xff] %vm596, %v4301
      %4338 = vst.msk [vmem:[%s294 + $0x28] sm:$0xff] %vm596, %v4302
      %4339 = vst.msk [vmem:[%s294 + $0x30] sm:$0xff] %vm596, %v4303
      %4340 = vst.msk [vmem:[%s294 + $0x38] sm:$0xff] %vm596, %v4304
      %4341 = vst.msk [vmem:[%s294 + $0x40] sm:$0xff] %vm596, %v4305
      %4342 = vst.msk [vmem:[%s294 + $0x48] sm:$0xff] %vm596, %v4306
      %4343 = vst.msk [vmem:[%s294 + $0x50] sm:$0xff] %vm596, %v4307
      %4344 = vst.msk [vmem:[%s294 + $0x58] sm:$0xff] %vm596, %v4308
      %4345 = vst.msk [vmem:[%s294 + $0x60] sm:$0xff] %vm596, %v4309
      %4346 = vst.msk [vmem:[%s294 + $0x68] sm:$0xff] %vm596, %v4310
      %4347 = vst.msk [vmem:[%s294 + $0x70] sm:$0xff] %vm596, %v4311
      %4348 = vst.msk [vmem:[%s294 + $0x78] sm:$0xff] %vm596, %v4312
      %4349 = vst.msk [vmem:[%s294 + $0x80] sm:$0xff] %vm596, %v4313
      %4350 = vst.msk [vmem:[%s294 + $0x88] sm:$0xff] %vm596, %v4314
      %4351 = vst.msk [vmem:[%s294 + $0x90] sm:$0xff] %vm596, %v4315
      %4352 = vst.msk [vmem:[%s294 + $0x98] sm:$0xff] %vm596, %v4316
      %4353 = vst.msk [vmem:[%s294 + $0xa0] sm:$0xff] %vm596, %v4317
      %4354 = vst.msk [vmem:[%s294 + $0xa8] sm:$0xff] %vm596, %v4318
      %4355 = vst.msk [vmem:[%s294 + $0xb0] sm:$0xff] %vm596, %v4319
      %4356 = vst.msk [vmem:[%s294 + $0xb8] sm:$0xff] %vm596, %v4320
      %4357 = vst.msk [vmem:[%s294 + $0xc0] sm:$0xff] %vm596, %v4321
      %4358 = vst.msk [vmem:[%s294 + $0xc8] sm:$0xff] %vm596, %v4322
      %4359 = vst.msk [vmem:[%s294 + $0xd0] sm:$0xff] %vm596, %v4323
      %4360 = vst.msk [vmem:[%s294 + $0xd8] sm:$0xff] %vm596, %v4324
      %4361 = vst.msk [vmem:[%s294 + $0xe0] sm:$0xff] %vm596, %v4325
      %4362 = vst.msk [vmem:[%s294 + $0xe8] sm:$0xff] %vm596, %v4326
      %4363 = vst.msk [vmem:[%s294 + $0xf0] sm:$0xff] %vm596, %v4327
      %4364 = vst.msk [vmem:[%s294 + $0xf8] sm:$0xff] %vm596, %v4328
      %4365 = vst.msk [vmem:[%s294 + $0x100] sm:$0xff] %vm596, %v4329
      %4366 = vst.msk [vmem:[%s294 + $0x108] sm:$0xff] %vm596, %v4330
      %4367 = vst.msk [vmem:[%s294 + $0x110] sm:$0xff] %vm596, %v4331
      %4368 = vst.msk [vmem:[%s294 + $0x118] sm:$0xff] %vm596, %v4332
      %p4369 = scmp.lt.s32.totalorder %s20, 1
      %s4370 = scalar_select %p4369, %s20, 1
      %p4371 = scmp.lt.s32.totalorder %s21, 0
      %s4372 = scalar_select %p4371, %s21, 0
      %s4373 = smul.addr %s4372, 36
      %s4374 = smul.addr %s4370, 36
      %s4375 = sadd.s32 %s4373, %s4374
      %s4376 = smul.addr %s4375, 8
      %s4377 = scalar_lea.vmem %s5, %s4376
      // Predicated region
      $region41: #{generator_synthesis_block.7} parent=39 // pred_check
        %p4378 = pneg %p170
      $region42: #{generator_synthesis_block.7} parent=39 // pred_check_branch
        %4380 = sbr.rel (%p4378) target = $region44
      $region43: #{generator_synthesis_block.7} parent=39 // pred_region
        _
      $region44: #{generator_synthesis_block.7} parent=39 // pred_fallthru
        _
    $region40: #{generator_synthesis_block.7} parent=5 // pred_fallthru
      _
    %p4381 = scmp.le.s32.totalorder 2, %s11
    // Predicated region
    $region45: #{generator_synthesis_block.7} parent=5 // pred_check
      %p4382 = pneg %p4381
    $region46: #{generator_synthesis_block.7} parent=5 // pred_check_branch
      %4384 = sbr.rel (%p4382) target = $region48
    $region47: #{generator_synthesis_block.7} parent=5 // pred_region
      %s4385 = ssub.s32 %s11, 2
      // Predicated region
      $region49: #{generator_synthesis_block.7} parent=47 // pred_check
        %p4386 = pneg %p176
      $region50: #{generator_synthesis_block.7} parent=47 // pred_check_branch
        %4388 = sbr.rel (%p4386) target = $region52
      $region51: #{generator_synthesis_block.7} parent=47 // pred_region
        %p4389 = scmp.lt.s32.totalorder %s22, 1
        %s4390 = scalar_select %p4389, %s22, 1
        %p4391 = scmp.lt.s32.totalorder %s23, 0
        %s4392 = scalar_select %p4391, %s23, 0
        %s4393 = smul.addr %s4392, 36
        %s4394 = smul.addr %s4390, 36
        %s4395 = sadd.s32 %s4393, %s4394
        %s4396 = smul.addr %s4395, 8
        %s4397 = scalar_lea.vmem %s5, %s4396
      $region52: #{generator_synthesis_block.7} parent=47 // pred_fallthru
        _
    $region48: #{generator_synthesis_block.7} parent=5 // pred_fallthru
      _
  $region6: #{generator_synthesis_block.7} parent=0 // loop_footer
    %s15 = sadd.s32 1, %s11
  $region7: #{generator_synthesis_block.7} parent=0 // loop_footer_branch
    %10 = sbr.rel target = $region3
  $region8: #{generator_synthesis_block.7} parent=0 // loop_exit
    _

</llo_original>
